<compile_context>
chip_gen: v6e
topology: v6e:2x2x1
jax: 0.10.0
libtpu: 0.0.40
codegen_flags: <defaults>
</compile_context>

<pallas_src>
import jax
import jax.numpy as jnp
from jax.experimental import pallas as pl
from jax.experimental.pallas import tpu as pltpu

LATENT = 4
IMG = 784           # 1 * 28 * 28
IMG_PAD = 896       # 7 * 128 -> lane-dense big layers
LANES = 128         # lane width for the partial-loss outputs


# ----------------------------------------------------------------------------
# Pallas kernel: one batch tile of the full VAE forward + partial losses.
# ----------------------------------------------------------------------------
def vae_kernel(
    nrows_ref,                            # SMEM scalar prefetch: real batch size
    x_ref, eps_ref,                       # (TM, 896) bf16, (TM, 4) f32
    w1, b1, w2, b2, w3, b3, w4, b4,       # encoder (w4 = merged mu/logvar head)
    w5, b5, w6, b6, w7, b7, w8, b8,       # decoder
    recon_ref, kl_ref,                    # per-tile partial sums (1, LANES)
):
    tm = x_ref.shape[0]
    x = x_ref[...]                        # (TM, 896) bf16, zero-padded cols/rows

    # in-kernel row mask: 1 for real rows, 0 for padded rows of the last tile
    row = pl.program_id(0) * tm + jax.lax.broadcasted_iota(jnp.int32, (tm, 1), 0)
    mask = (row < nrows_ref[0]).astype(jnp.float32)

    def dense(h, w_ref, b_ref, relu):
        # bf16 x bf16 MXU matmul, f32 accumulation; bias/activation in f32.
        y = jnp.dot(h.astype(jnp.bfloat16), w_ref[...],
                    preferred_element_type=jnp.float32) + b_ref[...]
        return jnp.maximum(y, 0.0) if relu else y

    # ---- encoder ----
    h = dense(x, w1, b1, True)            # (TM, 512)
    h = dense(h, w2, b2, True)            # (TM, 128)
    h = dense(h, w3, b3, True)            # (TM, 32)
    y4 = dense(h, w4, b4, False)          # (TM, 8)  merged head
    # mask BEFORE exp(): padded rows get mu = logvar = 0 -> exp(0)=1, KL term 0
    mu = y4[:, :LATENT] * mask            # (TM, 4)
    logvar = y4[:, LATENT:] * mask        # (TM, 4)

    # ---- reparameterization (noise supplied from host, deterministic) ----
    z = mu + eps_ref[...] * jnp.exp(0.5 * logvar)

    # ---- decoder ----
    d = dense(z, w5, b5, True)            # (TM, 32)
    d = dense(d, w6, b6, True)            # (TM, 128)
    d = dense(d, w7, b7, True)            # (TM, 512)
    x_recon = dense(d, w8, b8, False)     # (TM, 896); padded cols are exactly 0

    # ---- per-tile partial losses (padded rows masked before squaring) ----
    diff = (x_recon - x.astype(jnp.float32)) * mask
    sq = jnp.sum(diff * diff)
    kl = jnp.sum(1.0 + logvar - mu * mu - jnp.exp(logvar))   # 0 for padded rows

    recon_ref[...] = jnp.broadcast_to(sq, (1, LANES))
    kl_ref[...] = jnp.broadcast_to(kl, (1, LANES))


# ----------------------------------------------------------------------------
# Parameter init (PyTorch-Linear-style uniform) and packing for the kernel:
# weights stored (in, out), padded on the image dim, cast to bf16; f32 biases.
# ----------------------------------------------------------------------------
def init_params(key):
    dims = [(IMG, 512), (512, 128), (128, 32), (32, 2 * LATENT),
            (LATENT, 32), (32, 128), (128, 512), (512, IMG)]
    params = []
    for i, (fan_in, fan_out) in enumerate(dims):
        kw, kb = jax.random.split(jax.random.fold_in(key, i))
        bound = 1.0 / (fan_in ** 0.5)
        w = jax.random.uniform(kw, (fan_in, fan_out), jnp.float32, -bound, bound)
        b = jax.random.uniform(kb, (1, fan_out), jnp.float32, -bound, bound)
        params.append((w, b))
    return params


def pack_params(params):
    (w1, b1), (w2, b2), (w3, b3), (w4, b4) = params[:4]
    (w5, b5), (w6, b6), (w7, b7), (w8, b8) = params[4:]
    # pad image dim 784 -> 896 with zeros (transparent to the math)
    w1 = jnp.pad(w1, ((0, IMG_PAD - IMG), (0, 0)))
    w8 = jnp.pad(w8, ((0, 0), (0, IMG_PAD - IMG)))
    b8 = jnp.pad(b8, ((0, 0), (0, IMG_PAD - IMG)))
    flat = []
    for w, b in [(w1, b1), (w2, b2), (w3, b3), (w4, b4),
                 (w5, b5), (w6, b6), (w7, b7), (w8, b8)]:
        flat += [w.astype(jnp.bfloat16), b.astype(jnp.float32)]
    return tuple(flat)


# ----------------------------------------------------------------------------
# Wrapper
# ----------------------------------------------------------------------------
def _pick_tm(batch):
    # biggest tile that still leaves >=4 (else >=2) grid steps so v7x's two
    # TensorCores both get work and the pipeline has something to overlap.
    for min_tiles in (4, 2):
        for tm in (512, 256, 128):
            if pl.cdiv(batch, tm) >= min_tiles:
                return tm
    return 128


@jax.jit
def vae_forward(x, eps, flat_params):
    B = x.shape[0]
    TM = _pick_tm(B)
    nt = pl.cdiv(B, TM)
    b_pad = nt * TM

    # single fused pad of the bf16 input (rows for batch, cols for lane density)
    x_pad = jnp.pad(x.reshape(B, -1).astype(jnp.bfloat16),
                    ((0, b_pad - B), (0, IMG_PAD - IMG)))
    eps_pad = jnp.pad(eps.astype(jnp.float32), ((0, b_pad - B), (0, 0)))
    nrows = jnp.array([B], jnp.int32)           # scalar-prefetched batch size

    data_specs = [
        pl.BlockSpec((TM, IMG_PAD), lambda i, n: (i, 0)),
        pl.BlockSpec((TM, LATENT), lambda i, n: (i, 0)),
    ]
    # weights/biases: full-array blocks, constant index -> stay VMEM-resident
    param_specs = [pl.BlockSpec(p.shape, lambda i, n: (0, 0)) for p in flat_params]

    out_shape = (
        jax.ShapeDtypeStruct((1, nt * LANES), jnp.float32),   # recon partials
        jax.ShapeDtypeStruct((1, nt * LANES), jnp.float32),   # kl partials
    )
    out_specs = (
        pl.BlockSpec((1, LANES), lambda i, n: (0, i)),
        pl.BlockSpec((1, LANES), lambda i, n: (0, i)),
    )

    recon_parts, kl_parts = pl.pallas_call(
        vae_kernel,
        out_shape=out_shape,
        grid_spec=pltpu.PrefetchScalarGridSpec(
            num_scalar_prefetch=1,
            grid=(nt,),
            in_specs=data_specs + param_specs,
            out_specs=out_specs,
        ),
        compiler_params=pltpu.CompilerParams(
            dimension_semantics=("parallel",),
            vmem_limit_bytes=32 << 20,
        ),
    )(nrows, x_pad, eps_pad, *flat_params)

    # finalize: each tile's partial sum is broadcast across its 128-lane block
    recon = jnp.sum(recon_parts[0, ::LANES]) / B
    kl = -0.5 * jnp.sum(kl_parts[0, ::LANES]) / B
    return recon + kl, recon, kl


# ----------------------------------------------------------------------------
# Pure-JAX reference (same math & precision choices) for a sanity check.
# ----------------------------------------------------------------------------
def vae_reference(x, eps, flat_params):
    (w1, b1, w2, b2, w3, b3, w4, b4,
     w5, b5, w6, b6, w7, b7, w8, b8) = flat_params
    B = x.shape[0]
    xf = jnp.pad(x.reshape(B, -1).astype(jnp.bfloat16),
                 ((0, 0), (0, IMG_PAD - IMG)))

    def dense(h, w, b, relu):
        y = jnp.dot(h.astype(jnp.bfloat16), w,
                    preferred_element_type=jnp.float32) + b
        return jax.nn.relu(y) if relu else y

    h = dense(xf, w1, b1, True)
    h = dense(h, w2, b2, True)
    h = dense(h, w3, b3, True)
    y4 = dense(h, w4, b4, False)
    mu, logvar = y4[:, :LATENT], y4[:, LATENT:]
    z = mu + eps.astype(jnp.float32) * jnp.exp(0.5 * logvar)
    d = dense(z, w5, b5, True)
    d = dense(d, w6, b6, True)
    d = dense(d, w7, b7, True)
    xr = dense(d, w8, b8, False)
    recon = jnp.sum((xr - xf.astype(jnp.float32)) ** 2) / B
    kl = -0.5 * jnp.mean(jnp.sum(1.0 + logvar - mu ** 2 - jnp.exp(logvar), axis=1))
    return recon + kl, recon, kl


if __name__ == "__main__":
    key = jax.random.PRNGKey(0)
    k_param, k_x, k_eps = jax.random.split(key, 3)

    # B=200 exercises multi-tile grid (2 tiles of 128) + padded-row masking.
    B = 200
    x = jax.random.uniform(k_x, (B, 1, 28, 28), jnp.float32)   # NCHW images
    eps = jax.random.normal(k_eps, (B, LATENT), jnp.float32)   # reparam noise
    # TODO(synk): torch.randn_like noise is supplied externally as `eps` so the
    # kernel stays deterministic; in-kernel pltpu PRNG could replace it.

    flat_params = pack_params(init_params(k_param))

    total, recon, kl = vae_forward(x, eps, flat_params)
    jax.block_until_ready((total, recon, kl))

    ref_total, ref_recon, ref_kl = vae_reference(x, eps, flat_params)
    assert jnp.allclose(recon, ref_recon, rtol=2e-2, atol=1e-3), (recon, ref_recon)
    assert jnp.allclose(kl, ref_kl, rtol=2e-2, atol=1e-3), (kl, ref_kl)
    assert jnp.allclose(total, ref_total, rtol=2e-2, atol=1e-3), (total, ref_total)

    print("KERNEL_OK")
</pallas_src>

<mosaic_0001>
module attributes {stable_mosaic.version = 11 : i64} {
  func.func @vae_kernel(%arg0: i32, %arg1: memref<1xi32, #tpu.memory_space<smem>>, %arg2: memref<128x896xbf16, #tpu.memory_space<vmem>>, %arg3: memref<128x4xf32, #tpu.memory_space<vmem>>, %arg4: memref<896x512xbf16, #tpu.memory_space<vmem>>, %arg5: memref<1x512xf32, #tpu.memory_space<vmem>>, %arg6: memref<512x128xbf16, #tpu.memory_space<vmem>>, %arg7: memref<1x128xf32, #tpu.memory_space<vmem>>, %arg8: memref<128x32xbf16, #tpu.memory_space<vmem>>, %arg9: memref<1x32xf32, #tpu.memory_space<vmem>>, %arg10: memref<32x8xbf16, #tpu.memory_space<vmem>>, %arg11: memref<1x8xf32, #tpu.memory_space<vmem>>, %arg12: memref<4x32xbf16, #tpu.memory_space<vmem>>, %arg13: memref<1x32xf32, #tpu.memory_space<vmem>>, %arg14: memref<32x128xbf16, #tpu.memory_space<vmem>>, %arg15: memref<1x128xf32, #tpu.memory_space<vmem>>, %arg16: memref<128x512xbf16, #tpu.memory_space<vmem>>, %arg17: memref<1x512xf32, #tpu.memory_space<vmem>>, %arg18: memref<512x896xbf16, #tpu.memory_space<vmem>>, %arg19: memref<1x896xf32, #tpu.memory_space<vmem>>, %arg20: memref<1x128xf32, #tpu.memory_space<vmem>>, %arg21: memref<1x128xf32, #tpu.memory_space<vmem>>) attributes {dimension_semantics = [#tpu.dimension_semantics<parallel>], iteration_bounds = array<i64: 2>, scalar_prefetch = 1 : i64, scratch_operands = 0 : i64, tpu.core_type = #tpu.core_type<tc>, window_params = [{transform_indices = @transform_0, window_bounds = array<i64: 128, 896>}, {transform_indices = @transform_1, window_bounds = array<i64: 128, 4>}, {pipeline_mode = #tpu.pipeline_mode<synchronous>, transform_indices = @transform_2, window_bounds = array<i64: 896, 512>}, {pipeline_mode = #tpu.pipeline_mode<synchronous>, transform_indices = @transform_3, window_bounds = array<i64: 1, 512>}, {pipeline_mode = #tpu.pipeline_mode<synchronous>, transform_indices = @transform_4, window_bounds = array<i64: 512, 128>}, {pipeline_mode = #tpu.pipeline_mode<synchronous>, transform_indices = @transform_5, window_bounds = array<i64: 1, 128>}, {pipeline_mode = #tpu.pipeline_mode<synchronous>, transform_indices = @transform_6, window_bounds = array<i64: 128, 32>}, {pipeline_mode = #tpu.pipeline_mode<synchronous>, transform_indices = @transform_7, window_bounds = array<i64: 1, 32>}, {pipeline_mode = #tpu.pipeline_mode<synchronous>, transform_indices = @transform_8, window_bounds = array<i64: 32, 8>}, {pipeline_mode = #tpu.pipeline_mode<synchronous>, transform_indices = @transform_9, window_bounds = array<i64: 1, 8>}, {pipeline_mode = #tpu.pipeline_mode<synchronous>, transform_indices = @transform_10, window_bounds = array<i64: 4, 32>}, {pipeline_mode = #tpu.pipeline_mode<synchronous>, transform_indices = @transform_11, window_bounds = array<i64: 1, 32>}, {pipeline_mode = #tpu.pipeline_mode<synchronous>, transform_indices = @transform_12, window_bounds = array<i64: 32, 128>}, {pipeline_mode = #tpu.pipeline_mode<synchronous>, transform_indices = @transform_13, window_bounds = array<i64: 1, 128>}, {pipeline_mode = #tpu.pipeline_mode<synchronous>, transform_indices = @transform_14, window_bounds = array<i64: 128, 512>}, {pipeline_mode = #tpu.pipeline_mode<synchronous>, transform_indices = @transform_15, window_bounds = array<i64: 1, 512>}, {pipeline_mode = #tpu.pipeline_mode<synchronous>, transform_indices = @transform_16, window_bounds = array<i64: 512, 896>}, {pipeline_mode = #tpu.pipeline_mode<synchronous>, transform_indices = @transform_17, window_bounds = array<i64: 1, 896>}, {transform_indices = @transform_18, window_bounds = array<i64: 1, 128>}, {transform_indices = @transform_19, window_bounds = array<i64: 1, 128>}]} {
    %c0 = arith.constant 0 : index
    %c0_0 = arith.constant 0 : index
    %0 = vector.load %arg2[%c0, %c0_0] : memref<128x896xbf16, #tpu.memory_space<vmem>>, vector<128x896xbf16>
    %c128_i32 = arith.constant 128 : i32
    %1 = arith.muli %arg0, %c128_i32 : i32
    %2 = tpu.iota {dimensions = array<i32: 0>} : vector<128x1xi32>
    %3 = vector.broadcast %1 : i32 to vector<128x1xi32>
    %4 = arith.addi %3, %2 : vector<128x1xi32>
    %c0_1 = arith.constant 0 : index
    %5 = memref.load %arg1[%c0_1] : memref<1xi32, #tpu.memory_space<smem>>
    %6 = vector.broadcast %5 : i32 to vector<128x1xi32>
    %7 = arith.cmpi slt, %4, %6 : vector<128x1xi32>
    %8 = arith.extui %7 : vector<128x1xi1> to vector<128x1xi32>
    %9 = arith.sitofp %8 : vector<128x1xi32> to vector<128x1xf32>
    %c0_2 = arith.constant 0 : index
    %c0_3 = arith.constant 0 : index
    %10 = vector.load %arg4[%c0_2, %c0_3] : memref<896x512xbf16, #tpu.memory_space<vmem>>, vector<896x512xbf16>
    %cst = arith.constant dense<0.000000e+00> : vector<128x512xf32>
    %11 = tpu.matmul %0, %10, %cst {dimension_numbers = #tpu.dot_dimension_numbers<[1], [0], [0], [1], [0, 0, 1, 1], [], []>} : vector<128x896xbf16>, vector<896x512xbf16>, vector<128x512xf32> -> vector<128x512xf32>
    %c0_4 = arith.constant 0 : index
    %c0_5 = arith.constant 0 : index
    %12 = vector.load %arg5[%c0_4, %c0_5] : memref<1x512xf32, #tpu.memory_space<vmem>>, vector<1x512xf32>
    %13 = vector.broadcast %12 : vector<1x512xf32> to vector<128x512xf32>
    %14 = arith.addf %11, %13 : vector<128x512xf32>
    %cst_6 = arith.constant 0.000000e+00 : f32
    %15 = vector.broadcast %cst_6 : f32 to vector<128x512xf32>
    %16 = arith.maximumf %14, %15 : vector<128x512xf32>
    %17 = arith.truncf %16 : vector<128x512xf32> to vector<128x512xbf16>
    %c0_7 = arith.constant 0 : index
    %c0_8 = arith.constant 0 : index
    %18 = vector.load %arg6[%c0_7, %c0_8] : memref<512x128xbf16, #tpu.memory_space<vmem>>, vector<512x128xbf16>
    %cst_9 = arith.constant dense<0.000000e+00> : vector<128x128xf32>
    %19 = tpu.matmul %17, %18, %cst_9 {dimension_numbers = #tpu.dot_dimension_numbers<[1], [0], [0], [1], [0, 0, 1, 1], [], []>} : vector<128x512xbf16>, vector<512x128xbf16>, vector<128x128xf32> -> vector<128x128xf32>
    %c0_10 = arith.constant 0 : index
    %c0_11 = arith.constant 0 : index
    %20 = vector.load %arg7[%c0_10, %c0_11] : memref<1x128xf32, #tpu.memory_space<vmem>>, vector<1x128xf32>
    %21 = vector.broadcast %20 : vector<1x128xf32> to vector<128x128xf32>
    %22 = arith.addf %19, %21 : vector<128x128xf32>
    %cst_12 = arith.constant 0.000000e+00 : f32
    %23 = vector.broadcast %cst_12 : f32 to vector<128x128xf32>
    %24 = arith.maximumf %22, %23 : vector<128x128xf32>
    %25 = arith.truncf %24 : vector<128x128xf32> to vector<128x128xbf16>
    %c0_13 = arith.constant 0 : index
    %c0_14 = arith.constant 0 : index
    %26 = vector.load %arg8[%c0_13, %c0_14] : memref<128x32xbf16, #tpu.memory_space<vmem>>, vector<128x32xbf16>
    %cst_15 = arith.constant dense<0.000000e+00> : vector<128x32xf32>
    %27 = tpu.matmul %25, %26, %cst_15 {dimension_numbers = #tpu.dot_dimension_numbers<[1], [0], [0], [1], [0, 0, 1, 1], [], []>} : vector<128x128xbf16>, vector<128x32xbf16>, vector<128x32xf32> -> vector<128x32xf32>
    %c0_16 = arith.constant 0 : index
    %c0_17 = arith.constant 0 : index
    %28 = vector.load %arg9[%c0_16, %c0_17] : memref<1x32xf32, #tpu.memory_space<vmem>>, vector<1x32xf32>
    %29 = vector.broadcast %28 : vector<1x32xf32> to vector<128x32xf32>
    %30 = arith.addf %27, %29 : vector<128x32xf32>
    %cst_18 = arith.constant 0.000000e+00 : f32
    %31 = vector.broadcast %cst_18 : f32 to vector<128x32xf32>
    %32 = arith.maximumf %30, %31 : vector<128x32xf32>
    %33 = arith.truncf %32 : vector<128x32xf32> to vector<128x32xbf16>
    %c0_19 = arith.constant 0 : index
    %c0_20 = arith.constant 0 : index
    %34 = vector.load %arg10[%c0_19, %c0_20] : memref<32x8xbf16, #tpu.memory_space<vmem>>, vector<32x8xbf16>
    %cst_21 = arith.constant dense<0.000000e+00> : vector<128x8xf32>
    %35 = tpu.matmul %33, %34, %cst_21 {dimension_numbers = #tpu.dot_dimension_numbers<[1], [0], [0], [1], [0, 0, 1, 1], [], []>} : vector<128x32xbf16>, vector<32x8xbf16>, vector<128x8xf32> -> vector<128x8xf32>
    %c0_22 = arith.constant 0 : index
    %c0_23 = arith.constant 0 : index
    %36 = vector.load %arg11[%c0_22, %c0_23] : memref<1x8xf32, #tpu.memory_space<vmem>>, vector<1x8xf32>
    %37 = vector.broadcast %36 : vector<1x8xf32> to vector<128x8xf32>
    %38 = arith.addf %35, %37 : vector<128x8xf32>
    %39 = vector.extract_strided_slice %38 {offsets = [0, 0], sizes = [128, 4], strides = [1, 1]} : vector<128x8xf32> to vector<128x4xf32>
    %40 = vector.broadcast %9 : vector<128x1xf32> to vector<128x4xf32>
    %41 = arith.mulf %39, %40 : vector<128x4xf32>
    %42 = vector.extract_strided_slice %38 {offsets = [0, 4], sizes = [128, 4], strides = [1, 1]} : vector<128x8xf32> to vector<128x4xf32>
    %43 = vector.broadcast %9 : vector<128x1xf32> to vector<128x4xf32>
    %44 = arith.mulf %42, %43 : vector<128x4xf32>
    %c0_24 = arith.constant 0 : index
    %c0_25 = arith.constant 0 : index
    %45 = vector.load %arg3[%c0_24, %c0_25] : memref<128x4xf32, #tpu.memory_space<vmem>>, vector<128x4xf32>
    %cst_26 = arith.constant 5.000000e-01 : f32
    %46 = vector.broadcast %cst_26 : f32 to vector<128x4xf32>
    %47 = arith.mulf %46, %44 : vector<128x4xf32>
    %48 = math.exp %47 : vector<128x4xf32>
    %49 = arith.mulf %45, %48 : vector<128x4xf32>
    %50 = arith.addf %41, %49 : vector<128x4xf32>
    %51 = arith.truncf %50 : vector<128x4xf32> to vector<128x4xbf16>
    %c0_27 = arith.constant 0 : index
    %c0_28 = arith.constant 0 : index
    %52 = vector.load %arg12[%c0_27, %c0_28] : memref<4x32xbf16, #tpu.memory_space<vmem>>, vector<4x32xbf16>
    %cst_29 = arith.constant dense<0.000000e+00> : vector<128x32xf32>
    %53 = tpu.matmul %51, %52, %cst_29 {dimension_numbers = #tpu.dot_dimension_numbers<[1], [0], [0], [1], [0, 0, 1, 1], [], []>} : vector<128x4xbf16>, vector<4x32xbf16>, vector<128x32xf32> -> vector<128x32xf32>
    %c0_30 = arith.constant 0 : index
    %c0_31 = arith.constant 0 : index
    %54 = vector.load %arg13[%c0_30, %c0_31] : memref<1x32xf32, #tpu.memory_space<vmem>>, vector<1x32xf32>
    %55 = vector.broadcast %54 : vector<1x32xf32> to vector<128x32xf32>
    %56 = arith.addf %53, %55 : vector<128x32xf32>
    %cst_32 = arith.constant 0.000000e+00 : f32
    %57 = vector.broadcast %cst_32 : f32 to vector<128x32xf32>
    %58 = arith.maximumf %56, %57 : vector<128x32xf32>
    %59 = arith.truncf %58 : vector<128x32xf32> to vector<128x32xbf16>
    %c0_33 = arith.constant 0 : index
    %c0_34 = arith.constant 0 : index
    %60 = vector.load %arg14[%c0_33, %c0_34] : memref<32x128xbf16, #tpu.memory_space<vmem>>, vector<32x128xbf16>
    %cst_35 = arith.constant dense<0.000000e+00> : vector<128x128xf32>
    %61 = tpu.matmul %59, %60, %cst_35 {dimension_numbers = #tpu.dot_dimension_numbers<[1], [0], [0], [1], [0, 0, 1, 1], [], []>} : vector<128x32xbf16>, vector<32x128xbf16>, vector<128x128xf32> -> vector<128x128xf32>
    %c0_36 = arith.constant 0 : index
    %c0_37 = arith.constant 0 : index
    %62 = vector.load %arg15[%c0_36, %c0_37] : memref<1x128xf32, #tpu.memory_space<vmem>>, vector<1x128xf32>
    %63 = vector.broadcast %62 : vector<1x128xf32> to vector<128x128xf32>
    %64 = arith.addf %61, %63 : vector<128x128xf32>
    %cst_38 = arith.constant 0.000000e+00 : f32
    %65 = vector.broadcast %cst_38 : f32 to vector<128x128xf32>
    %66 = arith.maximumf %64, %65 : vector<128x128xf32>
    %67 = arith.truncf %66 : vector<128x128xf32> to vector<128x128xbf16>
    %c0_39 = arith.constant 0 : index
    %c0_40 = arith.constant 0 : index
    %68 = vector.load %arg16[%c0_39, %c0_40] : memref<128x512xbf16, #tpu.memory_space<vmem>>, vector<128x512xbf16>
    %cst_41 = arith.constant dense<0.000000e+00> : vector<128x512xf32>
    %69 = tpu.matmul %67, %68, %cst_41 {dimension_numbers = #tpu.dot_dimension_numbers<[1], [0], [0], [1], [0, 0, 1, 1], [], []>} : vector<128x128xbf16>, vector<128x512xbf16>, vector<128x512xf32> -> vector<128x512xf32>
    %c0_42 = arith.constant 0 : index
    %c0_43 = arith.constant 0 : index
    %70 = vector.load %arg17[%c0_42, %c0_43] : memref<1x512xf32, #tpu.memory_space<vmem>>, vector<1x512xf32>
    %71 = vector.broadcast %70 : vector<1x512xf32> to vector<128x512xf32>
    %72 = arith.addf %69, %71 : vector<128x512xf32>
    %cst_44 = arith.constant 0.000000e+00 : f32
    %73 = vector.broadcast %cst_44 : f32 to vector<128x512xf32>
    %74 = arith.maximumf %72, %73 : vector<128x512xf32>
    %75 = arith.truncf %74 : vector<128x512xf32> to vector<128x512xbf16>
    %c0_45 = arith.constant 0 : index
    %c0_46 = arith.constant 0 : index
    %76 = vector.load %arg18[%c0_45, %c0_46] : memref<512x896xbf16, #tpu.memory_space<vmem>>, vector<512x896xbf16>
    %cst_47 = arith.constant dense<0.000000e+00> : vector<128x896xf32>
    %77 = tpu.matmul %75, %76, %cst_47 {dimension_numbers = #tpu.dot_dimension_numbers<[1], [0], [0], [1], [0, 0, 1, 1], [], []>} : vector<128x512xbf16>, vector<512x896xbf16>, vector<128x896xf32> -> vector<128x896xf32>
    %c0_48 = arith.constant 0 : index
    %c0_49 = arith.constant 0 : index
    %78 = vector.load %arg19[%c0_48, %c0_49] : memref<1x896xf32, #tpu.memory_space<vmem>>, vector<1x896xf32>
    %79 = vector.broadcast %78 : vector<1x896xf32> to vector<128x896xf32>
    %80 = arith.addf %77, %79 : vector<128x896xf32>
    %81 = arith.extf %0 : vector<128x896xbf16> to vector<128x896xf32>
    %82 = arith.subf %80, %81 : vector<128x896xf32>
    %83 = vector.broadcast %9 : vector<128x1xf32> to vector<128x896xf32>
    %84 = arith.mulf %82, %83 : vector<128x896xf32>
    %85 = arith.mulf %84, %84 : vector<128x896xf32>
    %86 = vector.shape_cast %85 : vector<128x896xf32> to vector<1x128x896xf32>
    %cst_50 = arith.constant dense<0.000000e+00> : vector<1xf32>
    %87 = vector.multi_reduction <add>, %86, %cst_50 [1, 2] : vector<1x128x896xf32> to vector<1xf32>
    %88 = vector.shape_cast %87 : vector<1xf32> to vector<1x1x1xf32>
    %89 = vector.extract %88[0, 0, 0] : f32 from vector<1x1x1xf32>
    %cst_51 = arith.constant 1.000000e+00 : f32
    %90 = vector.broadcast %cst_51 : f32 to vector<128x4xf32>
    %91 = arith.addf %90, %44 : vector<128x4xf32>
    %92 = arith.mulf %41, %41 : vector<128x4xf32>
    %93 = arith.subf %91, %92 : vector<128x4xf32>
    %94 = math.exp %44 : vector<128x4xf32>
    %95 = arith.subf %93, %94 : vector<128x4xf32>
    %96 = vector.shape_cast %95 : vector<128x4xf32> to vector<1x128x4xf32>
    %cst_52 = arith.constant dense<0.000000e+00> : vector<1xf32>
    %97 = vector.multi_reduction <add>, %96, %cst_52 [1, 2] : vector<1x128x4xf32> to vector<1xf32>
    %98 = vector.shape_cast %97 : vector<1xf32> to vector<1x1x1xf32>
    %99 = vector.extract %98[0, 0, 0] : f32 from vector<1x1x1xf32>
    %100 = vector.broadcast %89 : f32 to vector<1x128xf32>
    %c0_53 = arith.constant 0 : index
    %c0_54 = arith.constant 0 : index
    %101 = vector.load %arg20[%c0_53, %c0_54] : memref<1x128xf32, #tpu.memory_space<vmem>>, vector<1x128xf32>
    tpu.vector_store %arg20[%c0_53, %c0_54], %100 {strides = array<i32>} : memref<1x128xf32, #tpu.memory_space<vmem>>, vector<1x128xf32>,
    %102 = vector.broadcast %99 : f32 to vector<1x128xf32>
    %c0_55 = arith.constant 0 : index
    %c0_56 = arith.constant 0 : index
    %103 = vector.load %arg21[%c0_55, %c0_56] : memref<1x128xf32, #tpu.memory_space<vmem>>, vector<1x128xf32>
    tpu.vector_store %arg21[%c0_55, %c0_56], %102 {strides = array<i32>} : memref<1x128xf32, #tpu.memory_space<vmem>>, vector<1x128xf32>,
    return
  }
  func.func @transform_0(%arg0: i32, %arg1: memref<1xi32, #tpu.memory_space<smem>>) -> (i32, i32) {
    %c0_i32 = arith.constant 0 : i32
    %c0_i32_0 = arith.constant 0 : i32
    return %arg0, %c0_i32 : i32, i32
  }
  func.func @transform_1(%arg0: i32, %arg1: memref<1xi32, #tpu.memory_space<smem>>) -> (i32, i32) {
    %c0_i32 = arith.constant 0 : i32
    %c0_i32_0 = arith.constant 0 : i32
    return %arg0, %c0_i32 : i32, i32
  }
  func.func @transform_2(%arg0: i32, %arg1: memref<1xi32, #tpu.memory_space<smem>>) -> (i32, i32) {
    %c0_i32 = arith.constant 0 : i32
    %c0_i32_0 = arith.constant 0 : i32
    %c0_i32_1 = arith.constant 0 : i32
    return %c0_i32, %c0_i32_0 : i32, i32
  }
  func.func @transform_3(%arg0: i32, %arg1: memref<1xi32, #tpu.memory_space<smem>>) -> (i32, i32) {
    %c0_i32 = arith.constant 0 : i32
    %c0_i32_0 = arith.constant 0 : i32
    %c0_i32_1 = arith.constant 0 : i32
    return %c0_i32, %c0_i32_0 : i32, i32
  }
  func.func @transform_4(%arg0: i32, %arg1: memref<1xi32, #tpu.memory_space<smem>>) -> (i32, i32) {
    %c0_i32 = arith.constant 0 : i32
    %c0_i32_0 = arith.constant 0 : i32
    %c0_i32_1 = arith.constant 0 : i32
    return %c0_i32, %c0_i32_0 : i32, i32
  }
  func.func @transform_5(%arg0: i32, %arg1: memref<1xi32, #tpu.memory_space<smem>>) -> (i32, i32) {
    %c0_i32 = arith.constant 0 : i32
    %c0_i32_0 = arith.constant 0 : i32
    %c0_i32_1 = arith.constant 0 : i32
    return %c0_i32, %c0_i32_0 : i32, i32
  }
  func.func @transform_6(%arg0: i32, %arg1: memref<1xi32, #tpu.memory_space<smem>>) -> (i32, i32) {
    %c0_i32 = arith.constant 0 : i32
    %c0_i32_0 = arith.constant 0 : i32
    %c0_i32_1 = arith.constant 0 : i32
    return %c0_i32, %c0_i32_0 : i32, i32
  }
  func.func @transform_7(%arg0: i32, %arg1: memref<1xi32, #tpu.memory_space<smem>>) -> (i32, i32) {
    %c0_i32 = arith.constant 0 : i32
    %c0_i32_0 = arith.constant 0 : i32
    %c0_i32_1 = arith.constant 0 : i32
    return %c0_i32, %c0_i32_0 : i32, i32
  }
  func.func @transform_8(%arg0: i32, %arg1: memref<1xi32, #tpu.memory_space<smem>>) -> (i32, i32) {
    %c0_i32 = arith.constant 0 : i32
    %c0_i32_0 = arith.constant 0 : i32
    %c0_i32_1 = arith.constant 0 : i32
    return %c0_i32, %c0_i32_0 : i32, i32
  }
  func.func @transform_9(%arg0: i32, %arg1: memref<1xi32, #tpu.memory_space<smem>>) -> (i32, i32) {
    %c0_i32 = arith.constant 0 : i32
    %c0_i32_0 = arith.constant 0 : i32
    %c0_i32_1 = arith.constant 0 : i32
    return %c0_i32, %c0_i32_0 : i32, i32
  }
  func.func @transform_10(%arg0: i32, %arg1: memref<1xi32, #tpu.memory_space<smem>>) -> (i32, i32) {
    %c0_i32 = arith.constant 0 : i32
    %c0_i32_0 = arith.constant 0 : i32
    %c0_i32_1 = arith.constant 0 : i32
    return %c0_i32, %c0_i32_0 : i32, i32
  }
  func.func @transform_11(%arg0: i32, %arg1: memref<1xi32, #tpu.memory_space<smem>>) -> (i32, i32) {
    %c0_i32 = arith.constant 0 : i32
    %c0_i32_0 = arith.constant 0 : i32
    %c0_i32_1 = arith.constant 0 : i32
    return %c0_i32, %c0_i32_0 : i32, i32
  }
  func.func @transform_12(%arg0: i32, %arg1: memref<1xi32, #tpu.memory_space<smem>>) -> (i32, i32) {
    %c0_i32 = arith.constant 0 : i32
    %c0_i32_0 = arith.constant 0 : i32
    %c0_i32_1 = arith.constant 0 : i32
    return %c0_i32, %c0_i32_0 : i32, i32
  }
  func.func @transform_13(%arg0: i32, %arg1: memref<1xi32, #tpu.memory_space<smem>>) -> (i32, i32) {
    %c0_i32 = arith.constant 0 : i32
    %c0_i32_0 = arith.constant 0 : i32
    %c0_i32_1 = arith.constant 0 : i32
    return %c0_i32, %c0_i32_0 : i32, i32
  }
  func.func @transform_14(%arg0: i32, %arg1: memref<1xi32, #tpu.memory_space<smem>>) -> (i32, i32) {
    %c0_i32 = arith.constant 0 : i32
    %c0_i32_0 = arith.constant 0 : i32
    %c0_i32_1 = arith.constant 0 : i32
    return %c0_i32, %c0_i32_0 : i32, i32
  }
  func.func @transform_15(%arg0: i32, %arg1: memref<1xi32, #tpu.memory_space<smem>>) -> (i32, i32) {
    %c0_i32 = arith.constant 0 : i32
    %c0_i32_0 = arith.constant 0 : i32
    %c0_i32_1 = arith.constant 0 : i32
    return %c0_i32, %c0_i32_0 : i32, i32
  }
  func.func @transform_16(%arg0: i32, %arg1: memref<1xi32, #tpu.memory_space<smem>>) -> (i32, i32) {
    %c0_i32 = arith.constant 0 : i32
    %c0_i32_0 = arith.constant 0 : i32
    %c0_i32_1 = arith.constant 0 : i32
    return %c0_i32, %c0_i32_0 : i32, i32
  }
  func.func @transform_17(%arg0: i32, %arg1: memref<1xi32, #tpu.memory_space<smem>>) -> (i32, i32) {
    %c0_i32 = arith.constant 0 : i32
    %c0_i32_0 = arith.constant 0 : i32
    %c0_i32_1 = arith.constant 0 : i32
    return %c0_i32, %c0_i32_0 : i32, i32
  }
  func.func @transform_18(%arg0: i32, %arg1: memref<1xi32, #tpu.memory_space<smem>>) -> (i32, i32) {
    %c0_i32 = arith.constant 0 : i32
    %c0_i32_0 = arith.constant 0 : i32
    return %c0_i32, %arg0 : i32, i32
  }
  func.func @transform_19(%arg0: i32, %arg1: memref<1xi32, #tpu.memory_space<smem>>) -> (i32, i32) {
    %c0_i32 = arith.constant 0 : i32
    %c0_i32_0 = arith.constant 0 : i32
    return %c0_i32, %arg0 : i32, i32
  }
}

</mosaic_0001>

<llo_original>
// kernel: vae_forward.1
$region0: #{vae_forward.1}
  #allocation0 [shape = 'u32[]', space=smem, size = 0x4, offset = 0x4, fixed_abs, tag = 'smem constant byte address 0x4 - core index']
  #allocation1 [shape = 'u32[144,128]{1,0:T(1,128)}', space=vmem, size = 0x12000, scoped, tag = 'internal scratch']
  #allocation2 [shape = 's32[1]{0}', space=sflag, size = 0x4, scoped, tag = 'scoped memory for vae_forward.1']
  #allocation3 [shape = 's32[1]{0:T(128)S(6)}', space=smem, size = 0x200, scoped, tag = 'prefetched SMEM operand 0']
  %s0 = inlined_call_operand.<no memory space> [shape: s32[1], index: 0, kind: input, shape index: {}]
  %s1 = inlined_call_operand.vmem [shape: bf16[256,896], index: 1, kind: input, shape index: {}]
  %s2 = inlined_call_operand.vmem [shape: f32[256,4], index: 2, kind: input, shape index: {}]
  %s3 = inlined_call_operand.vmem [shape: bf16[896,512], index: 3, kind: input, shape index: {}]
  %s4 = inlined_call_operand.vmem [shape: f32[1,512], index: 4, kind: input, shape index: {}]
  %s5 = inlined_call_operand.vmem [shape: bf16[512,128], index: 5, kind: input, shape index: {}]
  %s6 = inlined_call_operand.vmem [shape: f32[1,128], index: 6, kind: input, shape index: {}]
  %s7 = inlined_call_operand.vmem [shape: bf16[128,32], index: 7, kind: input, shape index: {}]
  %s8 = inlined_call_operand.vmem [shape: f32[1,32], index: 8, kind: input, shape index: {}]
  %s9 = inlined_call_operand.vmem [shape: bf16[32,8], index: 9, kind: input, shape index: {}]
  %s10 = inlined_call_operand.vmem [shape: f32[1,8], index: 10, kind: input, shape index: {}]
  %s11 = inlined_call_operand.vmem [shape: bf16[4,32], index: 11, kind: input, shape index: {}]
  %s12 = inlined_call_operand.vmem [shape: f32[1,32], index: 12, kind: input, shape index: {}]
  %s13 = inlined_call_operand.vmem [shape: bf16[32,128], index: 13, kind: input, shape index: {}]
  %s14 = inlined_call_operand.vmem [shape: f32[1,128], index: 14, kind: input, shape index: {}]
  %s15 = inlined_call_operand.vmem [shape: bf16[128,512], index: 15, kind: input, shape index: {}]
  %s16 = inlined_call_operand.vmem [shape: f32[1,512], index: 16, kind: input, shape index: {}]
  %s17 = inlined_call_operand.vmem [shape: bf16[512,896], index: 17, kind: input, shape index: {}]
  %s18 = inlined_call_operand.vmem [shape: f32[1,896], index: 18, kind: input, shape index: {}]
  %s19 = inlined_call_operand.vmem [shape: f32[1,256], index: 19, kind: output, shape index: {0}]
  %s20 = inlined_call_operand.vmem [shape: f32[1,256], index: 20, kind: output, shape index: {1}]
  %21 = xla_tuple %s19, %s20
  %s22 = sld [smem:[#allocation0]]
  $region113: #{vae_forward.1} parent=0
    _
  %s24 = ssub.s32 1, %s22
  %s25 = scalar_select 0, %s24, %s22
  %26 = sst [smem:[#allocation3]] %s0
  loop: start=0, step=1, limit=4
  $region2: #{vae_forward.1} parent=0 // loop_pre_header
    _
  $region3: #{vae_forward.1} parent=0 // loop_header
    %s28 = sphi 0, %s32
    %p29 = scmp.ge.s32.totalorder %s28, 4
    %s38 = sphi 0, %s40
    %s41 = sphi 0, %s38
    %s42 = sphi 0, %s41
    %s58 = sphi 0, %s42
    %s64 = sphi 0, %s66
    %s67 = sphi 0, %s64
    %s68 = sphi 0, %s67
    %s84 = sphi 0, %s68
    %s88 = sphi 0, %s88
    %s90 = sphi 0, %s88
    %s91 = sphi 0, %s90
    %s105 = sphi 0, %s91
    %s109 = sphi 0, %s109
    %s111 = sphi 0, %s109
    %s112 = sphi 0, %s111
    %s126 = sphi 0, %s112
    %s130 = sphi 0, %s130
    %s132 = sphi 0, %s130
    %s133 = sphi 0, %s132
    %s147 = sphi 0, %s133
    %s151 = sphi 0, %s151
    %s153 = sphi 0, %s151
    %s154 = sphi 0, %s153
    %s168 = sphi 0, %s154
    %s172 = sphi 0, %s172
    %s174 = sphi 0, %s172
    %s175 = sphi 0, %s174
    %s189 = sphi 0, %s175
    %s193 = sphi 0, %s193
    %s195 = sphi 0, %s193
    %s196 = sphi 0, %s195
    %s210 = sphi 0, %s196
    %s214 = sphi 0, %s214
    %s216 = sphi 0, %s214
    %s217 = sphi 0, %s216
    %s231 = sphi 0, %s217
    %s235 = sphi 0, %s235
    %s237 = sphi 0, %s235
    %s238 = sphi 0, %s237
    %s252 = sphi 0, %s238
    %s256 = sphi 0, %s256
    %s258 = sphi 0, %s256
    %s259 = sphi 0, %s258
    %s273 = sphi 0, %s259
    %s277 = sphi 0, %s277
    %s279 = sphi 0, %s277
    %s280 = sphi 0, %s279
    %s294 = sphi 0, %s280
    %s298 = sphi 0, %s298
    %s300 = sphi 0, %s298
    %s301 = sphi 0, %s300
    %s315 = sphi 0, %s301
    %s319 = sphi 0, %s319
    %s321 = sphi 0, %s319
    %s322 = sphi 0, %s321
    %s336 = sphi 0, %s322
    %s340 = sphi 0, %s340
    %s342 = sphi 0, %s340
    %s343 = sphi 0, %s342
    %s357 = sphi 0, %s343
    %s361 = sphi 0, %s361
    %s363 = sphi 0, %s361
    %s364 = sphi 0, %s363
    %s378 = sphi 0, %s364
    %s382 = sphi 0, %s382
    %s384 = sphi 0, %s382
    %s385 = sphi 0, %s384
    %s399 = sphi 0, %s385
    %s403 = sphi 0, %s403
    %s405 = sphi 0, %s403
    %s406 = sphi 0, %s405
    %s420 = sphi 0, %s406
    %s426 = sphi 0, %s428
    %s429 = sphi 0, %s426
    %s430 = sphi 0, %s429
    %s446 = sphi 0, %s430
    %s452 = sphi 0, %s454
    %s455 = sphi 0, %s452
    %s456 = sphi 0, %s455
    %s472 = sphi 0, %s456
  $region4: #{vae_forward.1} parent=0 // loop_header_branch
    %31 = sbr.rel (%p29) target = $region8
  $region5: #{vae_forward.1} parent=0 // loop_body
    %s33 = ssub.s32 %s28, 1
    %s34 = ssub.s32 %s28, 2
    %s35 = sadd.s32 %s28, 1
    %s36 = ssub.s32 %s28, %s35
    %p37 = scmp.eq.s32.totalorder %s36, 0
    %s39 = sadd.s32 %s38, 1
    %s40 = scalar_select %p37, %s38, %s39
    %p43 = pneg %p37
    %p44 = scmp.eq.s32.totalorder %s28, 1
    %p45 = por %p43, %p44
    %p46 = scmp.ne.s32.totalorder %s38, %s41
    %p47 = scmp.eq.s32.totalorder %s28, 0
    %p48 = por %p46, %p47
    %p49 = scmp.ne.s32.totalorder %s38, %s41
    %p50 = scmp.eq.s32.totalorder %s33, 1
    %p51 = por %p49, %p50
    %p52 = scmp.ne.s32.totalorder %s41, %s42
    %p53 = scmp.eq.s32.totalorder %s33, 0
    %p54 = por %p52, %p53
    %p55 = scmp.ne.s32.totalorder %s41, %s42
    %p56 = scmp.eq.s32.totalorder %s34, 1
    %p57 = por %p55, %p56
    %p59 = scmp.ne.s32.totalorder %s42, %s58
    %p60 = scmp.eq.s32.totalorder %s34, 0
    %p61 = por %p59, %p60
    %s62 = ssub.s32 %s28, %s35
    %p63 = scmp.eq.s32.totalorder %s62, 0
    %s65 = sadd.s32 %s64, 1
    %s66 = scalar_select %p63, %s64, %s65
    %p69 = pneg %p63
    %p70 = scmp.eq.s32.totalorder %s28, 1
    %p71 = por %p69, %p70
    %p72 = scmp.ne.s32.totalorder %s64, %s67
    %p73 = scmp.eq.s32.totalorder %s28, 0
    %p74 = por %p72, %p73
    %p75 = scmp.ne.s32.totalorder %s64, %s67
    %p76 = scmp.eq.s32.totalorder %s33, 1
    %p77 = por %p75, %p76
    %p78 = scmp.ne.s32.totalorder %s67, %s68
    %p79 = scmp.eq.s32.totalorder %s33, 0
    %p80 = por %p78, %p79
    %p81 = scmp.ne.s32.totalorder %s67, %s68
    %p82 = scmp.eq.s32.totalorder %s34, 1
    %p83 = por %p81, %p82
    %p85 = scmp.ne.s32.totalorder %s68, %s84
    %p86 = scmp.eq.s32.totalorder %s34, 0
    %p87 = por %p85, %p86
    %s89 = sadd.s32 %s88, 1
    %p92 = scmp.eq.s32.totalorder %s28, 1
    %p93 = scmp.ne.s32.totalorder %s88, %s90
    %p94 = scmp.eq.s32.totalorder %s28, 0
    %p95 = por %p93, %p94
    %p96 = scmp.ne.s32.totalorder %s88, %s90
    %p97 = scmp.eq.s32.totalorder %s33, 1
    %p98 = por %p96, %p97
    %p99 = scmp.ne.s32.totalorder %s90, %s91
    %p100 = scmp.eq.s32.totalorder %s33, 0
    %p101 = por %p99, %p100
    %p102 = scmp.ne.s32.totalorder %s90, %s91
    %p103 = scmp.eq.s32.totalorder %s34, 1
    %p104 = por %p102, %p103
    %p106 = scmp.ne.s32.totalorder %s91, %s105
    %p107 = scmp.eq.s32.totalorder %s34, 0
    %p108 = por %p106, %p107
    %s110 = sadd.s32 %s109, 1
    %p113 = scmp.eq.s32.totalorder %s28, 1
    %p114 = scmp.ne.s32.totalorder %s109, %s111
    %p115 = scmp.eq.s32.totalorder %s28, 0
    %p116 = por %p114, %p115
    %p117 = scmp.ne.s32.totalorder %s109, %s111
    %p118 = scmp.eq.s32.totalorder %s33, 1
    %p119 = por %p117, %p118
    %p120 = scmp.ne.s32.totalorder %s111, %s112
    %p121 = scmp.eq.s32.totalorder %s33, 0
    %p122 = por %p120, %p121
    %p123 = scmp.ne.s32.totalorder %s111, %s112
    %p124 = scmp.eq.s32.totalorder %s34, 1
    %p125 = por %p123, %p124
    %p127 = scmp.ne.s32.totalorder %s112, %s126
    %p128 = scmp.eq.s32.totalorder %s34, 0
    %p129 = por %p127, %p128
    %s131 = sadd.s32 %s130, 1
    %p134 = scmp.eq.s32.totalorder %s28, 1
    %p135 = scmp.ne.s32.totalorder %s130, %s132
    %p136 = scmp.eq.s32.totalorder %s28, 0
    %p137 = por %p135, %p136
    %p138 = scmp.ne.s32.totalorder %s130, %s132
    %p139 = scmp.eq.s32.totalorder %s33, 1
    %p140 = por %p138, %p139
    %p141 = scmp.ne.s32.totalorder %s132, %s133
    %p142 = scmp.eq.s32.totalorder %s33, 0
    %p143 = por %p141, %p142
    %p144 = scmp.ne.s32.totalorder %s132, %s133
    %p145 = scmp.eq.s32.totalorder %s34, 1
    %p146 = por %p144, %p145
    %p148 = scmp.ne.s32.totalorder %s133, %s147
    %p149 = scmp.eq.s32.totalorder %s34, 0
    %p150 = por %p148, %p149
    %s152 = sadd.s32 %s151, 1
    %p155 = scmp.eq.s32.totalorder %s28, 1
    %p156 = scmp.ne.s32.totalorder %s151, %s153
    %p157 = scmp.eq.s32.totalorder %s28, 0
    %p158 = por %p156, %p157
    %p159 = scmp.ne.s32.totalorder %s151, %s153
    %p160 = scmp.eq.s32.totalorder %s33, 1
    %p161 = por %p159, %p160
    %p162 = scmp.ne.s32.totalorder %s153, %s154
    %p163 = scmp.eq.s32.totalorder %s33, 0
    %p164 = por %p162, %p163
    %p165 = scmp.ne.s32.totalorder %s153, %s154
    %p166 = scmp.eq.s32.totalorder %s34, 1
    %p167 = por %p165, %p166
    %p169 = scmp.ne.s32.totalorder %s154, %s168
    %p170 = scmp.eq.s32.totalorder %s34, 0
    %p171 = por %p169, %p170
    %s173 = sadd.s32 %s172, 1
    %p176 = scmp.eq.s32.totalorder %s28, 1
    %p177 = scmp.ne.s32.totalorder %s172, %s174
    %p178 = scmp.eq.s32.totalorder %s28, 0
    %p179 = por %p177, %p178
    %p180 = scmp.ne.s32.totalorder %s172, %s174
    %p181 = scmp.eq.s32.totalorder %s33, 1
    %p182 = por %p180, %p181
    %p183 = scmp.ne.s32.totalorder %s174, %s175
    %p184 = scmp.eq.s32.totalorder %s33, 0
    %p185 = por %p183, %p184
    %p186 = scmp.ne.s32.totalorder %s174, %s175
    %p187 = scmp.eq.s32.totalorder %s34, 1
    %p188 = por %p186, %p187
    %p190 = scmp.ne.s32.totalorder %s175, %s189
    %p191 = scmp.eq.s32.totalorder %s34, 0
    %p192 = por %p190, %p191
    %s194 = sadd.s32 %s193, 1
    %p197 = scmp.eq.s32.totalorder %s28, 1
    %p198 = scmp.ne.s32.totalorder %s193, %s195
    %p199 = scmp.eq.s32.totalorder %s28, 0
    %p200 = por %p198, %p199
    %p201 = scmp.ne.s32.totalorder %s193, %s195
    %p202 = scmp.eq.s32.totalorder %s33, 1
    %p203 = por %p201, %p202
    %p204 = scmp.ne.s32.totalorder %s195, %s196
    %p205 = scmp.eq.s32.totalorder %s33, 0
    %p206 = por %p204, %p205
    %p207 = scmp.ne.s32.totalorder %s195, %s196
    %p208 = scmp.eq.s32.totalorder %s34, 1
    %p209 = por %p207, %p208
    %p211 = scmp.ne.s32.totalorder %s196, %s210
    %p212 = scmp.eq.s32.totalorder %s34, 0
    %p213 = por %p211, %p212
    %s215 = sadd.s32 %s214, 1
    %p218 = scmp.eq.s32.totalorder %s28, 1
    %p219 = scmp.ne.s32.totalorder %s214, %s216
    %p220 = scmp.eq.s32.totalorder %s28, 0
    %p221 = por %p219, %p220
    %p222 = scmp.ne.s32.totalorder %s214, %s216
    %p223 = scmp.eq.s32.totalorder %s33, 1
    %p224 = por %p222, %p223
    %p225 = scmp.ne.s32.totalorder %s216, %s217
    %p226 = scmp.eq.s32.totalorder %s33, 0
    %p227 = por %p225, %p226
    %p228 = scmp.ne.s32.totalorder %s216, %s217
    %p229 = scmp.eq.s32.totalorder %s34, 1
    %p230 = por %p228, %p229
    %p232 = scmp.ne.s32.totalorder %s217, %s231
    %p233 = scmp.eq.s32.totalorder %s34, 0
    %p234 = por %p232, %p233
    %s236 = sadd.s32 %s235, 1
    %p239 = scmp.eq.s32.totalorder %s28, 1
    %p240 = scmp.ne.s32.totalorder %s235, %s237
    %p241 = scmp.eq.s32.totalorder %s28, 0
    %p242 = por %p240, %p241
    %p243 = scmp.ne.s32.totalorder %s235, %s237
    %p244 = scmp.eq.s32.totalorder %s33, 1
    %p245 = por %p243, %p244
    %p246 = scmp.ne.s32.totalorder %s237, %s238
    %p247 = scmp.eq.s32.totalorder %s33, 0
    %p248 = por %p246, %p247
    %p249 = scmp.ne.s32.totalorder %s237, %s238
    %p250 = scmp.eq.s32.totalorder %s34, 1
    %p251 = por %p249, %p250
    %p253 = scmp.ne.s32.totalorder %s238, %s252
    %p254 = scmp.eq.s32.totalorder %s34, 0
    %p255 = por %p253, %p254
    %s257 = sadd.s32 %s256, 1
    %p260 = scmp.eq.s32.totalorder %s28, 1
    %p261 = scmp.ne.s32.totalorder %s256, %s258
    %p262 = scmp.eq.s32.totalorder %s28, 0
    %p263 = por %p261, %p262
    %p264 = scmp.ne.s32.totalorder %s256, %s258
    %p265 = scmp.eq.s32.totalorder %s33, 1
    %p266 = por %p264, %p265
    %p267 = scmp.ne.s32.totalorder %s258, %s259
    %p268 = scmp.eq.s32.totalorder %s33, 0
    %p269 = por %p267, %p268
    %p270 = scmp.ne.s32.totalorder %s258, %s259
    %p271 = scmp.eq.s32.totalorder %s34, 1
    %p272 = por %p270, %p271
    %p274 = scmp.ne.s32.totalorder %s259, %s273
    %p275 = scmp.eq.s32.totalorder %s34, 0
    %p276 = por %p274, %p275
    %s278 = sadd.s32 %s277, 1
    %p281 = scmp.eq.s32.totalorder %s28, 1
    %p282 = scmp.ne.s32.totalorder %s277, %s279
    %p283 = scmp.eq.s32.totalorder %s28, 0
    %p284 = por %p282, %p283
    %p285 = scmp.ne.s32.totalorder %s277, %s279
    %p286 = scmp.eq.s32.totalorder %s33, 1
    %p287 = por %p285, %p286
    %p288 = scmp.ne.s32.totalorder %s279, %s280
    %p289 = scmp.eq.s32.totalorder %s33, 0
    %p290 = por %p288, %p289
    %p291 = scmp.ne.s32.totalorder %s279, %s280
    %p292 = scmp.eq.s32.totalorder %s34, 1
    %p293 = por %p291, %p292
    %p295 = scmp.ne.s32.totalorder %s280, %s294
    %p296 = scmp.eq.s32.totalorder %s34, 0
    %p297 = por %p295, %p296
    %s299 = sadd.s32 %s298, 1
    %p302 = scmp.eq.s32.totalorder %s28, 1
    %p303 = scmp.ne.s32.totalorder %s298, %s300
    %p304 = scmp.eq.s32.totalorder %s28, 0
    %p305 = por %p303, %p304
    %p306 = scmp.ne.s32.totalorder %s298, %s300
    %p307 = scmp.eq.s32.totalorder %s33, 1
    %p308 = por %p306, %p307
    %p309 = scmp.ne.s32.totalorder %s300, %s301
    %p310 = scmp.eq.s32.totalorder %s33, 0
    %p311 = por %p309, %p310
    %p312 = scmp.ne.s32.totalorder %s300, %s301
    %p313 = scmp.eq.s32.totalorder %s34, 1
    %p314 = por %p312, %p313
    %p316 = scmp.ne.s32.totalorder %s301, %s315
    %p317 = scmp.eq.s32.totalorder %s34, 0
    %p318 = por %p316, %p317
    %s320 = sadd.s32 %s319, 1
    %p323 = scmp.eq.s32.totalorder %s28, 1
    %p324 = scmp.ne.s32.totalorder %s319, %s321
    %p325 = scmp.eq.s32.totalorder %s28, 0
    %p326 = por %p324, %p325
    %p327 = scmp.ne.s32.totalorder %s319, %s321
    %p328 = scmp.eq.s32.totalorder %s33, 1
    %p329 = por %p327, %p328
    %p330 = scmp.ne.s32.totalorder %s321, %s322
    %p331 = scmp.eq.s32.totalorder %s33, 0
    %p332 = por %p330, %p331
    %p333 = scmp.ne.s32.totalorder %s321, %s322
    %p334 = scmp.eq.s32.totalorder %s34, 1
    %p335 = por %p333, %p334
    %p337 = scmp.ne.s32.totalorder %s322, %s336
    %p338 = scmp.eq.s32.totalorder %s34, 0
    %p339 = por %p337, %p338
    %s341 = sadd.s32 %s340, 1
    %p344 = scmp.eq.s32.totalorder %s28, 1
    %p345 = scmp.ne.s32.totalorder %s340, %s342
    %p346 = scmp.eq.s32.totalorder %s28, 0
    %p347 = por %p345, %p346
    %p348 = scmp.ne.s32.totalorder %s340, %s342
    %p349 = scmp.eq.s32.totalorder %s33, 1
    %p350 = por %p348, %p349
    %p351 = scmp.ne.s32.totalorder %s342, %s343
    %p352 = scmp.eq.s32.totalorder %s33, 0
    %p353 = por %p351, %p352
    %p354 = scmp.ne.s32.totalorder %s342, %s343
    %p355 = scmp.eq.s32.totalorder %s34, 1
    %p356 = por %p354, %p355
    %p358 = scmp.ne.s32.totalorder %s343, %s357
    %p359 = scmp.eq.s32.totalorder %s34, 0
    %p360 = por %p358, %p359
    %s362 = sadd.s32 %s361, 1
    %p365 = scmp.eq.s32.totalorder %s28, 1
    %p366 = scmp.ne.s32.totalorder %s361, %s363
    %p367 = scmp.eq.s32.totalorder %s28, 0
    %p368 = por %p366, %p367
    %p369 = scmp.ne.s32.totalorder %s361, %s363
    %p370 = scmp.eq.s32.totalorder %s33, 1
    %p371 = por %p369, %p370
    %p372 = scmp.ne.s32.totalorder %s363, %s364
    %p373 = scmp.eq.s32.totalorder %s33, 0
    %p374 = por %p372, %p373
    %p375 = scmp.ne.s32.totalorder %s363, %s364
    %p376 = scmp.eq.s32.totalorder %s34, 1
    %p377 = por %p375, %p376
    %p379 = scmp.ne.s32.totalorder %s364, %s378
    %p380 = scmp.eq.s32.totalorder %s34, 0
    %p381 = por %p379, %p380
    %s383 = sadd.s32 %s382, 1
    %p386 = scmp.eq.s32.totalorder %s28, 1
    %p387 = scmp.ne.s32.totalorder %s382, %s384
    %p388 = scmp.eq.s32.totalorder %s28, 0
    %p389 = por %p387, %p388
    %p390 = scmp.ne.s32.totalorder %s382, %s384
    %p391 = scmp.eq.s32.totalorder %s33, 1
    %p392 = por %p390, %p391
    %p393 = scmp.ne.s32.totalorder %s384, %s385
    %p394 = scmp.eq.s32.totalorder %s33, 0
    %p395 = por %p393, %p394
    %p396 = scmp.ne.s32.totalorder %s384, %s385
    %p397 = scmp.eq.s32.totalorder %s34, 1
    %p398 = por %p396, %p397
    %p400 = scmp.ne.s32.totalorder %s385, %s399
    %p401 = scmp.eq.s32.totalorder %s34, 0
    %p402 = por %p400, %p401
    %s404 = sadd.s32 %s403, 1
    %p407 = scmp.eq.s32.totalorder %s28, 1
    %p408 = scmp.ne.s32.totalorder %s403, %s405
    %p409 = scmp.eq.s32.totalorder %s28, 0
    %p410 = por %p408, %p409
    %p411 = scmp.ne.s32.totalorder %s403, %s405
    %p412 = scmp.eq.s32.totalorder %s33, 1
    %p413 = por %p411, %p412
    %p414 = scmp.ne.s32.totalorder %s405, %s406
    %p415 = scmp.eq.s32.totalorder %s33, 0
    %p416 = por %p414, %p415
    %p417 = scmp.ne.s32.totalorder %s405, %s406
    %p418 = scmp.eq.s32.totalorder %s34, 1
    %p419 = por %p417, %p418
    %p421 = scmp.ne.s32.totalorder %s406, %s420
    %p422 = scmp.eq.s32.totalorder %s34, 0
    %p423 = por %p421, %p422
    %s424 = ssub.s32 %s28, %s35
    %p425 = scmp.eq.s32.totalorder %s424, 0
    %s427 = sadd.s32 %s426, 1
    %s428 = scalar_select %p425, %s426, %s427
    %p431 = pneg %p425
    %p432 = scmp.eq.s32.totalorder %s28, 1
    %p433 = por %p431, %p432
    %p434 = scmp.ne.s32.totalorder %s426, %s429
    %p435 = scmp.eq.s32.totalorder %s28, 0
    %p436 = por %p434, %p435
    %p437 = scmp.ne.s32.totalorder %s426, %s429
    %p438 = scmp.eq.s32.totalorder %s33, 1
    %p439 = por %p437, %p438
    %p440 = scmp.ne.s32.totalorder %s429, %s430
    %p441 = scmp.eq.s32.totalorder %s33, 0
    %p442 = por %p440, %p441
    %p443 = scmp.ne.s32.totalorder %s429, %s430
    %p444 = scmp.eq.s32.totalorder %s34, 1
    %p445 = por %p443, %p444
    %p447 = scmp.ne.s32.totalorder %s430, %s446
    %p448 = scmp.eq.s32.totalorder %s34, 0
    %p449 = por %p447, %p448
    %s450 = ssub.s32 %s28, %s35
    %p451 = scmp.eq.s32.totalorder %s450, 0
    %s453 = sadd.s32 %s452, 1
    %s454 = scalar_select %p451, %s452, %s453
    %p457 = pneg %p451
    %p458 = scmp.eq.s32.totalorder %s28, 1
    %p459 = por %p457, %p458
    %p460 = scmp.ne.s32.totalorder %s452, %s455
    %p461 = scmp.eq.s32.totalorder %s28, 0
    %p462 = por %p460, %p461
    %p463 = scmp.ne.s32.totalorder %s452, %s455
    %p464 = scmp.eq.s32.totalorder %s33, 1
    %p465 = por %p463, %p464
    %p466 = scmp.ne.s32.totalorder %s455, %s456
    %p467 = scmp.eq.s32.totalorder %s33, 0
    %p468 = por %p466, %p467
    %p469 = scmp.ne.s32.totalorder %s455, %s456
    %p470 = scmp.eq.s32.totalorder %s34, 1
    %p471 = por %p469, %p470
    %p473 = scmp.ne.s32.totalorder %s456, %s472
    %p474 = scmp.eq.s32.totalorder %s34, 0
    %p475 = por %p473, %p474
    %p476 = scmp.le.s32.totalorder 1, %s28
    %p477 = scmp.lt.s32.totalorder %s28, 3
    %p478 = pnand %p476, %p477
    %p479 = pneg %p478
    // Predicated region
    $region9: #{vae_forward.1} parent=5 // pred_check
      _
    $region10: #{vae_forward.1} parent=5 // pred_check_branch
      %481 = sbr.rel (%p478) target = $region12
    $region11: #{vae_forward.1} parent=5 // pred_region
      %s482 = ssub.s32 %s28, 1
      // Predicated region
      $region13: #{vae_forward.1} parent=11 // pred_check
        %p483 = pneg %p101
      $region14: #{vae_forward.1} parent=11 // pred_check_branch
        %485 = sbr.rel (%p483) target = $region16
      $region15: #{vae_forward.1} parent=11 // pred_region
        _
      $region16: #{vae_forward.1} parent=11 // pred_fallthru
        _
      // Predicated region
      $region17: #{vae_forward.1} parent=11 // pred_check
        %p486 = pneg %p122
      $region18: #{vae_forward.1} parent=11 // pred_check_branch
        %488 = sbr.rel (%p486) target = $region20
      $region19: #{vae_forward.1} parent=11 // pred_region
        _
      $region20: #{vae_forward.1} parent=11 // pred_fallthru
        _
      // Predicated region
      $region21: #{vae_forward.1} parent=11 // pred_check
        %p489 = pneg %p143
      $region22: #{vae_forward.1} parent=11 // pred_check_branch
        %491 = sbr.rel (%p489) target = $region24
      $region23: #{vae_forward.1} parent=11 // pred_region
        _
      $region24: #{vae_forward.1} parent=11 // pred_fallthru
        _
      // Predicated region
      $region25: #{vae_forward.1} parent=11 // pred_check
        %p492 = pneg %p164
      $region26: #{vae_forward.1} parent=11 // pred_check_branch
        %494 = sbr.rel (%p492) target = $region28
      $region27: #{vae_forward.1} parent=11 // pred_region
        _
      $region28: #{vae_forward.1} parent=11 // pred_fallthru
        _
      // Predicated region
      $region29: #{vae_forward.1} parent=11 // pred_check
        %p495 = pneg %p185
      $region30: #{vae_forward.1} parent=11 // pred_check_branch
        %497 = sbr.rel (%p495) target = $region32
      $region31: #{vae_forward.1} parent=11 // pred_region
        _
      $region32: #{vae_forward.1} parent=11 // pred_fallthru
        _
      // Predicated region
      $region33: #{vae_forward.1} parent=11 // pred_check
        %p498 = pneg %p206
      $region34: #{vae_forward.1} parent=11 // pred_check_branch
        %500 = sbr.rel (%p498) target = $region36
      $region35: #{vae_forward.1} parent=11 // pred_region
        _
      $region36: #{vae_forward.1} parent=11 // pred_fallthru
        _
      // Predicated region
      $region37: #{vae_forward.1} parent=11 // pred_check
        %p501 = pneg %p227
      $region38: #{vae_forward.1} parent=11 // pred_check_branch
        %503 = sbr.rel (%p501) target = $region40
      $region39: #{vae_forward.1} parent=11 // pred_region
        _
      $region40: #{vae_forward.1} parent=11 // pred_fallthru
        _
      // Predicated region
      $region41: #{vae_forward.1} parent=11 // pred_check
        %p504 = pneg %p248
      $region42: #{vae_forward.1} parent=11 // pred_check_branch
        %506 = sbr.rel (%p504) target = $region44
      $region43: #{vae_forward.1} parent=11 // pred_region
        _
      $region44: #{vae_forward.1} parent=11 // pred_fallthru
        _
      // Predicated region
      $region45: #{vae_forward.1} parent=11 // pred_check
        %p507 = pneg %p269
      $region46: #{vae_forward.1} parent=11 // pred_check_branch
        %509 = sbr.rel (%p507) target = $region48
      $region47: #{vae_forward.1} parent=11 // pred_region
        _
      $region48: #{vae_forward.1} parent=11 // pred_fallthru
        _
      // Predicated region
      $region49: #{vae_forward.1} parent=11 // pred_check
        %p510 = pneg %p290
      $region50: #{vae_forward.1} parent=11 // pred_check_branch
        %512 = sbr.rel (%p510) target = $region52
      $region51: #{vae_forward.1} parent=11 // pred_region
        _
      $region52: #{vae_forward.1} parent=11 // pred_fallthru
        _
      // Predicated region
      $region53: #{vae_forward.1} parent=11 // pred_check
        %p513 = pneg %p311
      $region54: #{vae_forward.1} parent=11 // pred_check_branch
        %515 = sbr.rel (%p513) target = $region56
      $region55: #{vae_forward.1} parent=11 // pred_region
        _
      $region56: #{vae_forward.1} parent=11 // pred_fallthru
        _
      // Predicated region
      $region57: #{vae_forward.1} parent=11 // pred_check
        %p516 = pneg %p332
      $region58: #{vae_forward.1} parent=11 // pred_check_branch
        %518 = sbr.rel (%p516) target = $region60
      $region59: #{vae_forward.1} parent=11 // pred_region
        _
      $region60: #{vae_forward.1} parent=11 // pred_fallthru
        _
      // Predicated region
      $region61: #{vae_forward.1} parent=11 // pred_check
        %p519 = pneg %p353
      $region62: #{vae_forward.1} parent=11 // pred_check_branch
        %521 = sbr.rel (%p519) target = $region64
      $region63: #{vae_forward.1} parent=11 // pred_region
        _
      $region64: #{vae_forward.1} parent=11 // pred_fallthru
        _
      // Predicated region
      $region65: #{vae_forward.1} parent=11 // pred_check
        %p522 = pneg %p374
      $region66: #{vae_forward.1} parent=11 // pred_check_branch
        %524 = sbr.rel (%p522) target = $region68
      $region67: #{vae_forward.1} parent=11 // pred_region
        _
      $region68: #{vae_forward.1} parent=11 // pred_fallthru
        _
      // Predicated region
      $region69: #{vae_forward.1} parent=11 // pred_check
        %p525 = pneg %p395
      $region70: #{vae_forward.1} parent=11 // pred_check_branch
        %527 = sbr.rel (%p525) target = $region72
      $region71: #{vae_forward.1} parent=11 // pred_region
        _
      $region72: #{vae_forward.1} parent=11 // pred_fallthru
        _
      // Predicated region
      $region73: #{vae_forward.1} parent=11 // pred_check
        %p528 = pneg %p416
      $region74: #{vae_forward.1} parent=11 // pred_check_branch
        %530 = sbr.rel (%p528) target = $region76
      $region75: #{vae_forward.1} parent=11 // pred_region
        _
      $region76: #{vae_forward.1} parent=11 // pred_fallthru
        _
    $region12: #{vae_forward.1} parent=5 // pred_fallthru
      _
    %p531 = scmp.lt.s32.totalorder %s28, 2
    // Predicated region
    $region77: #{vae_forward.1} parent=5 // pred_check
      %p532 = pneg %p531
    $region78: #{vae_forward.1} parent=5 // pred_check_branch
      %534 = sbr.rel (%p532) target = $region80
    $region79: #{vae_forward.1} parent=5 // pred_region
      // Predicated region
      $region81: #{vae_forward.1} parent=79 // pred_check
        %p535 = pneg %p48
      $region82: #{vae_forward.1} parent=79 // pred_check_branch
        %537 = sbr.rel (%p535) target = $region84
      $region83: #{vae_forward.1} parent=79 // pred_region
        %s538 = smul.u32 16, %s28
        %p539 = scmp.lt.s32.totalorder %s538, 31
        %s540 = scalar_select %p539, %s538, 31
        %s541 = smul.addr %s540, 7
        %s542 = smul.addr %s541, 4
        %s543 = scalar_lea.vmem %s1, %s542
        %s544 = smul.u32 16, %s28
      $region84: #{vae_forward.1} parent=79 // pred_fallthru
        _
      // Predicated region
      $region85: #{vae_forward.1} parent=79 // pred_check
        %p545 = pneg %p74
      $region86: #{vae_forward.1} parent=79 // pred_check_branch
        %547 = sbr.rel (%p545) target = $region88
      $region87: #{vae_forward.1} parent=79 // pred_region
        %s548 = smul.u32 16, %s28
        %p549 = scmp.lt.s32.totalorder %s548, 31
        %s550 = scalar_select %p549, %s548, 31
        %s551 = smul.addr %s550, 8
        %s552 = scalar_lea.vmem %s2, %s551
        %s553 = smul.u32 16, %s28
      $region88: #{vae_forward.1} parent=79 // pred_fallthru
        _
    $region80: #{vae_forward.1} parent=5 // pred_fallthru
      _
    %p554 = scmp.le.s32.totalorder 1, %s28
    %p555 = scmp.lt.s32.totalorder %s28, 3
    %p556 = pnand %p554, %p555
    %p557 = pneg %p556
    // Predicated region
    $region89: #{vae_forward.1} parent=5 // pred_check
      _
    $region90: #{vae_forward.1} parent=5 // pred_check_branch
      %559 = sbr.rel (%p556) target = $region92
    $region91: #{vae_forward.1} parent=5 // pred_region
      %s560 = ssub.s32 %s28, 1
      %s561 = smul.u32 16, %s33
      %p562 = scmp.lt.s32.totalorder %s561, 31
      %s563 = scalar_select %p562, %s561, 31
      %s564 = smul.addr %s563, 7
      %s565 = smul.addr %s564, 4
      %s566 = scalar_lea.vmem %s1, %s565
      %p567 = pneg %p54
      %p568 = pneg %p51
      %s569 = smul.u32 16, %s33
      %p570 = scmp.lt.s32.totalorder %s569, 31
      %s571 = scalar_select %p570, %s569, 31
      %s572 = smul.addr %s571, 8
      %s573 = scalar_lea.vmem %s2, %s572
      %p574 = pneg %p80
      %p575 = pneg %p77
      %p576 = pneg %p101
      %p577 = pneg %p98
      %p578 = pneg %p122
      %p579 = pneg %p119
      %p580 = pneg %p143
      %p581 = pneg %p140
      %p582 = pneg %p164
      %p583 = pneg %p161
      %p584 = pneg %p185
      %p585 = pneg %p182
      %p586 = pneg %p206
      %p587 = pneg %p203
      %p588 = pneg %p227
      %p589 = pneg %p224
      %p590 = pneg %p248
      %p591 = pneg %p245
      %p592 = pneg %p269
      %p593 = pneg %p266
      %p594 = pneg %p290
      %p595 = pneg %p287
      %p596 = pneg %p311
      %p597 = pneg %p308
      %p598 = pneg %p332
      %p599 = pneg %p329
      %p600 = pneg %p353
      %p601 = pneg %p350
      %p602 = pneg %p374
      %p603 = pneg %p371
      %p604 = pneg %p395
      %p605 = pneg %p392
      %p606 = pneg %p416
      %p607 = pneg %p413
      %p608 = pneg %p442
      %p609 = pneg %p439
      %p610 = scmp.lt.s32.totalorder %s33, 1
      %s611 = scalar_select %p610, %s33, 1
      %s612 = scalar_lea.vmem %s19, %s611
      %p613 = pneg %p468
      %p614 = pneg %p465
      %p615 = scmp.lt.s32.totalorder %s33, 1
      %s616 = scalar_select %p615, %s33, 1
      %s617 = scalar_lea.vmem %s20, %s616
      %s618 = smul.u32 16, %s33
      %p619 = scmp.lt.s32.totalorder %s618, 31
      %s620 = scalar_select %p619, %s618, 31
      %s621 = smul.addr %s620, 7
      %s622 = smul.addr %s621, 4
      %s623 = scalar_lea.vmem %s1, %s622
      %s624 = smul.u32 16, %s33
      %s625 = smul.u32 16, %s33
      %p626 = scmp.lt.s32.totalorder %s625, 31
      %s627 = scalar_select %p626, %s625, 31
      %s628 = smul.addr %s627, 8
      %s629 = scalar_lea.vmem %s2, %s628
      %s630 = smul.u32 16, %s33
      %p631 = scmp.lt.s32.totalorder %s33, 1
      %s632 = scalar_select %p631, %s33, 1
      %s633 = scalar_lea.vmem %s19, %s632
      %p634 = scmp.lt.s32.totalorder %s33, 1
      %s635 = scalar_select %p634, %s33, 1
      %s636 = scalar_lea.vmem %s20, %s635
      %v638 = vld [vmem:[%s623] sm:$0xff]
      %v639 = vld [vmem:[%s623 + $0x8] sm:$0xff]
      %v640 = vld [vmem:[%s623 + $0x10] sm:$0xff]
      %v641 = vld [vmem:[%s623 + $0x18] sm:$0xf]
      %v642 = vld [vmem:[%s623 + $0x1c] sm:$0xff]
      %v643 = vld [vmem:[%s623 + $0x24] sm:$0xff]
      %v644 = vld [vmem:[%s623 + $0x2c] sm:$0xff]
      %v645 = vld [vmem:[%s623 + $0x34] sm:$0xf]
      %v646 = vld [vmem:[%s623 + $0x38] sm:$0xff]
      %v647 = vld [vmem:[%s623 + $0x40] sm:$0xff]
      %v648 = vld [vmem:[%s623 + $0x48] sm:$0xff]
      %v649 = vld [vmem:[%s623 + $0x50] sm:$0xf]
      %v650 = vld [vmem:[%s623 + $0x54] sm:$0xff]
      %v651 = vld [vmem:[%s623 + $0x5c] sm:$0xff]
      %v652 = vld [vmem:[%s623 + $0x64] sm:$0xff]
      %v653 = vld [vmem:[%s623 + $0x6c] sm:$0xf]
      %v654 = vld [vmem:[%s623 + $0x70] sm:$0xff]
      %v655 = vld [vmem:[%s623 + $0x78] sm:$0xff]
      %v656 = vld [vmem:[%s623 + $0x80] sm:$0xff]
      %v657 = vld [vmem:[%s623 + $0x88] sm:$0xf]
      %v658 = vld [vmem:[%s623 + $0x8c] sm:$0xff]
      %v659 = vld [vmem:[%s623 + $0x94] sm:$0xff]
      %v660 = vld [vmem:[%s623 + $0x9c] sm:$0xff]
      %v661 = vld [vmem:[%s623 + $0xa4] sm:$0xf]
      %v662 = vld [vmem:[%s623 + $0xa8] sm:$0xff]
      %v663 = vld [vmem:[%s623 + $0xb0] sm:$0xff]
      %v664 = vld [vmem:[%s623 + $0xb8] sm:$0xff]
      %v665 = vld [vmem:[%s623 + $0xc0] sm:$0xf]
      %v666 = vld [vmem:[%s623 + $0xc4] sm:$0xff]
      %v667 = vld [vmem:[%s623 + $0xcc] sm:$0xff]
      %v668 = vld [vmem:[%s623 + $0xd4] sm:$0xff]
      %v669 = vld [vmem:[%s623 + $0xdc] sm:$0xf]
      %v670 = vld [vmem:[%s623 + $0xe0] sm:$0xff]
      %v671 = vld [vmem:[%s623 + $0xe8] sm:$0xff]
      %v672 = vld [vmem:[%s623 + $0xf0] sm:$0xff]
      %v673 = vld [vmem:[%s623 + $0xf8] sm:$0xf]
      %v674 = vld [vmem:[%s623 + $0xfc] sm:$0xff]
      %v675 = vld [vmem:[%s623 + $0x104] sm:$0xff]
      %v676 = vld [vmem:[%s623 + $0x10c] sm:$0xff]
      %v677 = vld [vmem:[%s623 + $0x114] sm:$0xf]
      %v678 = vld [vmem:[%s623 + $0x118] sm:$0xff]
      %v679 = vld [vmem:[%s623 + $0x120] sm:$0xff]
      %v680 = vld [vmem:[%s623 + $0x128] sm:$0xff]
      %v681 = vld [vmem:[%s623 + $0x130] sm:$0xf]
      %v682 = vld [vmem:[%s623 + $0x134] sm:$0xff]
      %v683 = vld [vmem:[%s623 + $0x13c] sm:$0xff]
      %v684 = vld [vmem:[%s623 + $0x144] sm:$0xff]
      %v685 = vld [vmem:[%s623 + $0x14c] sm:$0xf]
      %v686 = vld [vmem:[%s623 + $0x150] sm:$0xff]
      %v687 = vld [vmem:[%s623 + $0x158] sm:$0xff]
      %v688 = vld [vmem:[%s623 + $0x160] sm:$0xff]
      %v689 = vld [vmem:[%s623 + $0x168] sm:$0xf]
      %v690 = vld [vmem:[%s623 + $0x16c] sm:$0xff]
      %v691 = vld [vmem:[%s623 + $0x174] sm:$0xff]
      %v692 = vld [vmem:[%s623 + $0x17c] sm:$0xff]
      %v693 = vld [vmem:[%s623 + $0x184] sm:$0xf]
      %v694 = vld [vmem:[%s623 + $0x188] sm:$0xff]
      %v695 = vld [vmem:[%s623 + $0x190] sm:$0xff]
      %v696 = vld [vmem:[%s623 + $0x198] sm:$0xff]
      %v697 = vld [vmem:[%s623 + $0x1a0] sm:$0xf]
      %v698 = vld [vmem:[%s623 + $0x1a4] sm:$0xff]
      %v699 = vld [vmem:[%s623 + $0x1ac] sm:$0xff]
      %v700 = vld [vmem:[%s623 + $0x1b4] sm:$0xff]
      %v701 = vld [vmem:[%s623 + $0x1bc] sm:$0xf]
      %s702 = smul.u32 %s33, 128
      %v703 = vlaneseq
      %v704 = vshrl.u32 %v703, 7
      %v705 = vadd.s32 %v704, 8
      %v706 = vadd.s32 %v704, 16
      %v707 = vadd.s32 %v704, 24
      %v708 = vadd.s32 %v704, 32
      %v709 = vadd.s32 %v704, 40
      %v710 = vadd.s32 %v704, 48
      %v711 = vadd.s32 %v704, 56
      %v712 = vadd.s32 %v704, 64
      %v713 = vadd.s32 %v704, 72
      %v714 = vadd.s32 %v704, 80
      %v715 = vadd.s32 %v704, 88
      %v716 = vadd.s32 %v704, 96
      %v717 = vadd.s32 %v704, 104
      %v718 = vadd.s32 %v704, 112
      %v719 = vadd.s32 %v704, 120
      %v720 = vstv %s702
      %v721 = vadd.s32 %v720, %v704
      %v722 = vadd.s32 %v720, %v705
      %v723 = vadd.s32 %v720, %v706
      %v724 = vadd.s32 %v720, %v707
      %v725 = vadd.s32 %v720, %v708
      %v726 = vadd.s32 %v720, %v709
      %v727 = vadd.s32 %v720, %v710
      %v728 = vadd.s32 %v720, %v711
      %v729 = vadd.s32 %v720, %v712
      %v730 = vadd.s32 %v720, %v713
      %v731 = vadd.s32 %v720, %v714
      %v732 = vadd.s32 %v720, %v715
      %v733 = vadd.s32 %v720, %v716
      %v734 = vadd.s32 %v720, %v717
      %v735 = vadd.s32 %v720, %v718
      %v736 = vadd.s32 %v720, %v719
      %s737 = sld [smem:[#allocation3]]
      %v738 = vstv %s737
      %vm739 = vcmp.lt.s32.totalorder %v721, %v738
      %vm740 = vcmp.lt.s32.totalorder %v722, %v738
      %vm741 = vcmp.lt.s32.totalorder %v723, %v738
      %vm742 = vcmp.lt.s32.totalorder %v724, %v738
      %vm743 = vcmp.lt.s32.totalorder %v725, %v738
      %vm744 = vcmp.lt.s32.totalorder %v726, %v738
      %vm745 = vcmp.lt.s32.totalorder %v727, %v738
      %vm746 = vcmp.lt.s32.totalorder %v728, %v738
      %vm747 = vcmp.lt.s32.totalorder %v729, %v738
      %vm748 = vcmp.lt.s32.totalorder %v730, %v738
      %vm749 = vcmp.lt.s32.totalorder %v731, %v738
      %vm750 = vcmp.lt.s32.totalorder %v732, %v738
      %vm751 = vcmp.lt.s32.totalorder %v733, %v738
      %vm752 = vcmp.lt.s32.totalorder %v734, %v738
      %vm753 = vcmp.lt.s32.totalorder %v735, %v738
      %vm754 = vcmp.lt.s32.totalorder %v736, %v738
      %v755 = vsel %vm739, 1, 0
      %v756 = vsel %vm740, 1, 0
      %v757 = vsel %vm741, 1, 0
      %v758 = vsel %vm742, 1, 0
      %v759 = vsel %vm743, 1, 0
      %v760 = vsel %vm744, 1, 0
      %v761 = vsel %vm745, 1, 0
      %v762 = vsel %vm746, 1, 0
      %v763 = vsel %vm747, 1, 0
      %v764 = vsel %vm748, 1, 0
      %v765 = vsel %vm749, 1, 0
      %v766 = vsel %vm750, 1, 0
      %v767 = vsel %vm751, 1, 0
      %v768 = vsel %vm752, 1, 0
      %v769 = vsel %vm753, 1, 0
      %v770 = vsel %vm754, 1, 0
      %v771 = vcvt.s32.f32 %v755
      %v772 = vcvt.s32.f32 %v756
      %v773 = vcvt.s32.f32 %v757
      %v774 = vcvt.s32.f32 %v758
      %v775 = vcvt.s32.f32 %v759
      %v776 = vcvt.s32.f32 %v760
      %v777 = vcvt.s32.f32 %v761
      %v778 = vcvt.s32.f32 %v762
      %v779 = vcvt.s32.f32 %v763
      %v780 = vcvt.s32.f32 %v764
      %v781 = vcvt.s32.f32 %v765
      %v782 = vcvt.s32.f32 %v766
      %v783 = vcvt.s32.f32 %v767
      %v784 = vcvt.s32.f32 %v768
      %v785 = vcvt.s32.f32 %v769
      %v786 = vcvt.s32.f32 %v770
      %v787 = vld [vmem:[%s3] sm:$0xff]
      %v788 = vld [vmem:[%s3 + $0x8] sm:$0xff]
      %v789 = vld [vmem:[%s3 + $0x10] sm:$0xff]
      %v790 = vld [vmem:[%s3 + $0x18] sm:$0xff]
      %v791 = vld [vmem:[%s3 + $0x20] sm:$0xff]
      %v792 = vld [vmem:[%s3 + $0x28] sm:$0xff]
      %v793 = vld [vmem:[%s3 + $0x30] sm:$0xff]
      %v794 = vld [vmem:[%s3 + $0x38] sm:$0xff]
      %v795 = vld [vmem:[%s3 + $0x40] sm:$0xff]
      %v796 = vld [vmem:[%s3 + $0x48] sm:$0xff]
      %v797 = vld [vmem:[%s3 + $0x50] sm:$0xff]
      %v798 = vld [vmem:[%s3 + $0x58] sm:$0xff]
      %v799 = vld [vmem:[%s3 + $0x60] sm:$0xff]
      %v800 = vld [vmem:[%s3 + $0x68] sm:$0xff]
      %v801 = vld [vmem:[%s3 + $0x70] sm:$0xff]
      %v802 = vld [vmem:[%s3 + $0x78] sm:$0xff]
      %v803 = vld [vmem:[%s3 + $0x80] sm:$0xff]
      %v804 = vld [vmem:[%s3 + $0x88] sm:$0xff]
      %v805 = vld [vmem:[%s3 + $0x90] sm:$0xff]
      %v806 = vld [vmem:[%s3 + $0x98] sm:$0xff]
      %v807 = vld [vmem:[%s3 + $0xa0] sm:$0xff]
      %v808 = vld [vmem:[%s3 + $0xa8] sm:$0xff]
      %v809 = vld [vmem:[%s3 + $0xb0] sm:$0xff]
      %v810 = vld [vmem:[%s3 + $0xb8] sm:$0xff]
      %v811 = vld [vmem:[%s3 + $0xc0] sm:$0xff]
      %v812 = vld [vmem:[%s3 + $0xc8] sm:$0xff]
      %v813 = vld [vmem:[%s3 + $0xd0] sm:$0xff]
      %v814 = vld [vmem:[%s3 + $0xd8] sm:$0xff]
      %v815 = vld [vmem:[%s3 + $0xe0] sm:$0xff]
      %v816 = vld [vmem:[%s3 + $0xe8] sm:$0xff]
      %v817 = vld [vmem:[%s3 + $0xf0] sm:$0xff]
      %v818 = vld [vmem:[%s3 + $0xf8] sm:$0xff]
      %v819 = vld [vmem:[%s3 + $0x100] sm:$0xff]
      %v820 = vld [vmem:[%s3 + $0x108] sm:$0xff]
      %v821 = vld [vmem:[%s3 + $0x110] sm:$0xff]
      %v822 = vld [vmem:[%s3 + $0x118] sm:$0xff]
      %v823 = vld [vmem:[%s3 + $0x120] sm:$0xff]
      %v824 = vld [vmem:[%s3 + $0x128] sm:$0xff]
      %v825 = vld [vmem:[%s3 + $0x130] sm:$0xff]
      %v826 = vld [vmem:[%s3 + $0x138] sm:$0xff]
      %v827 = vld [vmem:[%s3 + $0x140] sm:$0xff]
      %v828 = vld [vmem:[%s3 + $0x148] sm:$0xff]
      %v829 = vld [vmem:[%s3 + $0x150] sm:$0xff]
      %v830 = vld [vmem:[%s3 + $0x158] sm:$0xff]
      %v831 = vld [vmem:[%s3 + $0x160] sm:$0xff]
      %v832 = vld [vmem:[%s3 + $0x168] sm:$0xff]
      %v833 = vld [vmem:[%s3 + $0x170] sm:$0xff]
      %v834 = vld [vmem:[%s3 + $0x178] sm:$0xff]
      %v835 = vld [vmem:[%s3 + $0x180] sm:$0xff]
      %v836 = vld [vmem:[%s3 + $0x188] sm:$0xff]
      %v837 = vld [vmem:[%s3 + $0x190] sm:$0xff]
      %v838 = vld [vmem:[%s3 + $0x198] sm:$0xff]
      %v839 = vld [vmem:[%s3 + $0x1a0] sm:$0xff]
      %v840 = vld [vmem:[%s3 + $0x1a8] sm:$0xff]
      %v841 = vld [vmem:[%s3 + $0x1b0] sm:$0xff]
      %v842 = vld [vmem:[%s3 + $0x1b8] sm:$0xff]
      %v843 = vld [vmem:[%s3 + $0x1c0] sm:$0xff]
      %v844 = vld [vmem:[%s3 + $0x1c8] sm:$0xff]
      %v845 = vld [vmem:[%s3 + $0x1d0] sm:$0xff]
      %v846 = vld [vmem:[%s3 + $0x1d8] sm:$0xff]
      %v847 = vld [vmem:[%s3 + $0x1e0] sm:$0xff]
      %v848 = vld [vmem:[%s3 + $0x1e8] sm:$0xff]
      %v849 = vld [vmem:[%s3 + $0x1f0] sm:$0xff]
      %v850 = vld [vmem:[%s3 + $0x1f8] sm:$0xff]
      %v851 = vld [vmem:[%s3 + $0x200] sm:$0xff]
      %v852 = vld [vmem:[%s3 + $0x208] sm:$0xff]
      %v853 = vld [vmem:[%s3 + $0x210] sm:$0xff]
      %v854 = vld [vmem:[%s3 + $0x218] sm:$0xff]
      %v855 = vld [vmem:[%s3 + $0x220] sm:$0xff]
      %v856 = vld [vmem:[%s3 + $0x228] sm:$0xff]
      %v857 = vld [vmem:[%s3 + $0x230] sm:$0xff]
      %v858 = vld [vmem:[%s3 + $0x238] sm:$0xff]
      %v859 = vld [vmem:[%s3 + $0x240] sm:$0xff]
      %v860 = vld [vmem:[%s3 + $0x248] sm:$0xff]
      %v861 = vld [vmem:[%s3 + $0x250] sm:$0xff]
      %v862 = vld [vmem:[%s3 + $0x258] sm:$0xff]
      %v863 = vld [vmem:[%s3 + $0x260] sm:$0xff]
      %v864 = vld [vmem:[%s3 + $0x268] sm:$0xff]
      %v865 = vld [vmem:[%s3 + $0x270] sm:$0xff]
      %v866 = vld [vmem:[%s3 + $0x278] sm:$0xff]
      %v867 = vld [vmem:[%s3 + $0x280] sm:$0xff]
      %v868 = vld [vmem:[%s3 + $0x288] sm:$0xff]
      %v869 = vld [vmem:[%s3 + $0x290] sm:$0xff]
      %v870 = vld [vmem:[%s3 + $0x298] sm:$0xff]
      %v871 = vld [vmem:[%s3 + $0x2a0] sm:$0xff]
      %v872 = vld [vmem:[%s3 + $0x2a8] sm:$0xff]
      %v873 = vld [vmem:[%s3 + $0x2b0] sm:$0xff]
      %v874 = vld [vmem:[%s3 + $0x2b8] sm:$0xff]
      %v875 = vld [vmem:[%s3 + $0x2c0] sm:$0xff]
      %v876 = vld [vmem:[%s3 + $0x2c8] sm:$0xff]
      %v877 = vld [vmem:[%s3 + $0x2d0] sm:$0xff]
      %v878 = vld [vmem:[%s3 + $0x2d8] sm:$0xff]
      %v879 = vld [vmem:[%s3 + $0x2e0] sm:$0xff]
      %v880 = vld [vmem:[%s3 + $0x2e8] sm:$0xff]
      %v881 = vld [vmem:[%s3 + $0x2f0] sm:$0xff]
      %v882 = vld [vmem:[%s3 + $0x2f8] sm:$0xff]
      %v883 = vld [vmem:[%s3 + $0x300] sm:$0xff]
      %v884 = vld [vmem:[%s3 + $0x308] sm:$0xff]
      %v885 = vld [vmem:[%s3 + $0x310] sm:$0xff]
      %v886 = vld [vmem:[%s3 + $0x318] sm:$0xff]
      %v887 = vld [vmem:[%s3 + $0x320] sm:$0xff]
      %v888 = vld [vmem:[%s3 + $0x328] sm:$0xff]
      %v889 = vld [vmem:[%s3 + $0x330] sm:$0xff]
      %v890 = vld [vmem:[%s3 + $0x338] sm:$0xff]
      %v891 = vld [vmem:[%s3 + $0x340] sm:$0xff]
      %v892 = vld [vmem:[%s3 + $0x348] sm:$0xff]
      %v893 = vld [vmem:[%s3 + $0x350] sm:$0xff]
      %v894 = vld [vmem:[%s3 + $0x358] sm:$0xff]
      %v895 = vld [vmem:[%s3 + $0x360] sm:$0xff]
      %v896 = vld [vmem:[%s3 + $0x368] sm:$0xff]
      %v897 = vld [vmem:[%s3 + $0x370] sm:$0xff]
      %v898 = vld [vmem:[%s3 + $0x378] sm:$0xff]
      %v899 = vld [vmem:[%s3 + $0x380] sm:$0xff]
      %v900 = vld [vmem:[%s3 + $0x388] sm:$0xff]
      %v901 = vld [vmem:[%s3 + $0x390] sm:$0xff]
      %v902 = vld [vmem:[%s3 + $0x398] sm:$0xff]
      %v903 = vld [vmem:[%s3 + $0x3a0] sm:$0xff]
      %v904 = vld [vmem:[%s3 + $0x3a8] sm:$0xff]
      %v905 = vld [vmem:[%s3 + $0x3b0] sm:$0xff]
      %v906 = vld [vmem:[%s3 + $0x3b8] sm:$0xff]
      %v907 = vld [vmem:[%s3 + $0x3c0] sm:$0xff]
      %v908 = vld [vmem:[%s3 + $0x3c8] sm:$0xff]
      %v909 = vld [vmem:[%s3 + $0x3d0] sm:$0xff]
      %v910 = vld [vmem:[%s3 + $0x3d8] sm:$0xff]
      %v911 = vld [vmem:[%s3 + $0x3e0] sm:$0xff]
      %v912 = vld [vmem:[%s3 + $0x3e8] sm:$0xff]
      %v913 = vld [vmem:[%s3 + $0x3f0] sm:$0xff]
      %v914 = vld [vmem:[%s3 + $0x3f8] sm:$0xff]
      %v915 = vld [vmem:[%s3 + $0x400] sm:$0xff]
      %v916 = vld [vmem:[%s3 + $0x408] sm:$0xff]
      %v917 = vld [vmem:[%s3 + $0x410] sm:$0xff]
      %v918 = vld [vmem:[%s3 + $0x418] sm:$0xff]
      %v919 = vld [vmem:[%s3 + $0x420] sm:$0xff]
      %v920 = vld [vmem:[%s3 + $0x428] sm:$0xff]
      %v921 = vld [vmem:[%s3 + $0x430] sm:$0xff]
      %v922 = vld [vmem:[%s3 + $0x438] sm:$0xff]
      %v923 = vld [vmem:[%s3 + $0x440] sm:$0xff]
      %v924 = vld [vmem:[%s3 + $0x448] sm:$0xff]
      %v925 = vld [vmem:[%s3 + $0x450] sm:$0xff]
      %v926 = vld [vmem:[%s3 + $0x458] sm:$0xff]
      %v927 = vld [vmem:[%s3 + $0x460] sm:$0xff]
      %v928 = vld [vmem:[%s3 + $0x468] sm:$0xff]
      %v929 = vld [vmem:[%s3 + $0x470] sm:$0xff]
      %v930 = vld [vmem:[%s3 + $0x478] sm:$0xff]
      %v931 = vld [vmem:[%s3 + $0x480] sm:$0xff]
      %v932 = vld [vmem:[%s3 + $0x488] sm:$0xff]
      %v933 = vld [vmem:[%s3 + $0x490] sm:$0xff]
      %v934 = vld [vmem:[%s3 + $0x498] sm:$0xff]
      %v935 = vld [vmem:[%s3 + $0x4a0] sm:$0xff]
      %v936 = vld [vmem:[%s3 + $0x4a8] sm:$0xff]
      %v937 = vld [vmem:[%s3 + $0x4b0] sm:$0xff]
      %v938 = vld [vmem:[%s3 + $0x4b8] sm:$0xff]
      %v939 = vld [vmem:[%s3 + $0x4c0] sm:$0xff]
      %v940 = vld [vmem:[%s3 + $0x4c8] sm:$0xff]
      %v941 = vld [vmem:[%s3 + $0x4d0] sm:$0xff]
      %v942 = vld [vmem:[%s3 + $0x4d8] sm:$0xff]
      %v943 = vld [vmem:[%s3 + $0x4e0] sm:$0xff]
      %v944 = vld [vmem:[%s3 + $0x4e8] sm:$0xff]
      %v945 = vld [vmem:[%s3 + $0x4f0] sm:$0xff]
      %v946 = vld [vmem:[%s3 + $0x4f8] sm:$0xff]
      %v947 = vld [vmem:[%s3 + $0x500] sm:$0xff]
      %v948 = vld [vmem:[%s3 + $0x508] sm:$0xff]
      %v949 = vld [vmem:[%s3 + $0x510] sm:$0xff]
      %v950 = vld [vmem:[%s3 + $0x518] sm:$0xff]
      %v951 = vld [vmem:[%s3 + $0x520] sm:$0xff]
      %v952 = vld [vmem:[%s3 + $0x528] sm:$0xff]
      %v953 = vld [vmem:[%s3 + $0x530] sm:$0xff]
      %v954 = vld [vmem:[%s3 + $0x538] sm:$0xff]
      %v955 = vld [vmem:[%s3 + $0x540] sm:$0xff]
      %v956 = vld [vmem:[%s3 + $0x548] sm:$0xff]
      %v957 = vld [vmem:[%s3 + $0x550] sm:$0xff]
      %v958 = vld [vmem:[%s3 + $0x558] sm:$0xff]
      %v959 = vld [vmem:[%s3 + $0x560] sm:$0xff]
      %v960 = vld [vmem:[%s3 + $0x568] sm:$0xff]
      %v961 = vld [vmem:[%s3 + $0x570] sm:$0xff]
      %v962 = vld [vmem:[%s3 + $0x578] sm:$0xff]
      %v963 = vld [vmem:[%s3 + $0x580] sm:$0xff]
      %v964 = vld [vmem:[%s3 + $0x588] sm:$0xff]
      %v965 = vld [vmem:[%s3 + $0x590] sm:$0xff]
      %v966 = vld [vmem:[%s3 + $0x598] sm:$0xff]
      %v967 = vld [vmem:[%s3 + $0x5a0] sm:$0xff]
      %v968 = vld [vmem:[%s3 + $0x5a8] sm:$0xff]
      %v969 = vld [vmem:[%s3 + $0x5b0] sm:$0xff]
      %v970 = vld [vmem:[%s3 + $0x5b8] sm:$0xff]
      %v971 = vld [vmem:[%s3 + $0x5c0] sm:$0xff]
      %v972 = vld [vmem:[%s3 + $0x5c8] sm:$0xff]
      %v973 = vld [vmem:[%s3 + $0x5d0] sm:$0xff]
      %v974 = vld [vmem:[%s3 + $0x5d8] sm:$0xff]
      %v975 = vld [vmem:[%s3 + $0x5e0] sm:$0xff]
      %v976 = vld [vmem:[%s3 + $0x5e8] sm:$0xff]
      %v977 = vld [vmem:[%s3 + $0x5f0] sm:$0xff]
      %v978 = vld [vmem:[%s3 + $0x5f8] sm:$0xff]
      %v979 = vld [vmem:[%s3 + $0x600] sm:$0xff]
      %v980 = vld [vmem:[%s3 + $0x608] sm:$0xff]
      %v981 = vld [vmem:[%s3 + $0x610] sm:$0xff]
      %v982 = vld [vmem:[%s3 + $0x618] sm:$0xff]
      %v983 = vld [vmem:[%s3 + $0x620] sm:$0xff]
      %v984 = vld [vmem:[%s3 + $0x628] sm:$0xff]
      %v985 = vld [vmem:[%s3 + $0x630] sm:$0xff]
      %v986 = vld [vmem:[%s3 + $0x638] sm:$0xff]
      %v987 = vld [vmem:[%s3 + $0x640] sm:$0xff]
      %v988 = vld [vmem:[%s3 + $0x648] sm:$0xff]
      %v989 = vld [vmem:[%s3 + $0x650] sm:$0xff]
      %v990 = vld [vmem:[%s3 + $0x658] sm:$0xff]
      %v991 = vld [vmem:[%s3 + $0x660] sm:$0xff]
      %v992 = vld [vmem:[%s3 + $0x668] sm:$0xff]
      %v993 = vld [vmem:[%s3 + $0x670] sm:$0xff]
      %v994 = vld [vmem:[%s3 + $0x678] sm:$0xff]
      %v995 = vld [vmem:[%s3 + $0x680] sm:$0xff]
      %v996 = vld [vmem:[%s3 + $0x688] sm:$0xff]
      %v997 = vld [vmem:[%s3 + $0x690] sm:$0xff]
      %v998 = vld [vmem:[%s3 + $0x698] sm:$0xff]
      %v999 = vld [vmem:[%s3 + $0x6a0] sm:$0xff]
      %v1000 = vld [vmem:[%s3 + $0x6a8] sm:$0xff]
      %v1001 = vld [vmem:[%s3 + $0x6b0] sm:$0xff]
      %v1002 = vld [vmem:[%s3 + $0x6b8] sm:$0xff]
      %v1003 = vld [vmem:[%s3 + $0x6c0] sm:$0xff]
      %v1004 = vld [vmem:[%s3 + $0x6c8] sm:$0xff]
      %v1005 = vld [vmem:[%s3 + $0x6d0] sm:$0xff]
      %v1006 = vld [vmem:[%s3 + $0x6d8] sm:$0xff]
      %v1007 = vld [vmem:[%s3 + $0x6e0] sm:$0xff]
      %v1008 = vld [vmem:[%s3 + $0x6e8] sm:$0xff]
      %v1009 = vld [vmem:[%s3 + $0x6f0] sm:$0xff]
      %v1010 = vld [vmem:[%s3 + $0x6f8] sm:$0xff]
      %v1011 = vld [vmem:[%s4] sm:$0xf]
      %v1013 = vlaneseq
      %v1014 = vshrl.u32 %v1013, 7
      %v1015 = vsub.s32 0, %v1014
      %v1016 = vrot.slane %v1011, %v1015
      %v1017 = vlaneseq
      %v1018 = vshrl.u32 %v1017, 7
      %v1019 = vsub.s32 1, %v1018
      %v1020 = vrot.slane %v1011, %v1019
      %v1021 = vlaneseq
      %v1022 = vshrl.u32 %v1021, 7
      %v1023 = vsub.s32 2, %v1022
      %v1024 = vrot.slane %v1011, %v1023
      %v1025 = vlaneseq
      %v1026 = vshrl.u32 %v1025, 7
      %v1027 = vsub.s32 3, %v1026
      %v1028 = vrot.slane %v1011, %v1027
      %v1097 = vunpack.c.l.b16 %v638
      %v1098 = vunpack.c.h.b16 %v638
      %v1099 = vunpack.c.l.b16 %v639
      %v1100 = vunpack.c.h.b16 %v639
      %v1101 = vunpack.c.l.b16 %v640
      %v1102 = vunpack.c.h.b16 %v640
      %v1103 = vunpack.c.l.b16 %v641
      %v1104 = vunpack.c.l.b16 %v642
      %v1105 = vunpack.c.h.b16 %v642
      %v1106 = vunpack.c.l.b16 %v643
      %v1107 = vunpack.c.h.b16 %v643
      %v1108 = vunpack.c.l.b16 %v644
      %v1109 = vunpack.c.h.b16 %v644
      %v1110 = vunpack.c.l.b16 %v645
      %v1111 = vunpack.c.l.b16 %v646
      %v1112 = vunpack.c.h.b16 %v646
      %v1113 = vunpack.c.l.b16 %v647
      %v1114 = vunpack.c.h.b16 %v647
      %v1115 = vunpack.c.l.b16 %v648
      %v1116 = vunpack.c.h.b16 %v648
      %v1117 = vunpack.c.l.b16 %v649
      %v1118 = vunpack.c.l.b16 %v650
      %v1119 = vunpack.c.h.b16 %v650
      %v1120 = vunpack.c.l.b16 %v651
      %v1121 = vunpack.c.h.b16 %v651
      %v1122 = vunpack.c.l.b16 %v652
      %v1123 = vunpack.c.h.b16 %v652
      %v1124 = vunpack.c.l.b16 %v653
      %v1125 = vunpack.c.l.b16 %v654
      %v1126 = vunpack.c.h.b16 %v654
      %v1127 = vunpack.c.l.b16 %v655
      %v1128 = vunpack.c.h.b16 %v655
      %v1129 = vunpack.c.l.b16 %v656
      %v1130 = vunpack.c.h.b16 %v656
      %v1131 = vunpack.c.l.b16 %v657
      %v1132 = vunpack.c.l.b16 %v658
      %v1133 = vunpack.c.h.b16 %v658
      %v1134 = vunpack.c.l.b16 %v659
      %v1135 = vunpack.c.h.b16 %v659
      %v1136 = vunpack.c.l.b16 %v660
      %v1137 = vunpack.c.h.b16 %v660
      %v1138 = vunpack.c.l.b16 %v661
      %v1139 = vunpack.c.l.b16 %v662
      %v1140 = vunpack.c.h.b16 %v662
      %v1141 = vunpack.c.l.b16 %v663
      %v1142 = vunpack.c.h.b16 %v663
      %v1143 = vunpack.c.l.b16 %v664
      %v1144 = vunpack.c.h.b16 %v664
      %v1145 = vunpack.c.l.b16 %v665
      %v1146 = vunpack.c.l.b16 %v666
      %v1147 = vunpack.c.h.b16 %v666
      %v1148 = vunpack.c.l.b16 %v667
      %v1149 = vunpack.c.h.b16 %v667
      %v1150 = vunpack.c.l.b16 %v668
      %v1151 = vunpack.c.h.b16 %v668
      %v1152 = vunpack.c.l.b16 %v669
      %v1153 = vunpack.c.l.b16 %v670
      %v1154 = vunpack.c.h.b16 %v670
      %v1155 = vunpack.c.l.b16 %v671
      %v1156 = vunpack.c.h.b16 %v671
      %v1157 = vunpack.c.l.b16 %v672
      %v1158 = vunpack.c.h.b16 %v672
      %v1159 = vunpack.c.l.b16 %v673
      %v1160 = vunpack.c.l.b16 %v674
      %v1161 = vunpack.c.h.b16 %v674
      %v1162 = vunpack.c.l.b16 %v675
      %v1163 = vunpack.c.h.b16 %v675
      %v1164 = vunpack.c.l.b16 %v676
      %v1165 = vunpack.c.h.b16 %v676
      %v1166 = vunpack.c.l.b16 %v677
      %v1167 = vunpack.c.l.b16 %v678
      %v1168 = vunpack.c.h.b16 %v678
      %v1169 = vunpack.c.l.b16 %v679
      %v1170 = vunpack.c.h.b16 %v679
      %v1171 = vunpack.c.l.b16 %v680
      %v1172 = vunpack.c.h.b16 %v680
      %v1173 = vunpack.c.l.b16 %v681
      %v1174 = vunpack.c.l.b16 %v682
      %v1175 = vunpack.c.h.b16 %v682
      %v1176 = vunpack.c.l.b16 %v683
      %v1177 = vunpack.c.h.b16 %v683
      %v1178 = vunpack.c.l.b16 %v684
      %v1179 = vunpack.c.h.b16 %v684
      %v1180 = vunpack.c.l.b16 %v685
      %v1181 = vunpack.c.l.b16 %v686
      %v1182 = vunpack.c.h.b16 %v686
      %v1183 = vunpack.c.l.b16 %v687
      %v1184 = vunpack.c.h.b16 %v687
      %v1185 = vunpack.c.l.b16 %v688
      %v1186 = vunpack.c.h.b16 %v688
      %v1187 = vunpack.c.l.b16 %v689
      %v1188 = vunpack.c.l.b16 %v690
      %v1189 = vunpack.c.h.b16 %v690
      %v1190 = vunpack.c.l.b16 %v691
      %v1191 = vunpack.c.h.b16 %v691
      %v1192 = vunpack.c.l.b16 %v692
      %v1193 = vunpack.c.h.b16 %v692
      %v1194 = vunpack.c.l.b16 %v693
      %v1195 = vunpack.c.l.b16 %v694
      %v1196 = vunpack.c.h.b16 %v694
      %v1197 = vunpack.c.l.b16 %v695
      %v1198 = vunpack.c.h.b16 %v695
      %v1199 = vunpack.c.l.b16 %v696
      %v1200 = vunpack.c.h.b16 %v696
      %v1201 = vunpack.c.l.b16 %v697
      %v1202 = vunpack.c.l.b16 %v698
      %v1203 = vunpack.c.h.b16 %v698
      %v1204 = vunpack.c.l.b16 %v699
      %v1205 = vunpack.c.h.b16 %v699
      %v1206 = vunpack.c.l.b16 %v700
      %v1207 = vunpack.c.h.b16 %v700
      %v1208 = vunpack.c.l.b16 %v701
      %v1209 = vpack.c.b16 %v1104, %v1097
      %v1210 = vpack.c.b16 %v1105, %v1098
      %v1211 = vpack.c.b16 %v1106, %v1099
      %v1212 = vpack.c.b16 %v1107, %v1100
      %v1213 = vpack.c.b16 %v1108, %v1101
      %v1214 = vpack.c.b16 %v1109, %v1102
      %v1215 = vpack.c.b16 %v1110, %v1103
      %v1216 = vpack.c.b16 %v1118, %v1111
      %v1217 = vpack.c.b16 %v1119, %v1112
      %v1218 = vpack.c.b16 %v1120, %v1113
      %v1219 = vpack.c.b16 %v1121, %v1114
      %v1220 = vpack.c.b16 %v1122, %v1115
      %v1221 = vpack.c.b16 %v1123, %v1116
      %v1222 = vpack.c.b16 %v1124, %v1117
      %v1223 = vpack.c.b16 %v1132, %v1125
      %v1224 = vpack.c.b16 %v1133, %v1126
      %v1225 = vpack.c.b16 %v1134, %v1127
      %v1226 = vpack.c.b16 %v1135, %v1128
      %v1227 = vpack.c.b16 %v1136, %v1129
      %v1228 = vpack.c.b16 %v1137, %v1130
      %v1229 = vpack.c.b16 %v1138, %v1131
      %v1230 = vpack.c.b16 %v1146, %v1139
      %v1231 = vpack.c.b16 %v1147, %v1140
      %v1232 = vpack.c.b16 %v1148, %v1141
      %v1233 = vpack.c.b16 %v1149, %v1142
      %v1234 = vpack.c.b16 %v1150, %v1143
      %v1235 = vpack.c.b16 %v1151, %v1144
      %v1236 = vpack.c.b16 %v1152, %v1145
      %v1237 = vpack.c.b16 %v1160, %v1153
      %v1238 = vpack.c.b16 %v1161, %v1154
      %v1239 = vpack.c.b16 %v1162, %v1155
      %v1240 = vpack.c.b16 %v1163, %v1156
      %v1241 = vpack.c.b16 %v1164, %v1157
      %v1242 = vpack.c.b16 %v1165, %v1158
      %v1243 = vpack.c.b16 %v1166, %v1159
      %v1244 = vpack.c.b16 %v1174, %v1167
      %v1245 = vpack.c.b16 %v1175, %v1168
      %v1246 = vpack.c.b16 %v1176, %v1169
      %v1247 = vpack.c.b16 %v1177, %v1170
      %v1248 = vpack.c.b16 %v1178, %v1171
      %v1249 = vpack.c.b16 %v1179, %v1172
      %v1250 = vpack.c.b16 %v1180, %v1173
      %v1251 = vpack.c.b16 %v1188, %v1181
      %v1252 = vpack.c.b16 %v1189, %v1182
      %v1253 = vpack.c.b16 %v1190, %v1183
      %v1254 = vpack.c.b16 %v1191, %v1184
      %v1255 = vpack.c.b16 %v1192, %v1185
      %v1256 = vpack.c.b16 %v1193, %v1186
      %v1257 = vpack.c.b16 %v1194, %v1187
      %v1258 = vpack.c.b16 %v1202, %v1195
      %v1259 = vpack.c.b16 %v1203, %v1196
      %v1260 = vpack.c.b16 %v1204, %v1197
      %v1261 = vpack.c.b16 %v1205, %v1198
      %v1262 = vpack.c.b16 %v1206, %v1199
      %v1263 = vpack.c.b16 %v1207, %v1200
      %v1264 = vpack.c.b16 %v1208, %v1201
      %v1545 = vunpack.c.l.b16 %v787
      %v1546 = vunpack.c.h.b16 %v787
      %v1547 = vunpack.c.l.b16 %v788
      %v1548 = vunpack.c.h.b16 %v788
      %v1549 = vunpack.c.l.b16 %v789
      %v1550 = vunpack.c.h.b16 %v789
      %v1551 = vunpack.c.l.b16 %v790
      %v1552 = vunpack.c.h.b16 %v790
      %v1553 = vunpack.c.l.b16 %v791
      %v1554 = vunpack.c.h.b16 %v791
      %v1555 = vunpack.c.l.b16 %v792
      %v1556 = vunpack.c.h.b16 %v792
      %v1557 = vunpack.c.l.b16 %v793
      %v1558 = vunpack.c.h.b16 %v793
      %v1559 = vunpack.c.l.b16 %v794
      %v1560 = vunpack.c.h.b16 %v794
      %v1561 = vunpack.c.l.b16 %v795
      %v1562 = vunpack.c.h.b16 %v795
      %v1563 = vunpack.c.l.b16 %v796
      %v1564 = vunpack.c.h.b16 %v796
      %v1565 = vunpack.c.l.b16 %v797
      %v1566 = vunpack.c.h.b16 %v797
      %v1567 = vunpack.c.l.b16 %v798
      %v1568 = vunpack.c.h.b16 %v798
      %v1569 = vunpack.c.l.b16 %v799
      %v1570 = vunpack.c.h.b16 %v799
      %v1571 = vunpack.c.l.b16 %v800
      %v1572 = vunpack.c.h.b16 %v800
      %v1573 = vunpack.c.l.b16 %v801
      %v1574 = vunpack.c.h.b16 %v801
      %v1575 = vunpack.c.l.b16 %v802
      %v1576 = vunpack.c.h.b16 %v802
      %v1577 = vunpack.c.l.b16 %v803
      %v1578 = vunpack.c.h.b16 %v803
      %v1579 = vunpack.c.l.b16 %v804
      %v1580 = vunpack.c.h.b16 %v804
      %v1581 = vunpack.c.l.b16 %v805
      %v1582 = vunpack.c.h.b16 %v805
      %v1583 = vunpack.c.l.b16 %v806
      %v1584 = vunpack.c.h.b16 %v806
      %v1585 = vunpack.c.l.b16 %v807
      %v1586 = vunpack.c.h.b16 %v807
      %v1587 = vunpack.c.l.b16 %v808
      %v1588 = vunpack.c.h.b16 %v808
      %v1589 = vunpack.c.l.b16 %v809
      %v1590 = vunpack.c.h.b16 %v809
      %v1591 = vunpack.c.l.b16 %v810
      %v1592 = vunpack.c.h.b16 %v810
      %v1593 = vunpack.c.l.b16 %v811
      %v1594 = vunpack.c.h.b16 %v811
      %v1595 = vunpack.c.l.b16 %v812
      %v1596 = vunpack.c.h.b16 %v812
      %v1597 = vunpack.c.l.b16 %v813
      %v1598 = vunpack.c.h.b16 %v813
      %v1599 = vunpack.c.l.b16 %v814
      %v1600 = vunpack.c.h.b16 %v814
      %v1601 = vunpack.c.l.b16 %v815
      %v1602 = vunpack.c.h.b16 %v815
      %v1603 = vunpack.c.l.b16 %v816
      %v1604 = vunpack.c.h.b16 %v816
      %v1605 = vunpack.c.l.b16 %v817
      %v1606 = vunpack.c.h.b16 %v817
      %v1607 = vunpack.c.l.b16 %v818
      %v1608 = vunpack.c.h.b16 %v818
      %v1609 = vunpack.c.l.b16 %v819
      %v1610 = vunpack.c.h.b16 %v819
      %v1611 = vunpack.c.l.b16 %v820
      %v1612 = vunpack.c.h.b16 %v820
      %v1613 = vunpack.c.l.b16 %v821
      %v1614 = vunpack.c.h.b16 %v821
      %v1615 = vunpack.c.l.b16 %v822
      %v1616 = vunpack.c.h.b16 %v822
      %v1617 = vunpack.c.l.b16 %v823
      %v1618 = vunpack.c.h.b16 %v823
      %v1619 = vunpack.c.l.b16 %v824
      %v1620 = vunpack.c.h.b16 %v824
      %v1621 = vunpack.c.l.b16 %v825
      %v1622 = vunpack.c.h.b16 %v825
      %v1623 = vunpack.c.l.b16 %v826
      %v1624 = vunpack.c.h.b16 %v826
      %v1625 = vunpack.c.l.b16 %v827
      %v1626 = vunpack.c.h.b16 %v827
      %v1627 = vunpack.c.l.b16 %v828
      %v1628 = vunpack.c.h.b16 %v828
      %v1629 = vunpack.c.l.b16 %v829
      %v1630 = vunpack.c.h.b16 %v829
      %v1631 = vunpack.c.l.b16 %v830
      %v1632 = vunpack.c.h.b16 %v830
      %v1633 = vunpack.c.l.b16 %v831
      %v1634 = vunpack.c.h.b16 %v831
      %v1635 = vunpack.c.l.b16 %v832
      %v1636 = vunpack.c.h.b16 %v832
      %v1637 = vunpack.c.l.b16 %v833
      %v1638 = vunpack.c.h.b16 %v833
      %v1639 = vunpack.c.l.b16 %v834
      %v1640 = vunpack.c.h.b16 %v834
      %v1641 = vunpack.c.l.b16 %v835
      %v1642 = vunpack.c.h.b16 %v835
      %v1643 = vunpack.c.l.b16 %v836
      %v1644 = vunpack.c.h.b16 %v836
      %v1645 = vunpack.c.l.b16 %v837
      %v1646 = vunpack.c.h.b16 %v837
      %v1647 = vunpack.c.l.b16 %v838
      %v1648 = vunpack.c.h.b16 %v838
      %v1649 = vunpack.c.l.b16 %v839
      %v1650 = vunpack.c.h.b16 %v839
      %v1651 = vunpack.c.l.b16 %v840
      %v1652 = vunpack.c.h.b16 %v840
      %v1653 = vunpack.c.l.b16 %v841
      %v1654 = vunpack.c.h.b16 %v841
      %v1655 = vunpack.c.l.b16 %v842
      %v1656 = vunpack.c.h.b16 %v842
      %v1657 = vunpack.c.l.b16 %v843
      %v1658 = vunpack.c.h.b16 %v843
      %v1659 = vunpack.c.l.b16 %v844
      %v1660 = vunpack.c.h.b16 %v844
      %v1661 = vunpack.c.l.b16 %v845
      %v1662 = vunpack.c.h.b16 %v845
      %v1663 = vunpack.c.l.b16 %v846
      %v1664 = vunpack.c.h.b16 %v846
      %v1665 = vunpack.c.l.b16 %v847
      %v1666 = vunpack.c.h.b16 %v847
      %v1667 = vunpack.c.l.b16 %v848
      %v1668 = vunpack.c.h.b16 %v848
      %v1669 = vunpack.c.l.b16 %v849
      %v1670 = vunpack.c.h.b16 %v849
      %v1671 = vunpack.c.l.b16 %v850
      %v1672 = vunpack.c.h.b16 %v850
      %v1673 = vunpack.c.l.b16 %v851
      %v1674 = vunpack.c.h.b16 %v851
      %v1675 = vunpack.c.l.b16 %v852
      %v1676 = vunpack.c.h.b16 %v852
      %v1677 = vunpack.c.l.b16 %v853
      %v1678 = vunpack.c.h.b16 %v853
      %v1679 = vunpack.c.l.b16 %v854
      %v1680 = vunpack.c.h.b16 %v854
      %v1681 = vunpack.c.l.b16 %v855
      %v1682 = vunpack.c.h.b16 %v855
      %v1683 = vunpack.c.l.b16 %v856
      %v1684 = vunpack.c.h.b16 %v856
      %v1685 = vunpack.c.l.b16 %v857
      %v1686 = vunpack.c.h.b16 %v857
      %v1687 = vunpack.c.l.b16 %v858
      %v1688 = vunpack.c.h.b16 %v858
      %v1689 = vunpack.c.l.b16 %v859
      %v1690 = vunpack.c.h.b16 %v859
      %v1691 = vunpack.c.l.b16 %v860
      %v1692 = vunpack.c.h.b16 %v860
      %v1693 = vunpack.c.l.b16 %v861
      %v1694 = vunpack.c.h.b16 %v861
      %v1695 = vunpack.c.l.b16 %v862
      %v1696 = vunpack.c.h.b16 %v862
      %v1697 = vunpack.c.l.b16 %v863
      %v1698 = vunpack.c.h.b16 %v863
      %v1699 = vunpack.c.l.b16 %v864
      %v1700 = vunpack.c.h.b16 %v864
      %v1701 = vunpack.c.l.b16 %v865
      %v1702 = vunpack.c.h.b16 %v865
      %v1703 = vunpack.c.l.b16 %v866
      %v1704 = vunpack.c.h.b16 %v866
      %v1705 = vunpack.c.l.b16 %v867
      %v1706 = vunpack.c.h.b16 %v867
      %v1707 = vunpack.c.l.b16 %v868
      %v1708 = vunpack.c.h.b16 %v868
      %v1709 = vunpack.c.l.b16 %v869
      %v1710 = vunpack.c.h.b16 %v869
      %v1711 = vunpack.c.l.b16 %v870
      %v1712 = vunpack.c.h.b16 %v870
      %v1713 = vunpack.c.l.b16 %v871
      %v1714 = vunpack.c.h.b16 %v871
      %v1715 = vunpack.c.l.b16 %v872
      %v1716 = vunpack.c.h.b16 %v872
      %v1717 = vunpack.c.l.b16 %v873
      %v1718 = vunpack.c.h.b16 %v873
      %v1719 = vunpack.c.l.b16 %v874
      %v1720 = vunpack.c.h.b16 %v874
      %v1721 = vunpack.c.l.b16 %v875
      %v1722 = vunpack.c.h.b16 %v875
      %v1723 = vunpack.c.l.b16 %v876
      %v1724 = vunpack.c.h.b16 %v876
      %v1725 = vunpack.c.l.b16 %v877
      %v1726 = vunpack.c.h.b16 %v877
      %v1727 = vunpack.c.l.b16 %v878
      %v1728 = vunpack.c.h.b16 %v878
      %v1729 = vunpack.c.l.b16 %v879
      %v1730 = vunpack.c.h.b16 %v879
      %v1731 = vunpack.c.l.b16 %v880
      %v1732 = vunpack.c.h.b16 %v880
      %v1733 = vunpack.c.l.b16 %v881
      %v1734 = vunpack.c.h.b16 %v881
      %v1735 = vunpack.c.l.b16 %v882
      %v1736 = vunpack.c.h.b16 %v882
      %v1737 = vunpack.c.l.b16 %v883
      %v1738 = vunpack.c.h.b16 %v883
      %v1739 = vunpack.c.l.b16 %v884
      %v1740 = vunpack.c.h.b16 %v884
      %v1741 = vunpack.c.l.b16 %v885
      %v1742 = vunpack.c.h.b16 %v885
      %v1743 = vunpack.c.l.b16 %v886
      %v1744 = vunpack.c.h.b16 %v886
      %v1745 = vunpack.c.l.b16 %v887
      %v1746 = vunpack.c.h.b16 %v887
      %v1747 = vunpack.c.l.b16 %v888
      %v1748 = vunpack.c.h.b16 %v888
      %v1749 = vunpack.c.l.b16 %v889
      %v1750 = vunpack.c.h.b16 %v889
      %v1751 = vunpack.c.l.b16 %v890
      %v1752 = vunpack.c.h.b16 %v890
      %v1753 = vunpack.c.l.b16 %v891
      %v1754 = vunpack.c.h.b16 %v891
      %v1755 = vunpack.c.l.b16 %v892
      %v1756 = vunpack.c.h.b16 %v892
      %v1757 = vunpack.c.l.b16 %v893
      %v1758 = vunpack.c.h.b16 %v893
      %v1759 = vunpack.c.l.b16 %v894
      %v1760 = vunpack.c.h.b16 %v894
      %v1761 = vunpack.c.l.b16 %v895
      %v1762 = vunpack.c.h.b16 %v895
      %v1763 = vunpack.c.l.b16 %v896
      %v1764 = vunpack.c.h.b16 %v896
      %v1765 = vunpack.c.l.b16 %v897
      %v1766 = vunpack.c.h.b16 %v897
      %v1767 = vunpack.c.l.b16 %v898
      %v1768 = vunpack.c.h.b16 %v898
      %v1769 = vunpack.c.l.b16 %v899
      %v1770 = vunpack.c.h.b16 %v899
      %v1771 = vunpack.c.l.b16 %v900
      %v1772 = vunpack.c.h.b16 %v900
      %v1773 = vunpack.c.l.b16 %v901
      %v1774 = vunpack.c.h.b16 %v901
      %v1775 = vunpack.c.l.b16 %v902
      %v1776 = vunpack.c.h.b16 %v902
      %v1777 = vunpack.c.l.b16 %v903
      %v1778 = vunpack.c.h.b16 %v903
      %v1779 = vunpack.c.l.b16 %v904
      %v1780 = vunpack.c.h.b16 %v904
      %v1781 = vunpack.c.l.b16 %v905
      %v1782 = vunpack.c.h.b16 %v905
      %v1783 = vunpack.c.l.b16 %v906
      %v1784 = vunpack.c.h.b16 %v906
      %v1785 = vunpack.c.l.b16 %v907
      %v1786 = vunpack.c.h.b16 %v907
      %v1787 = vunpack.c.l.b16 %v908
      %v1788 = vunpack.c.h.b16 %v908
      %v1789 = vunpack.c.l.b16 %v909
      %v1790 = vunpack.c.h.b16 %v909
      %v1791 = vunpack.c.l.b16 %v910
      %v1792 = vunpack.c.h.b16 %v910
      %v1793 = vunpack.c.l.b16 %v911
      %v1794 = vunpack.c.h.b16 %v911
      %v1795 = vunpack.c.l.b16 %v912
      %v1796 = vunpack.c.h.b16 %v912
      %v1797 = vunpack.c.l.b16 %v913
      %v1798 = vunpack.c.h.b16 %v913
      %v1799 = vunpack.c.l.b16 %v914
      %v1800 = vunpack.c.h.b16 %v914
      %v1801 = vunpack.c.l.b16 %v915
      %v1802 = vunpack.c.h.b16 %v915
      %v1803 = vunpack.c.l.b16 %v916
      %v1804 = vunpack.c.h.b16 %v916
      %v1805 = vunpack.c.l.b16 %v917
      %v1806 = vunpack.c.h.b16 %v917
      %v1807 = vunpack.c.l.b16 %v918
      %v1808 = vunpack.c.h.b16 %v918
      %v1809 = vunpack.c.l.b16 %v919
      %v1810 = vunpack.c.h.b16 %v919
      %v1811 = vunpack.c.l.b16 %v920
      %v1812 = vunpack.c.h.b16 %v920
      %v1813 = vunpack.c.l.b16 %v921
      %v1814 = vunpack.c.h.b16 %v921
      %v1815 = vunpack.c.l.b16 %v922
      %v1816 = vunpack.c.h.b16 %v922
      %v1817 = vunpack.c.l.b16 %v923
      %v1818 = vunpack.c.h.b16 %v923
      %v1819 = vunpack.c.l.b16 %v924
      %v1820 = vunpack.c.h.b16 %v924
      %v1821 = vunpack.c.l.b16 %v925
      %v1822 = vunpack.c.h.b16 %v925
      %v1823 = vunpack.c.l.b16 %v926
      %v1824 = vunpack.c.h.b16 %v926
      %v1825 = vunpack.c.l.b16 %v927
      %v1826 = vunpack.c.h.b16 %v927
      %v1827 = vunpack.c.l.b16 %v928
      %v1828 = vunpack.c.h.b16 %v928
      %v1829 = vunpack.c.l.b16 %v929
      %v1830 = vunpack.c.h.b16 %v929
      %v1831 = vunpack.c.l.b16 %v930
      %v1832 = vunpack.c.h.b16 %v930
      %v1833 = vunpack.c.l.b16 %v931
      %v1834 = vunpack.c.h.b16 %v931
      %v1835 = vunpack.c.l.b16 %v932
      %v1836 = vunpack.c.h.b16 %v932
      %v1837 = vunpack.c.l.b16 %v933
      %v1838 = vunpack.c.h.b16 %v933
      %v1839 = vunpack.c.l.b16 %v934
      %v1840 = vunpack.c.h.b16 %v934
      %v1841 = vunpack.c.l.b16 %v935
      %v1842 = vunpack.c.h.b16 %v935
      %v1843 = vunpack.c.l.b16 %v936
      %v1844 = vunpack.c.h.b16 %v936
      %v1845 = vunpack.c.l.b16 %v937
      %v1846 = vunpack.c.h.b16 %v937
      %v1847 = vunpack.c.l.b16 %v938
      %v1848 = vunpack.c.h.b16 %v938
      %v1849 = vunpack.c.l.b16 %v939
      %v1850 = vunpack.c.h.b16 %v939
      %v1851 = vunpack.c.l.b16 %v940
      %v1852 = vunpack.c.h.b16 %v940
      %v1853 = vunpack.c.l.b16 %v941
      %v1854 = vunpack.c.h.b16 %v941
      %v1855 = vunpack.c.l.b16 %v942
      %v1856 = vunpack.c.h.b16 %v942
      %v1857 = vunpack.c.l.b16 %v943
      %v1858 = vunpack.c.h.b16 %v943
      %v1859 = vunpack.c.l.b16 %v944
      %v1860 = vunpack.c.h.b16 %v944
      %v1861 = vunpack.c.l.b16 %v945
      %v1862 = vunpack.c.h.b16 %v945
      %v1863 = vunpack.c.l.b16 %v946
      %v1864 = vunpack.c.h.b16 %v946
      %v1865 = vunpack.c.l.b16 %v947
      %v1866 = vunpack.c.h.b16 %v947
      %v1867 = vunpack.c.l.b16 %v948
      %v1868 = vunpack.c.h.b16 %v948
      %v1869 = vunpack.c.l.b16 %v949
      %v1870 = vunpack.c.h.b16 %v949
      %v1871 = vunpack.c.l.b16 %v950
      %v1872 = vunpack.c.h.b16 %v950
      %v1873 = vunpack.c.l.b16 %v951
      %v1874 = vunpack.c.h.b16 %v951
      %v1875 = vunpack.c.l.b16 %v952
      %v1876 = vunpack.c.h.b16 %v952
      %v1877 = vunpack.c.l.b16 %v953
      %v1878 = vunpack.c.h.b16 %v953
      %v1879 = vunpack.c.l.b16 %v954
      %v1880 = vunpack.c.h.b16 %v954
      %v1881 = vunpack.c.l.b16 %v955
      %v1882 = vunpack.c.h.b16 %v955
      %v1883 = vunpack.c.l.b16 %v956
      %v1884 = vunpack.c.h.b16 %v956
      %v1885 = vunpack.c.l.b16 %v957
      %v1886 = vunpack.c.h.b16 %v957
      %v1887 = vunpack.c.l.b16 %v958
      %v1888 = vunpack.c.h.b16 %v958
      %v1889 = vunpack.c.l.b16 %v959
      %v1890 = vunpack.c.h.b16 %v959
      %v1891 = vunpack.c.l.b16 %v960
      %v1892 = vunpack.c.h.b16 %v960
      %v1893 = vunpack.c.l.b16 %v961
      %v1894 = vunpack.c.h.b16 %v961
      %v1895 = vunpack.c.l.b16 %v962
      %v1896 = vunpack.c.h.b16 %v962
      %v1897 = vunpack.c.l.b16 %v963
      %v1898 = vunpack.c.h.b16 %v963
      %v1899 = vunpack.c.l.b16 %v964
      %v1900 = vunpack.c.h.b16 %v964
      %v1901 = vunpack.c.l.b16 %v965
      %v1902 = vunpack.c.h.b16 %v965
      %v1903 = vunpack.c.l.b16 %v966
      %v1904 = vunpack.c.h.b16 %v966
      %v1905 = vunpack.c.l.b16 %v967
      %v1906 = vunpack.c.h.b16 %v967
      %v1907 = vunpack.c.l.b16 %v968
      %v1908 = vunpack.c.h.b16 %v968
      %v1909 = vunpack.c.l.b16 %v969
      %v1910 = vunpack.c.h.b16 %v969
      %v1911 = vunpack.c.l.b16 %v970
      %v1912 = vunpack.c.h.b16 %v970
      %v1913 = vunpack.c.l.b16 %v971
      %v1914 = vunpack.c.h.b16 %v971
      %v1915 = vunpack.c.l.b16 %v972
      %v1916 = vunpack.c.h.b16 %v972
      %v1917 = vunpack.c.l.b16 %v973
      %v1918 = vunpack.c.h.b16 %v973
      %v1919 = vunpack.c.l.b16 %v974
      %v1920 = vunpack.c.h.b16 %v974
      %v1921 = vunpack.c.l.b16 %v975
      %v1922 = vunpack.c.h.b16 %v975
      %v1923 = vunpack.c.l.b16 %v976
      %v1924 = vunpack.c.h.b16 %v976
      %v1925 = vunpack.c.l.b16 %v977
      %v1926 = vunpack.c.h.b16 %v977
      %v1927 = vunpack.c.l.b16 %v978
      %v1928 = vunpack.c.h.b16 %v978
      %v1929 = vunpack.c.l.b16 %v979
      %v1930 = vunpack.c.h.b16 %v979
      %v1931 = vunpack.c.l.b16 %v980
      %v1932 = vunpack.c.h.b16 %v980
      %v1933 = vunpack.c.l.b16 %v981
      %v1934 = vunpack.c.h.b16 %v981
      %v1935 = vunpack.c.l.b16 %v982
      %v1936 = vunpack.c.h.b16 %v982
      %v1937 = vunpack.c.l.b16 %v983
      %v1938 = vunpack.c.h.b16 %v983
      %v1939 = vunpack.c.l.b16 %v984
      %v1940 = vunpack.c.h.b16 %v984
      %v1941 = vunpack.c.l.b16 %v985
      %v1942 = vunpack.c.h.b16 %v985
      %v1943 = vunpack.c.l.b16 %v986
      %v1944 = vunpack.c.h.b16 %v986
      %v1945 = vunpack.c.l.b16 %v987
      %v1946 = vunpack.c.h.b16 %v987
      %v1947 = vunpack.c.l.b16 %v988
      %v1948 = vunpack.c.h.b16 %v988
      %v1949 = vunpack.c.l.b16 %v989
      %v1950 = vunpack.c.h.b16 %v989
      %v1951 = vunpack.c.l.b16 %v990
      %v1952 = vunpack.c.h.b16 %v990
      %v1953 = vunpack.c.l.b16 %v991
      %v1954 = vunpack.c.h.b16 %v991
      %v1955 = vunpack.c.l.b16 %v992
      %v1956 = vunpack.c.h.b16 %v992
      %v1957 = vunpack.c.l.b16 %v993
      %v1958 = vunpack.c.h.b16 %v993
      %v1959 = vunpack.c.l.b16 %v994
      %v1960 = vunpack.c.h.b16 %v994
      %v1961 = vunpack.c.l.b16 %v995
      %v1962 = vunpack.c.h.b16 %v995
      %v1963 = vunpack.c.l.b16 %v996
      %v1964 = vunpack.c.h.b16 %v996
      %v1965 = vunpack.c.l.b16 %v997
      %v1966 = vunpack.c.h.b16 %v997
      %v1967 = vunpack.c.l.b16 %v998
      %v1968 = vunpack.c.h.b16 %v998
      %v1969 = vunpack.c.l.b16 %v999
      %v1970 = vunpack.c.h.b16 %v999
      %v1971 = vunpack.c.l.b16 %v1000
      %v1972 = vunpack.c.h.b16 %v1000
      %v1973 = vunpack.c.l.b16 %v1001
      %v1974 = vunpack.c.h.b16 %v1001
      %v1975 = vunpack.c.l.b16 %v1002
      %v1976 = vunpack.c.h.b16 %v1002
      %v1977 = vunpack.c.l.b16 %v1003
      %v1978 = vunpack.c.h.b16 %v1003
      %v1979 = vunpack.c.l.b16 %v1004
      %v1980 = vunpack.c.h.b16 %v1004
      %v1981 = vunpack.c.l.b16 %v1005
      %v1982 = vunpack.c.h.b16 %v1005
      %v1983 = vunpack.c.l.b16 %v1006
      %v1984 = vunpack.c.h.b16 %v1006
      %v1985 = vunpack.c.l.b16 %v1007
      %v1986 = vunpack.c.h.b16 %v1007
      %v1987 = vunpack.c.l.b16 %v1008
      %v1988 = vunpack.c.h.b16 %v1008
      %v1989 = vunpack.c.l.b16 %v1009
      %v1990 = vunpack.c.h.b16 %v1009
      %v1991 = vunpack.c.l.b16 %v1010
      %v1992 = vunpack.c.h.b16 %v1010
      %v1993 = vpack.c.b16 %v1549, %v1545
      %v1994 = vpack.c.b16 %v1550, %v1546
      %v1995 = vpack.c.b16 %v1551, %v1547
      %v1996 = vpack.c.b16 %v1552, %v1548
      %v1997 = vpack.c.b16 %v1557, %v1553
      %v1998 = vpack.c.b16 %v1558, %v1554
      %v1999 = vpack.c.b16 %v1559, %v1555
      %v2000 = vpack.c.b16 %v1560, %v1556
      %v2001 = vpack.c.b16 %v1565, %v1561
      %v2002 = vpack.c.b16 %v1566, %v1562
      %v2003 = vpack.c.b16 %v1567, %v1563
      %v2004 = vpack.c.b16 %v1568, %v1564
      %v2005 = vpack.c.b16 %v1573, %v1569
      %v2006 = vpack.c.b16 %v1574, %v1570
      %v2007 = vpack.c.b16 %v1575, %v1571
      %v2008 = vpack.c.b16 %v1576, %v1572
      %v2009 = vpack.c.b16 %v1581, %v1577
      %v2010 = vpack.c.b16 %v1582, %v1578
      %v2011 = vpack.c.b16 %v1583, %v1579
      %v2012 = vpack.c.b16 %v1584, %v1580
      %v2013 = vpack.c.b16 %v1589, %v1585
      %v2014 = vpack.c.b16 %v1590, %v1586
      %v2015 = vpack.c.b16 %v1591, %v1587
      %v2016 = vpack.c.b16 %v1592, %v1588
      %v2017 = vpack.c.b16 %v1597, %v1593
      %v2018 = vpack.c.b16 %v1598, %v1594
      %v2019 = vpack.c.b16 %v1599, %v1595
      %v2020 = vpack.c.b16 %v1600, %v1596
      %v2021 = vpack.c.b16 %v1605, %v1601
      %v2022 = vpack.c.b16 %v1606, %v1602
      %v2023 = vpack.c.b16 %v1607, %v1603
      %v2024 = vpack.c.b16 %v1608, %v1604
      %v2025 = vpack.c.b16 %v1613, %v1609
      %v2026 = vpack.c.b16 %v1614, %v1610
      %v2027 = vpack.c.b16 %v1615, %v1611
      %v2028 = vpack.c.b16 %v1616, %v1612
      %v2029 = vpack.c.b16 %v1621, %v1617
      %v2030 = vpack.c.b16 %v1622, %v1618
      %v2031 = vpack.c.b16 %v1623, %v1619
      %v2032 = vpack.c.b16 %v1624, %v1620
      %v2033 = vpack.c.b16 %v1629, %v1625
      %v2034 = vpack.c.b16 %v1630, %v1626
      %v2035 = vpack.c.b16 %v1631, %v1627
      %v2036 = vpack.c.b16 %v1632, %v1628
      %v2037 = vpack.c.b16 %v1637, %v1633
      %v2038 = vpack.c.b16 %v1638, %v1634
      %v2039 = vpack.c.b16 %v1639, %v1635
      %v2040 = vpack.c.b16 %v1640, %v1636
      %v2041 = vpack.c.b16 %v1645, %v1641
      %v2042 = vpack.c.b16 %v1646, %v1642
      %v2043 = vpack.c.b16 %v1647, %v1643
      %v2044 = vpack.c.b16 %v1648, %v1644
      %v2045 = vpack.c.b16 %v1653, %v1649
      %v2046 = vpack.c.b16 %v1654, %v1650
      %v2047 = vpack.c.b16 %v1655, %v1651
      %v2048 = vpack.c.b16 %v1656, %v1652
      %v2049 = vpack.c.b16 %v1661, %v1657
      %v2050 = vpack.c.b16 %v1662, %v1658
      %v2051 = vpack.c.b16 %v1663, %v1659
      %v2052 = vpack.c.b16 %v1664, %v1660
      %v2053 = vpack.c.b16 %v1669, %v1665
      %v2054 = vpack.c.b16 %v1670, %v1666
      %v2055 = vpack.c.b16 %v1671, %v1667
      %v2056 = vpack.c.b16 %v1672, %v1668
      %v2057 = vpack.c.b16 %v1677, %v1673
      %v2058 = vpack.c.b16 %v1678, %v1674
      %v2059 = vpack.c.b16 %v1679, %v1675
      %v2060 = vpack.c.b16 %v1680, %v1676
      %v2061 = vpack.c.b16 %v1685, %v1681
      %v2062 = vpack.c.b16 %v1686, %v1682
      %v2063 = vpack.c.b16 %v1687, %v1683
      %v2064 = vpack.c.b16 %v1688, %v1684
      %v2065 = vpack.c.b16 %v1693, %v1689
      %v2066 = vpack.c.b16 %v1694, %v1690
      %v2067 = vpack.c.b16 %v1695, %v1691
      %v2068 = vpack.c.b16 %v1696, %v1692
      %v2069 = vpack.c.b16 %v1701, %v1697
      %v2070 = vpack.c.b16 %v1702, %v1698
      %v2071 = vpack.c.b16 %v1703, %v1699
      %v2072 = vpack.c.b16 %v1704, %v1700
      %v2073 = vpack.c.b16 %v1709, %v1705
      %v2074 = vpack.c.b16 %v1710, %v1706
      %v2075 = vpack.c.b16 %v1711, %v1707
      %v2076 = vpack.c.b16 %v1712, %v1708
      %v2077 = vpack.c.b16 %v1717, %v1713
      %v2078 = vpack.c.b16 %v1718, %v1714
      %v2079 = vpack.c.b16 %v1719, %v1715
      %v2080 = vpack.c.b16 %v1720, %v1716
      %v2081 = vpack.c.b16 %v1725, %v1721
      %v2082 = vpack.c.b16 %v1726, %v1722
      %v2083 = vpack.c.b16 %v1727, %v1723
      %v2084 = vpack.c.b16 %v1728, %v1724
      %v2085 = vpack.c.b16 %v1733, %v1729
      %v2086 = vpack.c.b16 %v1734, %v1730
      %v2087 = vpack.c.b16 %v1735, %v1731
      %v2088 = vpack.c.b16 %v1736, %v1732
      %v2089 = vpack.c.b16 %v1741, %v1737
      %v2090 = vpack.c.b16 %v1742, %v1738
      %v2091 = vpack.c.b16 %v1743, %v1739
      %v2092 = vpack.c.b16 %v1744, %v1740
      %v2093 = vpack.c.b16 %v1749, %v1745
      %v2094 = vpack.c.b16 %v1750, %v1746
      %v2095 = vpack.c.b16 %v1751, %v1747
      %v2096 = vpack.c.b16 %v1752, %v1748
      %v2097 = vpack.c.b16 %v1757, %v1753
      %v2098 = vpack.c.b16 %v1758, %v1754
      %v2099 = vpack.c.b16 %v1759, %v1755
      %v2100 = vpack.c.b16 %v1760, %v1756
      %v2101 = vpack.c.b16 %v1765, %v1761
      %v2102 = vpack.c.b16 %v1766, %v1762
      %v2103 = vpack.c.b16 %v1767, %v1763
      %v2104 = vpack.c.b16 %v1768, %v1764
      %v2105 = vpack.c.b16 %v1773, %v1769
      %v2106 = vpack.c.b16 %v1774, %v1770
      %v2107 = vpack.c.b16 %v1775, %v1771
      %v2108 = vpack.c.b16 %v1776, %v1772
      %v2109 = vpack.c.b16 %v1781, %v1777
      %v2110 = vpack.c.b16 %v1782, %v1778
      %v2111 = vpack.c.b16 %v1783, %v1779
      %v2112 = vpack.c.b16 %v1784, %v1780
      %v2113 = vpack.c.b16 %v1789, %v1785
      %v2114 = vpack.c.b16 %v1790, %v1786
      %v2115 = vpack.c.b16 %v1791, %v1787
      %v2116 = vpack.c.b16 %v1792, %v1788
      %v2117 = vpack.c.b16 %v1797, %v1793
      %v2118 = vpack.c.b16 %v1798, %v1794
      %v2119 = vpack.c.b16 %v1799, %v1795
      %v2120 = vpack.c.b16 %v1800, %v1796
      %v2121 = vpack.c.b16 %v1805, %v1801
      %v2122 = vpack.c.b16 %v1806, %v1802
      %v2123 = vpack.c.b16 %v1807, %v1803
      %v2124 = vpack.c.b16 %v1808, %v1804
      %v2125 = vpack.c.b16 %v1813, %v1809
      %v2126 = vpack.c.b16 %v1814, %v1810
      %v2127 = vpack.c.b16 %v1815, %v1811
      %v2128 = vpack.c.b16 %v1816, %v1812
      %v2129 = vpack.c.b16 %v1821, %v1817
      %v2130 = vpack.c.b16 %v1822, %v1818
      %v2131 = vpack.c.b16 %v1823, %v1819
      %v2132 = vpack.c.b16 %v1824, %v1820
      %v2133 = vpack.c.b16 %v1829, %v1825
      %v2134 = vpack.c.b16 %v1830, %v1826
      %v2135 = vpack.c.b16 %v1831, %v1827
      %v2136 = vpack.c.b16 %v1832, %v1828
      %v2137 = vpack.c.b16 %v1837, %v1833
      %v2138 = vpack.c.b16 %v1838, %v1834
      %v2139 = vpack.c.b16 %v1839, %v1835
      %v2140 = vpack.c.b16 %v1840, %v1836
      %v2141 = vpack.c.b16 %v1845, %v1841
      %v2142 = vpack.c.b16 %v1846, %v1842
      %v2143 = vpack.c.b16 %v1847, %v1843
      %v2144 = vpack.c.b16 %v1848, %v1844
      %v2145 = vpack.c.b16 %v1853, %v1849
      %v2146 = vpack.c.b16 %v1854, %v1850
      %v2147 = vpack.c.b16 %v1855, %v1851
      %v2148 = vpack.c.b16 %v1856, %v1852
      %v2149 = vpack.c.b16 %v1861, %v1857
      %v2150 = vpack.c.b16 %v1862, %v1858
      %v2151 = vpack.c.b16 %v1863, %v1859
      %v2152 = vpack.c.b16 %v1864, %v1860
      %v2153 = vpack.c.b16 %v1869, %v1865
      %v2154 = vpack.c.b16 %v1870, %v1866
      %v2155 = vpack.c.b16 %v1871, %v1867
      %v2156 = vpack.c.b16 %v1872, %v1868
      %v2157 = vpack.c.b16 %v1877, %v1873
      %v2158 = vpack.c.b16 %v1878, %v1874
      %v2159 = vpack.c.b16 %v1879, %v1875
      %v2160 = vpack.c.b16 %v1880, %v1876
      %v2161 = vpack.c.b16 %v1885, %v1881
      %v2162 = vpack.c.b16 %v1886, %v1882
      %v2163 = vpack.c.b16 %v1887, %v1883
      %v2164 = vpack.c.b16 %v1888, %v1884
      %v2165 = vpack.c.b16 %v1893, %v1889
      %v2166 = vpack.c.b16 %v1894, %v1890
      %v2167 = vpack.c.b16 %v1895, %v1891
      %v2168 = vpack.c.b16 %v1896, %v1892
      %v2169 = vpack.c.b16 %v1901, %v1897
      %v2170 = vpack.c.b16 %v1902, %v1898
      %v2171 = vpack.c.b16 %v1903, %v1899
      %v2172 = vpack.c.b16 %v1904, %v1900
      %v2173 = vpack.c.b16 %v1909, %v1905
      %v2174 = vpack.c.b16 %v1910, %v1906
      %v2175 = vpack.c.b16 %v1911, %v1907
      %v2176 = vpack.c.b16 %v1912, %v1908
      %v2177 = vpack.c.b16 %v1917, %v1913
      %v2178 = vpack.c.b16 %v1918, %v1914
      %v2179 = vpack.c.b16 %v1919, %v1915
      %v2180 = vpack.c.b16 %v1920, %v1916
      %v2181 = vpack.c.b16 %v1925, %v1921
      %v2182 = vpack.c.b16 %v1926, %v1922
      %v2183 = vpack.c.b16 %v1927, %v1923
      %v2184 = vpack.c.b16 %v1928, %v1924
      %v2185 = vpack.c.b16 %v1933, %v1929
      %v2186 = vpack.c.b16 %v1934, %v1930
      %v2187 = vpack.c.b16 %v1935, %v1931
      %v2188 = vpack.c.b16 %v1936, %v1932
      %v2189 = vpack.c.b16 %v1941, %v1937
      %v2190 = vpack.c.b16 %v1942, %v1938
      %v2191 = vpack.c.b16 %v1943, %v1939
      %v2192 = vpack.c.b16 %v1944, %v1940
      %v2193 = vpack.c.b16 %v1949, %v1945
      %v2194 = vpack.c.b16 %v1950, %v1946
      %v2195 = vpack.c.b16 %v1951, %v1947
      %v2196 = vpack.c.b16 %v1952, %v1948
      %v2197 = vpack.c.b16 %v1957, %v1953
      %v2198 = vpack.c.b16 %v1958, %v1954
      %v2199 = vpack.c.b16 %v1959, %v1955
      %v2200 = vpack.c.b16 %v1960, %v1956
      %v2201 = vpack.c.b16 %v1965, %v1961
      %v2202 = vpack.c.b16 %v1966, %v1962
      %v2203 = vpack.c.b16 %v1967, %v1963
      %v2204 = vpack.c.b16 %v1968, %v1964
      %v2205 = vpack.c.b16 %v1973, %v1969
      %v2206 = vpack.c.b16 %v1974, %v1970
      %v2207 = vpack.c.b16 %v1975, %v1971
      %v2208 = vpack.c.b16 %v1976, %v1972
      %v2209 = vpack.c.b16 %v1981, %v1977
      %v2210 = vpack.c.b16 %v1982, %v1978
      %v2211 = vpack.c.b16 %v1983, %v1979
      %v2212 = vpack.c.b16 %v1984, %v1980
      %v2213 = vpack.c.b16 %v1989, %v1985
      %v2214 = vpack.c.b16 %v1990, %v1986
      %v2215 = vpack.c.b16 %v1991, %v1987
      %v2216 = vpack.c.b16 %v1992, %v1988
      %2441 = vmatprep.subr.bf16.mxu0 %v2022
      %2442 = vmatpush1.bf16.msra.mxu0 %v2021
      %2443 = vmatprep.subr.bf16.mxu0 %v2018
      %2444 = vmatpush1.bf16.msra.mxu0 %v2017
      %2445 = vmatprep.subr.bf16.mxu0 %v2014
      %2446 = vmatpush1.bf16.msra.mxu0 %v2013
      %2447 = vmatprep.subr.bf16.mxu0 %v2010
      %2448 = vmatpush1.bf16.msra.mxu0 %v2009
      %2449 = vmatprep.subr.bf16.mxu0 %v2006
      %2450 = vmatpush1.bf16.msra.mxu0 %v2005
      %2451 = vmatprep.subr.bf16.mxu0 %v2002
      %2452 = vmatpush1.bf16.msra.mxu0 %v2001
      %2453 = vmatprep.subr.bf16.mxu0 %v1998
      %2454 = vmatpush1.bf16.msra.mxu0 %v1997
      %2455 = vmatprep.subr.bf16.mxu0 %v1994
      %2456 = vmatpush1.bf16.msra.mxu0 %v1993
      %2457 = vmatprep.subr.bf16.mxu0 %v2054
      %2458 = vmatpush2.bf16.msra.mxu0 %v2053
      %2459 = vmatprep.subr.bf16.mxu0 %v2050
      %2460 = vmatpush2.bf16.msra.mxu0 %v2049
      %2461 = vmatprep.subr.bf16.mxu0 %v2046
      %2462 = vmatpush2.bf16.msra.mxu0 %v2045
      %2463 = vmatprep.subr.bf16.mxu0 %v2042
      %2464 = vmatpush2.bf16.msra.mxu0 %v2041
      %2465 = vmatprep.subr.bf16.mxu0 %v2038
      %2466 = vmatpush2.bf16.msra.mxu0 %v2037
      %2467 = vmatprep.subr.bf16.mxu0 %v2034
      %2468 = vmatpush2.bf16.msra.mxu0 %v2033
      %2469 = vmatprep.subr.bf16.mxu0 %v2030
      %2470 = vmatpush2.bf16.msra.mxu0 %v2029
      %2471 = vmatprep.subr.bf16.mxu0 %v2026
      %2472 = vmatpush2.bf16.msra.mxu0 %v2025
      %2473 = vmatprep.mubr.bf16.mxu0 %v1210
      %2474 = vmatmul.mubr.bf16.gmra.mxu0 %v1209
      %v2475 = vpop.f32.mrf.mxu0
      %v2476 = vadd.f32 %v1016, %v2475
      %v2477 = vpop.f32.mrf.mxu0
      %v2478 = vadd.f32 %v1020, %v2477
      %v2479 = vpop.f32.mrf.mxu0
      %v2480 = vadd.f32 %v1016, %v2479
      %v2481 = vpop.f32.mrf.mxu0
      %v2482 = vadd.f32 %v1020, %v2481
      %2483 = vmatprep.mubr.bf16.mxu0 %v1217
      %2484 = vmatmul.mubr.bf16.gmra.mxu0 %v1216
      %v2485 = vpop.f32.mrf.mxu0
      %v2486 = vadd.f32 %v1016, %v2485
      %v2487 = vpop.f32.mrf.mxu0
      %v2488 = vadd.f32 %v1020, %v2487
      %v2489 = vpop.f32.mrf.mxu0
      %v2490 = vadd.f32 %v1016, %v2489
      %v2491 = vpop.f32.mrf.mxu0
      %v2492 = vadd.f32 %v1020, %v2491
      %2493 = vmatprep.mubr.bf16.mxu0 %v1224
      %2494 = vmatmul.mubr.bf16.gmra.mxu0 %v1223
      %v2495 = vpop.f32.mrf.mxu0
      %v2496 = vadd.f32 %v1016, %v2495
      %v2497 = vpop.f32.mrf.mxu0
      %v2498 = vadd.f32 %v1020, %v2497
      %v2499 = vpop.f32.mrf.mxu0
      %v2500 = vadd.f32 %v1016, %v2499
      %v2501 = vpop.f32.mrf.mxu0
      %v2502 = vadd.f32 %v1020, %v2501
      %2503 = vmatprep.mubr.bf16.mxu0 %v1231
      %2504 = vmatmul.mubr.bf16.gmra.mxu0 %v1230
      %v2505 = vpop.f32.mrf.mxu0
      %v2506 = vadd.f32 %v1016, %v2505
      %v2507 = vpop.f32.mrf.mxu0
      %v2508 = vadd.f32 %v1020, %v2507
      %v2509 = vpop.f32.mrf.mxu0
      %v2510 = vadd.f32 %v1016, %v2509
      %v2511 = vpop.f32.mrf.mxu0
      %v2512 = vadd.f32 %v1020, %v2511
      %2513 = vmatprep.mubr.bf16.mxu0 %v1238
      %2514 = vmatmul.mubr.bf16.gmra.mxu0 %v1237
      %v2515 = vpop.f32.mrf.mxu0
      %v2516 = vadd.f32 %v1016, %v2515
      %v2517 = vpop.f32.mrf.mxu0
      %v2518 = vadd.f32 %v1020, %v2517
      %v2519 = vpop.f32.mrf.mxu0
      %v2520 = vadd.f32 %v1016, %v2519
      %v2521 = vpop.f32.mrf.mxu0
      %v2522 = vadd.f32 %v1020, %v2521
      %2523 = vmatprep.mubr.bf16.mxu0 %v1245
      %2524 = vmatmul.mubr.bf16.gmra.mxu0 %v1244
      %v2525 = vpop.f32.mrf.mxu0
      %v2526 = vadd.f32 %v1016, %v2525
      %v2527 = vpop.f32.mrf.mxu0
      %v2528 = vadd.f32 %v1020, %v2527
      %v2529 = vpop.f32.mrf.mxu0
      %v2530 = vadd.f32 %v1016, %v2529
      %v2531 = vpop.f32.mrf.mxu0
      %v2532 = vadd.f32 %v1020, %v2531
      %2533 = vmatprep.mubr.bf16.mxu0 %v1252
      %2534 = vmatmul.mubr.bf16.gmra.mxu0 %v1251
      %v2535 = vpop.f32.mrf.mxu0
      %v2536 = vadd.f32 %v1016, %v2535
      %v2537 = vpop.f32.mrf.mxu0
      %v2538 = vadd.f32 %v1020, %v2537
      %v2539 = vpop.f32.mrf.mxu0
      %v2540 = vadd.f32 %v1016, %v2539
      %v2541 = vpop.f32.mrf.mxu0
      %v2542 = vadd.f32 %v1020, %v2541
      %2543 = vmatprep.mubr.bf16.mxu0 %v1259
      %2544 = vmatmul.mubr.bf16.gmra.mxu0 %v1258
      %v2545 = vpop.f32.mrf.mxu0
      %v2546 = vadd.f32 %v1016, %v2545
      %v2547 = vpop.f32.mrf.mxu0
      %v2548 = vadd.f32 %v1020, %v2547
      %v2549 = vpop.f32.mrf.mxu0
      %v2550 = vadd.f32 %v1016, %v2549
      %v2551 = vpop.f32.mrf.mxu0
      %v2552 = vadd.f32 %v1020, %v2551
      %2553 = vdwg.mxu0
      %2554 = vmatprep.subr.bf16.mxu0 %v2086
      %2555 = vmatpush1.bf16.msra.mxu0 %v2085
      %2556 = vmatprep.subr.bf16.mxu0 %v2082
      %2557 = vmatpush1.bf16.msra.mxu0 %v2081
      %2558 = vmatprep.subr.bf16.mxu0 %v2078
      %2559 = vmatpush1.bf16.msra.mxu0 %v2077
      %2560 = vmatprep.subr.bf16.mxu0 %v2074
      %2561 = vmatpush1.bf16.msra.mxu0 %v2073
      %2562 = vmatprep.subr.bf16.mxu0 %v2070
      %2563 = vmatpush1.bf16.msra.mxu0 %v2069
      %2564 = vmatprep.subr.bf16.mxu0 %v2066
      %2565 = vmatpush1.bf16.msra.mxu0 %v2065
      %2566 = vmatprep.subr.bf16.mxu0 %v2062
      %2567 = vmatpush1.bf16.msra.mxu0 %v2061
      %2568 = vmatprep.subr.bf16.mxu0 %v2058
      %2569 = vmatpush1.bf16.msra.mxu0 %v2057
      %2570 = vmatprep.subr.bf16.mxu0 %v2118
      %2571 = vmatpush2.bf16.msra.mxu0 %v2117
      %2572 = vmatprep.subr.bf16.mxu0 %v2114
      %2573 = vmatpush2.bf16.msra.mxu0 %v2113
      %2574 = vmatprep.subr.bf16.mxu0 %v2110
      %2575 = vmatpush2.bf16.msra.mxu0 %v2109
      %2576 = vmatprep.subr.bf16.mxu0 %v2106
      %2577 = vmatpush2.bf16.msra.mxu0 %v2105
      %2578 = vmatprep.subr.bf16.mxu0 %v2102
      %2579 = vmatpush2.bf16.msra.mxu0 %v2101
      %2580 = vmatprep.subr.bf16.mxu0 %v2098
      %2581 = vmatpush2.bf16.msra.mxu0 %v2097
      %2582 = vmatprep.subr.bf16.mxu0 %v2094
      %2583 = vmatpush2.bf16.msra.mxu0 %v2093
      %2584 = vmatprep.subr.bf16.mxu0 %v2090
      %2585 = vmatpush2.bf16.msra.mxu0 %v2089
      %2586 = vmatprep.mubr.bf16.mxu0 %v1212
      %2587 = vmatmul.mubr.bf16.gmra.mxu0 %v1211
      %v2588 = vpop.f32.mrf.mxu0
      %v2589 = vadd.f32 %v2476, %v2588
      %v2590 = vpop.f32.mrf.mxu0
      %v2591 = vadd.f32 %v2478, %v2590
      %v2592 = vpop.f32.mrf.mxu0
      %v2593 = vadd.f32 %v2480, %v2592
      %v2594 = vpop.f32.mrf.mxu0
      %v2595 = vadd.f32 %v2482, %v2594
      %2596 = vmatprep.mubr.bf16.mxu0 %v1219
      %2597 = vmatmul.mubr.bf16.gmra.mxu0 %v1218
      %v2598 = vpop.f32.mrf.mxu0
      %v2599 = vadd.f32 %v2486, %v2598
      %v2600 = vpop.f32.mrf.mxu0
      %v2601 = vadd.f32 %v2488, %v2600
      %v2602 = vpop.f32.mrf.mxu0
      %v2603 = vadd.f32 %v2490, %v2602
      %v2604 = vpop.f32.mrf.mxu0
      %v2605 = vadd.f32 %v2492, %v2604
      %2606 = vmatprep.mubr.bf16.mxu0 %v1226
      %2607 = vmatmul.mubr.bf16.gmra.mxu0 %v1225
      %v2608 = vpop.f32.mrf.mxu0
      %v2609 = vadd.f32 %v2496, %v2608
      %v2610 = vpop.f32.mrf.mxu0
      %v2611 = vadd.f32 %v2498, %v2610
      %v2612 = vpop.f32.mrf.mxu0
      %v2613 = vadd.f32 %v2500, %v2612
      %v2614 = vpop.f32.mrf.mxu0
      %v2615 = vadd.f32 %v2502, %v2614
      %2616 = vmatprep.mubr.bf16.mxu0 %v1233
      %2617 = vmatmul.mubr.bf16.gmra.mxu0 %v1232
      %v2618 = vpop.f32.mrf.mxu0
      %v2619 = vadd.f32 %v2506, %v2618
      %v2620 = vpop.f32.mrf.mxu0
      %v2621 = vadd.f32 %v2508, %v2620
      %v2622 = vpop.f32.mrf.mxu0
      %v2623 = vadd.f32 %v2510, %v2622
      %v2624 = vpop.f32.mrf.mxu0
      %v2625 = vadd.f32 %v2512, %v2624
      %2626 = vmatprep.mubr.bf16.mxu0 %v1240
      %2627 = vmatmul.mubr.bf16.gmra.mxu0 %v1239
      %v2628 = vpop.f32.mrf.mxu0
      %v2629 = vadd.f32 %v2516, %v2628
      %v2630 = vpop.f32.mrf.mxu0
      %v2631 = vadd.f32 %v2518, %v2630
      %v2632 = vpop.f32.mrf.mxu0
      %v2633 = vadd.f32 %v2520, %v2632
      %v2634 = vpop.f32.mrf.mxu0
      %v2635 = vadd.f32 %v2522, %v2634
      %2636 = vmatprep.mubr.bf16.mxu0 %v1247
      %2637 = vmatmul.mubr.bf16.gmra.mxu0 %v1246
      %v2638 = vpop.f32.mrf.mxu0
      %v2639 = vadd.f32 %v2526, %v2638
      %v2640 = vpop.f32.mrf.mxu0
      %v2641 = vadd.f32 %v2528, %v2640
      %v2642 = vpop.f32.mrf.mxu0
      %v2643 = vadd.f32 %v2530, %v2642
      %v2644 = vpop.f32.mrf.mxu0
      %v2645 = vadd.f32 %v2532, %v2644
      %2646 = vmatprep.mubr.bf16.mxu0 %v1254
      %2647 = vmatmul.mubr.bf16.gmra.mxu0 %v1253
      %v2648 = vpop.f32.mrf.mxu0
      %v2649 = vadd.f32 %v2536, %v2648
      %v2650 = vpop.f32.mrf.mxu0
      %v2651 = vadd.f32 %v2538, %v2650
      %v2652 = vpop.f32.mrf.mxu0
      %v2653 = vadd.f32 %v2540, %v2652
      %v2654 = vpop.f32.mrf.mxu0
      %v2655 = vadd.f32 %v2542, %v2654
      %2656 = vmatprep.mubr.bf16.mxu0 %v1261
      %2657 = vmatmul.mubr.bf16.gmra.mxu0 %v1260
      %v2658 = vpop.f32.mrf.mxu0
      %v2659 = vadd.f32 %v2546, %v2658
      %v2660 = vpop.f32.mrf.mxu0
      %v2661 = vadd.f32 %v2548, %v2660
      %v2662 = vpop.f32.mrf.mxu0
      %v2663 = vadd.f32 %v2550, %v2662
      %v2664 = vpop.f32.mrf.mxu0
      %v2665 = vadd.f32 %v2552, %v2664
      %2666 = vdwg.mxu0
      %2667 = vmatprep.subr.bf16.mxu0 %v2150
      %2668 = vmatpush1.bf16.msra.mxu0 %v2149
      %2669 = vmatprep.subr.bf16.mxu0 %v2146
      %2670 = vmatpush1.bf16.msra.mxu0 %v2145
      %2671 = vmatprep.subr.bf16.mxu0 %v2142
      %2672 = vmatpush1.bf16.msra.mxu0 %v2141
      %2673 = vmatprep.subr.bf16.mxu0 %v2138
      %2674 = vmatpush1.bf16.msra.mxu0 %v2137
      %2675 = vmatprep.subr.bf16.mxu0 %v2134
      %2676 = vmatpush1.bf16.msra.mxu0 %v2133
      %2677 = vmatprep.subr.bf16.mxu0 %v2130
      %2678 = vmatpush1.bf16.msra.mxu0 %v2129
      %2679 = vmatprep.subr.bf16.mxu0 %v2126
      %2680 = vmatpush1.bf16.msra.mxu0 %v2125
      %2681 = vmatprep.subr.bf16.mxu0 %v2122
      %2682 = vmatpush1.bf16.msra.mxu0 %v2121
      %2683 = vmatprep.subr.bf16.mxu0 %v2182
      %2684 = vmatpush2.bf16.msra.mxu0 %v2181
      %2685 = vmatprep.subr.bf16.mxu0 %v2178
      %2686 = vmatpush2.bf16.msra.mxu0 %v2177
      %2687 = vmatprep.subr.bf16.mxu0 %v2174
      %2688 = vmatpush2.bf16.msra.mxu0 %v2173
      %2689 = vmatprep.subr.bf16.mxu0 %v2170
      %2690 = vmatpush2.bf16.msra.mxu0 %v2169
      %2691 = vmatprep.subr.bf16.mxu0 %v2166
      %2692 = vmatpush2.bf16.msra.mxu0 %v2165
      %2693 = vmatprep.subr.bf16.mxu0 %v2162
      %2694 = vmatpush2.bf16.msra.mxu0 %v2161
      %2695 = vmatprep.subr.bf16.mxu0 %v2158
      %2696 = vmatpush2.bf16.msra.mxu0 %v2157
      %2697 = vmatprep.subr.bf16.mxu0 %v2154
      %2698 = vmatpush2.bf16.msra.mxu0 %v2153
      %2699 = vmatprep.mubr.bf16.mxu0 %v1214
      %2700 = vmatmul.mubr.bf16.gmra.mxu0 %v1213
      %v2701 = vpop.f32.mrf.mxu0
      %v2702 = vadd.f32 %v2589, %v2701
      %v2703 = vpop.f32.mrf.mxu0
      %v2704 = vadd.f32 %v2591, %v2703
      %v2705 = vpop.f32.mrf.mxu0
      %v2706 = vadd.f32 %v2593, %v2705
      %v2707 = vpop.f32.mrf.mxu0
      %v2708 = vadd.f32 %v2595, %v2707
      %2709 = vmatprep.mubr.bf16.mxu0 %v1221
      %2710 = vmatmul.mubr.bf16.gmra.mxu0 %v1220
      %v2711 = vpop.f32.mrf.mxu0
      %v2712 = vadd.f32 %v2599, %v2711
      %v2713 = vpop.f32.mrf.mxu0
      %v2714 = vadd.f32 %v2601, %v2713
      %v2715 = vpop.f32.mrf.mxu0
      %v2716 = vadd.f32 %v2603, %v2715
      %v2717 = vpop.f32.mrf.mxu0
      %v2718 = vadd.f32 %v2605, %v2717
      %2719 = vmatprep.mubr.bf16.mxu0 %v1228
      %2720 = vmatmul.mubr.bf16.gmra.mxu0 %v1227
      %v2721 = vpop.f32.mrf.mxu0
      %v2722 = vadd.f32 %v2609, %v2721
      %v2723 = vpop.f32.mrf.mxu0
      %v2724 = vadd.f32 %v2611, %v2723
      %v2725 = vpop.f32.mrf.mxu0
      %v2726 = vadd.f32 %v2613, %v2725
      %v2727 = vpop.f32.mrf.mxu0
      %v2728 = vadd.f32 %v2615, %v2727
      %2729 = vmatprep.mubr.bf16.mxu0 %v1235
      %2730 = vmatmul.mubr.bf16.gmra.mxu0 %v1234
      %v2731 = vpop.f32.mrf.mxu0
      %v2732 = vadd.f32 %v2619, %v2731
      %v2733 = vpop.f32.mrf.mxu0
      %v2734 = vadd.f32 %v2621, %v2733
      %v2735 = vpop.f32.mrf.mxu0
      %v2736 = vadd.f32 %v2623, %v2735
      %v2737 = vpop.f32.mrf.mxu0
      %v2738 = vadd.f32 %v2625, %v2737
      %2739 = vmatprep.mubr.bf16.mxu0 %v1242
      %2740 = vmatmul.mubr.bf16.gmra.mxu0 %v1241
      %v2741 = vpop.f32.mrf.mxu0
      %v2742 = vadd.f32 %v2629, %v2741
      %v2743 = vpop.f32.mrf.mxu0
      %v2744 = vadd.f32 %v2631, %v2743
      %v2745 = vpop.f32.mrf.mxu0
      %v2746 = vadd.f32 %v2633, %v2745
      %v2747 = vpop.f32.mrf.mxu0
      %v2748 = vadd.f32 %v2635, %v2747
      %2749 = vmatprep.mubr.bf16.mxu0 %v1249
      %2750 = vmatmul.mubr.bf16.gmra.mxu0 %v1248
      %v2751 = vpop.f32.mrf.mxu0
      %v2752 = vadd.f32 %v2639, %v2751
      %v2753 = vpop.f32.mrf.mxu0
      %v2754 = vadd.f32 %v2641, %v2753
      %v2755 = vpop.f32.mrf.mxu0
      %v2756 = vadd.f32 %v2643, %v2755
      %v2757 = vpop.f32.mrf.mxu0
      %v2758 = vadd.f32 %v2645, %v2757
      %2759 = vmatprep.mubr.bf16.mxu0 %v1256
      %2760 = vmatmul.mubr.bf16.gmra.mxu0 %v1255
      %v2761 = vpop.f32.mrf.mxu0
      %v2762 = vadd.f32 %v2649, %v2761
      %v2763 = vpop.f32.mrf.mxu0
      %v2764 = vadd.f32 %v2651, %v2763
      %v2765 = vpop.f32.mrf.mxu0
      %v2766 = vadd.f32 %v2653, %v2765
      %v2767 = vpop.f32.mrf.mxu0
      %v2768 = vadd.f32 %v2655, %v2767
      %2769 = vmatprep.mubr.bf16.mxu0 %v1263
      %2770 = vmatmul.mubr.bf16.gmra.mxu0 %v1262
      %v2771 = vpop.f32.mrf.mxu0
      %v2772 = vadd.f32 %v2659, %v2771
      %v2773 = vpop.f32.mrf.mxu0
      %v2774 = vadd.f32 %v2661, %v2773
      %v2775 = vpop.f32.mrf.mxu0
      %v2776 = vadd.f32 %v2663, %v2775
      %v2777 = vpop.f32.mrf.mxu0
      %v2778 = vadd.f32 %v2665, %v2777
      %2779 = vdwg.mxu0
      %2780 = vmatprep.subr.bf16.mxu0 %v2214
      %2781 = vmatpush1.bf16.msra.mxu0 %v2213
      %2782 = vmatprep.subr.bf16.mxu0 %v2210
      %2783 = vmatpush1.bf16.msra.mxu0 %v2209
      %2784 = vmatprep.subr.bf16.mxu0 %v2206
      %2785 = vmatpush1.bf16.msra.mxu0 %v2205
      %2786 = vmatprep.subr.bf16.mxu0 %v2202
      %2787 = vmatpush1.bf16.msra.mxu0 %v2201
      %2788 = vmatprep.subr.bf16.mxu0 %v2198
      %2789 = vmatpush1.bf16.msra.mxu0 %v2197
      %2790 = vmatprep.subr.bf16.mxu0 %v2194
      %2791 = vmatpush1.bf16.msra.mxu0 %v2193
      %2792 = vmatprep.subr.bf16.mxu0 %v2190
      %2793 = vmatpush1.bf16.msra.mxu0 %v2189
      %2794 = vmatprep.subr.bf16.mxu0 %v2186
      %2795 = vmatpush1.bf16.msra.mxu0 %v2185
      %2796 = vmatprep.subr.bf16.mxu0 0
      %2797 = vmatpush2.bf16.msra.mxu0 0
      %2798 = vmatprep.subr.bf16.mxu0 0
      %2799 = vmatpush2.bf16.msra.mxu0 0
      %2800 = vmatprep.subr.bf16.mxu0 0
      %2801 = vmatpush2.bf16.msra.mxu0 0
      %2802 = vmatprep.subr.bf16.mxu0 0
      %2803 = vmatpush2.bf16.msra.mxu0 0
      %2804 = vmatprep.subr.bf16.mxu0 0
      %2805 = vmatpush2.bf16.msra.mxu0 0
      %2806 = vmatprep.subr.bf16.mxu0 0
      %2807 = vmatpush2.bf16.msra.mxu0 0
      %2808 = vmatprep.subr.bf16.mxu0 0
      %2809 = vmatpush2.bf16.msra.mxu0 0
      %2810 = vmatprep.subr.bf16.mxu0 0
      %2811 = vmatpush2.bf16.msra.mxu0 0
      %2812 = vmatprep.mubr.bf16.mxu0 0
      %2813 = vmatmul.mubr.bf16.gmra.mxu0 %v1215
      %v2814 = vpop.f32.mrf.mxu0
      %v2815 = vadd.f32 %v2702, %v2814
      %v2816 = vpop.f32.mrf.mxu0
      %v2817 = vadd.f32 %v2704, %v2816
      %v2818 = vpop.f32.mrf.mxu0
      %v2819 = vadd.f32 %v2706, %v2818
      %v2820 = vpop.f32.mrf.mxu0
      %v2821 = vadd.f32 %v2708, %v2820
      %2822 = vmatprep.mubr.bf16.mxu0 0
      %2823 = vmatmul.mubr.bf16.gmra.mxu0 %v1222
      %v2824 = vpop.f32.mrf.mxu0
      %v2825 = vadd.f32 %v2712, %v2824
      %v2826 = vpop.f32.mrf.mxu0
      %v2827 = vadd.f32 %v2714, %v2826
      %v2828 = vpop.f32.mrf.mxu0
      %v2829 = vadd.f32 %v2716, %v2828
      %v2830 = vpop.f32.mrf.mxu0
      %v2831 = vadd.f32 %v2718, %v2830
      %2832 = vmatprep.mubr.bf16.mxu0 0
      %2833 = vmatmul.mubr.bf16.gmra.mxu0 %v1229
      %v2834 = vpop.f32.mrf.mxu0
      %v2835 = vadd.f32 %v2722, %v2834
      %v2836 = vpop.f32.mrf.mxu0
      %v2837 = vadd.f32 %v2724, %v2836
      %v2838 = vpop.f32.mrf.mxu0
      %v2839 = vadd.f32 %v2726, %v2838
      %v2840 = vpop.f32.mrf.mxu0
      %v2841 = vadd.f32 %v2728, %v2840
      %2842 = vmatprep.mubr.bf16.mxu0 0
      %2843 = vmatmul.mubr.bf16.gmra.mxu0 %v1236
      %v2844 = vpop.f32.mrf.mxu0
      %v2845 = vadd.f32 %v2732, %v2844
      %v2846 = vpop.f32.mrf.mxu0
      %v2847 = vadd.f32 %v2734, %v2846
      %v2848 = vpop.f32.mrf.mxu0
      %v2849 = vadd.f32 %v2736, %v2848
      %v2850 = vpop.f32.mrf.mxu0
      %v2851 = vadd.f32 %v2738, %v2850
      %2852 = vmatprep.mubr.bf16.mxu0 0
      %2853 = vmatmul.mubr.bf16.gmra.mxu0 %v1243
      %v2854 = vpop.f32.mrf.mxu0
      %v2855 = vadd.f32 %v2742, %v2854
      %v2856 = vpop.f32.mrf.mxu0
      %v2857 = vadd.f32 %v2744, %v2856
      %v2858 = vpop.f32.mrf.mxu0
      %v2859 = vadd.f32 %v2746, %v2858
      %v2860 = vpop.f32.mrf.mxu0
      %v2861 = vadd.f32 %v2748, %v2860
      %2862 = vmatprep.mubr.bf16.mxu0 0
      %2863 = vmatmul.mubr.bf16.gmra.mxu0 %v1250
      %v2864 = vpop.f32.mrf.mxu0
      %v2865 = vadd.f32 %v2752, %v2864
      %v2866 = vpop.f32.mrf.mxu0
      %v2867 = vadd.f32 %v2754, %v2866
      %v2868 = vpop.f32.mrf.mxu0
      %v2869 = vadd.f32 %v2756, %v2868
      %v2870 = vpop.f32.mrf.mxu0
      %v2871 = vadd.f32 %v2758, %v2870
      %2872 = vmatprep.mubr.bf16.mxu0 0
      %2873 = vmatmul.mubr.bf16.gmra.mxu0 %v1257
      %v2874 = vpop.f32.mrf.mxu0
      %v2875 = vadd.f32 %v2762, %v2874
      %v2876 = vpop.f32.mrf.mxu0
      %v2877 = vadd.f32 %v2764, %v2876
      %v2878 = vpop.f32.mrf.mxu0
      %v2879 = vadd.f32 %v2766, %v2878
      %v2880 = vpop.f32.mrf.mxu0
      %v2881 = vadd.f32 %v2768, %v2880
      %2882 = vmatprep.mubr.bf16.mxu0 0
      %2883 = vmatmul.mubr.bf16.gmra.mxu0 %v1264
      %v2884 = vpop.f32.mrf.mxu0
      %v2885 = vadd.f32 %v2772, %v2884
      %v2886 = vpop.f32.mrf.mxu0
      %v2887 = vadd.f32 %v2774, %v2886
      %v2888 = vpop.f32.mrf.mxu0
      %v2889 = vadd.f32 %v2776, %v2888
      %v2890 = vpop.f32.mrf.mxu0
      %v2891 = vadd.f32 %v2778, %v2890
      %2892 = vdwg.mxu0
      %2893 = vmatprep.subr.bf16.mxu0 %v2024
      %2894 = vmatpush1.bf16.msra.mxu0 %v2023
      %2895 = vmatprep.subr.bf16.mxu0 %v2020
      %2896 = vmatpush1.bf16.msra.mxu0 %v2019
      %2897 = vmatprep.subr.bf16.mxu0 %v2016
      %2898 = vmatpush1.bf16.msra.mxu0 %v2015
      %2899 = vmatprep.subr.bf16.mxu0 %v2012
      %2900 = vmatpush1.bf16.msra.mxu0 %v2011
      %2901 = vmatprep.subr.bf16.mxu0 %v2008
      %2902 = vmatpush1.bf16.msra.mxu0 %v2007
      %2903 = vmatprep.subr.bf16.mxu0 %v2004
      %2904 = vmatpush1.bf16.msra.mxu0 %v2003
      %2905 = vmatprep.subr.bf16.mxu0 %v2000
      %2906 = vmatpush1.bf16.msra.mxu0 %v1999
      %2907 = vmatprep.subr.bf16.mxu0 %v1996
      %2908 = vmatpush1.bf16.msra.mxu0 %v1995
      %2909 = vmatprep.subr.bf16.mxu0 %v2056
      %2910 = vmatpush2.bf16.msra.mxu0 %v2055
      %2911 = vmatprep.subr.bf16.mxu0 %v2052
      %2912 = vmatpush2.bf16.msra.mxu0 %v2051
      %2913 = vmatprep.subr.bf16.mxu0 %v2048
      %2914 = vmatpush2.bf16.msra.mxu0 %v2047
      %2915 = vmatprep.subr.bf16.mxu0 %v2044
      %2916 = vmatpush2.bf16.msra.mxu0 %v2043
      %2917 = vmatprep.subr.bf16.mxu0 %v2040
      %2918 = vmatpush2.bf16.msra.mxu0 %v2039
      %2919 = vmatprep.subr.bf16.mxu0 %v2036
      %2920 = vmatpush2.bf16.msra.mxu0 %v2035
      %2921 = vmatprep.subr.bf16.mxu0 %v2032
      %2922 = vmatpush2.bf16.msra.mxu0 %v2031
      %2923 = vmatprep.subr.bf16.mxu0 %v2028
      %2924 = vmatpush2.bf16.msra.mxu0 %v2027
      %2925 = vmatprep.mubr.bf16.mxu0 %v1210
      %2926 = vmatmul.mubr.bf16.gmra.mxu0 %v1209
      %v2927 = vpop.f32.mrf.mxu0
      %v2928 = vadd.f32 %v1024, %v2927
      %v2929 = vpop.f32.mrf.mxu0
      %v2930 = vadd.f32 %v1028, %v2929
      %v2931 = vpop.f32.mrf.mxu0
      %v2932 = vadd.f32 %v1024, %v2931
      %v2933 = vpop.f32.mrf.mxu0
      %v2934 = vadd.f32 %v1028, %v2933
      %2935 = vmatprep.mubr.bf16.mxu0 %v1217
      %2936 = vmatmul.mubr.bf16.gmra.mxu0 %v1216
      %v2937 = vpop.f32.mrf.mxu0
      %v2938 = vadd.f32 %v1024, %v2937
      %v2939 = vpop.f32.mrf.mxu0
      %v2940 = vadd.f32 %v1028, %v2939
      %v2941 = vpop.f32.mrf.mxu0
      %v2942 = vadd.f32 %v1024, %v2941
      %v2943 = vpop.f32.mrf.mxu0
      %v2944 = vadd.f32 %v1028, %v2943
      %2945 = vmatprep.mubr.bf16.mxu0 %v1224
      %2946 = vmatmul.mubr.bf16.gmra.mxu0 %v1223
      %v2947 = vpop.f32.mrf.mxu0
      %v2948 = vadd.f32 %v1024, %v2947
      %v2949 = vpop.f32.mrf.mxu0
      %v2950 = vadd.f32 %v1028, %v2949
      %v2951 = vpop.f32.mrf.mxu0
      %v2952 = vadd.f32 %v1024, %v2951
      %v2953 = vpop.f32.mrf.mxu0
      %v2954 = vadd.f32 %v1028, %v2953
      %2955 = vmatprep.mubr.bf16.mxu0 %v1231
      %2956 = vmatmul.mubr.bf16.gmra.mxu0 %v1230
      %v2957 = vpop.f32.mrf.mxu0
      %v2958 = vadd.f32 %v1024, %v2957
      %v2959 = vpop.f32.mrf.mxu0
      %v2960 = vadd.f32 %v1028, %v2959
      %v2961 = vpop.f32.mrf.mxu0
      %v2962 = vadd.f32 %v1024, %v2961
      %v2963 = vpop.f32.mrf.mxu0
      %v2964 = vadd.f32 %v1028, %v2963
      %2965 = vmatprep.mubr.bf16.mxu0 %v1238
      %2966 = vmatmul.mubr.bf16.gmra.mxu0 %v1237
      %v2967 = vpop.f32.mrf.mxu0
      %v2968 = vadd.f32 %v1024, %v2967
      %v2969 = vpop.f32.mrf.mxu0
      %v2970 = vadd.f32 %v1028, %v2969
      %v2971 = vpop.f32.mrf.mxu0
      %v2972 = vadd.f32 %v1024, %v2971
      %v2973 = vpop.f32.mrf.mxu0
      %v2974 = vadd.f32 %v1028, %v2973
      %2975 = vmatprep.mubr.bf16.mxu0 %v1245
      %2976 = vmatmul.mubr.bf16.gmra.mxu0 %v1244
      %v2977 = vpop.f32.mrf.mxu0
      %v2978 = vadd.f32 %v1024, %v2977
      %v2979 = vpop.f32.mrf.mxu0
      %v2980 = vadd.f32 %v1028, %v2979
      %v2981 = vpop.f32.mrf.mxu0
      %v2982 = vadd.f32 %v1024, %v2981
      %v2983 = vpop.f32.mrf.mxu0
      %v2984 = vadd.f32 %v1028, %v2983
      %2985 = vmatprep.mubr.bf16.mxu0 %v1252
      %2986 = vmatmul.mubr.bf16.gmra.mxu0 %v1251
      %v2987 = vpop.f32.mrf.mxu0
      %v2988 = vadd.f32 %v1024, %v2987
      %v2989 = vpop.f32.mrf.mxu0
      %v2990 = vadd.f32 %v1028, %v2989
      %v2991 = vpop.f32.mrf.mxu0
      %v2992 = vadd.f32 %v1024, %v2991
      %v2993 = vpop.f32.mrf.mxu0
      %v2994 = vadd.f32 %v1028, %v2993
      %2995 = vmatprep.mubr.bf16.mxu0 %v1259
      %2996 = vmatmul.mubr.bf16.gmra.mxu0 %v1258
      %v2997 = vpop.f32.mrf.mxu0
      %v2998 = vadd.f32 %v1024, %v2997
      %v2999 = vpop.f32.mrf.mxu0
      %v3000 = vadd.f32 %v1028, %v2999
      %v3001 = vpop.f32.mrf.mxu0
      %v3002 = vadd.f32 %v1024, %v3001
      %v3003 = vpop.f32.mrf.mxu0
      %v3004 = vadd.f32 %v1028, %v3003
      %3005 = vdwg.mxu0
      %3006 = vmatprep.subr.bf16.mxu0 %v2088
      %3007 = vmatpush1.bf16.msra.mxu0 %v2087
      %3008 = vmatprep.subr.bf16.mxu0 %v2084
      %3009 = vmatpush1.bf16.msra.mxu0 %v2083
      %3010 = vmatprep.subr.bf16.mxu0 %v2080
      %3011 = vmatpush1.bf16.msra.mxu0 %v2079
      %3012 = vmatprep.subr.bf16.mxu0 %v2076
      %3013 = vmatpush1.bf16.msra.mxu0 %v2075
      %3014 = vmatprep.subr.bf16.mxu0 %v2072
      %3015 = vmatpush1.bf16.msra.mxu0 %v2071
      %3016 = vmatprep.subr.bf16.mxu0 %v2068
      %3017 = vmatpush1.bf16.msra.mxu0 %v2067
      %3018 = vmatprep.subr.bf16.mxu0 %v2064
      %3019 = vmatpush1.bf16.msra.mxu0 %v2063
      %3020 = vmatprep.subr.bf16.mxu0 %v2060
      %3021 = vmatpush1.bf16.msra.mxu0 %v2059
      %3022 = vmatprep.subr.bf16.mxu0 %v2120
      %3023 = vmatpush2.bf16.msra.mxu0 %v2119
      %3024 = vmatprep.subr.bf16.mxu0 %v2116
      %3025 = vmatpush2.bf16.msra.mxu0 %v2115
      %3026 = vmatprep.subr.bf16.mxu0 %v2112
      %3027 = vmatpush2.bf16.msra.mxu0 %v2111
      %3028 = vmatprep.subr.bf16.mxu0 %v2108
      %3029 = vmatpush2.bf16.msra.mxu0 %v2107
      %3030 = vmatprep.subr.bf16.mxu0 %v2104
      %3031 = vmatpush2.bf16.msra.mxu0 %v2103
      %3032 = vmatprep.subr.bf16.mxu0 %v2100
      %3033 = vmatpush2.bf16.msra.mxu0 %v2099
      %3034 = vmatprep.subr.bf16.mxu0 %v2096
      %3035 = vmatpush2.bf16.msra.mxu0 %v2095
      %3036 = vmatprep.subr.bf16.mxu0 %v2092
      %3037 = vmatpush2.bf16.msra.mxu0 %v2091
      %3038 = vmatprep.mubr.bf16.mxu0 %v1212
      %3039 = vmatmul.mubr.bf16.gmra.mxu0 %v1211
      %v3040 = vpop.f32.mrf.mxu0
      %v3041 = vadd.f32 %v2928, %v3040
      %v3042 = vpop.f32.mrf.mxu0
      %v3043 = vadd.f32 %v2930, %v3042
      %v3044 = vpop.f32.mrf.mxu0
      %v3045 = vadd.f32 %v2932, %v3044
      %v3046 = vpop.f32.mrf.mxu0
      %v3047 = vadd.f32 %v2934, %v3046
      %3048 = vmatprep.mubr.bf16.mxu0 %v1219
      %3049 = vmatmul.mubr.bf16.gmra.mxu0 %v1218
      %v3050 = vpop.f32.mrf.mxu0
      %v3051 = vadd.f32 %v2938, %v3050
      %v3052 = vpop.f32.mrf.mxu0
      %v3053 = vadd.f32 %v2940, %v3052
      %v3054 = vpop.f32.mrf.mxu0
      %v3055 = vadd.f32 %v2942, %v3054
      %v3056 = vpop.f32.mrf.mxu0
      %v3057 = vadd.f32 %v2944, %v3056
      %3058 = vmatprep.mubr.bf16.mxu0 %v1226
      %3059 = vmatmul.mubr.bf16.gmra.mxu0 %v1225
      %v3060 = vpop.f32.mrf.mxu0
      %v3061 = vadd.f32 %v2948, %v3060
      %v3062 = vpop.f32.mrf.mxu0
      %v3063 = vadd.f32 %v2950, %v3062
      %v3064 = vpop.f32.mrf.mxu0
      %v3065 = vadd.f32 %v2952, %v3064
      %v3066 = vpop.f32.mrf.mxu0
      %v3067 = vadd.f32 %v2954, %v3066
      %3068 = vmatprep.mubr.bf16.mxu0 %v1233
      %3069 = vmatmul.mubr.bf16.gmra.mxu0 %v1232
      %v3070 = vpop.f32.mrf.mxu0
      %v3071 = vadd.f32 %v2958, %v3070
      %v3072 = vpop.f32.mrf.mxu0
      %v3073 = vadd.f32 %v2960, %v3072
      %v3074 = vpop.f32.mrf.mxu0
      %v3075 = vadd.f32 %v2962, %v3074
      %v3076 = vpop.f32.mrf.mxu0
      %v3077 = vadd.f32 %v2964, %v3076
      %3078 = vmatprep.mubr.bf16.mxu0 %v1240
      %3079 = vmatmul.mubr.bf16.gmra.mxu0 %v1239
      %v3080 = vpop.f32.mrf.mxu0
      %v3081 = vadd.f32 %v2968, %v3080
      %v3082 = vpop.f32.mrf.mxu0
      %v3083 = vadd.f32 %v2970, %v3082
      %v3084 = vpop.f32.mrf.mxu0
      %v3085 = vadd.f32 %v2972, %v3084
      %v3086 = vpop.f32.mrf.mxu0
      %v3087 = vadd.f32 %v2974, %v3086
      %3088 = vmatprep.mubr.bf16.mxu0 %v1247
      %3089 = vmatmul.mubr.bf16.gmra.mxu0 %v1246
      %v3090 = vpop.f32.mrf.mxu0
      %v3091 = vadd.f32 %v2978, %v3090
      %v3092 = vpop.f32.mrf.mxu0
      %v3093 = vadd.f32 %v2980, %v3092
      %v3094 = vpop.f32.mrf.mxu0
      %v3095 = vadd.f32 %v2982, %v3094
      %v3096 = vpop.f32.mrf.mxu0
      %v3097 = vadd.f32 %v2984, %v3096
      %3098 = vmatprep.mubr.bf16.mxu0 %v1254
      %3099 = vmatmul.mubr.bf16.gmra.mxu0 %v1253
      %v3100 = vpop.f32.mrf.mxu0
      %v3101 = vadd.f32 %v2988, %v3100
      %v3102 = vpop.f32.mrf.mxu0
      %v3103 = vadd.f32 %v2990, %v3102
      %v3104 = vpop.f32.mrf.mxu0
      %v3105 = vadd.f32 %v2992, %v3104
      %v3106 = vpop.f32.mrf.mxu0
      %v3107 = vadd.f32 %v2994, %v3106
      %3108 = vmatprep.mubr.bf16.mxu0 %v1261
      %3109 = vmatmul.mubr.bf16.gmra.mxu0 %v1260
      %v3110 = vpop.f32.mrf.mxu0
      %v3111 = vadd.f32 %v2998, %v3110
      %v3112 = vpop.f32.mrf.mxu0
      %v3113 = vadd.f32 %v3000, %v3112
      %v3114 = vpop.f32.mrf.mxu0
      %v3115 = vadd.f32 %v3002, %v3114
      %v3116 = vpop.f32.mrf.mxu0
      %v3117 = vadd.f32 %v3004, %v3116
      %3118 = vdwg.mxu0
      %3119 = vmatprep.subr.bf16.mxu0 %v2152
      %3120 = vmatpush1.bf16.msra.mxu0 %v2151
      %3121 = vmatprep.subr.bf16.mxu0 %v2148
      %3122 = vmatpush1.bf16.msra.mxu0 %v2147
      %3123 = vmatprep.subr.bf16.mxu0 %v2144
      %3124 = vmatpush1.bf16.msra.mxu0 %v2143
      %3125 = vmatprep.subr.bf16.mxu0 %v2140
      %3126 = vmatpush1.bf16.msra.mxu0 %v2139
      %3127 = vmatprep.subr.bf16.mxu0 %v2136
      %3128 = vmatpush1.bf16.msra.mxu0 %v2135
      %3129 = vmatprep.subr.bf16.mxu0 %v2132
      %3130 = vmatpush1.bf16.msra.mxu0 %v2131
      %3131 = vmatprep.subr.bf16.mxu0 %v2128
      %3132 = vmatpush1.bf16.msra.mxu0 %v2127
      %3133 = vmatprep.subr.bf16.mxu0 %v2124
      %3134 = vmatpush1.bf16.msra.mxu0 %v2123
      %3135 = vmatprep.subr.bf16.mxu0 %v2184
      %3136 = vmatpush2.bf16.msra.mxu0 %v2183
      %3137 = vmatprep.subr.bf16.mxu0 %v2180
      %3138 = vmatpush2.bf16.msra.mxu0 %v2179
      %3139 = vmatprep.subr.bf16.mxu0 %v2176
      %3140 = vmatpush2.bf16.msra.mxu0 %v2175
      %3141 = vmatprep.subr.bf16.mxu0 %v2172
      %3142 = vmatpush2.bf16.msra.mxu0 %v2171
      %3143 = vmatprep.subr.bf16.mxu0 %v2168
      %3144 = vmatpush2.bf16.msra.mxu0 %v2167
      %3145 = vmatprep.subr.bf16.mxu0 %v2164
      %3146 = vmatpush2.bf16.msra.mxu0 %v2163
      %3147 = vmatprep.subr.bf16.mxu0 %v2160
      %3148 = vmatpush2.bf16.msra.mxu0 %v2159
      %3149 = vmatprep.subr.bf16.mxu0 %v2156
      %3150 = vmatpush2.bf16.msra.mxu0 %v2155
      %3151 = vmatprep.mubr.bf16.mxu0 %v1214
      %3152 = vmatmul.mubr.bf16.gmra.mxu0 %v1213
      %v3153 = vpop.f32.mrf.mxu0
      %v3154 = vadd.f32 %v3041, %v3153
      %v3155 = vpop.f32.mrf.mxu0
      %v3156 = vadd.f32 %v3043, %v3155
      %v3157 = vpop.f32.mrf.mxu0
      %v3158 = vadd.f32 %v3045, %v3157
      %v3159 = vpop.f32.mrf.mxu0
      %v3160 = vadd.f32 %v3047, %v3159
      %3161 = vmatprep.mubr.bf16.mxu0 %v1221
      %3162 = vmatmul.mubr.bf16.gmra.mxu0 %v1220
      %v3163 = vpop.f32.mrf.mxu0
      %v3164 = vadd.f32 %v3051, %v3163
      %v3165 = vpop.f32.mrf.mxu0
      %v3166 = vadd.f32 %v3053, %v3165
      %v3167 = vpop.f32.mrf.mxu0
      %v3168 = vadd.f32 %v3055, %v3167
      %v3169 = vpop.f32.mrf.mxu0
      %v3170 = vadd.f32 %v3057, %v3169
      %3171 = vmatprep.mubr.bf16.mxu0 %v1228
      %3172 = vmatmul.mubr.bf16.gmra.mxu0 %v1227
      %v3173 = vpop.f32.mrf.mxu0
      %v3174 = vadd.f32 %v3061, %v3173
      %v3175 = vpop.f32.mrf.mxu0
      %v3176 = vadd.f32 %v3063, %v3175
      %v3177 = vpop.f32.mrf.mxu0
      %v3178 = vadd.f32 %v3065, %v3177
      %v3179 = vpop.f32.mrf.mxu0
      %v3180 = vadd.f32 %v3067, %v3179
      %3181 = vmatprep.mubr.bf16.mxu0 %v1235
      %3182 = vmatmul.mubr.bf16.gmra.mxu0 %v1234
      %v3183 = vpop.f32.mrf.mxu0
      %v3184 = vadd.f32 %v3071, %v3183
      %v3185 = vpop.f32.mrf.mxu0
      %v3186 = vadd.f32 %v3073, %v3185
      %v3187 = vpop.f32.mrf.mxu0
      %v3188 = vadd.f32 %v3075, %v3187
      %v3189 = vpop.f32.mrf.mxu0
      %v3190 = vadd.f32 %v3077, %v3189
      %3191 = vmatprep.mubr.bf16.mxu0 %v1242
      %3192 = vmatmul.mubr.bf16.gmra.mxu0 %v1241
      %v3193 = vpop.f32.mrf.mxu0
      %v3194 = vadd.f32 %v3081, %v3193
      %v3195 = vpop.f32.mrf.mxu0
      %v3196 = vadd.f32 %v3083, %v3195
      %v3197 = vpop.f32.mrf.mxu0
      %v3198 = vadd.f32 %v3085, %v3197
      %v3199 = vpop.f32.mrf.mxu0
      %v3200 = vadd.f32 %v3087, %v3199
      %3201 = vmatprep.mubr.bf16.mxu0 %v1249
      %3202 = vmatmul.mubr.bf16.gmra.mxu0 %v1248
      %v3203 = vpop.f32.mrf.mxu0
      %v3204 = vadd.f32 %v3091, %v3203
      %v3205 = vpop.f32.mrf.mxu0
      %v3206 = vadd.f32 %v3093, %v3205
      %v3207 = vpop.f32.mrf.mxu0
      %v3208 = vadd.f32 %v3095, %v3207
      %v3209 = vpop.f32.mrf.mxu0
      %v3210 = vadd.f32 %v3097, %v3209
      %3211 = vmatprep.mubr.bf16.mxu0 %v1256
      %3212 = vmatmul.mubr.bf16.gmra.mxu0 %v1255
      %v3213 = vpop.f32.mrf.mxu0
      %v3214 = vadd.f32 %v3101, %v3213
      %v3215 = vpop.f32.mrf.mxu0
      %v3216 = vadd.f32 %v3103, %v3215
      %v3217 = vpop.f32.mrf.mxu0
      %v3218 = vadd.f32 %v3105, %v3217
      %v3219 = vpop.f32.mrf.mxu0
      %v3220 = vadd.f32 %v3107, %v3219
      %3221 = vmatprep.mubr.bf16.mxu0 %v1263
      %3222 = vmatmul.mubr.bf16.gmra.mxu0 %v1262
      %v3223 = vpop.f32.mrf.mxu0
      %v3224 = vadd.f32 %v3111, %v3223
      %v3225 = vpop.f32.mrf.mxu0
      %v3226 = vadd.f32 %v3113, %v3225
      %v3227 = vpop.f32.mrf.mxu0
      %v3228 = vadd.f32 %v3115, %v3227
      %v3229 = vpop.f32.mrf.mxu0
      %v3230 = vadd.f32 %v3117, %v3229
      %3231 = vdwg.mxu0
      %3232 = vmatprep.subr.bf16.mxu0 %v2216
      %3233 = vmatpush1.bf16.msra.mxu0 %v2215
      %3234 = vmatprep.subr.bf16.mxu0 %v2212
      %3235 = vmatpush1.bf16.msra.mxu0 %v2211
      %3236 = vmatprep.subr.bf16.mxu0 %v2208
      %3237 = vmatpush1.bf16.msra.mxu0 %v2207
      %3238 = vmatprep.subr.bf16.mxu0 %v2204
      %3239 = vmatpush1.bf16.msra.mxu0 %v2203
      %3240 = vmatprep.subr.bf16.mxu0 %v2200
      %3241 = vmatpush1.bf16.msra.mxu0 %v2199
      %3242 = vmatprep.subr.bf16.mxu0 %v2196
      %3243 = vmatpush1.bf16.msra.mxu0 %v2195
      %3244 = vmatprep.subr.bf16.mxu0 %v2192
      %3245 = vmatpush1.bf16.msra.mxu0 %v2191
      %3246 = vmatprep.subr.bf16.mxu0 %v2188
      %3247 = vmatpush1.bf16.msra.mxu0 %v2187
      %3248 = vmatprep.subr.bf16.mxu0 0
      %3249 = vmatpush2.bf16.msra.mxu0 0
      %3250 = vmatprep.subr.bf16.mxu0 0
      %3251 = vmatpush2.bf16.msra.mxu0 0
      %3252 = vmatprep.subr.bf16.mxu0 0
      %3253 = vmatpush2.bf16.msra.mxu0 0
      %3254 = vmatprep.subr.bf16.mxu0 0
      %3255 = vmatpush2.bf16.msra.mxu0 0
      %3256 = vmatprep.subr.bf16.mxu0 0
      %3257 = vmatpush2.bf16.msra.mxu0 0
      %3258 = vmatprep.subr.bf16.mxu0 0
      %3259 = vmatpush2.bf16.msra.mxu0 0
      %3260 = vmatprep.subr.bf16.mxu0 0
      %3261 = vmatpush2.bf16.msra.mxu0 0
      %3262 = vmatprep.subr.bf16.mxu0 0
      %3263 = vmatpush2.bf16.msra.mxu0 0
      %3264 = vmatprep.mubr.bf16.mxu0 0
      %3265 = vmatmul.mubr.bf16.gmra.mxu0 %v1215
      %v3266 = vpop.f32.mrf.mxu0
      %v3267 = vadd.f32 %v3154, %v3266
      %v3268 = vpop.f32.mrf.mxu0
      %v3269 = vadd.f32 %v3156, %v3268
      %v3270 = vpop.f32.mrf.mxu0
      %v3271 = vadd.f32 %v3158, %v3270
      %v3272 = vpop.f32.mrf.mxu0
      %v3273 = vadd.f32 %v3160, %v3272
      %3274 = vmatprep.mubr.bf16.mxu0 0
      %3275 = vmatmul.mubr.bf16.gmra.mxu0 %v1222
      %v3276 = vpop.f32.mrf.mxu0
      %v3277 = vadd.f32 %v3164, %v3276
      %v3278 = vpop.f32.mrf.mxu0
      %v3279 = vadd.f32 %v3166, %v3278
      %v3280 = vpop.f32.mrf.mxu0
      %v3281 = vadd.f32 %v3168, %v3280
      %v3282 = vpop.f32.mrf.mxu0
      %v3283 = vadd.f32 %v3170, %v3282
      %3284 = vmatprep.mubr.bf16.mxu0 0
      %3285 = vmatmul.mubr.bf16.gmra.mxu0 %v1229
      %v3286 = vpop.f32.mrf.mxu0
      %v3287 = vadd.f32 %v3174, %v3286
      %v3288 = vpop.f32.mrf.mxu0
      %v3289 = vadd.f32 %v3176, %v3288
      %v3290 = vpop.f32.mrf.mxu0
      %v3291 = vadd.f32 %v3178, %v3290
      %v3292 = vpop.f32.mrf.mxu0
      %v3293 = vadd.f32 %v3180, %v3292
      %3294 = vmatprep.mubr.bf16.mxu0 0
      %3295 = vmatmul.mubr.bf16.gmra.mxu0 %v1236
      %v3296 = vpop.f32.mrf.mxu0
      %v3297 = vadd.f32 %v3184, %v3296
      %v3298 = vpop.f32.mrf.mxu0
      %v3299 = vadd.f32 %v3186, %v3298
      %v3300 = vpop.f32.mrf.mxu0
      %v3301 = vadd.f32 %v3188, %v3300
      %v3302 = vpop.f32.mrf.mxu0
      %v3303 = vadd.f32 %v3190, %v3302
      %3304 = vmatprep.mubr.bf16.mxu0 0
      %3305 = vmatmul.mubr.bf16.gmra.mxu0 %v1243
      %v3306 = vpop.f32.mrf.mxu0
      %v3307 = vadd.f32 %v3194, %v3306
      %v3308 = vpop.f32.mrf.mxu0
      %v3309 = vadd.f32 %v3196, %v3308
      %v3310 = vpop.f32.mrf.mxu0
      %v3311 = vadd.f32 %v3198, %v3310
      %v3312 = vpop.f32.mrf.mxu0
      %v3313 = vadd.f32 %v3200, %v3312
      %3314 = vmatprep.mubr.bf16.mxu0 0
      %3315 = vmatmul.mubr.bf16.gmra.mxu0 %v1250
      %v3316 = vpop.f32.mrf.mxu0
      %v3317 = vadd.f32 %v3204, %v3316
      %v3318 = vpop.f32.mrf.mxu0
      %v3319 = vadd.f32 %v3206, %v3318
      %v3320 = vpop.f32.mrf.mxu0
      %v3321 = vadd.f32 %v3208, %v3320
      %v3322 = vpop.f32.mrf.mxu0
      %v3323 = vadd.f32 %v3210, %v3322
      %3324 = vmatprep.mubr.bf16.mxu0 0
      %3325 = vmatmul.mubr.bf16.gmra.mxu0 %v1257
      %v3326 = vpop.f32.mrf.mxu0
      %v3327 = vadd.f32 %v3214, %v3326
      %v3328 = vpop.f32.mrf.mxu0
      %v3329 = vadd.f32 %v3216, %v3328
      %v3330 = vpop.f32.mrf.mxu0
      %v3331 = vadd.f32 %v3218, %v3330
      %v3332 = vpop.f32.mrf.mxu0
      %v3333 = vadd.f32 %v3220, %v3332
      %3334 = vmatprep.mubr.bf16.mxu0 0
      %3335 = vmatmul.mubr.bf16.gmra.mxu0 %v1264
      %v3336 = vpop.f32.mrf.mxu0
      %v3337 = vadd.f32 %v3224, %v3336
      %v3338 = vpop.f32.mrf.mxu0
      %v3339 = vadd.f32 %v3226, %v3338
      %v3340 = vpop.f32.mrf.mxu0
      %v3341 = vadd.f32 %v3228, %v3340
      %v3342 = vpop.f32.mrf.mxu0
      %v3343 = vadd.f32 %v3230, %v3342
      %3344 = vdwg.mxu0
      %v3345 = vmax.f32 %v2815, 0.0
      %v3346 = vmax.f32 %v2817, 0.0
      %v3347 = vmax.f32 %v3267, 0.0
      %v3348 = vmax.f32 %v3269, 0.0
      %v3349 = vmax.f32 %v2819, 0.0
      %v3350 = vmax.f32 %v2821, 0.0
      %v3351 = vmax.f32 %v3271, 0.0
      %v3352 = vmax.f32 %v3273, 0.0
      %v3353 = vmax.f32 %v2825, 0.0
      %v3354 = vmax.f32 %v2827, 0.0
      %v3355 = vmax.f32 %v3277, 0.0
      %v3356 = vmax.f32 %v3279, 0.0
      %v3357 = vmax.f32 %v2829, 0.0
      %v3358 = vmax.f32 %v2831, 0.0
      %v3359 = vmax.f32 %v3281, 0.0
      %v3360 = vmax.f32 %v3283, 0.0
      %v3361 = vmax.f32 %v2835, 0.0
      %v3362 = vmax.f32 %v2837, 0.0
      %v3363 = vmax.f32 %v3287, 0.0
      %v3364 = vmax.f32 %v3289, 0.0
      %v3365 = vmax.f32 %v2839, 0.0
      %v3366 = vmax.f32 %v2841, 0.0
      %v3367 = vmax.f32 %v3291, 0.0
      %v3368 = vmax.f32 %v3293, 0.0
      %v3369 = vmax.f32 %v2845, 0.0
      %v3370 = vmax.f32 %v2847, 0.0
      %v3371 = vmax.f32 %v3297, 0.0
      %v3372 = vmax.f32 %v3299, 0.0
      %v3373 = vmax.f32 %v2849, 0.0
      %v3374 = vmax.f32 %v2851, 0.0
      %v3375 = vmax.f32 %v3301, 0.0
      %v3376 = vmax.f32 %v3303, 0.0
      %v3377 = vmax.f32 %v2855, 0.0
      %v3378 = vmax.f32 %v2857, 0.0
      %v3379 = vmax.f32 %v3307, 0.0
      %v3380 = vmax.f32 %v3309, 0.0
      %v3381 = vmax.f32 %v2859, 0.0
      %v3382 = vmax.f32 %v2861, 0.0
      %v3383 = vmax.f32 %v3311, 0.0
      %v3384 = vmax.f32 %v3313, 0.0
      %v3385 = vmax.f32 %v2865, 0.0
      %v3386 = vmax.f32 %v2867, 0.0
      %v3387 = vmax.f32 %v3317, 0.0
      %v3388 = vmax.f32 %v3319, 0.0
      %v3389 = vmax.f32 %v2869, 0.0
      %v3390 = vmax.f32 %v2871, 0.0
      %v3391 = vmax.f32 %v3321, 0.0
      %v3392 = vmax.f32 %v3323, 0.0
      %v3393 = vmax.f32 %v2875, 0.0
      %v3394 = vmax.f32 %v2877, 0.0
      %v3395 = vmax.f32 %v3327, 0.0
      %v3396 = vmax.f32 %v3329, 0.0
      %v3397 = vmax.f32 %v2879, 0.0
      %v3398 = vmax.f32 %v2881, 0.0
      %v3399 = vmax.f32 %v3331, 0.0
      %v3400 = vmax.f32 %v3333, 0.0
      %v3401 = vmax.f32 %v2885, 0.0
      %v3402 = vmax.f32 %v2887, 0.0
      %v3403 = vmax.f32 %v3337, 0.0
      %v3404 = vmax.f32 %v3339, 0.0
      %v3405 = vmax.f32 %v2889, 0.0
      %v3406 = vmax.f32 %v2891, 0.0
      %v3407 = vmax.f32 %v3341, 0.0
      %v3408 = vmax.f32 %v3343, 0.0
      %v3409 = vpack.c.bf16 %v3349, %v3345
      %v3410 = vpack.c.bf16 %v3350, %v3346
      %v3411 = vpack.c.bf16 %v3351, %v3347
      %v3412 = vpack.c.bf16 %v3352, %v3348
      %v3413 = vpack.c.bf16 %v3357, %v3353
      %v3414 = vpack.c.bf16 %v3358, %v3354
      %v3415 = vpack.c.bf16 %v3359, %v3355
      %v3416 = vpack.c.bf16 %v3360, %v3356
      %v3417 = vpack.c.bf16 %v3365, %v3361
      %v3418 = vpack.c.bf16 %v3366, %v3362
      %v3419 = vpack.c.bf16 %v3367, %v3363
      %v3420 = vpack.c.bf16 %v3368, %v3364
      %v3421 = vpack.c.bf16 %v3373, %v3369
      %v3422 = vpack.c.bf16 %v3374, %v3370
      %v3423 = vpack.c.bf16 %v3375, %v3371
      %v3424 = vpack.c.bf16 %v3376, %v3372
      %v3425 = vpack.c.bf16 %v3381, %v3377
      %v3426 = vpack.c.bf16 %v3382, %v3378
      %v3427 = vpack.c.bf16 %v3383, %v3379
      %v3428 = vpack.c.bf16 %v3384, %v3380
      %v3429 = vpack.c.bf16 %v3389, %v3385
      %v3430 = vpack.c.bf16 %v3390, %v3386
      %v3431 = vpack.c.bf16 %v3391, %v3387
      %v3432 = vpack.c.bf16 %v3392, %v3388
      %v3433 = vpack.c.bf16 %v3397, %v3393
      %v3434 = vpack.c.bf16 %v3398, %v3394
      %v3435 = vpack.c.bf16 %v3399, %v3395
      %v3436 = vpack.c.bf16 %v3400, %v3396
      %v3437 = vpack.c.bf16 %v3405, %v3401
      %v3438 = vpack.c.bf16 %v3406, %v3402
      %v3439 = vpack.c.bf16 %v3407, %v3403
      %v3440 = vpack.c.bf16 %v3408, %v3404
      %v3441 = vld [vmem:[%s5] sm:$0xf]
      %v3442 = vld [vmem:[%s5 + $0x4] sm:$0xf]
      %v3443 = vld [vmem:[%s5 + $0x8] sm:$0xf]
      %v3444 = vld [vmem:[%s5 + $0xc] sm:$0xf]
      %v3445 = vld [vmem:[%s5 + $0x10] sm:$0xf]
      %v3446 = vld [vmem:[%s5 + $0x14] sm:$0xf]
      %v3447 = vld [vmem:[%s5 + $0x18] sm:$0xf]
      %v3448 = vld [vmem:[%s5 + $0x1c] sm:$0xf]
      %v3449 = vld [vmem:[%s5 + $0x20] sm:$0xf]
      %v3450 = vld [vmem:[%s5 + $0x24] sm:$0xf]
      %v3451 = vld [vmem:[%s5 + $0x28] sm:$0xf]
      %v3452 = vld [vmem:[%s5 + $0x2c] sm:$0xf]
      %v3453 = vld [vmem:[%s5 + $0x30] sm:$0xf]
      %v3454 = vld [vmem:[%s5 + $0x34] sm:$0xf]
      %v3455 = vld [vmem:[%s5 + $0x38] sm:$0xf]
      %v3456 = vld [vmem:[%s5 + $0x3c] sm:$0xf]
      %v3457 = vld [vmem:[%s5 + $0x40] sm:$0xf]
      %v3458 = vld [vmem:[%s5 + $0x44] sm:$0xf]
      %v3459 = vld [vmem:[%s5 + $0x48] sm:$0xf]
      %v3460 = vld [vmem:[%s5 + $0x4c] sm:$0xf]
      %v3461 = vld [vmem:[%s5 + $0x50] sm:$0xf]
      %v3462 = vld [vmem:[%s5 + $0x54] sm:$0xf]
      %v3463 = vld [vmem:[%s5 + $0x58] sm:$0xf]
      %v3464 = vld [vmem:[%s5 + $0x5c] sm:$0xf]
      %v3465 = vld [vmem:[%s5 + $0x60] sm:$0xf]
      %v3466 = vld [vmem:[%s5 + $0x64] sm:$0xf]
      %v3467 = vld [vmem:[%s5 + $0x68] sm:$0xf]
      %v3468 = vld [vmem:[%s5 + $0x6c] sm:$0xf]
      %v3469 = vld [vmem:[%s5 + $0x70] sm:$0xf]
      %v3470 = vld [vmem:[%s5 + $0x74] sm:$0xf]
      %v3471 = vld [vmem:[%s5 + $0x78] sm:$0xf]
      %v3472 = vld [vmem:[%s5 + $0x7c] sm:$0xf]
      %v3473 = vld [vmem:[%s5 + $0x80] sm:$0xf]
      %v3474 = vld [vmem:[%s5 + $0x84] sm:$0xf]
      %v3475 = vld [vmem:[%s5 + $0x88] sm:$0xf]
      %v3476 = vld [vmem:[%s5 + $0x8c] sm:$0xf]
      %v3477 = vld [vmem:[%s5 + $0x90] sm:$0xf]
      %v3478 = vld [vmem:[%s5 + $0x94] sm:$0xf]
      %v3479 = vld [vmem:[%s5 + $0x98] sm:$0xf]
      %v3480 = vld [vmem:[%s5 + $0x9c] sm:$0xf]
      %v3481 = vld [vmem:[%s5 + $0xa0] sm:$0xf]
      %v3482 = vld [vmem:[%s5 + $0xa4] sm:$0xf]
      %v3483 = vld [vmem:[%s5 + $0xa8] sm:$0xf]
      %v3484 = vld [vmem:[%s5 + $0xac] sm:$0xf]
      %v3485 = vld [vmem:[%s5 + $0xb0] sm:$0xf]
      %v3486 = vld [vmem:[%s5 + $0xb4] sm:$0xf]
      %v3487 = vld [vmem:[%s5 + $0xb8] sm:$0xf]
      %v3488 = vld [vmem:[%s5 + $0xbc] sm:$0xf]
      %v3489 = vld [vmem:[%s5 + $0xc0] sm:$0xf]
      %v3490 = vld [vmem:[%s5 + $0xc4] sm:$0xf]
      %v3491 = vld [vmem:[%s5 + $0xc8] sm:$0xf]
      %v3492 = vld [vmem:[%s5 + $0xcc] sm:$0xf]
      %v3493 = vld [vmem:[%s5 + $0xd0] sm:$0xf]
      %v3494 = vld [vmem:[%s5 + $0xd4] sm:$0xf]
      %v3495 = vld [vmem:[%s5 + $0xd8] sm:$0xf]
      %v3496 = vld [vmem:[%s5 + $0xdc] sm:$0xf]
      %v3497 = vld [vmem:[%s5 + $0xe0] sm:$0xf]
      %v3498 = vld [vmem:[%s5 + $0xe4] sm:$0xf]
      %v3499 = vld [vmem:[%s5 + $0xe8] sm:$0xf]
      %v3500 = vld [vmem:[%s5 + $0xec] sm:$0xf]
      %v3501 = vld [vmem:[%s5 + $0xf0] sm:$0xf]
      %v3502 = vld [vmem:[%s5 + $0xf4] sm:$0xf]
      %v3503 = vld [vmem:[%s5 + $0xf8] sm:$0xf]
      %v3504 = vld [vmem:[%s5 + $0xfc] sm:$0xf]
      %v3505 = vld [vmem:[%s6] sm:$0x1]
      %v3507 = vlaneseq
      %v3508 = vshrl.u32 %v3507, 7
      %v3509 = vsub.s32 0, %v3508
      %v3510 = vrot.slane %v3505, %v3509
      %v3576 = vunpack.c.l.b16 %v3441
      %v3577 = vunpack.c.l.b16 %v3442
      %v3578 = vunpack.c.l.b16 %v3443
      %v3579 = vunpack.c.l.b16 %v3444
      %v3580 = vunpack.c.l.b16 %v3445
      %v3581 = vunpack.c.l.b16 %v3446
      %v3582 = vunpack.c.l.b16 %v3447
      %v3583 = vunpack.c.l.b16 %v3448
      %v3584 = vunpack.c.l.b16 %v3449
      %v3585 = vunpack.c.l.b16 %v3450
      %v3586 = vunpack.c.l.b16 %v3451
      %v3587 = vunpack.c.l.b16 %v3452
      %v3588 = vunpack.c.l.b16 %v3453
      %v3589 = vunpack.c.l.b16 %v3454
      %v3590 = vunpack.c.l.b16 %v3455
      %v3591 = vunpack.c.l.b16 %v3456
      %v3592 = vunpack.c.l.b16 %v3457
      %v3593 = vunpack.c.l.b16 %v3458
      %v3594 = vunpack.c.l.b16 %v3459
      %v3595 = vunpack.c.l.b16 %v3460
      %v3596 = vunpack.c.l.b16 %v3461
      %v3597 = vunpack.c.l.b16 %v3462
      %v3598 = vunpack.c.l.b16 %v3463
      %v3599 = vunpack.c.l.b16 %v3464
      %v3600 = vunpack.c.l.b16 %v3465
      %v3601 = vunpack.c.l.b16 %v3466
      %v3602 = vunpack.c.l.b16 %v3467
      %v3603 = vunpack.c.l.b16 %v3468
      %v3604 = vunpack.c.l.b16 %v3469
      %v3605 = vunpack.c.l.b16 %v3470
      %v3606 = vunpack.c.l.b16 %v3471
      %v3607 = vunpack.c.l.b16 %v3472
      %v3608 = vunpack.c.l.b16 %v3473
      %v3609 = vunpack.c.l.b16 %v3474
      %v3610 = vunpack.c.l.b16 %v3475
      %v3611 = vunpack.c.l.b16 %v3476
      %v3612 = vunpack.c.l.b16 %v3477
      %v3613 = vunpack.c.l.b16 %v3478
      %v3614 = vunpack.c.l.b16 %v3479
      %v3615 = vunpack.c.l.b16 %v3480
      %v3616 = vunpack.c.l.b16 %v3481
      %v3617 = vunpack.c.l.b16 %v3482
      %v3618 = vunpack.c.l.b16 %v3483
      %v3619 = vunpack.c.l.b16 %v3484
      %v3620 = vunpack.c.l.b16 %v3485
      %v3621 = vunpack.c.l.b16 %v3486
      %v3622 = vunpack.c.l.b16 %v3487
      %v3623 = vunpack.c.l.b16 %v3488
      %v3624 = vunpack.c.l.b16 %v3489
      %v3625 = vunpack.c.l.b16 %v3490
      %v3626 = vunpack.c.l.b16 %v3491
      %v3627 = vunpack.c.l.b16 %v3492
      %v3628 = vunpack.c.l.b16 %v3493
      %v3629 = vunpack.c.l.b16 %v3494
      %v3630 = vunpack.c.l.b16 %v3495
      %v3631 = vunpack.c.l.b16 %v3496
      %v3632 = vunpack.c.l.b16 %v3497
      %v3633 = vunpack.c.l.b16 %v3498
      %v3634 = vunpack.c.l.b16 %v3499
      %v3635 = vunpack.c.l.b16 %v3500
      %v3636 = vunpack.c.l.b16 %v3501
      %v3637 = vunpack.c.l.b16 %v3502
      %v3638 = vunpack.c.l.b16 %v3503
      %v3639 = vunpack.c.l.b16 %v3504
      %v3640 = vpack.c.b16 %v3577, %v3576
      %v3641 = vpack.c.b16 %v3579, %v3578
      %v3642 = vpack.c.b16 %v3581, %v3580
      %v3643 = vpack.c.b16 %v3583, %v3582
      %v3644 = vpack.c.b16 %v3585, %v3584
      %v3645 = vpack.c.b16 %v3587, %v3586
      %v3646 = vpack.c.b16 %v3589, %v3588
      %v3647 = vpack.c.b16 %v3591, %v3590
      %v3648 = vpack.c.b16 %v3593, %v3592
      %v3649 = vpack.c.b16 %v3595, %v3594
      %v3650 = vpack.c.b16 %v3597, %v3596
      %v3651 = vpack.c.b16 %v3599, %v3598
      %v3652 = vpack.c.b16 %v3601, %v3600
      %v3653 = vpack.c.b16 %v3603, %v3602
      %v3654 = vpack.c.b16 %v3605, %v3604
      %v3655 = vpack.c.b16 %v3607, %v3606
      %v3656 = vpack.c.b16 %v3609, %v3608
      %v3657 = vpack.c.b16 %v3611, %v3610
      %v3658 = vpack.c.b16 %v3613, %v3612
      %v3659 = vpack.c.b16 %v3615, %v3614
      %v3660 = vpack.c.b16 %v3617, %v3616
      %v3661 = vpack.c.b16 %v3619, %v3618
      %v3662 = vpack.c.b16 %v3621, %v3620
      %v3663 = vpack.c.b16 %v3623, %v3622
      %v3664 = vpack.c.b16 %v3625, %v3624
      %v3665 = vpack.c.b16 %v3627, %v3626
      %v3666 = vpack.c.b16 %v3629, %v3628
      %v3667 = vpack.c.b16 %v3631, %v3630
      %v3668 = vpack.c.b16 %v3633, %v3632
      %v3669 = vpack.c.b16 %v3635, %v3634
      %v3670 = vpack.c.b16 %v3637, %v3636
      %v3671 = vpack.c.b16 %v3639, %v3638
      %3704 = vmatprep.subr.bf16.mxu0 0
      %3705 = vmatpush1.bf16.msra.mxu0 %v3647
      %3706 = vmatprep.subr.bf16.mxu0 0
      %3707 = vmatpush1.bf16.msra.mxu0 %v3646
      %3708 = vmatprep.subr.bf16.mxu0 0
      %3709 = vmatpush1.bf16.msra.mxu0 %v3645
      %3710 = vmatprep.subr.bf16.mxu0 0
      %3711 = vmatpush1.bf16.msra.mxu0 %v3644
      %3712 = vmatprep.subr.bf16.mxu0 0
      %3713 = vmatpush1.bf16.msra.mxu0 %v3643
      %3714 = vmatprep.subr.bf16.mxu0 0
      %3715 = vmatpush1.bf16.msra.mxu0 %v3642
      %3716 = vmatprep.subr.bf16.mxu0 0
      %3717 = vmatpush1.bf16.msra.mxu0 %v3641
      %3718 = vmatprep.subr.bf16.mxu0 0
      %3719 = vmatpush1.bf16.msra.mxu0 %v3640
      %3720 = vmatprep.subr.bf16.mxu0 0
      %3721 = vmatpush2.bf16.msra.mxu0 %v3655
      %3722 = vmatprep.subr.bf16.mxu0 0
      %3723 = vmatpush2.bf16.msra.mxu0 %v3654
      %3724 = vmatprep.subr.bf16.mxu0 0
      %3725 = vmatpush2.bf16.msra.mxu0 %v3653
      %3726 = vmatprep.subr.bf16.mxu0 0
      %3727 = vmatpush2.bf16.msra.mxu0 %v3652
      %3728 = vmatprep.subr.bf16.mxu0 0
      %3729 = vmatpush2.bf16.msra.mxu0 %v3651
      %3730 = vmatprep.subr.bf16.mxu0 0
      %3731 = vmatpush2.bf16.msra.mxu0 %v3650
      %3732 = vmatprep.subr.bf16.mxu0 0
      %3733 = vmatpush2.bf16.msra.mxu0 %v3649
      %3734 = vmatprep.subr.bf16.mxu0 0
      %3735 = vmatpush2.bf16.msra.mxu0 %v3648
      %3736 = vmatprep.mubr.bf16.mxu0 %v3410
      %3737 = vmatmul.mubr.bf16.gmra.mxu0 %v3409
      %v3738 = vpop.f32.mrf.mxu0
      %v3739 = vadd.f32 %v3510, %v3738
      %v3740 = vpop.f32.mrf.mxu0
      %v3741 = vpop.f32.mrf.mxu0
      %v3742 = vadd.f32 %v3510, %v3741
      %v3743 = vpop.f32.mrf.mxu0
      %3744 = vmatprep.mubr.bf16.mxu0 %v3414
      %3745 = vmatmul.mubr.bf16.gmra.mxu0 %v3413
      %v3746 = vpop.f32.mrf.mxu0
      %v3747 = vadd.f32 %v3510, %v3746
      %v3748 = vpop.f32.mrf.mxu0
      %v3749 = vpop.f32.mrf.mxu0
      %v3750 = vadd.f32 %v3510, %v3749
      %v3751 = vpop.f32.mrf.mxu0
      %3752 = vmatprep.mubr.bf16.mxu0 %v3418
      %3753 = vmatmul.mubr.bf16.gmra.mxu0 %v3417
      %v3754 = vpop.f32.mrf.mxu0
      %v3755 = vadd.f32 %v3510, %v3754
      %v3756 = vpop.f32.mrf.mxu0
      %v3757 = vpop.f32.mrf.mxu0
      %v3758 = vadd.f32 %v3510, %v3757
      %v3759 = vpop.f32.mrf.mxu0
      %3760 = vmatprep.mubr.bf16.mxu0 %v3422
      %3761 = vmatmul.mubr.bf16.gmra.mxu0 %v3421
      %v3762 = vpop.f32.mrf.mxu0
      %v3763 = vadd.f32 %v3510, %v3762
      %v3764 = vpop.f32.mrf.mxu0
      %v3765 = vpop.f32.mrf.mxu0
      %v3766 = vadd.f32 %v3510, %v3765
      %v3767 = vpop.f32.mrf.mxu0
      %3768 = vmatprep.mubr.bf16.mxu0 %v3426
      %3769 = vmatmul.mubr.bf16.gmra.mxu0 %v3425
      %v3770 = vpop.f32.mrf.mxu0
      %v3771 = vadd.f32 %v3510, %v3770
      %v3772 = vpop.f32.mrf.mxu0
      %v3773 = vpop.f32.mrf.mxu0
      %v3774 = vadd.f32 %v3510, %v3773
      %v3775 = vpop.f32.mrf.mxu0
      %3776 = vmatprep.mubr.bf16.mxu0 %v3430
      %3777 = vmatmul.mubr.bf16.gmra.mxu0 %v3429
      %v3778 = vpop.f32.mrf.mxu0
      %v3779 = vadd.f32 %v3510, %v3778
      %v3780 = vpop.f32.mrf.mxu0
      %v3781 = vpop.f32.mrf.mxu0
      %v3782 = vadd.f32 %v3510, %v3781
      %v3783 = vpop.f32.mrf.mxu0
      %3784 = vmatprep.mubr.bf16.mxu0 %v3434
      %3785 = vmatmul.mubr.bf16.gmra.mxu0 %v3433
      %v3786 = vpop.f32.mrf.mxu0
      %v3787 = vadd.f32 %v3510, %v3786
      %v3788 = vpop.f32.mrf.mxu0
      %v3789 = vpop.f32.mrf.mxu0
      %v3790 = vadd.f32 %v3510, %v3789
      %v3791 = vpop.f32.mrf.mxu0
      %3792 = vmatprep.mubr.bf16.mxu0 %v3438
      %3793 = vmatmul.mubr.bf16.gmra.mxu0 %v3437
      %v3794 = vpop.f32.mrf.mxu0
      %v3795 = vadd.f32 %v3510, %v3794
      %v3796 = vpop.f32.mrf.mxu0
      %v3797 = vpop.f32.mrf.mxu0
      %v3798 = vadd.f32 %v3510, %v3797
      %v3799 = vpop.f32.mrf.mxu0
      %3800 = vdwg.mxu0
      %3801 = vmatprep.subr.bf16.mxu0 0
      %3802 = vmatpush1.bf16.msra.mxu0 %v3663
      %3803 = vmatprep.subr.bf16.mxu0 0
      %3804 = vmatpush1.bf16.msra.mxu0 %v3662
      %3805 = vmatprep.subr.bf16.mxu0 0
      %3806 = vmatpush1.bf16.msra.mxu0 %v3661
      %3807 = vmatprep.subr.bf16.mxu0 0
      %3808 = vmatpush1.bf16.msra.mxu0 %v3660
      %3809 = vmatprep.subr.bf16.mxu0 0
      %3810 = vmatpush1.bf16.msra.mxu0 %v3659
      %3811 = vmatprep.subr.bf16.mxu0 0
      %3812 = vmatpush1.bf16.msra.mxu0 %v3658
      %3813 = vmatprep.subr.bf16.mxu0 0
      %3814 = vmatpush1.bf16.msra.mxu0 %v3657
      %3815 = vmatprep.subr.bf16.mxu0 0
      %3816 = vmatpush1.bf16.msra.mxu0 %v3656
      %3817 = vmatprep.subr.bf16.mxu0 0
      %3818 = vmatpush2.bf16.msra.mxu0 %v3671
      %3819 = vmatprep.subr.bf16.mxu0 0
      %3820 = vmatpush2.bf16.msra.mxu0 %v3670
      %3821 = vmatprep.subr.bf16.mxu0 0
      %3822 = vmatpush2.bf16.msra.mxu0 %v3669
      %3823 = vmatprep.subr.bf16.mxu0 0
      %3824 = vmatpush2.bf16.msra.mxu0 %v3668
      %3825 = vmatprep.subr.bf16.mxu0 0
      %3826 = vmatpush2.bf16.msra.mxu0 %v3667
      %3827 = vmatprep.subr.bf16.mxu0 0
      %3828 = vmatpush2.bf16.msra.mxu0 %v3666
      %3829 = vmatprep.subr.bf16.mxu0 0
      %3830 = vmatpush2.bf16.msra.mxu0 %v3665
      %3831 = vmatprep.subr.bf16.mxu0 0
      %3832 = vmatpush2.bf16.msra.mxu0 %v3664
      %3833 = vmatprep.mubr.bf16.mxu0 %v3412
      %3834 = vmatmul.mubr.bf16.gmra.mxu0 %v3411
      %v3835 = vpop.f32.mrf.mxu0
      %v3836 = vadd.f32 %v3739, %v3835
      %v3837 = vpop.f32.mrf.mxu0
      %v3838 = vpop.f32.mrf.mxu0
      %v3839 = vadd.f32 %v3742, %v3838
      %v3840 = vpop.f32.mrf.mxu0
      %3841 = vmatprep.mubr.bf16.mxu0 %v3416
      %3842 = vmatmul.mubr.bf16.gmra.mxu0 %v3415
      %v3843 = vpop.f32.mrf.mxu0
      %v3844 = vadd.f32 %v3747, %v3843
      %v3845 = vpop.f32.mrf.mxu0
      %v3846 = vpop.f32.mrf.mxu0
      %v3847 = vadd.f32 %v3750, %v3846
      %v3848 = vpop.f32.mrf.mxu0
      %3849 = vmatprep.mubr.bf16.mxu0 %v3420
      %3850 = vmatmul.mubr.bf16.gmra.mxu0 %v3419
      %v3851 = vpop.f32.mrf.mxu0
      %v3852 = vadd.f32 %v3755, %v3851
      %v3853 = vpop.f32.mrf.mxu0
      %v3854 = vpop.f32.mrf.mxu0
      %v3855 = vadd.f32 %v3758, %v3854
      %v3856 = vpop.f32.mrf.mxu0
      %3857 = vmatprep.mubr.bf16.mxu0 %v3424
      %3858 = vmatmul.mubr.bf16.gmra.mxu0 %v3423
      %v3859 = vpop.f32.mrf.mxu0
      %v3860 = vadd.f32 %v3763, %v3859
      %v3861 = vpop.f32.mrf.mxu0
      %v3862 = vpop.f32.mrf.mxu0
      %v3863 = vadd.f32 %v3766, %v3862
      %v3864 = vpop.f32.mrf.mxu0
      %3865 = vmatprep.mubr.bf16.mxu0 %v3428
      %3866 = vmatmul.mubr.bf16.gmra.mxu0 %v3427
      %v3867 = vpop.f32.mrf.mxu0
      %v3868 = vadd.f32 %v3771, %v3867
      %v3869 = vpop.f32.mrf.mxu0
      %v3870 = vpop.f32.mrf.mxu0
      %v3871 = vadd.f32 %v3774, %v3870
      %v3872 = vpop.f32.mrf.mxu0
      %3873 = vmatprep.mubr.bf16.mxu0 %v3432
      %3874 = vmatmul.mubr.bf16.gmra.mxu0 %v3431
      %v3875 = vpop.f32.mrf.mxu0
      %v3876 = vadd.f32 %v3779, %v3875
      %v3877 = vpop.f32.mrf.mxu0
      %v3878 = vpop.f32.mrf.mxu0
      %v3879 = vadd.f32 %v3782, %v3878
      %v3880 = vpop.f32.mrf.mxu0
      %3881 = vmatprep.mubr.bf16.mxu0 %v3436
      %3882 = vmatmul.mubr.bf16.gmra.mxu0 %v3435
      %v3883 = vpop.f32.mrf.mxu0
      %v3884 = vadd.f32 %v3787, %v3883
      %v3885 = vpop.f32.mrf.mxu0
      %v3886 = vpop.f32.mrf.mxu0
      %v3887 = vadd.f32 %v3790, %v3886
      %v3888 = vpop.f32.mrf.mxu0
      %3889 = vmatprep.mubr.bf16.mxu0 %v3440
      %3890 = vmatmul.mubr.bf16.gmra.mxu0 %v3439
      %v3891 = vpop.f32.mrf.mxu0
      %v3892 = vadd.f32 %v3795, %v3891
      %v3893 = vpop.f32.mrf.mxu0
      %v3894 = vpop.f32.mrf.mxu0
      %v3895 = vadd.f32 %v3798, %v3894
      %v3896 = vpop.f32.mrf.mxu0
      %3897 = vdwg.mxu0
      %v3898 = vmax.f32 %v3836, 0.0
      %v3899 = vmax.f32 %v3839, 0.0
      %v3900 = vmax.f32 %v3844, 0.0
      %v3901 = vmax.f32 %v3847, 0.0
      %v3902 = vmax.f32 %v3852, 0.0
      %v3903 = vmax.f32 %v3855, 0.0
      %v3904 = vmax.f32 %v3860, 0.0
      %v3905 = vmax.f32 %v3863, 0.0
      %v3906 = vmax.f32 %v3868, 0.0
      %v3907 = vmax.f32 %v3871, 0.0
      %v3908 = vmax.f32 %v3876, 0.0
      %v3909 = vmax.f32 %v3879, 0.0
      %v3910 = vmax.f32 %v3884, 0.0
      %v3911 = vmax.f32 %v3887, 0.0
      %v3912 = vmax.f32 %v3892, 0.0
      %v3913 = vmax.f32 %v3895, 0.0
      %v3914 = vpack.c.bf16 %v3899, %v3898
      %v3915 = vpack.c.bf16 %v3901, %v3900
      %v3916 = vpack.c.bf16 %v3903, %v3902
      %v3917 = vpack.c.bf16 %v3905, %v3904
      %v3918 = vpack.c.bf16 %v3907, %v3906
      %v3919 = vpack.c.bf16 %v3909, %v3908
      %v3920 = vpack.c.bf16 %v3911, %v3910
      %v3921 = vpack.c.bf16 %v3913, %v3912
      %v3922 = vld [vmem:[%s7] sm:$0xf]
      %v3923 = vld [vmem:[%s7 + $0x4] sm:$0xf]
      %v3924 = vld [vmem:[%s7 + $0x8] sm:$0xf]
      %v3925 = vld [vmem:[%s7 + $0xc] sm:$0xf]
      %v3926 = vld [vmem:[%s7 + $0x10] sm:$0xf]
      %v3927 = vld [vmem:[%s7 + $0x14] sm:$0xf]
      %v3928 = vld [vmem:[%s7 + $0x18] sm:$0xf]
      %v3929 = vld [vmem:[%s7 + $0x1c] sm:$0xf]
      %v3930 = vld [vmem:[%s7 + $0x20] sm:$0xf]
      %v3931 = vld [vmem:[%s7 + $0x24] sm:$0xf]
      %v3932 = vld [vmem:[%s7 + $0x28] sm:$0xf]
      %v3933 = vld [vmem:[%s7 + $0x2c] sm:$0xf]
      %v3934 = vld [vmem:[%s7 + $0x30] sm:$0xf]
      %v3935 = vld [vmem:[%s7 + $0x34] sm:$0xf]
      %v3936 = vld [vmem:[%s7 + $0x38] sm:$0xf]
      %v3937 = vld [vmem:[%s7 + $0x3c] sm:$0xf]
      %v3938 = vld [vmem:[%s8] sm:$0x1]
      %v3940 = vlaneseq
      %v3941 = vshrl.u32 %v3940, 7
      %v3942 = vsub.s32 0, %v3941
      %v3943 = vrot.slane %v3938, %v3942
      %v3961 = vunpack.c.l.b16 %v3922
      %v3962 = vunpack.c.l.b16 %v3923
      %v3963 = vunpack.c.l.b16 %v3924
      %v3964 = vunpack.c.l.b16 %v3925
      %v3965 = vunpack.c.l.b16 %v3926
      %v3966 = vunpack.c.l.b16 %v3927
      %v3967 = vunpack.c.l.b16 %v3928
      %v3968 = vunpack.c.l.b16 %v3929
      %v3969 = vunpack.c.l.b16 %v3930
      %v3970 = vunpack.c.l.b16 %v3931
      %v3971 = vunpack.c.l.b16 %v3932
      %v3972 = vunpack.c.l.b16 %v3933
      %v3973 = vunpack.c.l.b16 %v3934
      %v3974 = vunpack.c.l.b16 %v3935
      %v3975 = vunpack.c.l.b16 %v3936
      %v3976 = vunpack.c.l.b16 %v3937
      %v3977 = vpack.c.b16 %v3962, %v3961
      %v3978 = vpack.c.b16 %v3964, %v3963
      %v3979 = vpack.c.b16 %v3966, %v3965
      %v3980 = vpack.c.b16 %v3968, %v3967
      %v3981 = vpack.c.b16 %v3970, %v3969
      %v3982 = vpack.c.b16 %v3972, %v3971
      %v3983 = vpack.c.b16 %v3974, %v3973
      %v3984 = vpack.c.b16 %v3976, %v3975
      %3993 = vmatprep.subr.bf16.mxu0 0
      %3994 = vmatpush1.bf16.msra.mxu0 %v3984
      %3995 = vmatprep.subr.bf16.mxu0 0
      %3996 = vmatpush1.bf16.msra.mxu0 %v3983
      %3997 = vmatprep.subr.bf16.mxu0 0
      %3998 = vmatpush1.bf16.msra.mxu0 %v3982
      %3999 = vmatprep.subr.bf16.mxu0 0
      %4000 = vmatpush1.bf16.msra.mxu0 %v3981
      %4001 = vmatprep.subr.bf16.mxu0 0
      %4002 = vmatpush1.bf16.msra.mxu0 %v3980
      %4003 = vmatprep.subr.bf16.mxu0 0
      %4004 = vmatpush1.bf16.msra.mxu0 %v3979
      %4005 = vmatprep.subr.bf16.mxu0 0
      %4006 = vmatpush1.bf16.msra.mxu0 %v3978
      %4007 = vmatprep.subr.bf16.mxu0 0
      %4008 = vmatpush1.bf16.msra.mxu0 %v3977
      %4009 = vmatprep.subr.bf16.mxu0 0
      %4010 = vmatpush2.bf16.msra.mxu0 0
      %4011 = vmatprep.subr.bf16.mxu0 0
      %4012 = vmatpush2.bf16.msra.mxu0 0
      %4013 = vmatprep.subr.bf16.mxu0 0
      %4014 = vmatpush2.bf16.msra.mxu0 0
      %4015 = vmatprep.subr.bf16.mxu0 0
      %4016 = vmatpush2.bf16.msra.mxu0 0
      %4017 = vmatprep.subr.bf16.mxu0 0
      %4018 = vmatpush2.bf16.msra.mxu0 0
      %4019 = vmatprep.subr.bf16.mxu0 0
      %4020 = vmatpush2.bf16.msra.mxu0 0
      %4021 = vmatprep.subr.bf16.mxu0 0
      %4022 = vmatpush2.bf16.msra.mxu0 0
      %4023 = vmatprep.subr.bf16.mxu0 0
      %4024 = vmatpush2.bf16.msra.mxu0 0
      %4025 = vmatprep.mubr.bf16.mxu0 0
      %4026 = vmatmul.mubr.bf16.gmra.mxu0 %v3914
      %v4027 = vpop.f32.mrf.mxu0
      %v4028 = vadd.f32 %v3943, %v4027
      %v4029 = vpop.f32.mrf.mxu0
      %v4030 = vpop.f32.mrf.mxu0
      %v4031 = vadd.f32 %v3943, %v4030
      %v4032 = vpop.f32.mrf.mxu0
      %4033 = vmatprep.mubr.bf16.mxu0 0
      %4034 = vmatmul.mubr.bf16.gmra.mxu0 %v3915
      %v4035 = vpop.f32.mrf.mxu0
      %v4036 = vadd.f32 %v3943, %v4035
      %v4037 = vpop.f32.mrf.mxu0
      %v4038 = vpop.f32.mrf.mxu0
      %v4039 = vadd.f32 %v3943, %v4038
      %v4040 = vpop.f32.mrf.mxu0
      %4041 = vmatprep.mubr.bf16.mxu0 0
      %4042 = vmatmul.mubr.bf16.gmra.mxu0 %v3916
      %v4043 = vpop.f32.mrf.mxu0
      %v4044 = vadd.f32 %v3943, %v4043
      %v4045 = vpop.f32.mrf.mxu0
      %v4046 = vpop.f32.mrf.mxu0
      %v4047 = vadd.f32 %v3943, %v4046
      %v4048 = vpop.f32.mrf.mxu0
      %4049 = vmatprep.mubr.bf16.mxu0 0
      %4050 = vmatmul.mubr.bf16.gmra.mxu0 %v3917
      %v4051 = vpop.f32.mrf.mxu0
      %v4052 = vadd.f32 %v3943, %v4051
      %v4053 = vpop.f32.mrf.mxu0
      %v4054 = vpop.f32.mrf.mxu0
      %v4055 = vadd.f32 %v3943, %v4054
      %v4056 = vpop.f32.mrf.mxu0
      %4057 = vmatprep.mubr.bf16.mxu0 0
      %4058 = vmatmul.mubr.bf16.gmra.mxu0 %v3918
      %v4059 = vpop.f32.mrf.mxu0
      %v4060 = vadd.f32 %v3943, %v4059
      %v4061 = vpop.f32.mrf.mxu0
      %v4062 = vpop.f32.mrf.mxu0
      %v4063 = vadd.f32 %v3943, %v4062
      %v4064 = vpop.f32.mrf.mxu0
      %4065 = vmatprep.mubr.bf16.mxu0 0
      %4066 = vmatmul.mubr.bf16.gmra.mxu0 %v3919
      %v4067 = vpop.f32.mrf.mxu0
      %v4068 = vadd.f32 %v3943, %v4067
      %v4069 = vpop.f32.mrf.mxu0
      %v4070 = vpop.f32.mrf.mxu0
      %v4071 = vadd.f32 %v3943, %v4070
      %v4072 = vpop.f32.mrf.mxu0
      %4073 = vmatprep.mubr.bf16.mxu0 0
      %4074 = vmatmul.mubr.bf16.gmra.mxu0 %v3920
      %v4075 = vpop.f32.mrf.mxu0
      %v4076 = vadd.f32 %v3943, %v4075
      %v4077 = vpop.f32.mrf.mxu0
      %v4078 = vpop.f32.mrf.mxu0
      %v4079 = vadd.f32 %v3943, %v4078
      %v4080 = vpop.f32.mrf.mxu0
      %4081 = vmatprep.mubr.bf16.mxu0 0
      %4082 = vmatmul.mubr.bf16.gmra.mxu0 %v3921
      %v4083 = vpop.f32.mrf.mxu0
      %v4084 = vadd.f32 %v3943, %v4083
      %v4085 = vpop.f32.mrf.mxu0
      %v4086 = vpop.f32.mrf.mxu0
      %v4087 = vadd.f32 %v3943, %v4086
      %v4088 = vpop.f32.mrf.mxu0
      %4089 = vdwg.mxu0
      %v4090 = vmax.f32 %v4028, 0.0
      %v4091 = vmax.f32 %v4031, 0.0
      %v4092 = vmax.f32 %v4036, 0.0
      %v4093 = vmax.f32 %v4039, 0.0
      %v4094 = vmax.f32 %v4044, 0.0
      %v4095 = vmax.f32 %v4047, 0.0
      %v4096 = vmax.f32 %v4052, 0.0
      %v4097 = vmax.f32 %v4055, 0.0
      %v4098 = vmax.f32 %v4060, 0.0
      %v4099 = vmax.f32 %v4063, 0.0
      %v4100 = vmax.f32 %v4068, 0.0
      %v4101 = vmax.f32 %v4071, 0.0
      %v4102 = vmax.f32 %v4076, 0.0
      %v4103 = vmax.f32 %v4079, 0.0
      %v4104 = vmax.f32 %v4084, 0.0
      %v4105 = vmax.f32 %v4087, 0.0
      %v4106 = vpack.c.bf16 %v4091, %v4090
      %v4107 = vpack.c.bf16 %v4093, %v4092
      %v4108 = vpack.c.bf16 %v4095, %v4094
      %v4109 = vpack.c.bf16 %v4097, %v4096
      %v4110 = vpack.c.bf16 %v4099, %v4098
      %v4111 = vpack.c.bf16 %v4101, %v4100
      %v4112 = vpack.c.bf16 %v4103, %v4102
      %v4113 = vpack.c.bf16 %v4105, %v4104
      %v4114 = vld [vmem:[%s9] sm:$0xf]
      %v4115 = vld [vmem:[%s9 + $0x4] sm:$0xf]
      %v4116 = vld [vmem:[%s9 + $0x8] sm:$0xf]
      %v4117 = vld [vmem:[%s9 + $0xc] sm:$0xf]
      %v4118 = vld [vmem:[%s10] sm:$0x1]
      %v4120 = vlaneseq
      %v4121 = vshrl.u32 %v4120, 7
      %v4122 = vsub.s32 0, %v4121
      %v4123 = vrot.slane %v4118, %v4122
      %v4129 = vunpack.c.l.b16 %v4114
      %v4130 = vunpack.c.l.b16 %v4115
      %v4131 = vunpack.c.l.b16 %v4116
      %v4132 = vunpack.c.l.b16 %v4117
      %v4133 = vpack.c.b16 %v4130, %v4129
      %v4134 = vpack.c.b16 %v4132, %v4131
      %vm4137 = vcmask 261120
      %v4139 = vsel %vm4137, %v4106, 0
      %v4142 = vsel %vm4137, %v4107, 0
      %v4145 = vsel %vm4137, %v4108, 0
      %v4148 = vsel %vm4137, %v4109, 0
      %v4151 = vsel %vm4137, %v4110, 0
      %v4154 = vsel %vm4137, %v4111, 0
      %v4157 = vsel %vm4137, %v4112, 0
      %v4160 = vsel %vm4137, %v4113, 0
      %4162 = vmatprep.subr.bf16.mxu0 0
      %4163 = vmatpush1.bf16.msra.mxu0 0
      %4164 = vmatprep.subr.bf16.mxu0 0
      %4165 = vmatpush1.bf16.msra.mxu0 0
      %4166 = vmatprep.subr.bf16.mxu0 0
      %4167 = vmatpush1.bf16.msra.mxu0 0
      %4168 = vmatprep.subr.bf16.mxu0 0
      %4169 = vmatpush1.bf16.msra.mxu0 0
      %4170 = vmatprep.subr.bf16.mxu0 0
      %4171 = vmatpush1.bf16.msra.mxu0 0
      %4172 = vmatprep.subr.bf16.mxu0 0
      %4173 = vmatpush1.bf16.msra.mxu0 0
      %4174 = vmatprep.subr.bf16.mxu0 0
      %4175 = vmatpush1.bf16.msra.mxu0 %v4134
      %4176 = vmatprep.subr.bf16.mxu0 0
      %4177 = vmatpush1.bf16.msra.mxu0 %v4133
      %4178 = vmatprep.subr.bf16.mxu0 0
      %4179 = vmatpush2.bf16.msra.mxu0 0
      %4180 = vmatprep.subr.bf16.mxu0 0
      %4181 = vmatpush2.bf16.msra.mxu0 0
      %4182 = vmatprep.subr.bf16.mxu0 0
      %4183 = vmatpush2.bf16.msra.mxu0 0
      %4184 = vmatprep.subr.bf16.mxu0 0
      %4185 = vmatpush2.bf16.msra.mxu0 0
      %4186 = vmatprep.subr.bf16.mxu0 0
      %4187 = vmatpush2.bf16.msra.mxu0 0
      %4188 = vmatprep.subr.bf16.mxu0 0
      %4189 = vmatpush2.bf16.msra.mxu0 0
      %4190 = vmatprep.subr.bf16.mxu0 0
      %4191 = vmatpush2.bf16.msra.mxu0 0
      %4192 = vmatprep.subr.bf16.mxu0 0
      %4193 = vmatpush2.bf16.msra.mxu0 0
      %4194 = vmatprep.mubr.bf16.mxu0 0
      %4195 = vmatmul.mubr.bf16.gmra.mxu0 %v4139
      %v4196 = vpop.f32.mrf.mxu0
      %v4197 = vadd.f32 %v4123, %v4196
      %v4198 = vpop.f32.mrf.mxu0
      %v4199 = vpop.f32.mrf.mxu0
      %v4200 = vadd.f32 %v4123, %v4199
      %v4201 = vpop.f32.mrf.mxu0
      %4202 = vmatprep.mubr.bf16.mxu0 0
      %4203 = vmatmul.mubr.bf16.gmra.mxu0 %v4142
      %v4204 = vpop.f32.mrf.mxu0
      %v4205 = vadd.f32 %v4123, %v4204
      %v4206 = vpop.f32.mrf.mxu0
      %v4207 = vpop.f32.mrf.mxu0
      %v4208 = vadd.f32 %v4123, %v4207
      %v4209 = vpop.f32.mrf.mxu0
      %4210 = vmatprep.mubr.bf16.mxu0 0
      %4211 = vmatmul.mubr.bf16.gmra.mxu0 %v4145
      %v4212 = vpop.f32.mrf.mxu0
      %v4213 = vadd.f32 %v4123, %v4212
      %v4214 = vpop.f32.mrf.mxu0
      %v4215 = vpop.f32.mrf.mxu0
      %v4216 = vadd.f32 %v4123, %v4215
      %v4217 = vpop.f32.mrf.mxu0
      %4218 = vmatprep.mubr.bf16.mxu0 0
      %4219 = vmatmul.mubr.bf16.gmra.mxu0 %v4148
      %v4220 = vpop.f32.mrf.mxu0
      %v4221 = vadd.f32 %v4123, %v4220
      %v4222 = vpop.f32.mrf.mxu0
      %v4223 = vpop.f32.mrf.mxu0
      %v4224 = vadd.f32 %v4123, %v4223
      %v4225 = vpop.f32.mrf.mxu0
      %4226 = vmatprep.mubr.bf16.mxu0 0
      %4227 = vmatmul.mubr.bf16.gmra.mxu0 %v4151
      %v4228 = vpop.f32.mrf.mxu0
      %v4229 = vadd.f32 %v4123, %v4228
      %v4230 = vpop.f32.mrf.mxu0
      %v4231 = vpop.f32.mrf.mxu0
      %v4232 = vadd.f32 %v4123, %v4231
      %v4233 = vpop.f32.mrf.mxu0
      %4234 = vmatprep.mubr.bf16.mxu0 0
      %4235 = vmatmul.mubr.bf16.gmra.mxu0 %v4154
      %v4236 = vpop.f32.mrf.mxu0
      %v4237 = vadd.f32 %v4123, %v4236
      %v4238 = vpop.f32.mrf.mxu0
      %v4239 = vpop.f32.mrf.mxu0
      %v4240 = vadd.f32 %v4123, %v4239
      %v4241 = vpop.f32.mrf.mxu0
      %4242 = vmatprep.mubr.bf16.mxu0 0
      %4243 = vmatmul.mubr.bf16.gmra.mxu0 %v4157
      %v4244 = vpop.f32.mrf.mxu0
      %v4245 = vadd.f32 %v4123, %v4244
      %v4246 = vpop.f32.mrf.mxu0
      %v4247 = vpop.f32.mrf.mxu0
      %v4248 = vadd.f32 %v4123, %v4247
      %v4249 = vpop.f32.mrf.mxu0
      %4250 = vmatprep.mubr.bf16.mxu0 0
      %4251 = vmatmul.mubr.bf16.gmra.mxu0 %v4160
      %v4252 = vpop.f32.mrf.mxu0
      %v4253 = vadd.f32 %v4123, %v4252
      %v4254 = vpop.f32.mrf.mxu0
      %v4255 = vpop.f32.mrf.mxu0
      %v4256 = vadd.f32 %v4123, %v4255
      %v4257 = vpop.f32.mrf.mxu0
      %4258 = vdwg.mxu0
      %v4259 = vmul.f32 %v4197, %v771
      %v4260 = vmul.f32 %v4200, %v772
      %v4261 = vmul.f32 %v4205, %v773
      %v4262 = vmul.f32 %v4208, %v774
      %v4263 = vmul.f32 %v4213, %v775
      %v4264 = vmul.f32 %v4216, %v776
      %v4265 = vmul.f32 %v4221, %v777
      %v4266 = vmul.f32 %v4224, %v778
      %v4267 = vmul.f32 %v4229, %v779
      %v4268 = vmul.f32 %v4232, %v780
      %v4269 = vmul.f32 %v4237, %v781
      %v4270 = vmul.f32 %v4240, %v782
      %v4271 = vmul.f32 %v4245, %v783
      %v4272 = vmul.f32 %v4248, %v784
      %v4273 = vmul.f32 %v4253, %v785
      %v4274 = vmul.f32 %v4256, %v786
      %v4275 = vld [vmem:[%s629] sm:$0xff]
      %v4276 = vld [vmem:[%s629 + $0x8] sm:$0xff]
      %v4277 = vld [vmem:[%s629 + $0x10] sm:$0xff]
      %v4278 = vld [vmem:[%s629 + $0x18] sm:$0xff]
      %v4279 = vld [vmem:[%s629 + $0x20] sm:$0xff]
      %v4280 = vld [vmem:[%s629 + $0x28] sm:$0xff]
      %v4281 = vld [vmem:[%s629 + $0x30] sm:$0xff]
      %v4282 = vld [vmem:[%s629 + $0x38] sm:$0xff]
      %v4283 = vld [vmem:[%s629 + $0x40] sm:$0xff]
      %v4284 = vld [vmem:[%s629 + $0x48] sm:$0xff]
      %v4285 = vld [vmem:[%s629 + $0x50] sm:$0xff]
      %v4286 = vld [vmem:[%s629 + $0x58] sm:$0xff]
      %v4287 = vld [vmem:[%s629 + $0x60] sm:$0xff]
      %v4288 = vld [vmem:[%s629 + $0x68] sm:$0xff]
      %v4289 = vld [vmem:[%s629 + $0x70] sm:$0xff]
      %v4290 = vld [vmem:[%s629 + $0x78] sm:$0xff]
      %v4291 = vmul.f32 %v4259, 0.5
      %v4292 = vmul.f32 %v4260, 0.5
      %v4293 = vmul.f32 %v4261, 0.5
      %v4294 = vmul.f32 %v4262, 0.5
      %v4295 = vmul.f32 %v4263, 0.5
      %v4296 = vmul.f32 %v4264, 0.5
      %v4297 = vmul.f32 %v4265, 0.5
      %v4298 = vmul.f32 %v4266, 0.5
      %v4299 = vmul.f32 %v4267, 0.5
      %v4300 = vmul.f32 %v4268, 0.5
      %v4301 = vmul.f32 %v4269, 0.5
      %v4302 = vmul.f32 %v4270, 0.5
      %v4303 = vmul.f32 %v4271, 0.5
      %v4304 = vmul.f32 %v4272, 0.5
      %v4305 = vmul.f32 %v4273, 0.5
      %v4306 = vmul.f32 %v4274, 0.5
      %v4307 = vmul.f32 %v4291, 1.442695
      %v4308 = vpow.pop %v4307
      %v4309 = vmul.f32 %v4292, 1.442695
      %v4310 = vpow.pop %v4309
      %v4311 = vmul.f32 %v4293, 1.442695
      %v4312 = vpow.pop %v4311
      %v4313 = vmul.f32 %v4294, 1.442695
      %v4314 = vpow.pop %v4313
      %v4315 = vmul.f32 %v4295, 1.442695
      %v4316 = vpow.pop %v4315
      %v4317 = vmul.f32 %v4296, 1.442695
      %v4318 = vpow.pop %v4317
      %v4319 = vmul.f32 %v4297, 1.442695
      %v4320 = vpow.pop %v4319
      %v4321 = vmul.f32 %v4298, 1.442695
      %v4322 = vpow.pop %v4321
      %v4323 = vmul.f32 %v4299, 1.442695
      %v4324 = vpow.pop %v4323
      %v4325 = vmul.f32 %v4300, 1.442695
      %v4326 = vpow.pop %v4325
      %v4327 = vmul.f32 %v4301, 1.442695
      %v4328 = vpow.pop %v4327
      %v4329 = vmul.f32 %v4302, 1.442695
      %v4330 = vpow.pop %v4329
      %v4331 = vmul.f32 %v4303, 1.442695
      %v4332 = vpow.pop %v4331
      %v4333 = vmul.f32 %v4304, 1.442695
      %v4334 = vpow.pop %v4333
      %v4335 = vmul.f32 %v4305, 1.442695
      %v4336 = vpow.pop %v4335
      %v4337 = vmul.f32 %v4306, 1.442695
      %v4338 = vpow.pop %v4337
      %4355 = vrot.lane.b32.xlu0 %v4308, 124
      %v4356 = vpop.permute.xlu0 %4355
      %4357 = vrot.lane.b32.xlu0 %v4310, 124
      %v4358 = vpop.permute.xlu0 %4357
      %4359 = vrot.lane.b32.xlu0 %v4312, 124
      %v4360 = vpop.permute.xlu0 %4359
      %4361 = vrot.lane.b32.xlu0 %v4314, 124
      %v4362 = vpop.permute.xlu0 %4361
      %4363 = vrot.lane.b32.xlu0 %v4316, 124
      %v4364 = vpop.permute.xlu0 %4363
      %4365 = vrot.lane.b32.xlu0 %v4318, 124
      %v4366 = vpop.permute.xlu0 %4365
      %4367 = vrot.lane.b32.xlu0 %v4320, 124
      %v4368 = vpop.permute.xlu0 %4367
      %4369 = vrot.lane.b32.xlu0 %v4322, 124
      %v4370 = vpop.permute.xlu0 %4369
      %4371 = vrot.lane.b32.xlu0 %v4324, 124
      %v4372 = vpop.permute.xlu0 %4371
      %4373 = vrot.lane.b32.xlu0 %v4326, 124
      %v4374 = vpop.permute.xlu0 %4373
      %4375 = vrot.lane.b32.xlu0 %v4328, 124
      %v4376 = vpop.permute.xlu0 %4375
      %4377 = vrot.lane.b32.xlu0 %v4330, 124
      %v4378 = vpop.permute.xlu0 %4377
      %4379 = vrot.lane.b32.xlu0 %v4332, 124
      %v4380 = vpop.permute.xlu0 %4379
      %4381 = vrot.lane.b32.xlu0 %v4334, 124
      %v4382 = vpop.permute.xlu0 %4381
      %4383 = vrot.lane.b32.xlu0 %v4336, 124
      %v4384 = vpop.permute.xlu0 %4383
      %4385 = vrot.lane.b32.xlu0 %v4338, 124
      %v4386 = vpop.permute.xlu0 %4385
      %v4403 = vmul.f32 %v4275, %v4356
      %v4404 = vmul.f32 %v4276, %v4358
      %v4405 = vmul.f32 %v4277, %v4360
      %v4406 = vmul.f32 %v4278, %v4362
      %v4407 = vmul.f32 %v4279, %v4364
      %v4408 = vmul.f32 %v4280, %v4366
      %v4409 = vmul.f32 %v4281, %v4368
      %v4410 = vmul.f32 %v4282, %v4370
      %v4411 = vmul.f32 %v4283, %v4372
      %v4412 = vmul.f32 %v4284, %v4374
      %v4413 = vmul.f32 %v4285, %v4376
      %v4414 = vmul.f32 %v4286, %v4378
      %v4415 = vmul.f32 %v4287, %v4380
      %v4416 = vmul.f32 %v4288, %v4382
      %v4417 = vmul.f32 %v4289, %v4384
      %v4418 = vmul.f32 %v4290, %v4386
      %v4419 = vadd.f32 %v4259, %v4403
      %v4420 = vadd.f32 %v4260, %v4404
      %v4421 = vadd.f32 %v4261, %v4405
      %v4422 = vadd.f32 %v4262, %v4406
      %v4423 = vadd.f32 %v4263, %v4407
      %v4424 = vadd.f32 %v4264, %v4408
      %v4425 = vadd.f32 %v4265, %v4409
      %v4426 = vadd.f32 %v4266, %v4410
      %v4427 = vadd.f32 %v4267, %v4411
      %v4428 = vadd.f32 %v4268, %v4412
      %v4429 = vadd.f32 %v4269, %v4413
      %v4430 = vadd.f32 %v4270, %v4414
      %v4431 = vadd.f32 %v4271, %v4415
      %v4432 = vadd.f32 %v4272, %v4416
      %v4433 = vadd.f32 %v4273, %v4417
      %v4434 = vadd.f32 %v4274, %v4418
      %v4435 = vpack.c.bf16 %v4420, %v4419
      %v4436 = vpack.c.bf16 %v4422, %v4421
      %v4437 = vpack.c.bf16 %v4424, %v4423
      %v4438 = vpack.c.bf16 %v4426, %v4425
      %v4439 = vpack.c.bf16 %v4428, %v4427
      %v4440 = vpack.c.bf16 %v4430, %v4429
      %v4441 = vpack.c.bf16 %v4432, %v4431
      %v4442 = vpack.c.bf16 %v4434, %v4433
      %v4443 = vld [vmem:[%s11] sm:$0x3]
      %v4444 = vld [vmem:[%s12] sm:$0x1]
      %v4446 = vlaneseq
      %v4447 = vshrl.u32 %v4446, 7
      %v4448 = vsub.s32 0, %v4447
      %v4449 = vrot.slane %v4444, %v4448
      %vm4451 = vcmask 31744
      %v4453 = vsel %vm4451, %v4435, 0
      %v4456 = vsel %vm4451, %v4436, 0
      %v4459 = vsel %vm4451, %v4437, 0
      %v4462 = vsel %vm4451, %v4438, 0
      %v4465 = vsel %vm4451, %v4439, 0
      %v4468 = vsel %vm4451, %v4440, 0
      %v4471 = vsel %vm4451, %v4441, 0
      %v4474 = vsel %vm4451, %v4442, 0
      %vm4476 = vcmask 1041408
      %v4478 = vsel %vm4476, %v4443, 0
      %4480 = vmatprep.subr.bf16.mxu0 0
      %4481 = vmatpush1.bf16.msra.mxu0 0
      %4482 = vmatprep.subr.bf16.mxu0 0
      %4483 = vmatpush1.bf16.msra.mxu0 0
      %4484 = vmatprep.subr.bf16.mxu0 0
      %4485 = vmatpush1.bf16.msra.mxu0 0
      %4486 = vmatprep.subr.bf16.mxu0 0
      %4487 = vmatpush1.bf16.msra.mxu0 0
      %4488 = vmatprep.subr.bf16.mxu0 0
      %4489 = vmatpush1.bf16.msra.mxu0 0
      %4490 = vmatprep.subr.bf16.mxu0 0
      %4491 = vmatpush1.bf16.msra.mxu0 0
      %4492 = vmatprep.subr.bf16.mxu0 0
      %4493 = vmatpush1.bf16.msra.mxu0 0
      %4494 = vmatprep.subr.bf16.mxu0 0
      %4495 = vmatpush1.bf16.msra.mxu0 %v4478
      %4496 = vmatprep.subr.bf16.mxu0 0
      %4497 = vmatpush2.bf16.msra.mxu0 0
      %4498 = vmatprep.subr.bf16.mxu0 0
      %4499 = vmatpush2.bf16.msra.mxu0 0
      %4500 = vmatprep.subr.bf16.mxu0 0
      %4501 = vmatpush2.bf16.msra.mxu0 0
      %4502 = vmatprep.subr.bf16.mxu0 0
      %4503 = vmatpush2.bf16.msra.mxu0 0
      %4504 = vmatprep.subr.bf16.mxu0 0
      %4505 = vmatpush2.bf16.msra.mxu0 0
      %4506 = vmatprep.subr.bf16.mxu0 0
      %4507 = vmatpush2.bf16.msra.mxu0 0
      %4508 = vmatprep.subr.bf16.mxu0 0
      %4509 = vmatpush2.bf16.msra.mxu0 0
      %4510 = vmatprep.subr.bf16.mxu0 0
      %4511 = vmatpush2.bf16.msra.mxu0 0
      %4512 = vmatprep.mubr.bf16.mxu0 0
      %4513 = vmatmul.mubr.bf16.gmra.mxu0 %v4453
      %v4514 = vpop.f32.mrf.mxu0
      %v4515 = vadd.f32 %v4449, %v4514
      %v4516 = vpop.f32.mrf.mxu0
      %v4517 = vpop.f32.mrf.mxu0
      %v4518 = vadd.f32 %v4449, %v4517
      %v4519 = vpop.f32.mrf.mxu0
      %4520 = vmatprep.mubr.bf16.mxu0 0
      %4521 = vmatmul.mubr.bf16.gmra.mxu0 %v4456
      %v4522 = vpop.f32.mrf.mxu0
      %v4523 = vadd.f32 %v4449, %v4522
      %v4524 = vpop.f32.mrf.mxu0
      %v4525 = vpop.f32.mrf.mxu0
      %v4526 = vadd.f32 %v4449, %v4525
      %v4527 = vpop.f32.mrf.mxu0
      %4528 = vmatprep.mubr.bf16.mxu0 0
      %4529 = vmatmul.mubr.bf16.gmra.mxu0 %v4459
      %v4530 = vpop.f32.mrf.mxu0
      %v4531 = vadd.f32 %v4449, %v4530
      %v4532 = vpop.f32.mrf.mxu0
      %v4533 = vpop.f32.mrf.mxu0
      %v4534 = vadd.f32 %v4449, %v4533
      %v4535 = vpop.f32.mrf.mxu0
      %4536 = vmatprep.mubr.bf16.mxu0 0
      %4537 = vmatmul.mubr.bf16.gmra.mxu0 %v4462
      %v4538 = vpop.f32.mrf.mxu0
      %v4539 = vadd.f32 %v4449, %v4538
      %v4540 = vpop.f32.mrf.mxu0
      %v4541 = vpop.f32.mrf.mxu0
      %v4542 = vadd.f32 %v4449, %v4541
      %v4543 = vpop.f32.mrf.mxu0
      %4544 = vmatprep.mubr.bf16.mxu0 0
      %4545 = vmatmul.mubr.bf16.gmra.mxu0 %v4465
      %v4546 = vpop.f32.mrf.mxu0
      %v4547 = vadd.f32 %v4449, %v4546
      %v4548 = vpop.f32.mrf.mxu0
      %v4549 = vpop.f32.mrf.mxu0
      %v4550 = vadd.f32 %v4449, %v4549
      %v4551 = vpop.f32.mrf.mxu0
      %4552 = vmatprep.mubr.bf16.mxu0 0
      %4553 = vmatmul.mubr.bf16.gmra.mxu0 %v4468
      %v4554 = vpop.f32.mrf.mxu0
      %v4555 = vadd.f32 %v4449, %v4554
      %v4556 = vpop.f32.mrf.mxu0
      %v4557 = vpop.f32.mrf.mxu0
      %v4558 = vadd.f32 %v4449, %v4557
      %v4559 = vpop.f32.mrf.mxu0
      %4560 = vmatprep.mubr.bf16.mxu0 0
      %4561 = vmatmul.mubr.bf16.gmra.mxu0 %v4471
      %v4562 = vpop.f32.mrf.mxu0
      %v4563 = vadd.f32 %v4449, %v4562
      %v4564 = vpop.f32.mrf.mxu0
      %v4565 = vpop.f32.mrf.mxu0
      %v4566 = vadd.f32 %v4449, %v4565
      %v4567 = vpop.f32.mrf.mxu0
      %4568 = vmatprep.mubr.bf16.mxu0 0
      %4569 = vmatmul.mubr.bf16.gmra.mxu0 %v4474
      %v4570 = vpop.f32.mrf.mxu0
      %v4571 = vadd.f32 %v4449, %v4570
      %v4572 = vpop.f32.mrf.mxu0
      %v4573 = vpop.f32.mrf.mxu0
      %v4574 = vadd.f32 %v4449, %v4573
      %v4575 = vpop.f32.mrf.mxu0
      %4576 = vdwg.mxu0
      %v4577 = vmax.f32 %v4515, 0.0
      %v4578 = vmax.f32 %v4518, 0.0
      %v4579 = vmax.f32 %v4523, 0.0
      %v4580 = vmax.f32 %v4526, 0.0
      %v4581 = vmax.f32 %v4531, 0.0
      %v4582 = vmax.f32 %v4534, 0.0
      %v4583 = vmax.f32 %v4539, 0.0
      %v4584 = vmax.f32 %v4542, 0.0
      %v4585 = vmax.f32 %v4547, 0.0
      %v4586 = vmax.f32 %v4550, 0.0
      %v4587 = vmax.f32 %v4555, 0.0
      %v4588 = vmax.f32 %v4558, 0.0
      %v4589 = vmax.f32 %v4563, 0.0
      %v4590 = vmax.f32 %v4566, 0.0
      %v4591 = vmax.f32 %v4571, 0.0
      %v4592 = vmax.f32 %v4574, 0.0
      %v4593 = vpack.c.bf16 %v4578, %v4577
      %v4594 = vpack.c.bf16 %v4580, %v4579
      %v4595 = vpack.c.bf16 %v4582, %v4581
      %v4596 = vpack.c.bf16 %v4584, %v4583
      %v4597 = vpack.c.bf16 %v4586, %v4585
      %v4598 = vpack.c.bf16 %v4588, %v4587
      %v4599 = vpack.c.bf16 %v4590, %v4589
      %v4600 = vpack.c.bf16 %v4592, %v4591
      %v4601 = vld [vmem:[%s13] sm:$0xf]
      %v4602 = vld [vmem:[%s13 + $0x4] sm:$0xf]
      %v4603 = vld [vmem:[%s13 + $0x8] sm:$0xf]
      %v4604 = vld [vmem:[%s13 + $0xc] sm:$0xf]
      %v4605 = vld [vmem:[%s14] sm:$0x1]
      %v4607 = vlaneseq
      %v4608 = vshrl.u32 %v4607, 7
      %v4609 = vsub.s32 0, %v4608
      %v4610 = vrot.slane %v4605, %v4609
      %v4616 = vunpack.c.l.b16 %v4601
      %v4617 = vunpack.c.l.b16 %v4602
      %v4618 = vunpack.c.l.b16 %v4603
      %v4619 = vunpack.c.l.b16 %v4604
      %v4620 = vpack.c.b16 %v4617, %v4616
      %v4621 = vpack.c.b16 %v4619, %v4618
      %v4625 = vsel %vm4137, %v4593, 0
      %v4628 = vsel %vm4137, %v4594, 0
      %v4631 = vsel %vm4137, %v4595, 0
      %v4634 = vsel %vm4137, %v4596, 0
      %v4637 = vsel %vm4137, %v4597, 0
      %v4640 = vsel %vm4137, %v4598, 0
      %v4643 = vsel %vm4137, %v4599, 0
      %v4646 = vsel %vm4137, %v4600, 0
      %4648 = vmatprep.subr.bf16.mxu0 0
      %4649 = vmatpush1.bf16.msra.mxu0 0
      %4650 = vmatprep.subr.bf16.mxu0 0
      %4651 = vmatpush1.bf16.msra.mxu0 0
      %4652 = vmatprep.subr.bf16.mxu0 0
      %4653 = vmatpush1.bf16.msra.mxu0 0
      %4654 = vmatprep.subr.bf16.mxu0 0
      %4655 = vmatpush1.bf16.msra.mxu0 0
      %4656 = vmatprep.subr.bf16.mxu0 0
      %4657 = vmatpush1.bf16.msra.mxu0 0
      %4658 = vmatprep.subr.bf16.mxu0 0
      %4659 = vmatpush1.bf16.msra.mxu0 0
      %4660 = vmatprep.subr.bf16.mxu0 0
      %4661 = vmatpush1.bf16.msra.mxu0 %v4621
      %4662 = vmatprep.subr.bf16.mxu0 0
      %4663 = vmatpush1.bf16.msra.mxu0 %v4620
      %4664 = vmatprep.subr.bf16.mxu0 0
      %4665 = vmatpush2.bf16.msra.mxu0 0
      %4666 = vmatprep.subr.bf16.mxu0 0
      %4667 = vmatpush2.bf16.msra.mxu0 0
      %4668 = vmatprep.subr.bf16.mxu0 0
      %4669 = vmatpush2.bf16.msra.mxu0 0
      %4670 = vmatprep.subr.bf16.mxu0 0
      %4671 = vmatpush2.bf16.msra.mxu0 0
      %4672 = vmatprep.subr.bf16.mxu0 0
      %4673 = vmatpush2.bf16.msra.mxu0 0
      %4674 = vmatprep.subr.bf16.mxu0 0
      %4675 = vmatpush2.bf16.msra.mxu0 0
      %4676 = vmatprep.subr.bf16.mxu0 0
      %4677 = vmatpush2.bf16.msra.mxu0 0
      %4678 = vmatprep.subr.bf16.mxu0 0
      %4679 = vmatpush2.bf16.msra.mxu0 0
      %4680 = vmatprep.mubr.bf16.mxu0 0
      %4681 = vmatmul.mubr.bf16.gmra.mxu0 %v4625
      %v4682 = vpop.f32.mrf.mxu0
      %v4683 = vadd.f32 %v4610, %v4682
      %v4684 = vpop.f32.mrf.mxu0
      %v4685 = vpop.f32.mrf.mxu0
      %v4686 = vadd.f32 %v4610, %v4685
      %v4687 = vpop.f32.mrf.mxu0
      %4688 = vmatprep.mubr.bf16.mxu0 0
      %4689 = vmatmul.mubr.bf16.gmra.mxu0 %v4628
      %v4690 = vpop.f32.mrf.mxu0
      %v4691 = vadd.f32 %v4610, %v4690
      %v4692 = vpop.f32.mrf.mxu0
      %v4693 = vpop.f32.mrf.mxu0
      %v4694 = vadd.f32 %v4610, %v4693
      %v4695 = vpop.f32.mrf.mxu0
      %4696 = vmatprep.mubr.bf16.mxu0 0
      %4697 = vmatmul.mubr.bf16.gmra.mxu0 %v4631
      %v4698 = vpop.f32.mrf.mxu0
      %v4699 = vadd.f32 %v4610, %v4698
      %v4700 = vpop.f32.mrf.mxu0
      %v4701 = vpop.f32.mrf.mxu0
      %v4702 = vadd.f32 %v4610, %v4701
      %v4703 = vpop.f32.mrf.mxu0
      %4704 = vmatprep.mubr.bf16.mxu0 0
      %4705 = vmatmul.mubr.bf16.gmra.mxu0 %v4634
      %v4706 = vpop.f32.mrf.mxu0
      %v4707 = vadd.f32 %v4610, %v4706
      %v4708 = vpop.f32.mrf.mxu0
      %v4709 = vpop.f32.mrf.mxu0
      %v4710 = vadd.f32 %v4610, %v4709
      %v4711 = vpop.f32.mrf.mxu0
      %4712 = vmatprep.mubr.bf16.mxu0 0
      %4713 = vmatmul.mubr.bf16.gmra.mxu0 %v4637
      %v4714 = vpop.f32.mrf.mxu0
      %v4715 = vadd.f32 %v4610, %v4714
      %v4716 = vpop.f32.mrf.mxu0
      %v4717 = vpop.f32.mrf.mxu0
      %v4718 = vadd.f32 %v4610, %v4717
      %v4719 = vpop.f32.mrf.mxu0
      %4720 = vmatprep.mubr.bf16.mxu0 0
      %4721 = vmatmul.mubr.bf16.gmra.mxu0 %v4640
      %v4722 = vpop.f32.mrf.mxu0
      %v4723 = vadd.f32 %v4610, %v4722
      %v4724 = vpop.f32.mrf.mxu0
      %v4725 = vpop.f32.mrf.mxu0
      %v4726 = vadd.f32 %v4610, %v4725
      %v4727 = vpop.f32.mrf.mxu0
      %4728 = vmatprep.mubr.bf16.mxu0 0
      %4729 = vmatmul.mubr.bf16.gmra.mxu0 %v4643
      %v4730 = vpop.f32.mrf.mxu0
      %v4731 = vadd.f32 %v4610, %v4730
      %v4732 = vpop.f32.mrf.mxu0
      %v4733 = vpop.f32.mrf.mxu0
      %v4734 = vadd.f32 %v4610, %v4733
      %v4735 = vpop.f32.mrf.mxu0
      %4736 = vmatprep.mubr.bf16.mxu0 0
      %4737 = vmatmul.mubr.bf16.gmra.mxu0 %v4646
      %v4738 = vpop.f32.mrf.mxu0
      %v4739 = vadd.f32 %v4610, %v4738
      %v4740 = vpop.f32.mrf.mxu0
      %v4741 = vpop.f32.mrf.mxu0
      %v4742 = vadd.f32 %v4610, %v4741
      %v4743 = vpop.f32.mrf.mxu0
      %4744 = vdwg.mxu0
      %v4745 = vmax.f32 %v4683, 0.0
      %v4746 = vmax.f32 %v4686, 0.0
      %v4747 = vmax.f32 %v4691, 0.0
      %v4748 = vmax.f32 %v4694, 0.0
      %v4749 = vmax.f32 %v4699, 0.0
      %v4750 = vmax.f32 %v4702, 0.0
      %v4751 = vmax.f32 %v4707, 0.0
      %v4752 = vmax.f32 %v4710, 0.0
      %v4753 = vmax.f32 %v4715, 0.0
      %v4754 = vmax.f32 %v4718, 0.0
      %v4755 = vmax.f32 %v4723, 0.0
      %v4756 = vmax.f32 %v4726, 0.0
      %v4757 = vmax.f32 %v4731, 0.0
      %v4758 = vmax.f32 %v4734, 0.0
      %v4759 = vmax.f32 %v4739, 0.0
      %v4760 = vmax.f32 %v4742, 0.0
      %v4761 = vpack.c.bf16 %v4746, %v4745
      %v4762 = vpack.c.bf16 %v4748, %v4747
      %v4763 = vpack.c.bf16 %v4750, %v4749
      %v4764 = vpack.c.bf16 %v4752, %v4751
      %v4765 = vpack.c.bf16 %v4754, %v4753
      %v4766 = vpack.c.bf16 %v4756, %v4755
      %v4767 = vpack.c.bf16 %v4758, %v4757
      %v4768 = vpack.c.bf16 %v4760, %v4759
      %v4769 = vld [vmem:[%s15] sm:$0xff]
      %v4770 = vld [vmem:[%s15 + $0x8] sm:$0xff]
      %v4771 = vld [vmem:[%s15 + $0x10] sm:$0xff]
      %v4772 = vld [vmem:[%s15 + $0x18] sm:$0xff]
      %v4773 = vld [vmem:[%s15 + $0x20] sm:$0xff]
      %v4774 = vld [vmem:[%s15 + $0x28] sm:$0xff]
      %v4775 = vld [vmem:[%s15 + $0x30] sm:$0xff]
      %v4776 = vld [vmem:[%s15 + $0x38] sm:$0xff]
      %v4777 = vld [vmem:[%s15 + $0x40] sm:$0xff]
      %v4778 = vld [vmem:[%s15 + $0x48] sm:$0xff]
      %v4779 = vld [vmem:[%s15 + $0x50] sm:$0xff]
      %v4780 = vld [vmem:[%s15 + $0x58] sm:$0xff]
      %v4781 = vld [vmem:[%s15 + $0x60] sm:$0xff]
      %v4782 = vld [vmem:[%s15 + $0x68] sm:$0xff]
      %v4783 = vld [vmem:[%s15 + $0x70] sm:$0xff]
      %v4784 = vld [vmem:[%s15 + $0x78] sm:$0xff]
      %v4785 = vld [vmem:[%s15 + $0x80] sm:$0xff]
      %v4786 = vld [vmem:[%s15 + $0x88] sm:$0xff]
      %v4787 = vld [vmem:[%s15 + $0x90] sm:$0xff]
      %v4788 = vld [vmem:[%s15 + $0x98] sm:$0xff]
      %v4789 = vld [vmem:[%s15 + $0xa0] sm:$0xff]
      %v4790 = vld [vmem:[%s15 + $0xa8] sm:$0xff]
      %v4791 = vld [vmem:[%s15 + $0xb0] sm:$0xff]
      %v4792 = vld [vmem:[%s15 + $0xb8] sm:$0xff]
      %v4793 = vld [vmem:[%s15 + $0xc0] sm:$0xff]
      %v4794 = vld [vmem:[%s15 + $0xc8] sm:$0xff]
      %v4795 = vld [vmem:[%s15 + $0xd0] sm:$0xff]
      %v4796 = vld [vmem:[%s15 + $0xd8] sm:$0xff]
      %v4797 = vld [vmem:[%s15 + $0xe0] sm:$0xff]
      %v4798 = vld [vmem:[%s15 + $0xe8] sm:$0xff]
      %v4799 = vld [vmem:[%s15 + $0xf0] sm:$0xff]
      %v4800 = vld [vmem:[%s15 + $0xf8] sm:$0xff]
      %v4801 = vld [vmem:[%s16] sm:$0xf]
      %v4803 = vlaneseq
      %v4804 = vshrl.u32 %v4803, 7
      %v4805 = vsub.s32 0, %v4804
      %v4806 = vrot.slane %v4801, %v4805
      %v4807 = vlaneseq
      %v4808 = vshrl.u32 %v4807, 7
      %v4809 = vsub.s32 1, %v4808
      %v4810 = vrot.slane %v4801, %v4809
      %v4811 = vlaneseq
      %v4812 = vshrl.u32 %v4811, 7
      %v4813 = vsub.s32 2, %v4812
      %v4814 = vrot.slane %v4801, %v4813
      %v4815 = vlaneseq
      %v4816 = vshrl.u32 %v4815, 7
      %v4817 = vsub.s32 3, %v4816
      %v4818 = vrot.slane %v4801, %v4817
      %v4855 = vunpack.c.l.b16 %v4769
      %v4856 = vunpack.c.h.b16 %v4769
      %v4857 = vunpack.c.l.b16 %v4770
      %v4858 = vunpack.c.h.b16 %v4770
      %v4859 = vunpack.c.l.b16 %v4771
      %v4860 = vunpack.c.h.b16 %v4771
      %v4861 = vunpack.c.l.b16 %v4772
      %v4862 = vunpack.c.h.b16 %v4772
      %v4863 = vunpack.c.l.b16 %v4773
      %v4864 = vunpack.c.h.b16 %v4773
      %v4865 = vunpack.c.l.b16 %v4774
      %v4866 = vunpack.c.h.b16 %v4774
      %v4867 = vunpack.c.l.b16 %v4775
      %v4868 = vunpack.c.h.b16 %v4775
      %v4869 = vunpack.c.l.b16 %v4776
      %v4870 = vunpack.c.h.b16 %v4776
      %v4871 = vunpack.c.l.b16 %v4777
      %v4872 = vunpack.c.h.b16 %v4777
      %v4873 = vunpack.c.l.b16 %v4778
      %v4874 = vunpack.c.h.b16 %v4778
      %v4875 = vunpack.c.l.b16 %v4779
      %v4876 = vunpack.c.h.b16 %v4779
      %v4877 = vunpack.c.l.b16 %v4780
      %v4878 = vunpack.c.h.b16 %v4780
      %v4879 = vunpack.c.l.b16 %v4781
      %v4880 = vunpack.c.h.b16 %v4781
      %v4881 = vunpack.c.l.b16 %v4782
      %v4882 = vunpack.c.h.b16 %v4782
      %v4883 = vunpack.c.l.b16 %v4783
      %v4884 = vunpack.c.h.b16 %v4783
      %v4885 = vunpack.c.l.b16 %v4784
      %v4886 = vunpack.c.h.b16 %v4784
      %v4887 = vunpack.c.l.b16 %v4785
      %v4888 = vunpack.c.h.b16 %v4785
      %v4889 = vunpack.c.l.b16 %v4786
      %v4890 = vunpack.c.h.b16 %v4786
      %v4891 = vunpack.c.l.b16 %v4787
      %v4892 = vunpack.c.h.b16 %v4787
      %v4893 = vunpack.c.l.b16 %v4788
      %v4894 = vunpack.c.h.b16 %v4788
      %v4895 = vunpack.c.l.b16 %v4789
      %v4896 = vunpack.c.h.b16 %v4789
      %v4897 = vunpack.c.l.b16 %v4790
      %v4898 = vunpack.c.h.b16 %v4790
      %v4899 = vunpack.c.l.b16 %v4791
      %v4900 = vunpack.c.h.b16 %v4791
      %v4901 = vunpack.c.l.b16 %v4792
      %v4902 = vunpack.c.h.b16 %v4792
      %v4903 = vunpack.c.l.b16 %v4793
      %v4904 = vunpack.c.h.b16 %v4793
      %v4905 = vunpack.c.l.b16 %v4794
      %v4906 = vunpack.c.h.b16 %v4794
      %v4907 = vunpack.c.l.b16 %v4795
      %v4908 = vunpack.c.h.b16 %v4795
      %v4909 = vunpack.c.l.b16 %v4796
      %v4910 = vunpack.c.h.b16 %v4796
      %v4911 = vunpack.c.l.b16 %v4797
      %v4912 = vunpack.c.h.b16 %v4797
      %v4913 = vunpack.c.l.b16 %v4798
      %v4914 = vunpack.c.h.b16 %v4798
      %v4915 = vunpack.c.l.b16 %v4799
      %v4916 = vunpack.c.h.b16 %v4799
      %v4917 = vunpack.c.l.b16 %v4800
      %v4918 = vunpack.c.h.b16 %v4800
      %v4919 = vpack.c.b16 %v4859, %v4855
      %v4920 = vpack.c.b16 %v4860, %v4856
      %v4921 = vpack.c.b16 %v4861, %v4857
      %v4922 = vpack.c.b16 %v4862, %v4858
      %v4923 = vpack.c.b16 %v4867, %v4863
      %v4924 = vpack.c.b16 %v4868, %v4864
      %v4925 = vpack.c.b16 %v4869, %v4865
      %v4926 = vpack.c.b16 %v4870, %v4866
      %v4927 = vpack.c.b16 %v4875, %v4871
      %v4928 = vpack.c.b16 %v4876, %v4872
      %v4929 = vpack.c.b16 %v4877, %v4873
      %v4930 = vpack.c.b16 %v4878, %v4874
      %v4931 = vpack.c.b16 %v4883, %v4879
      %v4932 = vpack.c.b16 %v4884, %v4880
      %v4933 = vpack.c.b16 %v4885, %v4881
      %v4934 = vpack.c.b16 %v4886, %v4882
      %v4935 = vpack.c.b16 %v4891, %v4887
      %v4936 = vpack.c.b16 %v4892, %v4888
      %v4937 = vpack.c.b16 %v4893, %v4889
      %v4938 = vpack.c.b16 %v4894, %v4890
      %v4939 = vpack.c.b16 %v4899, %v4895
      %v4940 = vpack.c.b16 %v4900, %v4896
      %v4941 = vpack.c.b16 %v4901, %v4897
      %v4942 = vpack.c.b16 %v4902, %v4898
      %v4943 = vpack.c.b16 %v4907, %v4903
      %v4944 = vpack.c.b16 %v4908, %v4904
      %v4945 = vpack.c.b16 %v4909, %v4905
      %v4946 = vpack.c.b16 %v4910, %v4906
      %v4947 = vpack.c.b16 %v4915, %v4911
      %v4948 = vpack.c.b16 %v4916, %v4912
      %v4949 = vpack.c.b16 %v4917, %v4913
      %v4950 = vpack.c.b16 %v4918, %v4914
      %4983 = vmatprep.subr.bf16.mxu0 %v4948
      %4984 = vmatpush1.bf16.msra.mxu0 %v4947
      %4985 = vmatprep.subr.bf16.mxu0 %v4944
      %4986 = vmatpush1.bf16.msra.mxu0 %v4943
      %4987 = vmatprep.subr.bf16.mxu0 %v4940
      %4988 = vmatpush1.bf16.msra.mxu0 %v4939
      %4989 = vmatprep.subr.bf16.mxu0 %v4936
      %4990 = vmatpush1.bf16.msra.mxu0 %v4935
      %4991 = vmatprep.subr.bf16.mxu0 %v4932
      %4992 = vmatpush1.bf16.msra.mxu0 %v4931
      %4993 = vmatprep.subr.bf16.mxu0 %v4928
      %4994 = vmatpush1.bf16.msra.mxu0 %v4927
      %4995 = vmatprep.subr.bf16.mxu0 %v4924
      %4996 = vmatpush1.bf16.msra.mxu0 %v4923
      %4997 = vmatprep.subr.bf16.mxu0 %v4920
      %4998 = vmatpush1.bf16.msra.mxu0 %v4919
      %4999 = vmatprep.subr.bf16.mxu0 0
      %5000 = vmatpush2.bf16.msra.mxu0 0
      %5001 = vmatprep.subr.bf16.mxu0 0
      %5002 = vmatpush2.bf16.msra.mxu0 0
      %5003 = vmatprep.subr.bf16.mxu0 0
      %5004 = vmatpush2.bf16.msra.mxu0 0
      %5005 = vmatprep.subr.bf16.mxu0 0
      %5006 = vmatpush2.bf16.msra.mxu0 0
      %5007 = vmatprep.subr.bf16.mxu0 0
      %5008 = vmatpush2.bf16.msra.mxu0 0
      %5009 = vmatprep.subr.bf16.mxu0 0
      %5010 = vmatpush2.bf16.msra.mxu0 0
      %5011 = vmatprep.subr.bf16.mxu0 0
      %5012 = vmatpush2.bf16.msra.mxu0 0
      %5013 = vmatprep.subr.bf16.mxu0 0
      %5014 = vmatpush2.bf16.msra.mxu0 0
      %5015 = vmatprep.mubr.bf16.mxu0 0
      %5016 = vmatmul.mubr.bf16.gmra.mxu0 %v4761
      %v5017 = vpop.f32.mrf.mxu0
      %v5018 = vadd.f32 %v4806, %v5017
      %v5019 = vpop.f32.mrf.mxu0
      %v5020 = vadd.f32 %v4810, %v5019
      %v5021 = vpop.f32.mrf.mxu0
      %v5022 = vadd.f32 %v4806, %v5021
      %v5023 = vpop.f32.mrf.mxu0
      %v5024 = vadd.f32 %v4810, %v5023
      %5025 = vmatprep.mubr.bf16.mxu0 0
      %5026 = vmatmul.mubr.bf16.gmra.mxu0 %v4762
      %v5027 = vpop.f32.mrf.mxu0
      %v5028 = vadd.f32 %v4806, %v5027
      %v5029 = vpop.f32.mrf.mxu0
      %v5030 = vadd.f32 %v4810, %v5029
      %v5031 = vpop.f32.mrf.mxu0
      %v5032 = vadd.f32 %v4806, %v5031
      %v5033 = vpop.f32.mrf.mxu0
      %v5034 = vadd.f32 %v4810, %v5033
      %5035 = vmatprep.mubr.bf16.mxu0 0
      %5036 = vmatmul.mubr.bf16.gmra.mxu0 %v4763
      %v5037 = vpop.f32.mrf.mxu0
      %v5038 = vadd.f32 %v4806, %v5037
      %v5039 = vpop.f32.mrf.mxu0
      %v5040 = vadd.f32 %v4810, %v5039
      %v5041 = vpop.f32.mrf.mxu0
      %v5042 = vadd.f32 %v4806, %v5041
      %v5043 = vpop.f32.mrf.mxu0
      %v5044 = vadd.f32 %v4810, %v5043
      %5045 = vmatprep.mubr.bf16.mxu0 0
      %5046 = vmatmul.mubr.bf16.gmra.mxu0 %v4764
      %v5047 = vpop.f32.mrf.mxu0
      %v5048 = vadd.f32 %v4806, %v5047
      %v5049 = vpop.f32.mrf.mxu0
      %v5050 = vadd.f32 %v4810, %v5049
      %v5051 = vpop.f32.mrf.mxu0
      %v5052 = vadd.f32 %v4806, %v5051
      %v5053 = vpop.f32.mrf.mxu0
      %v5054 = vadd.f32 %v4810, %v5053
      %5055 = vmatprep.mubr.bf16.mxu0 0
      %5056 = vmatmul.mubr.bf16.gmra.mxu0 %v4765
      %v5057 = vpop.f32.mrf.mxu0
      %v5058 = vadd.f32 %v4806, %v5057
      %v5059 = vpop.f32.mrf.mxu0
      %v5060 = vadd.f32 %v4810, %v5059
      %v5061 = vpop.f32.mrf.mxu0
      %v5062 = vadd.f32 %v4806, %v5061
      %v5063 = vpop.f32.mrf.mxu0
      %v5064 = vadd.f32 %v4810, %v5063
      %5065 = vmatprep.mubr.bf16.mxu0 0
      %5066 = vmatmul.mubr.bf16.gmra.mxu0 %v4766
      %v5067 = vpop.f32.mrf.mxu0
      %v5068 = vadd.f32 %v4806, %v5067
      %v5069 = vpop.f32.mrf.mxu0
      %v5070 = vadd.f32 %v4810, %v5069
      %v5071 = vpop.f32.mrf.mxu0
      %v5072 = vadd.f32 %v4806, %v5071
      %v5073 = vpop.f32.mrf.mxu0
      %v5074 = vadd.f32 %v4810, %v5073
      %5075 = vmatprep.mubr.bf16.mxu0 0
      %5076 = vmatmul.mubr.bf16.gmra.mxu0 %v4767
      %v5077 = vpop.f32.mrf.mxu0
      %v5078 = vadd.f32 %v4806, %v5077
      %v5079 = vpop.f32.mrf.mxu0
      %v5080 = vadd.f32 %v4810, %v5079
      %v5081 = vpop.f32.mrf.mxu0
      %v5082 = vadd.f32 %v4806, %v5081
      %v5083 = vpop.f32.mrf.mxu0
      %v5084 = vadd.f32 %v4810, %v5083
      %5085 = vmatprep.mubr.bf16.mxu0 0
      %5086 = vmatmul.mubr.bf16.gmra.mxu0 %v4768
      %v5087 = vpop.f32.mrf.mxu0
      %v5088 = vadd.f32 %v4806, %v5087
      %v5089 = vpop.f32.mrf.mxu0
      %v5090 = vadd.f32 %v4810, %v5089
      %v5091 = vpop.f32.mrf.mxu0
      %v5092 = vadd.f32 %v4806, %v5091
      %v5093 = vpop.f32.mrf.mxu0
      %v5094 = vadd.f32 %v4810, %v5093
      %5095 = vdwg.mxu0
      %5096 = vmatprep.subr.bf16.mxu0 %v4950
      %5097 = vmatpush1.bf16.msra.mxu0 %v4949
      %5098 = vmatprep.subr.bf16.mxu0 %v4946
      %5099 = vmatpush1.bf16.msra.mxu0 %v4945
      %5100 = vmatprep.subr.bf16.mxu0 %v4942
      %5101 = vmatpush1.bf16.msra.mxu0 %v4941
      %5102 = vmatprep.subr.bf16.mxu0 %v4938
      %5103 = vmatpush1.bf16.msra.mxu0 %v4937
      %5104 = vmatprep.subr.bf16.mxu0 %v4934
      %5105 = vmatpush1.bf16.msra.mxu0 %v4933
      %5106 = vmatprep.subr.bf16.mxu0 %v4930
      %5107 = vmatpush1.bf16.msra.mxu0 %v4929
      %5108 = vmatprep.subr.bf16.mxu0 %v4926
      %5109 = vmatpush1.bf16.msra.mxu0 %v4925
      %5110 = vmatprep.subr.bf16.mxu0 %v4922
      %5111 = vmatpush1.bf16.msra.mxu0 %v4921
      %5112 = vmatprep.subr.bf16.mxu0 0
      %5113 = vmatpush2.bf16.msra.mxu0 0
      %5114 = vmatprep.subr.bf16.mxu0 0
      %5115 = vmatpush2.bf16.msra.mxu0 0
      %5116 = vmatprep.subr.bf16.mxu0 0
      %5117 = vmatpush2.bf16.msra.mxu0 0
      %5118 = vmatprep.subr.bf16.mxu0 0
      %5119 = vmatpush2.bf16.msra.mxu0 0
      %5120 = vmatprep.subr.bf16.mxu0 0
      %5121 = vmatpush2.bf16.msra.mxu0 0
      %5122 = vmatprep.subr.bf16.mxu0 0
      %5123 = vmatpush2.bf16.msra.mxu0 0
      %5124 = vmatprep.subr.bf16.mxu0 0
      %5125 = vmatpush2.bf16.msra.mxu0 0
      %5126 = vmatprep.subr.bf16.mxu0 0
      %5127 = vmatpush2.bf16.msra.mxu0 0
      %5128 = vmatprep.mubr.bf16.mxu0 0
      %5129 = vmatmul.mubr.bf16.gmra.mxu0 %v4761
      %v5130 = vpop.f32.mrf.mxu0
      %v5131 = vadd.f32 %v4814, %v5130
      %v5132 = vpop.f32.mrf.mxu0
      %v5133 = vadd.f32 %v4818, %v5132
      %v5134 = vpop.f32.mrf.mxu0
      %v5135 = vadd.f32 %v4814, %v5134
      %v5136 = vpop.f32.mrf.mxu0
      %v5137 = vadd.f32 %v4818, %v5136
      %5138 = vmatprep.mubr.bf16.mxu0 0
      %5139 = vmatmul.mubr.bf16.gmra.mxu0 %v4762
      %v5140 = vpop.f32.mrf.mxu0
      %v5141 = vadd.f32 %v4814, %v5140
      %v5142 = vpop.f32.mrf.mxu0
      %v5143 = vadd.f32 %v4818, %v5142
      %v5144 = vpop.f32.mrf.mxu0
      %v5145 = vadd.f32 %v4814, %v5144
      %v5146 = vpop.f32.mrf.mxu0
      %v5147 = vadd.f32 %v4818, %v5146
      %5148 = vmatprep.mubr.bf16.mxu0 0
      %5149 = vmatmul.mubr.bf16.gmra.mxu0 %v4763
      %v5150 = vpop.f32.mrf.mxu0
      %v5151 = vadd.f32 %v4814, %v5150
      %v5152 = vpop.f32.mrf.mxu0
      %v5153 = vadd.f32 %v4818, %v5152
      %v5154 = vpop.f32.mrf.mxu0
      %v5155 = vadd.f32 %v4814, %v5154
      %v5156 = vpop.f32.mrf.mxu0
      %v5157 = vadd.f32 %v4818, %v5156
      %5158 = vmatprep.mubr.bf16.mxu0 0
      %5159 = vmatmul.mubr.bf16.gmra.mxu0 %v4764
      %v5160 = vpop.f32.mrf.mxu0
      %v5161 = vadd.f32 %v4814, %v5160
      %v5162 = vpop.f32.mrf.mxu0
      %v5163 = vadd.f32 %v4818, %v5162
      %v5164 = vpop.f32.mrf.mxu0
      %v5165 = vadd.f32 %v4814, %v5164
      %v5166 = vpop.f32.mrf.mxu0
      %v5167 = vadd.f32 %v4818, %v5166
      %5168 = vmatprep.mubr.bf16.mxu0 0
      %5169 = vmatmul.mubr.bf16.gmra.mxu0 %v4765
      %v5170 = vpop.f32.mrf.mxu0
      %v5171 = vadd.f32 %v4814, %v5170
      %v5172 = vpop.f32.mrf.mxu0
      %v5173 = vadd.f32 %v4818, %v5172
      %v5174 = vpop.f32.mrf.mxu0
      %v5175 = vadd.f32 %v4814, %v5174
      %v5176 = vpop.f32.mrf.mxu0
      %v5177 = vadd.f32 %v4818, %v5176
      %5178 = vmatprep.mubr.bf16.mxu0 0
      %5179 = vmatmul.mubr.bf16.gmra.mxu0 %v4766
      %v5180 = vpop.f32.mrf.mxu0
      %v5181 = vadd.f32 %v4814, %v5180
      %v5182 = vpop.f32.mrf.mxu0
      %v5183 = vadd.f32 %v4818, %v5182
      %v5184 = vpop.f32.mrf.mxu0
      %v5185 = vadd.f32 %v4814, %v5184
      %v5186 = vpop.f32.mrf.mxu0
      %v5187 = vadd.f32 %v4818, %v5186
      %5188 = vmatprep.mubr.bf16.mxu0 0
      %5189 = vmatmul.mubr.bf16.gmra.mxu0 %v4767
      %v5190 = vpop.f32.mrf.mxu0
      %v5191 = vadd.f32 %v4814, %v5190
      %v5192 = vpop.f32.mrf.mxu0
      %v5193 = vadd.f32 %v4818, %v5192
      %v5194 = vpop.f32.mrf.mxu0
      %v5195 = vadd.f32 %v4814, %v5194
      %v5196 = vpop.f32.mrf.mxu0
      %v5197 = vadd.f32 %v4818, %v5196
      %5198 = vmatprep.mubr.bf16.mxu0 0
      %5199 = vmatmul.mubr.bf16.gmra.mxu0 %v4768
      %v5200 = vpop.f32.mrf.mxu0
      %v5201 = vadd.f32 %v4814, %v5200
      %v5202 = vpop.f32.mrf.mxu0
      %v5203 = vadd.f32 %v4818, %v5202
      %v5204 = vpop.f32.mrf.mxu0
      %v5205 = vadd.f32 %v4814, %v5204
      %v5206 = vpop.f32.mrf.mxu0
      %v5207 = vadd.f32 %v4818, %v5206
      %5208 = vdwg.mxu0
      %v5209 = vmax.f32 %v5018, 0.0
      %v5210 = vmax.f32 %v5020, 0.0
      %v5211 = vmax.f32 %v5131, 0.0
      %v5212 = vmax.f32 %v5133, 0.0
      %v5213 = vmax.f32 %v5022, 0.0
      %v5214 = vmax.f32 %v5024, 0.0
      %v5215 = vmax.f32 %v5135, 0.0
      %v5216 = vmax.f32 %v5137, 0.0
      %v5217 = vmax.f32 %v5028, 0.0
      %v5218 = vmax.f32 %v5030, 0.0
      %v5219 = vmax.f32 %v5141, 0.0
      %v5220 = vmax.f32 %v5143, 0.0
      %v5221 = vmax.f32 %v5032, 0.0
      %v5222 = vmax.f32 %v5034, 0.0
      %v5223 = vmax.f32 %v5145, 0.0
      %v5224 = vmax.f32 %v5147, 0.0
      %v5225 = vmax.f32 %v5038, 0.0
      %v5226 = vmax.f32 %v5040, 0.0
      %v5227 = vmax.f32 %v5151, 0.0
      %v5228 = vmax.f32 %v5153, 0.0
      %v5229 = vmax.f32 %v5042, 0.0
      %v5230 = vmax.f32 %v5044, 0.0
      %v5231 = vmax.f32 %v5155, 0.0
      %v5232 = vmax.f32 %v5157, 0.0
      %v5233 = vmax.f32 %v5048, 0.0
      %v5234 = vmax.f32 %v5050, 0.0
      %v5235 = vmax.f32 %v5161, 0.0
      %v5236 = vmax.f32 %v5163, 0.0
      %v5237 = vmax.f32 %v5052, 0.0
      %v5238 = vmax.f32 %v5054, 0.0
      %v5239 = vmax.f32 %v5165, 0.0
      %v5240 = vmax.f32 %v5167, 0.0
      %v5241 = vmax.f32 %v5058, 0.0
      %v5242 = vmax.f32 %v5060, 0.0
      %v5243 = vmax.f32 %v5171, 0.0
      %v5244 = vmax.f32 %v5173, 0.0
      %v5245 = vmax.f32 %v5062, 0.0
      %v5246 = vmax.f32 %v5064, 0.0
      %v5247 = vmax.f32 %v5175, 0.0
      %v5248 = vmax.f32 %v5177, 0.0
      %v5249 = vmax.f32 %v5068, 0.0
      %v5250 = vmax.f32 %v5070, 0.0
      %v5251 = vmax.f32 %v5181, 0.0
      %v5252 = vmax.f32 %v5183, 0.0
      %v5253 = vmax.f32 %v5072, 0.0
      %v5254 = vmax.f32 %v5074, 0.0
      %v5255 = vmax.f32 %v5185, 0.0
      %v5256 = vmax.f32 %v5187, 0.0
      %v5257 = vmax.f32 %v5078, 0.0
      %v5258 = vmax.f32 %v5080, 0.0
      %v5259 = vmax.f32 %v5191, 0.0
      %v5260 = vmax.f32 %v5193, 0.0
      %v5261 = vmax.f32 %v5082, 0.0
      %v5262 = vmax.f32 %v5084, 0.0
      %v5263 = vmax.f32 %v5195, 0.0
      %v5264 = vmax.f32 %v5197, 0.0
      %v5265 = vmax.f32 %v5088, 0.0
      %v5266 = vmax.f32 %v5090, 0.0
      %v5267 = vmax.f32 %v5201, 0.0
      %v5268 = vmax.f32 %v5203, 0.0
      %v5269 = vmax.f32 %v5092, 0.0
      %v5270 = vmax.f32 %v5094, 0.0
      %v5271 = vmax.f32 %v5205, 0.0
      %v5272 = vmax.f32 %v5207, 0.0
      %v5273 = vpack.c.bf16 %v5213, %v5209
      %v5274 = vpack.c.bf16 %v5214, %v5210
      %v5275 = vpack.c.bf16 %v5215, %v5211
      %v5276 = vpack.c.bf16 %v5216, %v5212
      %v5277 = vpack.c.bf16 %v5221, %v5217
      %v5278 = vpack.c.bf16 %v5222, %v5218
      %v5279 = vpack.c.bf16 %v5223, %v5219
      %v5280 = vpack.c.bf16 %v5224, %v5220
      %v5281 = vpack.c.bf16 %v5229, %v5225
      %v5282 = vpack.c.bf16 %v5230, %v5226
      %v5283 = vpack.c.bf16 %v5231, %v5227
      %v5284 = vpack.c.bf16 %v5232, %v5228
      %v5285 = vpack.c.bf16 %v5237, %v5233
      %v5286 = vpack.c.bf16 %v5238, %v5234
      %v5287 = vpack.c.bf16 %v5239, %v5235
      %v5288 = vpack.c.bf16 %v5240, %v5236
      %v5289 = vpack.c.bf16 %v5245, %v5241
      %v5290 = vpack.c.bf16 %v5246, %v5242
      %v5291 = vpack.c.bf16 %v5247, %v5243
      %v5292 = vpack.c.bf16 %v5248, %v5244
      %v5293 = vpack.c.bf16 %v5253, %v5249
      %v5294 = vpack.c.bf16 %v5254, %v5250
      %v5295 = vpack.c.bf16 %v5255, %v5251
      %v5296 = vpack.c.bf16 %v5256, %v5252
      %v5297 = vpack.c.bf16 %v5261, %v5257
      %v5298 = vpack.c.bf16 %v5262, %v5258
      %v5299 = vpack.c.bf16 %v5263, %v5259
      %v5300 = vpack.c.bf16 %v5264, %v5260
      %v5301 = vpack.c.bf16 %v5269, %v5265
      %v5302 = vpack.c.bf16 %v5270, %v5266
      %v5303 = vpack.c.bf16 %v5271, %v5267
      %v5304 = vpack.c.bf16 %v5272, %v5268
      %v5305 = vld [vmem:[%s17] sm:$0xff]
      %v5306 = vld [vmem:[%s17 + $0x8] sm:$0xff]
      %v5307 = vld [vmem:[%s17 + $0x10] sm:$0xff]
      %v5308 = vld [vmem:[%s17 + $0x18] sm:$0xf]
      %v5309 = vld [vmem:[%s17 + $0x1c] sm:$0xff]
      %v5310 = vld [vmem:[%s17 + $0x24] sm:$0xff]
      %v5311 = vld [vmem:[%s17 + $0x2c] sm:$0xff]
      %v5312 = vld [vmem:[%s17 + $0x34] sm:$0xf]
      %v5313 = vld [vmem:[%s17 + $0x38] sm:$0xff]
      %v5314 = vld [vmem:[%s17 + $0x40] sm:$0xff]
      %v5315 = vld [vmem:[%s17 + $0x48] sm:$0xff]
      %v5316 = vld [vmem:[%s17 + $0x50] sm:$0xf]
      %v5317 = vld [vmem:[%s17 + $0x54] sm:$0xff]
      %v5318 = vld [vmem:[%s17 + $0x5c] sm:$0xff]
      %v5319 = vld [vmem:[%s17 + $0x64] sm:$0xff]
      %v5320 = vld [vmem:[%s17 + $0x6c] sm:$0xf]
      %v5321 = vld [vmem:[%s17 + $0x70] sm:$0xff]
      %v5322 = vld [vmem:[%s17 + $0x78] sm:$0xff]
      %v5323 = vld [vmem:[%s17 + $0x80] sm:$0xff]
      %v5324 = vld [vmem:[%s17 + $0x88] sm:$0xf]
      %v5325 = vld [vmem:[%s17 + $0x8c] sm:$0xff]
      %v5326 = vld [vmem:[%s17 + $0x94] sm:$0xff]
      %v5327 = vld [vmem:[%s17 + $0x9c] sm:$0xff]
      %v5328 = vld [vmem:[%s17 + $0xa4] sm:$0xf]
      %v5329 = vld [vmem:[%s17 + $0xa8] sm:$0xff]
      %v5330 = vld [vmem:[%s17 + $0xb0] sm:$0xff]
      %v5331 = vld [vmem:[%s17 + $0xb8] sm:$0xff]
      %v5332 = vld [vmem:[%s17 + $0xc0] sm:$0xf]
      %v5333 = vld [vmem:[%s17 + $0xc4] sm:$0xff]
      %v5334 = vld [vmem:[%s17 + $0xcc] sm:$0xff]
      %v5335 = vld [vmem:[%s17 + $0xd4] sm:$0xff]
      %v5336 = vld [vmem:[%s17 + $0xdc] sm:$0xf]
      %v5337 = vld [vmem:[%s17 + $0xe0] sm:$0xff]
      %v5338 = vld [vmem:[%s17 + $0xe8] sm:$0xff]
      %v5339 = vld [vmem:[%s17 + $0xf0] sm:$0xff]
      %v5340 = vld [vmem:[%s17 + $0xf8] sm:$0xf]
      %v5341 = vld [vmem:[%s17 + $0xfc] sm:$0xff]
      %v5342 = vld [vmem:[%s17 + $0x104] sm:$0xff]
      %v5343 = vld [vmem:[%s17 + $0x10c] sm:$0xff]
      %v5344 = vld [vmem:[%s17 + $0x114] sm:$0xf]
      %v5345 = vld [vmem:[%s17 + $0x118] sm:$0xff]
      %v5346 = vld [vmem:[%s17 + $0x120] sm:$0xff]
      %v5347 = vld [vmem:[%s17 + $0x128] sm:$0xff]
      %v5348 = vld [vmem:[%s17 + $0x130] sm:$0xf]
      %v5349 = vld [vmem:[%s17 + $0x134] sm:$0xff]
      %v5350 = vld [vmem:[%s17 + $0x13c] sm:$0xff]
      %v5351 = vld [vmem:[%s17 + $0x144] sm:$0xff]
      %v5352 = vld [vmem:[%s17 + $0x14c] sm:$0xf]
      %v5353 = vld [vmem:[%s17 + $0x150] sm:$0xff]
      %v5354 = vld [vmem:[%s17 + $0x158] sm:$0xff]
      %v5355 = vld [vmem:[%s17 + $0x160] sm:$0xff]
      %v5356 = vld [vmem:[%s17 + $0x168] sm:$0xf]
      %v5357 = vld [vmem:[%s17 + $0x16c] sm:$0xff]
      %v5358 = vld [vmem:[%s17 + $0x174] sm:$0xff]
      %v5359 = vld [vmem:[%s17 + $0x17c] sm:$0xff]
      %v5360 = vld [vmem:[%s17 + $0x184] sm:$0xf]
      %v5361 = vld [vmem:[%s17 + $0x188] sm:$0xff]
      %v5362 = vld [vmem:[%s17 + $0x190] sm:$0xff]
      %v5363 = vld [vmem:[%s17 + $0x198] sm:$0xff]
      %v5364 = vld [vmem:[%s17 + $0x1a0] sm:$0xf]
      %v5365 = vld [vmem:[%s17 + $0x1a4] sm:$0xff]
      %v5366 = vld [vmem:[%s17 + $0x1ac] sm:$0xff]
      %v5367 = vld [vmem:[%s17 + $0x1b4] sm:$0xff]
      %v5368 = vld [vmem:[%s17 + $0x1bc] sm:$0xf]
      %v5369 = vld [vmem:[%s17 + $0x1c0] sm:$0xff]
      %v5370 = vld [vmem:[%s17 + $0x1c8] sm:$0xff]
      %v5371 = vld [vmem:[%s17 + $0x1d0] sm:$0xff]
      %v5372 = vld [vmem:[%s17 + $0x1d8] sm:$0xf]
      %v5373 = vld [vmem:[%s17 + $0x1dc] sm:$0xff]
      %v5374 = vld [vmem:[%s17 + $0x1e4] sm:$0xff]
      %v5375 = vld [vmem:[%s17 + $0x1ec] sm:$0xff]
      %v5376 = vld [vmem:[%s17 + $0x1f4] sm:$0xf]
      %v5377 = vld [vmem:[%s17 + $0x1f8] sm:$0xff]
      %v5378 = vld [vmem:[%s17 + $0x200] sm:$0xff]
      %v5379 = vld [vmem:[%s17 + $0x208] sm:$0xff]
      %v5380 = vld [vmem:[%s17 + $0x210] sm:$0xf]
      %v5381 = vld [vmem:[%s17 + $0x214] sm:$0xff]
      %v5382 = vld [vmem:[%s17 + $0x21c] sm:$0xff]
      %v5383 = vld [vmem:[%s17 + $0x224] sm:$0xff]
      %v5384 = vld [vmem:[%s17 + $0x22c] sm:$0xf]
      %v5385 = vld [vmem:[%s17 + $0x230] sm:$0xff]
      %v5386 = vld [vmem:[%s17 + $0x238] sm:$0xff]
      %v5387 = vld [vmem:[%s17 + $0x240] sm:$0xff]
      %v5388 = vld [vmem:[%s17 + $0x248] sm:$0xf]
      %v5389 = vld [vmem:[%s17 + $0x24c] sm:$0xff]
      %v5390 = vld [vmem:[%s17 + $0x254] sm:$0xff]
      %v5391 = vld [vmem:[%s17 + $0x25c] sm:$0xff]
      %v5392 = vld [vmem:[%s17 + $0x264] sm:$0xf]
      %v5393 = vld [vmem:[%s17 + $0x268] sm:$0xff]
      %v5394 = vld [vmem:[%s17 + $0x270] sm:$0xff]
      %v5395 = vld [vmem:[%s17 + $0x278] sm:$0xff]
      %v5396 = vld [vmem:[%s17 + $0x280] sm:$0xf]
      %v5397 = vld [vmem:[%s17 + $0x284] sm:$0xff]
      %v5398 = vld [vmem:[%s17 + $0x28c] sm:$0xff]
      %v5399 = vld [vmem:[%s17 + $0x294] sm:$0xff]
      %v5400 = vld [vmem:[%s17 + $0x29c] sm:$0xf]
      %v5401 = vld [vmem:[%s17 + $0x2a0] sm:$0xff]
      %v5402 = vld [vmem:[%s17 + $0x2a8] sm:$0xff]
      %v5403 = vld [vmem:[%s17 + $0x2b0] sm:$0xff]
      %v5404 = vld [vmem:[%s17 + $0x2b8] sm:$0xf]
      %v5405 = vld [vmem:[%s17 + $0x2bc] sm:$0xff]
      %v5406 = vld [vmem:[%s17 + $0x2c4] sm:$0xff]
      %v5407 = vld [vmem:[%s17 + $0x2cc] sm:$0xff]
      %v5408 = vld [vmem:[%s17 + $0x2d4] sm:$0xf]
      %v5409 = vld [vmem:[%s17 + $0x2d8] sm:$0xff]
      %v5410 = vld [vmem:[%s17 + $0x2e0] sm:$0xff]
      %v5411 = vld [vmem:[%s17 + $0x2e8] sm:$0xff]
      %v5412 = vld [vmem:[%s17 + $0x2f0] sm:$0xf]
      %v5413 = vld [vmem:[%s17 + $0x2f4] sm:$0xff]
      %v5414 = vld [vmem:[%s17 + $0x2fc] sm:$0xff]
      %v5415 = vld [vmem:[%s17 + $0x304] sm:$0xff]
      %v5416 = vld [vmem:[%s17 + $0x30c] sm:$0xf]
      %v5417 = vld [vmem:[%s17 + $0x310] sm:$0xff]
      %v5418 = vld [vmem:[%s17 + $0x318] sm:$0xff]
      %v5419 = vld [vmem:[%s17 + $0x320] sm:$0xff]
      %v5420 = vld [vmem:[%s17 + $0x328] sm:$0xf]
      %v5421 = vld [vmem:[%s17 + $0x32c] sm:$0xff]
      %v5422 = vld [vmem:[%s17 + $0x334] sm:$0xff]
      %v5423 = vld [vmem:[%s17 + $0x33c] sm:$0xff]
      %v5424 = vld [vmem:[%s17 + $0x344] sm:$0xf]
      %v5425 = vld [vmem:[%s17 + $0x348] sm:$0xff]
      %v5426 = vld [vmem:[%s17 + $0x350] sm:$0xff]
      %v5427 = vld [vmem:[%s17 + $0x358] sm:$0xff]
      %v5428 = vld [vmem:[%s17 + $0x360] sm:$0xf]
      %v5429 = vld [vmem:[%s17 + $0x364] sm:$0xff]
      %v5430 = vld [vmem:[%s17 + $0x36c] sm:$0xff]
      %v5431 = vld [vmem:[%s17 + $0x374] sm:$0xff]
      %v5432 = vld [vmem:[%s17 + $0x37c] sm:$0xf]
      %v5433 = vld [vmem:[%s17 + $0x380] sm:$0xff]
      %v5434 = vld [vmem:[%s17 + $0x388] sm:$0xff]
      %v5435 = vld [vmem:[%s17 + $0x390] sm:$0xff]
      %v5436 = vld [vmem:[%s17 + $0x398] sm:$0xf]
      %v5437 = vld [vmem:[%s17 + $0x39c] sm:$0xff]
      %v5438 = vld [vmem:[%s17 + $0x3a4] sm:$0xff]
      %v5439 = vld [vmem:[%s17 + $0x3ac] sm:$0xff]
      %v5440 = vld [vmem:[%s17 + $0x3b4] sm:$0xf]
      %v5441 = vld [vmem:[%s17 + $0x3b8] sm:$0xff]
      %v5442 = vld [vmem:[%s17 + $0x3c0] sm:$0xff]
      %v5443 = vld [vmem:[%s17 + $0x3c8] sm:$0xff]
      %v5444 = vld [vmem:[%s17 + $0x3d0] sm:$0xf]
      %v5445 = vld [vmem:[%s17 + $0x3d4] sm:$0xff]
      %v5446 = vld [vmem:[%s17 + $0x3dc] sm:$0xff]
      %v5447 = vld [vmem:[%s17 + $0x3e4] sm:$0xff]
      %v5448 = vld [vmem:[%s17 + $0x3ec] sm:$0xf]
      %v5449 = vld [vmem:[%s17 + $0x3f0] sm:$0xff]
      %v5450 = vld [vmem:[%s17 + $0x3f8] sm:$0xff]
      %v5451 = vld [vmem:[%s17 + $0x400] sm:$0xff]
      %v5452 = vld [vmem:[%s17 + $0x408] sm:$0xf]
      %v5453 = vld [vmem:[%s17 + $0x40c] sm:$0xff]
      %v5454 = vld [vmem:[%s17 + $0x414] sm:$0xff]
      %v5455 = vld [vmem:[%s17 + $0x41c] sm:$0xff]
      %v5456 = vld [vmem:[%s17 + $0x424] sm:$0xf]
      %v5457 = vld [vmem:[%s17 + $0x428] sm:$0xff]
      %v5458 = vld [vmem:[%s17 + $0x430] sm:$0xff]
      %v5459 = vld [vmem:[%s17 + $0x438] sm:$0xff]
      %v5460 = vld [vmem:[%s17 + $0x440] sm:$0xf]
      %v5461 = vld [vmem:[%s17 + $0x444] sm:$0xff]
      %v5462 = vld [vmem:[%s17 + $0x44c] sm:$0xff]
      %v5463 = vld [vmem:[%s17 + $0x454] sm:$0xff]
      %v5464 = vld [vmem:[%s17 + $0x45c] sm:$0xf]
      %v5465 = vld [vmem:[%s17 + $0x460] sm:$0xff]
      %v5466 = vld [vmem:[%s17 + $0x468] sm:$0xff]
      %v5467 = vld [vmem:[%s17 + $0x470] sm:$0xff]
      %v5468 = vld [vmem:[%s17 + $0x478] sm:$0xf]
      %v5469 = vld [vmem:[%s17 + $0x47c] sm:$0xff]
      %v5470 = vld [vmem:[%s17 + $0x484] sm:$0xff]
      %v5471 = vld [vmem:[%s17 + $0x48c] sm:$0xff]
      %v5472 = vld [vmem:[%s17 + $0x494] sm:$0xf]
      %v5473 = vld [vmem:[%s17 + $0x498] sm:$0xff]
      %v5474 = vld [vmem:[%s17 + $0x4a0] sm:$0xff]
      %v5475 = vld [vmem:[%s17 + $0x4a8] sm:$0xff]
      %v5476 = vld [vmem:[%s17 + $0x4b0] sm:$0xf]
      %v5477 = vld [vmem:[%s17 + $0x4b4] sm:$0xff]
      %v5478 = vld [vmem:[%s17 + $0x4bc] sm:$0xff]
      %v5479 = vld [vmem:[%s17 + $0x4c4] sm:$0xff]
      %v5480 = vld [vmem:[%s17 + $0x4cc] sm:$0xf]
      %v5481 = vld [vmem:[%s17 + $0x4d0] sm:$0xff]
      %v5482 = vld [vmem:[%s17 + $0x4d8] sm:$0xff]
      %v5483 = vld [vmem:[%s17 + $0x4e0] sm:$0xff]
      %v5484 = vld [vmem:[%s17 + $0x4e8] sm:$0xf]
      %v5485 = vld [vmem:[%s17 + $0x4ec] sm:$0xff]
      %v5486 = vld [vmem:[%s17 + $0x4f4] sm:$0xff]
      %v5487 = vld [vmem:[%s17 + $0x4fc] sm:$0xff]
      %v5488 = vld [vmem:[%s17 + $0x504] sm:$0xf]
      %v5489 = vld [vmem:[%s17 + $0x508] sm:$0xff]
      %v5490 = vld [vmem:[%s17 + $0x510] sm:$0xff]
      %v5491 = vld [vmem:[%s17 + $0x518] sm:$0xff]
      %v5492 = vld [vmem:[%s17 + $0x520] sm:$0xf]
      %v5493 = vld [vmem:[%s17 + $0x524] sm:$0xff]
      %v5494 = vld [vmem:[%s17 + $0x52c] sm:$0xff]
      %v5495 = vld [vmem:[%s17 + $0x534] sm:$0xff]
      %v5496 = vld [vmem:[%s17 + $0x53c] sm:$0xf]
      %v5497 = vld [vmem:[%s17 + $0x540] sm:$0xff]
      %v5498 = vld [vmem:[%s17 + $0x548] sm:$0xff]
      %v5499 = vld [vmem:[%s17 + $0x550] sm:$0xff]
      %v5500 = vld [vmem:[%s17 + $0x558] sm:$0xf]
      %v5501 = vld [vmem:[%s17 + $0x55c] sm:$0xff]
      %v5502 = vld [vmem:[%s17 + $0x564] sm:$0xff]
      %v5503 = vld [vmem:[%s17 + $0x56c] sm:$0xff]
      %v5504 = vld [vmem:[%s17 + $0x574] sm:$0xf]
      %v5505 = vld [vmem:[%s17 + $0x578] sm:$0xff]
      %v5506 = vld [vmem:[%s17 + $0x580] sm:$0xff]
      %v5507 = vld [vmem:[%s17 + $0x588] sm:$0xff]
      %v5508 = vld [vmem:[%s17 + $0x590] sm:$0xf]
      %v5509 = vld [vmem:[%s17 + $0x594] sm:$0xff]
      %v5510 = vld [vmem:[%s17 + $0x59c] sm:$0xff]
      %v5511 = vld [vmem:[%s17 + $0x5a4] sm:$0xff]
      %v5512 = vld [vmem:[%s17 + $0x5ac] sm:$0xf]
      %v5513 = vld [vmem:[%s17 + $0x5b0] sm:$0xff]
      %v5514 = vld [vmem:[%s17 + $0x5b8] sm:$0xff]
      %v5515 = vld [vmem:[%s17 + $0x5c0] sm:$0xff]
      %v5516 = vld [vmem:[%s17 + $0x5c8] sm:$0xf]
      %v5517 = vld [vmem:[%s17 + $0x5cc] sm:$0xff]
      %v5518 = vld [vmem:[%s17 + $0x5d4] sm:$0xff]
      %v5519 = vld [vmem:[%s17 + $0x5dc] sm:$0xff]
      %v5520 = vld [vmem:[%s17 + $0x5e4] sm:$0xf]
      %v5521 = vld [vmem:[%s17 + $0x5e8] sm:$0xff]
      %v5522 = vld [vmem:[%s17 + $0x5f0] sm:$0xff]
      %v5523 = vld [vmem:[%s17 + $0x5f8] sm:$0xff]
      %v5524 = vld [vmem:[%s17 + $0x600] sm:$0xf]
      %v5525 = vld [vmem:[%s17 + $0x604] sm:$0xff]
      %v5526 = vld [vmem:[%s17 + $0x60c] sm:$0xff]
      %v5527 = vld [vmem:[%s17 + $0x614] sm:$0xff]
      %v5528 = vld [vmem:[%s17 + $0x61c] sm:$0xf]
      %v5529 = vld [vmem:[%s17 + $0x620] sm:$0xff]
      %v5530 = vld [vmem:[%s17 + $0x628] sm:$0xff]
      %v5531 = vld [vmem:[%s17 + $0x630] sm:$0xff]
      %v5532 = vld [vmem:[%s17 + $0x638] sm:$0xf]
      %v5533 = vld [vmem:[%s17 + $0x63c] sm:$0xff]
      %v5534 = vld [vmem:[%s17 + $0x644] sm:$0xff]
      %v5535 = vld [vmem:[%s17 + $0x64c] sm:$0xff]
      %v5536 = vld [vmem:[%s17 + $0x654] sm:$0xf]
      %v5537 = vld [vmem:[%s17 + $0x658] sm:$0xff]
      %v5538 = vld [vmem:[%s17 + $0x660] sm:$0xff]
      %v5539 = vld [vmem:[%s17 + $0x668] sm:$0xff]
      %v5540 = vld [vmem:[%s17 + $0x670] sm:$0xf]
      %v5541 = vld [vmem:[%s17 + $0x674] sm:$0xff]
      %v5542 = vld [vmem:[%s17 + $0x67c] sm:$0xff]
      %v5543 = vld [vmem:[%s17 + $0x684] sm:$0xff]
      %v5544 = vld [vmem:[%s17 + $0x68c] sm:$0xf]
      %v5545 = vld [vmem:[%s17 + $0x690] sm:$0xff]
      %v5546 = vld [vmem:[%s17 + $0x698] sm:$0xff]
      %v5547 = vld [vmem:[%s17 + $0x6a0] sm:$0xff]
      %v5548 = vld [vmem:[%s17 + $0x6a8] sm:$0xf]
      %v5549 = vld [vmem:[%s17 + $0x6ac] sm:$0xff]
      %v5550 = vld [vmem:[%s17 + $0x6b4] sm:$0xff]
      %v5551 = vld [vmem:[%s17 + $0x6bc] sm:$0xff]
      %v5552 = vld [vmem:[%s17 + $0x6c4] sm:$0xf]
      %v5553 = vld [vmem:[%s17 + $0x6c8] sm:$0xff]
      %v5554 = vld [vmem:[%s17 + $0x6d0] sm:$0xff]
      %v5555 = vld [vmem:[%s17 + $0x6d8] sm:$0xff]
      %v5556 = vld [vmem:[%s17 + $0x6e0] sm:$0xf]
      %v5557 = vld [vmem:[%s17 + $0x6e4] sm:$0xff]
      %v5558 = vld [vmem:[%s17 + $0x6ec] sm:$0xff]
      %v5559 = vld [vmem:[%s17 + $0x6f4] sm:$0xff]
      %v5560 = vld [vmem:[%s17 + $0x6fc] sm:$0xf]
      %v5561 = vld [vmem:[%s18] sm:$0xff]
      %v5563 = vlaneseq
      %v5564 = vshrl.u32 %v5563, 7
      %v5565 = vsub.s32 0, %v5564
      %v5566 = vrot.slane %v5561, %v5565
      %v5567 = vlaneseq
      %v5568 = vshrl.u32 %v5567, 7
      %v5569 = vsub.s32 1, %v5568
      %v5570 = vrot.slane %v5561, %v5569
      %v5571 = vlaneseq
      %v5572 = vshrl.u32 %v5571, 7
      %v5573 = vsub.s32 2, %v5572
      %v5574 = vrot.slane %v5561, %v5573
      %v5575 = vlaneseq
      %v5576 = vshrl.u32 %v5575, 7
      %v5577 = vsub.s32 3, %v5576
      %v5578 = vrot.slane %v5561, %v5577
      %v5579 = vlaneseq
      %v5580 = vshrl.u32 %v5579, 7
      %v5581 = vsub.s32 4, %v5580
      %v5582 = vrot.slane %v5561, %v5581
      %v5583 = vlaneseq
      %v5584 = vshrl.u32 %v5583, 7
      %v5585 = vsub.s32 5, %v5584
      %v5586 = vrot.slane %v5561, %v5585
      %v5587 = vlaneseq
      %v5588 = vshrl.u32 %v5587, 7
      %v5589 = vsub.s32 6, %v5588
      %v5590 = vrot.slane %v5561, %v5589
      %v5854 = vunpack.c.l.b16 %v5305
      %v5855 = vunpack.c.h.b16 %v5305
      %v5856 = vunpack.c.l.b16 %v5306
      %v5857 = vunpack.c.h.b16 %v5306
      %v5858 = vunpack.c.l.b16 %v5307
      %v5859 = vunpack.c.h.b16 %v5307
      %v5860 = vunpack.c.l.b16 %v5308
      %v5861 = vunpack.c.l.b16 %v5309
      %v5862 = vunpack.c.h.b16 %v5309
      %v5863 = vunpack.c.l.b16 %v5310
      %v5864 = vunpack.c.h.b16 %v5310
      %v5865 = vunpack.c.l.b16 %v5311
      %v5866 = vunpack.c.h.b16 %v5311
      %v5867 = vunpack.c.l.b16 %v5312
      %v5868 = vunpack.c.l.b16 %v5313
      %v5869 = vunpack.c.h.b16 %v5313
      %v5870 = vunpack.c.l.b16 %v5314
      %v5871 = vunpack.c.h.b16 %v5314
      %v5872 = vunpack.c.l.b16 %v5315
      %v5873 = vunpack.c.h.b16 %v5315
      %v5874 = vunpack.c.l.b16 %v5316
      %v5875 = vunpack.c.l.b16 %v5317
      %v5876 = vunpack.c.h.b16 %v5317
      %v5877 = vunpack.c.l.b16 %v5318
      %v5878 = vunpack.c.h.b16 %v5318
      %v5879 = vunpack.c.l.b16 %v5319
      %v5880 = vunpack.c.h.b16 %v5319
      %v5881 = vunpack.c.l.b16 %v5320
      %v5882 = vunpack.c.l.b16 %v5321
      %v5883 = vunpack.c.h.b16 %v5321
      %v5884 = vunpack.c.l.b16 %v5322
      %v5885 = vunpack.c.h.b16 %v5322
      %v5886 = vunpack.c.l.b16 %v5323
      %v5887 = vunpack.c.h.b16 %v5323
      %v5888 = vunpack.c.l.b16 %v5324
      %v5889 = vunpack.c.l.b16 %v5325
      %v5890 = vunpack.c.h.b16 %v5325
      %v5891 = vunpack.c.l.b16 %v5326
      %v5892 = vunpack.c.h.b16 %v5326
      %v5893 = vunpack.c.l.b16 %v5327
      %v5894 = vunpack.c.h.b16 %v5327
      %v5895 = vunpack.c.l.b16 %v5328
      %v5896 = vunpack.c.l.b16 %v5329
      %v5897 = vunpack.c.h.b16 %v5329
      %v5898 = vunpack.c.l.b16 %v5330
      %v5899 = vunpack.c.h.b16 %v5330
      %v5900 = vunpack.c.l.b16 %v5331
      %v5901 = vunpack.c.h.b16 %v5331
      %v5902 = vunpack.c.l.b16 %v5332
      %v5903 = vunpack.c.l.b16 %v5333
      %v5904 = vunpack.c.h.b16 %v5333
      %v5905 = vunpack.c.l.b16 %v5334
      %v5906 = vunpack.c.h.b16 %v5334
      %v5907 = vunpack.c.l.b16 %v5335
      %v5908 = vunpack.c.h.b16 %v5335
      %v5909 = vunpack.c.l.b16 %v5336
      %v5910 = vunpack.c.l.b16 %v5337
      %v5911 = vunpack.c.h.b16 %v5337
      %v5912 = vunpack.c.l.b16 %v5338
      %v5913 = vunpack.c.h.b16 %v5338
      %v5914 = vunpack.c.l.b16 %v5339
      %v5915 = vunpack.c.h.b16 %v5339
      %v5916 = vunpack.c.l.b16 %v5340
      %v5917 = vunpack.c.l.b16 %v5341
      %v5918 = vunpack.c.h.b16 %v5341
      %v5919 = vunpack.c.l.b16 %v5342
      %v5920 = vunpack.c.h.b16 %v5342
      %v5921 = vunpack.c.l.b16 %v5343
      %v5922 = vunpack.c.h.b16 %v5343
      %v5923 = vunpack.c.l.b16 %v5344
      %v5924 = vunpack.c.l.b16 %v5345
      %v5925 = vunpack.c.h.b16 %v5345
      %v5926 = vunpack.c.l.b16 %v5346
      %v5927 = vunpack.c.h.b16 %v5346
      %v5928 = vunpack.c.l.b16 %v5347
      %v5929 = vunpack.c.h.b16 %v5347
      %v5930 = vunpack.c.l.b16 %v5348
      %v5931 = vunpack.c.l.b16 %v5349
      %v5932 = vunpack.c.h.b16 %v5349
      %v5933 = vunpack.c.l.b16 %v5350
      %v5934 = vunpack.c.h.b16 %v5350
      %v5935 = vunpack.c.l.b16 %v5351
      %v5936 = vunpack.c.h.b16 %v5351
      %v5937 = vunpack.c.l.b16 %v5352
      %v5938 = vunpack.c.l.b16 %v5353
      %v5939 = vunpack.c.h.b16 %v5353
      %v5940 = vunpack.c.l.b16 %v5354
      %v5941 = vunpack.c.h.b16 %v5354
      %v5942 = vunpack.c.l.b16 %v5355
      %v5943 = vunpack.c.h.b16 %v5355
      %v5944 = vunpack.c.l.b16 %v5356
      %v5945 = vunpack.c.l.b16 %v5357
      %v5946 = vunpack.c.h.b16 %v5357
      %v5947 = vunpack.c.l.b16 %v5358
      %v5948 = vunpack.c.h.b16 %v5358
      %v5949 = vunpack.c.l.b16 %v5359
      %v5950 = vunpack.c.h.b16 %v5359
      %v5951 = vunpack.c.l.b16 %v5360
      %v5952 = vunpack.c.l.b16 %v5361
      %v5953 = vunpack.c.h.b16 %v5361
      %v5954 = vunpack.c.l.b16 %v5362
      %v5955 = vunpack.c.h.b16 %v5362
      %v5956 = vunpack.c.l.b16 %v5363
      %v5957 = vunpack.c.h.b16 %v5363
      %v5958 = vunpack.c.l.b16 %v5364
      %v5959 = vunpack.c.l.b16 %v5365
      %v5960 = vunpack.c.h.b16 %v5365
      %v5961 = vunpack.c.l.b16 %v5366
      %v5962 = vunpack.c.h.b16 %v5366
      %v5963 = vunpack.c.l.b16 %v5367
      %v5964 = vunpack.c.h.b16 %v5367
      %v5965 = vunpack.c.l.b16 %v5368
      %v5966 = vunpack.c.l.b16 %v5369
      %v5967 = vunpack.c.h.b16 %v5369
      %v5968 = vunpack.c.l.b16 %v5370
      %v5969 = vunpack.c.h.b16 %v5370
      %v5970 = vunpack.c.l.b16 %v5371
      %v5971 = vunpack.c.h.b16 %v5371
      %v5972 = vunpack.c.l.b16 %v5372
      %v5973 = vunpack.c.l.b16 %v5373
      %v5974 = vunpack.c.h.b16 %v5373
      %v5975 = vunpack.c.l.b16 %v5374
      %v5976 = vunpack.c.h.b16 %v5374
      %v5977 = vunpack.c.l.b16 %v5375
      %v5978 = vunpack.c.h.b16 %v5375
      %v5979 = vunpack.c.l.b16 %v5376
      %v5980 = vunpack.c.l.b16 %v5377
      %v5981 = vunpack.c.h.b16 %v5377
      %v5982 = vunpack.c.l.b16 %v5378
      %v5983 = vunpack.c.h.b16 %v5378
      %v5984 = vunpack.c.l.b16 %v5379
      %v5985 = vunpack.c.h.b16 %v5379
      %v5986 = vunpack.c.l.b16 %v5380
      %v5987 = vunpack.c.l.b16 %v5381
      %v5988 = vunpack.c.h.b16 %v5381
      %v5989 = vunpack.c.l.b16 %v5382
      %v5990 = vunpack.c.h.b16 %v5382
      %v5991 = vunpack.c.l.b16 %v5383
      %v5992 = vunpack.c.h.b16 %v5383
      %v5993 = vunpack.c.l.b16 %v5384
      %v5994 = vunpack.c.l.b16 %v5385
      %v5995 = vunpack.c.h.b16 %v5385
      %v5996 = vunpack.c.l.b16 %v5386
      %v5997 = vunpack.c.h.b16 %v5386
      %v5998 = vunpack.c.l.b16 %v5387
      %v5999 = vunpack.c.h.b16 %v5387
      %v6000 = vunpack.c.l.b16 %v5388
      %v6001 = vunpack.c.l.b16 %v5389
      %v6002 = vunpack.c.h.b16 %v5389
      %v6003 = vunpack.c.l.b16 %v5390
      %v6004 = vunpack.c.h.b16 %v5390
      %v6005 = vunpack.c.l.b16 %v5391
      %v6006 = vunpack.c.h.b16 %v5391
      %v6007 = vunpack.c.l.b16 %v5392
      %v6008 = vunpack.c.l.b16 %v5393
      %v6009 = vunpack.c.h.b16 %v5393
      %v6010 = vunpack.c.l.b16 %v5394
      %v6011 = vunpack.c.h.b16 %v5394
      %v6012 = vunpack.c.l.b16 %v5395
      %v6013 = vunpack.c.h.b16 %v5395
      %v6014 = vunpack.c.l.b16 %v5396
      %v6015 = vunpack.c.l.b16 %v5397
      %v6016 = vunpack.c.h.b16 %v5397
      %v6017 = vunpack.c.l.b16 %v5398
      %v6018 = vunpack.c.h.b16 %v5398
      %v6019 = vunpack.c.l.b16 %v5399
      %v6020 = vunpack.c.h.b16 %v5399
      %v6021 = vunpack.c.l.b16 %v5400
      %v6022 = vunpack.c.l.b16 %v5401
      %v6023 = vunpack.c.h.b16 %v5401
      %v6024 = vunpack.c.l.b16 %v5402
      %v6025 = vunpack.c.h.b16 %v5402
      %v6026 = vunpack.c.l.b16 %v5403
      %v6027 = vunpack.c.h.b16 %v5403
      %v6028 = vunpack.c.l.b16 %v5404
      %v6029 = vunpack.c.l.b16 %v5405
      %v6030 = vunpack.c.h.b16 %v5405
      %v6031 = vunpack.c.l.b16 %v5406
      %v6032 = vunpack.c.h.b16 %v5406
      %v6033 = vunpack.c.l.b16 %v5407
      %v6034 = vunpack.c.h.b16 %v5407
      %v6035 = vunpack.c.l.b16 %v5408
      %v6036 = vunpack.c.l.b16 %v5409
      %v6037 = vunpack.c.h.b16 %v5409
      %v6038 = vunpack.c.l.b16 %v5410
      %v6039 = vunpack.c.h.b16 %v5410
      %v6040 = vunpack.c.l.b16 %v5411
      %v6041 = vunpack.c.h.b16 %v5411
      %v6042 = vunpack.c.l.b16 %v5412
      %v6043 = vunpack.c.l.b16 %v5413
      %v6044 = vunpack.c.h.b16 %v5413
      %v6045 = vunpack.c.l.b16 %v5414
      %v6046 = vunpack.c.h.b16 %v5414
      %v6047 = vunpack.c.l.b16 %v5415
      %v6048 = vunpack.c.h.b16 %v5415
      %v6049 = vunpack.c.l.b16 %v5416
      %v6050 = vunpack.c.l.b16 %v5417
      %v6051 = vunpack.c.h.b16 %v5417
      %v6052 = vunpack.c.l.b16 %v5418
      %v6053 = vunpack.c.h.b16 %v5418
      %v6054 = vunpack.c.l.b16 %v5419
      %v6055 = vunpack.c.h.b16 %v5419
      %v6056 = vunpack.c.l.b16 %v5420
      %v6057 = vunpack.c.l.b16 %v5421
      %v6058 = vunpack.c.h.b16 %v5421
      %v6059 = vunpack.c.l.b16 %v5422
      %v6060 = vunpack.c.h.b16 %v5422
      %v6061 = vunpack.c.l.b16 %v5423
      %v6062 = vunpack.c.h.b16 %v5423
      %v6063 = vunpack.c.l.b16 %v5424
      %v6064 = vunpack.c.l.b16 %v5425
      %v6065 = vunpack.c.h.b16 %v5425
      %v6066 = vunpack.c.l.b16 %v5426
      %v6067 = vunpack.c.h.b16 %v5426
      %v6068 = vunpack.c.l.b16 %v5427
      %v6069 = vunpack.c.h.b16 %v5427
      %v6070 = vunpack.c.l.b16 %v5428
      %v6071 = vunpack.c.l.b16 %v5429
      %v6072 = vunpack.c.h.b16 %v5429
      %v6073 = vunpack.c.l.b16 %v5430
      %v6074 = vunpack.c.h.b16 %v5430
      %v6075 = vunpack.c.l.b16 %v5431
      %v6076 = vunpack.c.h.b16 %v5431
      %v6077 = vunpack.c.l.b16 %v5432
      %v6078 = vunpack.c.l.b16 %v5433
      %v6079 = vunpack.c.h.b16 %v5433
      %v6080 = vunpack.c.l.b16 %v5434
      %v6081 = vunpack.c.h.b16 %v5434
      %v6082 = vunpack.c.l.b16 %v5435
      %v6083 = vunpack.c.h.b16 %v5435
      %v6084 = vunpack.c.l.b16 %v5436
      %v6085 = vunpack.c.l.b16 %v5437
      %v6086 = vunpack.c.h.b16 %v5437
      %v6087 = vunpack.c.l.b16 %v5438
      %v6088 = vunpack.c.h.b16 %v5438
      %v6089 = vunpack.c.l.b16 %v5439
      %v6090 = vunpack.c.h.b16 %v5439
      %v6091 = vunpack.c.l.b16 %v5440
      %v6092 = vunpack.c.l.b16 %v5441
      %v6093 = vunpack.c.h.b16 %v5441
      %v6094 = vunpack.c.l.b16 %v5442
      %v6095 = vunpack.c.h.b16 %v5442
      %v6096 = vunpack.c.l.b16 %v5443
      %v6097 = vunpack.c.h.b16 %v5443
      %v6098 = vunpack.c.l.b16 %v5444
      %v6099 = vunpack.c.l.b16 %v5445
      %v6100 = vunpack.c.h.b16 %v5445
      %v6101 = vunpack.c.l.b16 %v5446
      %v6102 = vunpack.c.h.b16 %v5446
      %v6103 = vunpack.c.l.b16 %v5447
      %v6104 = vunpack.c.h.b16 %v5447
      %v6105 = vunpack.c.l.b16 %v5448
      %v6106 = vunpack.c.l.b16 %v5449
      %v6107 = vunpack.c.h.b16 %v5449
      %v6108 = vunpack.c.l.b16 %v5450
      %v6109 = vunpack.c.h.b16 %v5450
      %v6110 = vunpack.c.l.b16 %v5451
      %v6111 = vunpack.c.h.b16 %v5451
      %v6112 = vunpack.c.l.b16 %v5452
      %v6113 = vunpack.c.l.b16 %v5453
      %v6114 = vunpack.c.h.b16 %v5453
      %v6115 = vunpack.c.l.b16 %v5454
      %v6116 = vunpack.c.h.b16 %v5454
      %v6117 = vunpack.c.l.b16 %v5455
      %v6118 = vunpack.c.h.b16 %v5455
      %v6119 = vunpack.c.l.b16 %v5456
      %v6120 = vunpack.c.l.b16 %v5457
      %v6121 = vunpack.c.h.b16 %v5457
      %v6122 = vunpack.c.l.b16 %v5458
      %v6123 = vunpack.c.h.b16 %v5458
      %v6124 = vunpack.c.l.b16 %v5459
      %v6125 = vunpack.c.h.b16 %v5459
      %v6126 = vunpack.c.l.b16 %v5460
      %v6127 = vunpack.c.l.b16 %v5461
      %v6128 = vunpack.c.h.b16 %v5461
      %v6129 = vunpack.c.l.b16 %v5462
      %v6130 = vunpack.c.h.b16 %v5462
      %v6131 = vunpack.c.l.b16 %v5463
      %v6132 = vunpack.c.h.b16 %v5463
      %v6133 = vunpack.c.l.b16 %v5464
      %v6134 = vunpack.c.l.b16 %v5465
      %v6135 = vunpack.c.h.b16 %v5465
      %v6136 = vunpack.c.l.b16 %v5466
      %v6137 = vunpack.c.h.b16 %v5466
      %v6138 = vunpack.c.l.b16 %v5467
      %v6139 = vunpack.c.h.b16 %v5467
      %v6140 = vunpack.c.l.b16 %v5468
      %v6141 = vunpack.c.l.b16 %v5469
      %v6142 = vunpack.c.h.b16 %v5469
      %v6143 = vunpack.c.l.b16 %v5470
      %v6144 = vunpack.c.h.b16 %v5470
      %v6145 = vunpack.c.l.b16 %v5471
      %v6146 = vunpack.c.h.b16 %v5471
      %v6147 = vunpack.c.l.b16 %v5472
      %v6148 = vunpack.c.l.b16 %v5473
      %v6149 = vunpack.c.h.b16 %v5473
      %v6150 = vunpack.c.l.b16 %v5474
      %v6151 = vunpack.c.h.b16 %v5474
      %v6152 = vunpack.c.l.b16 %v5475
      %v6153 = vunpack.c.h.b16 %v5475
      %v6154 = vunpack.c.l.b16 %v5476
      %v6155 = vunpack.c.l.b16 %v5477
      %v6156 = vunpack.c.h.b16 %v5477
      %v6157 = vunpack.c.l.b16 %v5478
      %v6158 = vunpack.c.h.b16 %v5478
      %v6159 = vunpack.c.l.b16 %v5479
      %v6160 = vunpack.c.h.b16 %v5479
      %v6161 = vunpack.c.l.b16 %v5480
      %v6162 = vunpack.c.l.b16 %v5481
      %v6163 = vunpack.c.h.b16 %v5481
      %v6164 = vunpack.c.l.b16 %v5482
      %v6165 = vunpack.c.h.b16 %v5482
      %v6166 = vunpack.c.l.b16 %v5483
      %v6167 = vunpack.c.h.b16 %v5483
      %v6168 = vunpack.c.l.b16 %v5484
      %v6169 = vunpack.c.l.b16 %v5485
      %v6170 = vunpack.c.h.b16 %v5485
      %v6171 = vunpack.c.l.b16 %v5486
      %v6172 = vunpack.c.h.b16 %v5486
      %v6173 = vunpack.c.l.b16 %v5487
      %v6174 = vunpack.c.h.b16 %v5487
      %v6175 = vunpack.c.l.b16 %v5488
      %v6176 = vunpack.c.l.b16 %v5489
      %v6177 = vunpack.c.h.b16 %v5489
      %v6178 = vunpack.c.l.b16 %v5490
      %v6179 = vunpack.c.h.b16 %v5490
      %v6180 = vunpack.c.l.b16 %v5491
      %v6181 = vunpack.c.h.b16 %v5491
      %v6182 = vunpack.c.l.b16 %v5492
      %v6183 = vunpack.c.l.b16 %v5493
      %v6184 = vunpack.c.h.b16 %v5493
      %v6185 = vunpack.c.l.b16 %v5494
      %v6186 = vunpack.c.h.b16 %v5494
      %v6187 = vunpack.c.l.b16 %v5495
      %v6188 = vunpack.c.h.b16 %v5495
      %v6189 = vunpack.c.l.b16 %v5496
      %v6190 = vunpack.c.l.b16 %v5497
      %v6191 = vunpack.c.h.b16 %v5497
      %v6192 = vunpack.c.l.b16 %v5498
      %v6193 = vunpack.c.h.b16 %v5498
      %v6194 = vunpack.c.l.b16 %v5499
      %v6195 = vunpack.c.h.b16 %v5499
      %v6196 = vunpack.c.l.b16 %v5500
      %v6197 = vunpack.c.l.b16 %v5501
      %v6198 = vunpack.c.h.b16 %v5501
      %v6199 = vunpack.c.l.b16 %v5502
      %v6200 = vunpack.c.h.b16 %v5502
      %v6201 = vunpack.c.l.b16 %v5503
      %v6202 = vunpack.c.h.b16 %v5503
      %v6203 = vunpack.c.l.b16 %v5504
      %v6204 = vunpack.c.l.b16 %v5505
      %v6205 = vunpack.c.h.b16 %v5505
      %v6206 = vunpack.c.l.b16 %v5506
      %v6207 = vunpack.c.h.b16 %v5506
      %v6208 = vunpack.c.l.b16 %v5507
      %v6209 = vunpack.c.h.b16 %v5507
      %v6210 = vunpack.c.l.b16 %v5508
      %v6211 = vunpack.c.l.b16 %v5509
      %v6212 = vunpack.c.h.b16 %v5509
      %v6213 = vunpack.c.l.b16 %v5510
      %v6214 = vunpack.c.h.b16 %v5510
      %v6215 = vunpack.c.l.b16 %v5511
      %v6216 = vunpack.c.h.b16 %v5511
      %v6217 = vunpack.c.l.b16 %v5512
      %v6218 = vunpack.c.l.b16 %v5513
      %v6219 = vunpack.c.h.b16 %v5513
      %v6220 = vunpack.c.l.b16 %v5514
      %v6221 = vunpack.c.h.b16 %v5514
      %v6222 = vunpack.c.l.b16 %v5515
      %v6223 = vunpack.c.h.b16 %v5515
      %v6224 = vunpack.c.l.b16 %v5516
      %v6225 = vunpack.c.l.b16 %v5517
      %v6226 = vunpack.c.h.b16 %v5517
      %v6227 = vunpack.c.l.b16 %v5518
      %v6228 = vunpack.c.h.b16 %v5518
      %v6229 = vunpack.c.l.b16 %v5519
      %v6230 = vunpack.c.h.b16 %v5519
      %v6231 = vunpack.c.l.b16 %v5520
      %v6232 = vunpack.c.l.b16 %v5521
      %v6233 = vunpack.c.h.b16 %v5521
      %v6234 = vunpack.c.l.b16 %v5522
      %v6235 = vunpack.c.h.b16 %v5522
      %v6236 = vunpack.c.l.b16 %v5523
      %v6237 = vunpack.c.h.b16 %v5523
      %v6238 = vunpack.c.l.b16 %v5524
      %v6239 = vunpack.c.l.b16 %v5525
      %v6240 = vunpack.c.h.b16 %v5525
      %v6241 = vunpack.c.l.b16 %v5526
      %v6242 = vunpack.c.h.b16 %v5526
      %v6243 = vunpack.c.l.b16 %v5527
      %v6244 = vunpack.c.h.b16 %v5527
      %v6245 = vunpack.c.l.b16 %v5528
      %v6246 = vunpack.c.l.b16 %v5529
      %v6247 = vunpack.c.h.b16 %v5529
      %v6248 = vunpack.c.l.b16 %v5530
      %v6249 = vunpack.c.h.b16 %v5530
      %v6250 = vunpack.c.l.b16 %v5531
      %v6251 = vunpack.c.h.b16 %v5531
      %v6252 = vunpack.c.l.b16 %v5532
      %v6253 = vunpack.c.l.b16 %v5533
      %v6254 = vunpack.c.h.b16 %v5533
      %v6255 = vunpack.c.l.b16 %v5534
      %v6256 = vunpack.c.h.b16 %v5534
      %v6257 = vunpack.c.l.b16 %v5535
      %v6258 = vunpack.c.h.b16 %v5535
      %v6259 = vunpack.c.l.b16 %v5536
      %v6260 = vunpack.c.l.b16 %v5537
      %v6261 = vunpack.c.h.b16 %v5537
      %v6262 = vunpack.c.l.b16 %v5538
      %v6263 = vunpack.c.h.b16 %v5538
      %v6264 = vunpack.c.l.b16 %v5539
      %v6265 = vunpack.c.h.b16 %v5539
      %v6266 = vunpack.c.l.b16 %v5540
      %v6267 = vunpack.c.l.b16 %v5541
      %v6268 = vunpack.c.h.b16 %v5541
      %v6269 = vunpack.c.l.b16 %v5542
      %v6270 = vunpack.c.h.b16 %v5542
      %v6271 = vunpack.c.l.b16 %v5543
      %v6272 = vunpack.c.h.b16 %v5543
      %v6273 = vunpack.c.l.b16 %v5544
      %v6274 = vunpack.c.l.b16 %v5545
      %v6275 = vunpack.c.h.b16 %v5545
      %v6276 = vunpack.c.l.b16 %v5546
      %v6277 = vunpack.c.h.b16 %v5546
      %v6278 = vunpack.c.l.b16 %v5547
      %v6279 = vunpack.c.h.b16 %v5547
      %v6280 = vunpack.c.l.b16 %v5548
      %v6281 = vunpack.c.l.b16 %v5549
      %v6282 = vunpack.c.h.b16 %v5549
      %v6283 = vunpack.c.l.b16 %v5550
      %v6284 = vunpack.c.h.b16 %v5550
      %v6285 = vunpack.c.l.b16 %v5551
      %v6286 = vunpack.c.h.b16 %v5551
      %v6287 = vunpack.c.l.b16 %v5552
      %v6288 = vunpack.c.l.b16 %v5553
      %v6289 = vunpack.c.h.b16 %v5553
      %v6290 = vunpack.c.l.b16 %v5554
      %v6291 = vunpack.c.h.b16 %v5554
      %v6292 = vunpack.c.l.b16 %v5555
      %v6293 = vunpack.c.h.b16 %v5555
      %v6294 = vunpack.c.l.b16 %v5556
      %v6295 = vunpack.c.l.b16 %v5557
      %v6296 = vunpack.c.h.b16 %v5557
      %v6297 = vunpack.c.l.b16 %v5558
      %v6298 = vunpack.c.h.b16 %v5558
      %v6299 = vunpack.c.l.b16 %v5559
      %v6300 = vunpack.c.h.b16 %v5559
      %v6301 = vunpack.c.l.b16 %v5560
      %v6302 = vpack.c.b16 %v5861, %v5854
      %v6303 = vpack.c.b16 %v5862, %v5855
      %v6304 = vpack.c.b16 %v5863, %v5856
      %v6305 = vpack.c.b16 %v5864, %v5857
      %v6306 = vpack.c.b16 %v5865, %v5858
      %v6307 = vpack.c.b16 %v5866, %v5859
      %v6308 = vpack.c.b16 %v5867, %v5860
      %v6309 = vpack.c.b16 %v5875, %v5868
      %v6310 = vpack.c.b16 %v5876, %v5869
      %v6311 = vpack.c.b16 %v5877, %v5870
      %v6312 = vpack.c.b16 %v5878, %v5871
      %v6313 = vpack.c.b16 %v5879, %v5872
      %v6314 = vpack.c.b16 %v5880, %v5873
      %v6315 = vpack.c.b16 %v5881, %v5874
      %v6316 = vpack.c.b16 %v5889, %v5882
      %v6317 = vpack.c.b16 %v5890, %v5883
      %v6318 = vpack.c.b16 %v5891, %v5884
      %v6319 = vpack.c.b16 %v5892, %v5885
      %v6320 = vpack.c.b16 %v5893, %v5886
      %v6321 = vpack.c.b16 %v5894, %v5887
      %v6322 = vpack.c.b16 %v5895, %v5888
      %v6323 = vpack.c.b16 %v5903, %v5896
      %v6324 = vpack.c.b16 %v5904, %v5897
      %v6325 = vpack.c.b16 %v5905, %v5898
      %v6326 = vpack.c.b16 %v5906, %v5899
      %v6327 = vpack.c.b16 %v5907, %v5900
      %v6328 = vpack.c.b16 %v5908, %v5901
      %v6329 = vpack.c.b16 %v5909, %v5902
      %v6330 = vpack.c.b16 %v5917, %v5910
      %v6331 = vpack.c.b16 %v5918, %v5911
      %v6332 = vpack.c.b16 %v5919, %v5912
      %v6333 = vpack.c.b16 %v5920, %v5913
      %v6334 = vpack.c.b16 %v5921, %v5914
      %v6335 = vpack.c.b16 %v5922, %v5915
      %v6336 = vpack.c.b16 %v5923, %v5916
      %v6337 = vpack.c.b16 %v5931, %v5924
      %v6338 = vpack.c.b16 %v5932, %v5925
      %v6339 = vpack.c.b16 %v5933, %v5926
      %v6340 = vpack.c.b16 %v5934, %v5927
      %v6341 = vpack.c.b16 %v5935, %v5928
      %v6342 = vpack.c.b16 %v5936, %v5929
      %v6343 = vpack.c.b16 %v5937, %v5930
      %v6344 = vpack.c.b16 %v5945, %v5938
      %v6345 = vpack.c.b16 %v5946, %v5939
      %v6346 = vpack.c.b16 %v5947, %v5940
      %v6347 = vpack.c.b16 %v5948, %v5941
      %v6348 = vpack.c.b16 %v5949, %v5942
      %v6349 = vpack.c.b16 %v5950, %v5943
      %v6350 = vpack.c.b16 %v5951, %v5944
      %v6351 = vpack.c.b16 %v5959, %v5952
      %v6352 = vpack.c.b16 %v5960, %v5953
      %v6353 = vpack.c.b16 %v5961, %v5954
      %v6354 = vpack.c.b16 %v5962, %v5955
      %v6355 = vpack.c.b16 %v5963, %v5956
      %v6356 = vpack.c.b16 %v5964, %v5957
      %v6357 = vpack.c.b16 %v5965, %v5958
      %v6358 = vpack.c.b16 %v5973, %v5966
      %v6359 = vpack.c.b16 %v5974, %v5967
      %v6360 = vpack.c.b16 %v5975, %v5968
      %v6361 = vpack.c.b16 %v5976, %v5969
      %v6362 = vpack.c.b16 %v5977, %v5970
      %v6363 = vpack.c.b16 %v5978, %v5971
      %v6364 = vpack.c.b16 %v5979, %v5972
      %v6365 = vpack.c.b16 %v5987, %v5980
      %v6366 = vpack.c.b16 %v5988, %v5981
      %v6367 = vpack.c.b16 %v5989, %v5982
      %v6368 = vpack.c.b16 %v5990, %v5983
      %v6369 = vpack.c.b16 %v5991, %v5984
      %v6370 = vpack.c.b16 %v5992, %v5985
      %v6371 = vpack.c.b16 %v5993, %v5986
      %v6372 = vpack.c.b16 %v6001, %v5994
      %v6373 = vpack.c.b16 %v6002, %v5995
      %v6374 = vpack.c.b16 %v6003, %v5996
      %v6375 = vpack.c.b16 %v6004, %v5997
      %v6376 = vpack.c.b16 %v6005, %v5998
      %v6377 = vpack.c.b16 %v6006, %v5999
      %v6378 = vpack.c.b16 %v6007, %v6000
      %v6379 = vpack.c.b16 %v6015, %v6008
      %v6380 = vpack.c.b16 %v6016, %v6009
      %v6381 = vpack.c.b16 %v6017, %v6010
      %v6382 = vpack.c.b16 %v6018, %v6011
      %v6383 = vpack.c.b16 %v6019, %v6012
      %v6384 = vpack.c.b16 %v6020, %v6013
      %v6385 = vpack.c.b16 %v6021, %v6014
      %v6386 = vpack.c.b16 %v6029, %v6022
      %v6387 = vpack.c.b16 %v6030, %v6023
      %v6388 = vpack.c.b16 %v6031, %v6024
      %v6389 = vpack.c.b16 %v6032, %v6025
      %v6390 = vpack.c.b16 %v6033, %v6026
      %v6391 = vpack.c.b16 %v6034, %v6027
      %v6392 = vpack.c.b16 %v6035, %v6028
      %v6393 = vpack.c.b16 %v6043, %v6036
      %v6394 = vpack.c.b16 %v6044, %v6037
      %v6395 = vpack.c.b16 %v6045, %v6038
      %v6396 = vpack.c.b16 %v6046, %v6039
      %v6397 = vpack.c.b16 %v6047, %v6040
      %v6398 = vpack.c.b16 %v6048, %v6041
      %v6399 = vpack.c.b16 %v6049, %v6042
      %v6400 = vpack.c.b16 %v6057, %v6050
      %v6401 = vpack.c.b16 %v6058, %v6051
      %v6402 = vpack.c.b16 %v6059, %v6052
      %v6403 = vpack.c.b16 %v6060, %v6053
      %v6404 = vpack.c.b16 %v6061, %v6054
      %v6405 = vpack.c.b16 %v6062, %v6055
      %v6406 = vpack.c.b16 %v6063, %v6056
      %v6407 = vpack.c.b16 %v6071, %v6064
      %v6408 = vpack.c.b16 %v6072, %v6065
      %v6409 = vpack.c.b16 %v6073, %v6066
      %v6410 = vpack.c.b16 %v6074, %v6067
      %v6411 = vpack.c.b16 %v6075, %v6068
      %v6412 = vpack.c.b16 %v6076, %v6069
      %v6413 = vpack.c.b16 %v6077, %v6070
      %v6414 = vpack.c.b16 %v6085, %v6078
      %v6415 = vpack.c.b16 %v6086, %v6079
      %v6416 = vpack.c.b16 %v6087, %v6080
      %v6417 = vpack.c.b16 %v6088, %v6081
      %v6418 = vpack.c.b16 %v6089, %v6082
      %v6419 = vpack.c.b16 %v6090, %v6083
      %v6420 = vpack.c.b16 %v6091, %v6084
      %v6421 = vpack.c.b16 %v6099, %v6092
      %v6422 = vpack.c.b16 %v6100, %v6093
      %v6423 = vpack.c.b16 %v6101, %v6094
      %v6424 = vpack.c.b16 %v6102, %v6095
      %v6425 = vpack.c.b16 %v6103, %v6096
      %v6426 = vpack.c.b16 %v6104, %v6097
      %v6427 = vpack.c.b16 %v6105, %v6098
      %v6428 = vpack.c.b16 %v6113, %v6106
      %v6429 = vpack.c.b16 %v6114, %v6107
      %v6430 = vpack.c.b16 %v6115, %v6108
      %v6431 = vpack.c.b16 %v6116, %v6109
      %v6432 = vpack.c.b16 %v6117, %v6110
      %v6433 = vpack.c.b16 %v6118, %v6111
      %v6434 = vpack.c.b16 %v6119, %v6112
      %v6435 = vpack.c.b16 %v6127, %v6120
      %v6436 = vpack.c.b16 %v6128, %v6121
      %v6437 = vpack.c.b16 %v6129, %v6122
      %v6438 = vpack.c.b16 %v6130, %v6123
      %v6439 = vpack.c.b16 %v6131, %v6124
      %v6440 = vpack.c.b16 %v6132, %v6125
      %v6441 = vpack.c.b16 %v6133, %v6126
      %v6442 = vpack.c.b16 %v6141, %v6134
      %v6443 = vpack.c.b16 %v6142, %v6135
      %v6444 = vpack.c.b16 %v6143, %v6136
      %v6445 = vpack.c.b16 %v6144, %v6137
      %v6446 = vpack.c.b16 %v6145, %v6138
      %v6447 = vpack.c.b16 %v6146, %v6139
      %v6448 = vpack.c.b16 %v6147, %v6140
      %v6449 = vpack.c.b16 %v6155, %v6148
      %v6450 = vpack.c.b16 %v6156, %v6149
      %v6451 = vpack.c.b16 %v6157, %v6150
      %v6452 = vpack.c.b16 %v6158, %v6151
      %v6453 = vpack.c.b16 %v6159, %v6152
      %v6454 = vpack.c.b16 %v6160, %v6153
      %v6455 = vpack.c.b16 %v6161, %v6154
      %v6456 = vpack.c.b16 %v6169, %v6162
      %v6457 = vpack.c.b16 %v6170, %v6163
      %v6458 = vpack.c.b16 %v6171, %v6164
      %v6459 = vpack.c.b16 %v6172, %v6165
      %v6460 = vpack.c.b16 %v6173, %v6166
      %v6461 = vpack.c.b16 %v6174, %v6167
      %v6462 = vpack.c.b16 %v6175, %v6168
      %v6463 = vpack.c.b16 %v6183, %v6176
      %v6464 = vpack.c.b16 %v6184, %v6177
      %v6465 = vpack.c.b16 %v6185, %v6178
      %v6466 = vpack.c.b16 %v6186, %v6179
      %v6467 = vpack.c.b16 %v6187, %v6180
      %v6468 = vpack.c.b16 %v6188, %v6181
      %v6469 = vpack.c.b16 %v6189, %v6182
      %v6470 = vpack.c.b16 %v6197, %v6190
      %v6471 = vpack.c.b16 %v6198, %v6191
      %v6472 = vpack.c.b16 %v6199, %v6192
      %v6473 = vpack.c.b16 %v6200, %v6193
      %v6474 = vpack.c.b16 %v6201, %v6194
      %v6475 = vpack.c.b16 %v6202, %v6195
      %v6476 = vpack.c.b16 %v6203, %v6196
      %v6477 = vpack.c.b16 %v6211, %v6204
      %v6478 = vpack.c.b16 %v6212, %v6205
      %v6479 = vpack.c.b16 %v6213, %v6206
      %v6480 = vpack.c.b16 %v6214, %v6207
      %v6481 = vpack.c.b16 %v6215, %v6208
      %v6482 = vpack.c.b16 %v6216, %v6209
      %v6483 = vpack.c.b16 %v6217, %v6210
      %v6484 = vpack.c.b16 %v6225, %v6218
      %v6485 = vpack.c.b16 %v6226, %v6219
      %v6486 = vpack.c.b16 %v6227, %v6220
      %v6487 = vpack.c.b16 %v6228, %v6221
      %v6488 = vpack.c.b16 %v6229, %v6222
      %v6489 = vpack.c.b16 %v6230, %v6223
      %v6490 = vpack.c.b16 %v6231, %v6224
      %v6491 = vpack.c.b16 %v6239, %v6232
      %v6492 = vpack.c.b16 %v6240, %v6233
      %v6493 = vpack.c.b16 %v6241, %v6234
      %v6494 = vpack.c.b16 %v6242, %v6235
      %v6495 = vpack.c.b16 %v6243, %v6236
      %v6496 = vpack.c.b16 %v6244, %v6237
      %v6497 = vpack.c.b16 %v6245, %v6238
      %v6498 = vpack.c.b16 %v6253, %v6246
      %v6499 = vpack.c.b16 %v6254, %v6247
      %v6500 = vpack.c.b16 %v6255, %v6248
      %v6501 = vpack.c.b16 %v6256, %v6249
      %v6502 = vpack.c.b16 %v6257, %v6250
      %v6503 = vpack.c.b16 %v6258, %v6251
      %v6504 = vpack.c.b16 %v6259, %v6252
      %v6505 = vpack.c.b16 %v6267, %v6260
      %v6506 = vpack.c.b16 %v6268, %v6261
      %v6507 = vpack.c.b16 %v6269, %v6262
      %v6508 = vpack.c.b16 %v6270, %v6263
      %v6509 = vpack.c.b16 %v6271, %v6264
      %v6510 = vpack.c.b16 %v6272, %v6265
      %v6511 = vpack.c.b16 %v6273, %v6266
      %v6512 = vpack.c.b16 %v6281, %v6274
      %v6513 = vpack.c.b16 %v6282, %v6275
      %v6514 = vpack.c.b16 %v6283, %v6276
      %v6515 = vpack.c.b16 %v6284, %v6277
      %v6516 = vpack.c.b16 %v6285, %v6278
      %v6517 = vpack.c.b16 %v6286, %v6279
      %v6518 = vpack.c.b16 %v6287, %v6280
      %v6519 = vpack.c.b16 %v6295, %v6288
      %v6520 = vpack.c.b16 %v6296, %v6289
      %v6521 = vpack.c.b16 %v6297, %v6290
      %v6522 = vpack.c.b16 %v6298, %v6291
      %v6523 = vpack.c.b16 %v6299, %v6292
      %v6524 = vpack.c.b16 %v6300, %v6293
      %v6525 = vpack.c.b16 %v6301, %v6294
      %6750 = vmatprep.subr.bf16.mxu0 %v6352
      %6751 = vmatpush1.bf16.msra.mxu0 %v6351
      %6752 = vmatprep.subr.bf16.mxu0 %v6345
      %6753 = vmatpush1.bf16.msra.mxu0 %v6344
      %6754 = vmatprep.subr.bf16.mxu0 %v6338
      %6755 = vmatpush1.bf16.msra.mxu0 %v6337
      %6756 = vmatprep.subr.bf16.mxu0 %v6331
      %6757 = vmatpush1.bf16.msra.mxu0 %v6330
      %6758 = vmatprep.subr.bf16.mxu0 %v6324
      %6759 = vmatpush1.bf16.msra.mxu0 %v6323
      %6760 = vmatprep.subr.bf16.mxu0 %v6317
      %6761 = vmatpush1.bf16.msra.mxu0 %v6316
      %6762 = vmatprep.subr.bf16.mxu0 %v6310
      %6763 = vmatpush1.bf16.msra.mxu0 %v6309
      %6764 = vmatprep.subr.bf16.mxu0 %v6303
      %6765 = vmatpush1.bf16.msra.mxu0 %v6302
      %6766 = vmatprep.subr.bf16.mxu0 %v6408
      %6767 = vmatpush2.bf16.msra.mxu0 %v6407
      %6768 = vmatprep.subr.bf16.mxu0 %v6401
      %6769 = vmatpush2.bf16.msra.mxu0 %v6400
      %6770 = vmatprep.subr.bf16.mxu0 %v6394
      %6771 = vmatpush2.bf16.msra.mxu0 %v6393
      %6772 = vmatprep.subr.bf16.mxu0 %v6387
      %6773 = vmatpush2.bf16.msra.mxu0 %v6386
      %6774 = vmatprep.subr.bf16.mxu0 %v6380
      %6775 = vmatpush2.bf16.msra.mxu0 %v6379
      %6776 = vmatprep.subr.bf16.mxu0 %v6373
      %6777 = vmatpush2.bf16.msra.mxu0 %v6372
      %6778 = vmatprep.subr.bf16.mxu0 %v6366
      %6779 = vmatpush2.bf16.msra.mxu0 %v6365
      %6780 = vmatprep.subr.bf16.mxu0 %v6359
      %6781 = vmatpush2.bf16.msra.mxu0 %v6358
      %6782 = vmatprep.mubr.bf16.mxu0 %v5274
      %6783 = vmatmul.mubr.bf16.gmra.mxu0 %v5273
      %v6784 = vpop.f32.mrf.mxu0
      %v6785 = vadd.f32 %v5566, %v6784
      %v6786 = vpop.f32.mrf.mxu0
      %v6787 = vadd.f32 %v5570, %v6786
      %v6788 = vpop.f32.mrf.mxu0
      %v6789 = vadd.f32 %v5566, %v6788
      %v6790 = vpop.f32.mrf.mxu0
      %v6791 = vadd.f32 %v5570, %v6790
      %6792 = vmatprep.mubr.bf16.mxu0 %v5278
      %6793 = vmatmul.mubr.bf16.gmra.mxu0 %v5277
      %v6794 = vpop.f32.mrf.mxu0
      %v6795 = vadd.f32 %v5566, %v6794
      %v6796 = vpop.f32.mrf.mxu0
      %v6797 = vadd.f32 %v5570, %v6796
      %v6798 = vpop.f32.mrf.mxu0
      %v6799 = vadd.f32 %v5566, %v6798
      %v6800 = vpop.f32.mrf.mxu0
      %v6801 = vadd.f32 %v5570, %v6800
      %6802 = vmatprep.mubr.bf16.mxu0 %v5282
      %6803 = vmatmul.mubr.bf16.gmra.mxu0 %v5281
      %v6804 = vpop.f32.mrf.mxu0
      %v6805 = vadd.f32 %v5566, %v6804
      %v6806 = vpop.f32.mrf.mxu0
      %v6807 = vadd.f32 %v5570, %v6806
      %v6808 = vpop.f32.mrf.mxu0
      %v6809 = vadd.f32 %v5566, %v6808
      %v6810 = vpop.f32.mrf.mxu0
      %v6811 = vadd.f32 %v5570, %v6810
      %6812 = vmatprep.mubr.bf16.mxu0 %v5286
      %6813 = vmatmul.mubr.bf16.gmra.mxu0 %v5285
      %v6814 = vpop.f32.mrf.mxu0
      %v6815 = vadd.f32 %v5566, %v6814
      %v6816 = vpop.f32.mrf.mxu0
      %v6817 = vadd.f32 %v5570, %v6816
      %v6818 = vpop.f32.mrf.mxu0
      %v6819 = vadd.f32 %v5566, %v6818
      %v6820 = vpop.f32.mrf.mxu0
      %v6821 = vadd.f32 %v5570, %v6820
      %6822 = vmatprep.mubr.bf16.mxu0 %v5290
      %6823 = vmatmul.mubr.bf16.gmra.mxu0 %v5289
      %v6824 = vpop.f32.mrf.mxu0
      %v6825 = vadd.f32 %v5566, %v6824
      %v6826 = vpop.f32.mrf.mxu0
      %v6827 = vadd.f32 %v5570, %v6826
      %v6828 = vpop.f32.mrf.mxu0
      %v6829 = vadd.f32 %v5566, %v6828
      %v6830 = vpop.f32.mrf.mxu0
      %v6831 = vadd.f32 %v5570, %v6830
      %6832 = vmatprep.mubr.bf16.mxu0 %v5294
      %6833 = vmatmul.mubr.bf16.gmra.mxu0 %v5293
      %v6834 = vpop.f32.mrf.mxu0
      %v6835 = vadd.f32 %v5566, %v6834
      %v6836 = vpop.f32.mrf.mxu0
      %v6837 = vadd.f32 %v5570, %v6836
      %v6838 = vpop.f32.mrf.mxu0
      %v6839 = vadd.f32 %v5566, %v6838
      %v6840 = vpop.f32.mrf.mxu0
      %v6841 = vadd.f32 %v5570, %v6840
      %6842 = vmatprep.mubr.bf16.mxu0 %v5298
      %6843 = vmatmul.mubr.bf16.gmra.mxu0 %v5297
      %v6844 = vpop.f32.mrf.mxu0
      %v6845 = vadd.f32 %v5566, %v6844
      %v6846 = vpop.f32.mrf.mxu0
      %v6847 = vadd.f32 %v5570, %v6846
      %v6848 = vpop.f32.mrf.mxu0
      %v6849 = vadd.f32 %v5566, %v6848
      %v6850 = vpop.f32.mrf.mxu0
      %v6851 = vadd.f32 %v5570, %v6850
      %6852 = vmatprep.mubr.bf16.mxu0 %v5302
      %6853 = vmatmul.mubr.bf16.gmra.mxu0 %v5301
      %v6854 = vpop.f32.mrf.mxu0
      %v6855 = vadd.f32 %v5566, %v6854
      %v6856 = vpop.f32.mrf.mxu0
      %v6857 = vadd.f32 %v5570, %v6856
      %v6858 = vpop.f32.mrf.mxu0
      %v6859 = vadd.f32 %v5566, %v6858
      %v6860 = vpop.f32.mrf.mxu0
      %v6861 = vadd.f32 %v5570, %v6860
      %6862 = vdwg.mxu0
      %6863 = vmatprep.subr.bf16.mxu0 %v6464
      %6864 = vmatpush1.bf16.msra.mxu0 %v6463
      %6865 = vmatprep.subr.bf16.mxu0 %v6457
      %6866 = vmatpush1.bf16.msra.mxu0 %v6456
      %6867 = vmatprep.subr.bf16.mxu0 %v6450
      %6868 = vmatpush1.bf16.msra.mxu0 %v6449
      %6869 = vmatprep.subr.bf16.mxu0 %v6443
      %6870 = vmatpush1.bf16.msra.mxu0 %v6442
      %6871 = vmatprep.subr.bf16.mxu0 %v6436
      %6872 = vmatpush1.bf16.msra.mxu0 %v6435
      %6873 = vmatprep.subr.bf16.mxu0 %v6429
      %6874 = vmatpush1.bf16.msra.mxu0 %v6428
      %6875 = vmatprep.subr.bf16.mxu0 %v6422
      %6876 = vmatpush1.bf16.msra.mxu0 %v6421
      %6877 = vmatprep.subr.bf16.mxu0 %v6415
      %6878 = vmatpush1.bf16.msra.mxu0 %v6414
      %6879 = vmatprep.subr.bf16.mxu0 %v6520
      %6880 = vmatpush2.bf16.msra.mxu0 %v6519
      %6881 = vmatprep.subr.bf16.mxu0 %v6513
      %6882 = vmatpush2.bf16.msra.mxu0 %v6512
      %6883 = vmatprep.subr.bf16.mxu0 %v6506
      %6884 = vmatpush2.bf16.msra.mxu0 %v6505
      %6885 = vmatprep.subr.bf16.mxu0 %v6499
      %6886 = vmatpush2.bf16.msra.mxu0 %v6498
      %6887 = vmatprep.subr.bf16.mxu0 %v6492
      %6888 = vmatpush2.bf16.msra.mxu0 %v6491
      %6889 = vmatprep.subr.bf16.mxu0 %v6485
      %6890 = vmatpush2.bf16.msra.mxu0 %v6484
      %6891 = vmatprep.subr.bf16.mxu0 %v6478
      %6892 = vmatpush2.bf16.msra.mxu0 %v6477
      %6893 = vmatprep.subr.bf16.mxu0 %v6471
      %6894 = vmatpush2.bf16.msra.mxu0 %v6470
      %6895 = vmatprep.mubr.bf16.mxu0 %v5276
      %6896 = vmatmul.mubr.bf16.gmra.mxu0 %v5275
      %v6897 = vpop.f32.mrf.mxu0
      %v6898 = vadd.f32 %v6785, %v6897
      %v6899 = vpop.f32.mrf.mxu0
      %v6900 = vadd.f32 %v6787, %v6899
      %v6901 = vpop.f32.mrf.mxu0
      %v6902 = vadd.f32 %v6789, %v6901
      %v6903 = vpop.f32.mrf.mxu0
      %v6904 = vadd.f32 %v6791, %v6903
      %6905 = vmatprep.mubr.bf16.mxu0 %v5280
      %6906 = vmatmul.mubr.bf16.gmra.mxu0 %v5279
      %v6907 = vpop.f32.mrf.mxu0
      %v6908 = vadd.f32 %v6795, %v6907
      %v6909 = vpop.f32.mrf.mxu0
      %v6910 = vadd.f32 %v6797, %v6909
      %v6911 = vpop.f32.mrf.mxu0
      %v6912 = vadd.f32 %v6799, %v6911
      %v6913 = vpop.f32.mrf.mxu0
      %v6914 = vadd.f32 %v6801, %v6913
      %6915 = vmatprep.mubr.bf16.mxu0 %v5284
      %6916 = vmatmul.mubr.bf16.gmra.mxu0 %v5283
      %v6917 = vpop.f32.mrf.mxu0
      %v6918 = vadd.f32 %v6805, %v6917
      %v6919 = vpop.f32.mrf.mxu0
      %v6920 = vadd.f32 %v6807, %v6919
      %v6921 = vpop.f32.mrf.mxu0
      %v6922 = vadd.f32 %v6809, %v6921
      %v6923 = vpop.f32.mrf.mxu0
      %v6924 = vadd.f32 %v6811, %v6923
      %6925 = vmatprep.mubr.bf16.mxu0 %v5288
      %6926 = vmatmul.mubr.bf16.gmra.mxu0 %v5287
      %v6927 = vpop.f32.mrf.mxu0
      %v6928 = vadd.f32 %v6815, %v6927
      %v6929 = vpop.f32.mrf.mxu0
      %v6930 = vadd.f32 %v6817, %v6929
      %v6931 = vpop.f32.mrf.mxu0
      %v6932 = vadd.f32 %v6819, %v6931
      %v6933 = vpop.f32.mrf.mxu0
      %v6934 = vadd.f32 %v6821, %v6933
      %6935 = vmatprep.mubr.bf16.mxu0 %v5292
      %6936 = vmatmul.mubr.bf16.gmra.mxu0 %v5291
      %v6937 = vpop.f32.mrf.mxu0
      %v6938 = vadd.f32 %v6825, %v6937
      %v6939 = vpop.f32.mrf.mxu0
      %v6940 = vadd.f32 %v6827, %v6939
      %v6941 = vpop.f32.mrf.mxu0
      %v6942 = vadd.f32 %v6829, %v6941
      %v6943 = vpop.f32.mrf.mxu0
      %v6944 = vadd.f32 %v6831, %v6943
      %6945 = vmatprep.mubr.bf16.mxu0 %v5296
      %6946 = vmatmul.mubr.bf16.gmra.mxu0 %v5295
      %v6947 = vpop.f32.mrf.mxu0
      %v6948 = vadd.f32 %v6835, %v6947
      %v6949 = vpop.f32.mrf.mxu0
      %v6950 = vadd.f32 %v6837, %v6949
      %v6951 = vpop.f32.mrf.mxu0
      %v6952 = vadd.f32 %v6839, %v6951
      %v6953 = vpop.f32.mrf.mxu0
      %v6954 = vadd.f32 %v6841, %v6953
      %6955 = vmatprep.mubr.bf16.mxu0 %v5300
      %6956 = vmatmul.mubr.bf16.gmra.mxu0 %v5299
      %v6957 = vpop.f32.mrf.mxu0
      %v6958 = vadd.f32 %v6845, %v6957
      %v6959 = vpop.f32.mrf.mxu0
      %v6960 = vadd.f32 %v6847, %v6959
      %v6961 = vpop.f32.mrf.mxu0
      %v6962 = vadd.f32 %v6849, %v6961
      %v6963 = vpop.f32.mrf.mxu0
      %v6964 = vadd.f32 %v6851, %v6963
      %6965 = vmatprep.mubr.bf16.mxu0 %v5304
      %6966 = vmatmul.mubr.bf16.gmra.mxu0 %v5303
      %v6967 = vpop.f32.mrf.mxu0
      %v6968 = vadd.f32 %v6855, %v6967
      %v6969 = vpop.f32.mrf.mxu0
      %v6970 = vadd.f32 %v6857, %v6969
      %v6971 = vpop.f32.mrf.mxu0
      %v6972 = vadd.f32 %v6859, %v6971
      %v6973 = vpop.f32.mrf.mxu0
      %v6974 = vadd.f32 %v6861, %v6973
      %6975 = vdwg.mxu0
      %6976 = vmatprep.subr.bf16.mxu0 %v6354
      %6977 = vmatpush1.bf16.msra.mxu0 %v6353
      %6978 = vmatprep.subr.bf16.mxu0 %v6347
      %6979 = vmatpush1.bf16.msra.mxu0 %v6346
      %6980 = vmatprep.subr.bf16.mxu0 %v6340
      %6981 = vmatpush1.bf16.msra.mxu0 %v6339
      %6982 = vmatprep.subr.bf16.mxu0 %v6333
      %6983 = vmatpush1.bf16.msra.mxu0 %v6332
      %6984 = vmatprep.subr.bf16.mxu0 %v6326
      %6985 = vmatpush1.bf16.msra.mxu0 %v6325
      %6986 = vmatprep.subr.bf16.mxu0 %v6319
      %6987 = vmatpush1.bf16.msra.mxu0 %v6318
      %6988 = vmatprep.subr.bf16.mxu0 %v6312
      %6989 = vmatpush1.bf16.msra.mxu0 %v6311
      %6990 = vmatprep.subr.bf16.mxu0 %v6305
      %6991 = vmatpush1.bf16.msra.mxu0 %v6304
      %6992 = vmatprep.subr.bf16.mxu0 %v6410
      %6993 = vmatpush2.bf16.msra.mxu0 %v6409
      %6994 = vmatprep.subr.bf16.mxu0 %v6403
      %6995 = vmatpush2.bf16.msra.mxu0 %v6402
      %6996 = vmatprep.subr.bf16.mxu0 %v6396
      %6997 = vmatpush2.bf16.msra.mxu0 %v6395
      %6998 = vmatprep.subr.bf16.mxu0 %v6389
      %6999 = vmatpush2.bf16.msra.mxu0 %v6388
      %7000 = vmatprep.subr.bf16.mxu0 %v6382
      %7001 = vmatpush2.bf16.msra.mxu0 %v6381
      %7002 = vmatprep.subr.bf16.mxu0 %v6375
      %7003 = vmatpush2.bf16.msra.mxu0 %v6374
      %7004 = vmatprep.subr.bf16.mxu0 %v6368
      %7005 = vmatpush2.bf16.msra.mxu0 %v6367
      %7006 = vmatprep.subr.bf16.mxu0 %v6361
      %7007 = vmatpush2.bf16.msra.mxu0 %v6360
      %7008 = vmatprep.mubr.bf16.mxu0 %v5274
      %7009 = vmatmul.mubr.bf16.gmra.mxu0 %v5273
      %v7010 = vpop.f32.mrf.mxu0
      %v7011 = vadd.f32 %v5574, %v7010
      %v7012 = vpop.f32.mrf.mxu0
      %v7013 = vadd.f32 %v5578, %v7012
      %v7014 = vpop.f32.mrf.mxu0
      %v7015 = vadd.f32 %v5574, %v7014
      %v7016 = vpop.f32.mrf.mxu0
      %v7017 = vadd.f32 %v5578, %v7016
      %7018 = vmatprep.mubr.bf16.mxu0 %v5278
      %7019 = vmatmul.mubr.bf16.gmra.mxu0 %v5277
      %v7020 = vpop.f32.mrf.mxu0
      %v7021 = vadd.f32 %v5574, %v7020
      %v7022 = vpop.f32.mrf.mxu0
      %v7023 = vadd.f32 %v5578, %v7022
      %v7024 = vpop.f32.mrf.mxu0
      %v7025 = vadd.f32 %v5574, %v7024
      %v7026 = vpop.f32.mrf.mxu0
      %v7027 = vadd.f32 %v5578, %v7026
      %7028 = vmatprep.mubr.bf16.mxu0 %v5282
      %7029 = vmatmul.mubr.bf16.gmra.mxu0 %v5281
      %v7030 = vpop.f32.mrf.mxu0
      %v7031 = vadd.f32 %v5574, %v7030
      %v7032 = vpop.f32.mrf.mxu0
      %v7033 = vadd.f32 %v5578, %v7032
      %v7034 = vpop.f32.mrf.mxu0
      %v7035 = vadd.f32 %v5574, %v7034
      %v7036 = vpop.f32.mrf.mxu0
      %v7037 = vadd.f32 %v5578, %v7036
      %7038 = vmatprep.mubr.bf16.mxu0 %v5286
      %7039 = vmatmul.mubr.bf16.gmra.mxu0 %v5285
      %v7040 = vpop.f32.mrf.mxu0
      %v7041 = vadd.f32 %v5574, %v7040
      %v7042 = vpop.f32.mrf.mxu0
      %v7043 = vadd.f32 %v5578, %v7042
      %v7044 = vpop.f32.mrf.mxu0
      %v7045 = vadd.f32 %v5574, %v7044
      %v7046 = vpop.f32.mrf.mxu0
      %v7047 = vadd.f32 %v5578, %v7046
      %7048 = vmatprep.mubr.bf16.mxu0 %v5290
      %7049 = vmatmul.mubr.bf16.gmra.mxu0 %v5289
      %v7050 = vpop.f32.mrf.mxu0
      %v7051 = vadd.f32 %v5574, %v7050
      %v7052 = vpop.f32.mrf.mxu0
      %v7053 = vadd.f32 %v5578, %v7052
      %v7054 = vpop.f32.mrf.mxu0
      %v7055 = vadd.f32 %v5574, %v7054
      %v7056 = vpop.f32.mrf.mxu0
      %v7057 = vadd.f32 %v5578, %v7056
      %7058 = vmatprep.mubr.bf16.mxu0 %v5294
      %7059 = vmatmul.mubr.bf16.gmra.mxu0 %v5293
      %v7060 = vpop.f32.mrf.mxu0
      %v7061 = vadd.f32 %v5574, %v7060
      %v7062 = vpop.f32.mrf.mxu0
      %v7063 = vadd.f32 %v5578, %v7062
      %v7064 = vpop.f32.mrf.mxu0
      %v7065 = vadd.f32 %v5574, %v7064
      %v7066 = vpop.f32.mrf.mxu0
      %v7067 = vadd.f32 %v5578, %v7066
      %7068 = vmatprep.mubr.bf16.mxu0 %v5298
      %7069 = vmatmul.mubr.bf16.gmra.mxu0 %v5297
      %v7070 = vpop.f32.mrf.mxu0
      %v7071 = vadd.f32 %v5574, %v7070
      %v7072 = vpop.f32.mrf.mxu0
      %v7073 = vadd.f32 %v5578, %v7072
      %v7074 = vpop.f32.mrf.mxu0
      %v7075 = vadd.f32 %v5574, %v7074
      %v7076 = vpop.f32.mrf.mxu0
      %v7077 = vadd.f32 %v5578, %v7076
      %7078 = vmatprep.mubr.bf16.mxu0 %v5302
      %7079 = vmatmul.mubr.bf16.gmra.mxu0 %v5301
      %v7080 = vpop.f32.mrf.mxu0
      %v7081 = vadd.f32 %v5574, %v7080
      %v7082 = vpop.f32.mrf.mxu0
      %v7083 = vadd.f32 %v5578, %v7082
      %v7084 = vpop.f32.mrf.mxu0
      %v7085 = vadd.f32 %v5574, %v7084
      %v7086 = vpop.f32.mrf.mxu0
      %v7087 = vadd.f32 %v5578, %v7086
      %7088 = vdwg.mxu0
      %7089 = vmatprep.subr.bf16.mxu0 %v6466
      %7090 = vmatpush1.bf16.msra.mxu0 %v6465
      %7091 = vmatprep.subr.bf16.mxu0 %v6459
      %7092 = vmatpush1.bf16.msra.mxu0 %v6458
      %7093 = vmatprep.subr.bf16.mxu0 %v6452
      %7094 = vmatpush1.bf16.msra.mxu0 %v6451
      %7095 = vmatprep.subr.bf16.mxu0 %v6445
      %7096 = vmatpush1.bf16.msra.mxu0 %v6444
      %7097 = vmatprep.subr.bf16.mxu0 %v6438
      %7098 = vmatpush1.bf16.msra.mxu0 %v6437
      %7099 = vmatprep.subr.bf16.mxu0 %v6431
      %7100 = vmatpush1.bf16.msra.mxu0 %v6430
      %7101 = vmatprep.subr.bf16.mxu0 %v6424
      %7102 = vmatpush1.bf16.msra.mxu0 %v6423
      %7103 = vmatprep.subr.bf16.mxu0 %v6417
      %7104 = vmatpush1.bf16.msra.mxu0 %v6416
      %7105 = vmatprep.subr.bf16.mxu0 %v6522
      %7106 = vmatpush2.bf16.msra.mxu0 %v6521
      %7107 = vmatprep.subr.bf16.mxu0 %v6515
      %7108 = vmatpush2.bf16.msra.mxu0 %v6514
      %7109 = vmatprep.subr.bf16.mxu0 %v6508
      %7110 = vmatpush2.bf16.msra.mxu0 %v6507
      %7111 = vmatprep.subr.bf16.mxu0 %v6501
      %7112 = vmatpush2.bf16.msra.mxu0 %v6500
      %7113 = vmatprep.subr.bf16.mxu0 %v6494
      %7114 = vmatpush2.bf16.msra.mxu0 %v6493
      %7115 = vmatprep.subr.bf16.mxu0 %v6487
      %7116 = vmatpush2.bf16.msra.mxu0 %v6486
      %7117 = vmatprep.subr.bf16.mxu0 %v6480
      %7118 = vmatpush2.bf16.msra.mxu0 %v6479
      %7119 = vmatprep.subr.bf16.mxu0 %v6473
      %7120 = vmatpush2.bf16.msra.mxu0 %v6472
      %7121 = vmatprep.mubr.bf16.mxu0 %v5276
      %7122 = vmatmul.mubr.bf16.gmra.mxu0 %v5275
      %v7123 = vpop.f32.mrf.mxu0
      %v7124 = vadd.f32 %v7011, %v7123
      %v7125 = vpop.f32.mrf.mxu0
      %v7126 = vadd.f32 %v7013, %v7125
      %v7127 = vpop.f32.mrf.mxu0
      %v7128 = vadd.f32 %v7015, %v7127
      %v7129 = vpop.f32.mrf.mxu0
      %v7130 = vadd.f32 %v7017, %v7129
      %7131 = vmatprep.mubr.bf16.mxu0 %v5280
      %7132 = vmatmul.mubr.bf16.gmra.mxu0 %v5279
      %v7133 = vpop.f32.mrf.mxu0
      %v7134 = vadd.f32 %v7021, %v7133
      %v7135 = vpop.f32.mrf.mxu0
      %v7136 = vadd.f32 %v7023, %v7135
      %v7137 = vpop.f32.mrf.mxu0
      %v7138 = vadd.f32 %v7025, %v7137
      %v7139 = vpop.f32.mrf.mxu0
      %v7140 = vadd.f32 %v7027, %v7139
      %7141 = vmatprep.mubr.bf16.mxu0 %v5284
      %7142 = vmatmul.mubr.bf16.gmra.mxu0 %v5283
      %v7143 = vpop.f32.mrf.mxu0
      %v7144 = vadd.f32 %v7031, %v7143
      %v7145 = vpop.f32.mrf.mxu0
      %v7146 = vadd.f32 %v7033, %v7145
      %v7147 = vpop.f32.mrf.mxu0
      %v7148 = vadd.f32 %v7035, %v7147
      %v7149 = vpop.f32.mrf.mxu0
      %v7150 = vadd.f32 %v7037, %v7149
      %7151 = vmatprep.mubr.bf16.mxu0 %v5288
      %7152 = vmatmul.mubr.bf16.gmra.mxu0 %v5287
      %v7153 = vpop.f32.mrf.mxu0
      %v7154 = vadd.f32 %v7041, %v7153
      %v7155 = vpop.f32.mrf.mxu0
      %v7156 = vadd.f32 %v7043, %v7155
      %v7157 = vpop.f32.mrf.mxu0
      %v7158 = vadd.f32 %v7045, %v7157
      %v7159 = vpop.f32.mrf.mxu0
      %v7160 = vadd.f32 %v7047, %v7159
      %7161 = vmatprep.mubr.bf16.mxu0 %v5292
      %7162 = vmatmul.mubr.bf16.gmra.mxu0 %v5291
      %v7163 = vpop.f32.mrf.mxu0
      %v7164 = vadd.f32 %v7051, %v7163
      %v7165 = vpop.f32.mrf.mxu0
      %v7166 = vadd.f32 %v7053, %v7165
      %v7167 = vpop.f32.mrf.mxu0
      %v7168 = vadd.f32 %v7055, %v7167
      %v7169 = vpop.f32.mrf.mxu0
      %v7170 = vadd.f32 %v7057, %v7169
      %7171 = vmatprep.mubr.bf16.mxu0 %v5296
      %7172 = vmatmul.mubr.bf16.gmra.mxu0 %v5295
      %v7173 = vpop.f32.mrf.mxu0
      %v7174 = vadd.f32 %v7061, %v7173
      %v7175 = vpop.f32.mrf.mxu0
      %v7176 = vadd.f32 %v7063, %v7175
      %v7177 = vpop.f32.mrf.mxu0
      %v7178 = vadd.f32 %v7065, %v7177
      %v7179 = vpop.f32.mrf.mxu0
      %v7180 = vadd.f32 %v7067, %v7179
      %7181 = vmatprep.mubr.bf16.mxu0 %v5300
      %7182 = vmatmul.mubr.bf16.gmra.mxu0 %v5299
      %v7183 = vpop.f32.mrf.mxu0
      %v7184 = vadd.f32 %v7071, %v7183
      %v7185 = vpop.f32.mrf.mxu0
      %v7186 = vadd.f32 %v7073, %v7185
      %v7187 = vpop.f32.mrf.mxu0
      %v7188 = vadd.f32 %v7075, %v7187
      %v7189 = vpop.f32.mrf.mxu0
      %v7190 = vadd.f32 %v7077, %v7189
      %7191 = vmatprep.mubr.bf16.mxu0 %v5304
      %7192 = vmatmul.mubr.bf16.gmra.mxu0 %v5303
      %v7193 = vpop.f32.mrf.mxu0
      %v7194 = vadd.f32 %v7081, %v7193
      %v7195 = vpop.f32.mrf.mxu0
      %v7196 = vadd.f32 %v7083, %v7195
      %v7197 = vpop.f32.mrf.mxu0
      %v7198 = vadd.f32 %v7085, %v7197
      %v7199 = vpop.f32.mrf.mxu0
      %v7200 = vadd.f32 %v7087, %v7199
      %7201 = vdwg.mxu0
      %7202 = vmatprep.subr.bf16.mxu0 %v6356
      %7203 = vmatpush1.bf16.msra.mxu0 %v6355
      %7204 = vmatprep.subr.bf16.mxu0 %v6349
      %7205 = vmatpush1.bf16.msra.mxu0 %v6348
      %7206 = vmatprep.subr.bf16.mxu0 %v6342
      %7207 = vmatpush1.bf16.msra.mxu0 %v6341
      %7208 = vmatprep.subr.bf16.mxu0 %v6335
      %7209 = vmatpush1.bf16.msra.mxu0 %v6334
      %7210 = vmatprep.subr.bf16.mxu0 %v6328
      %7211 = vmatpush1.bf16.msra.mxu0 %v6327
      %7212 = vmatprep.subr.bf16.mxu0 %v6321
      %7213 = vmatpush1.bf16.msra.mxu0 %v6320
      %7214 = vmatprep.subr.bf16.mxu0 %v6314
      %7215 = vmatpush1.bf16.msra.mxu0 %v6313
      %7216 = vmatprep.subr.bf16.mxu0 %v6307
      %7217 = vmatpush1.bf16.msra.mxu0 %v6306
      %7218 = vmatprep.subr.bf16.mxu0 %v6412
      %7219 = vmatpush2.bf16.msra.mxu0 %v6411
      %7220 = vmatprep.subr.bf16.mxu0 %v6405
      %7221 = vmatpush2.bf16.msra.mxu0 %v6404
      %7222 = vmatprep.subr.bf16.mxu0 %v6398
      %7223 = vmatpush2.bf16.msra.mxu0 %v6397
      %7224 = vmatprep.subr.bf16.mxu0 %v6391
      %7225 = vmatpush2.bf16.msra.mxu0 %v6390
      %7226 = vmatprep.subr.bf16.mxu0 %v6384
      %7227 = vmatpush2.bf16.msra.mxu0 %v6383
      %7228 = vmatprep.subr.bf16.mxu0 %v6377
      %7229 = vmatpush2.bf16.msra.mxu0 %v6376
      %7230 = vmatprep.subr.bf16.mxu0 %v6370
      %7231 = vmatpush2.bf16.msra.mxu0 %v6369
      %7232 = vmatprep.subr.bf16.mxu0 %v6363
      %7233 = vmatpush2.bf16.msra.mxu0 %v6362
      %7234 = vmatprep.mubr.bf16.mxu0 %v5274
      %7235 = vmatmul.mubr.bf16.gmra.mxu0 %v5273
      %v7236 = vpop.f32.mrf.mxu0
      %v7237 = vadd.f32 %v5582, %v7236
      %v7238 = vpop.f32.mrf.mxu0
      %v7239 = vadd.f32 %v5586, %v7238
      %v7240 = vpop.f32.mrf.mxu0
      %v7241 = vadd.f32 %v5582, %v7240
      %v7242 = vpop.f32.mrf.mxu0
      %v7243 = vadd.f32 %v5586, %v7242
      %7244 = vmatprep.mubr.bf16.mxu0 %v5278
      %7245 = vmatmul.mubr.bf16.gmra.mxu0 %v5277
      %v7246 = vpop.f32.mrf.mxu0
      %v7247 = vadd.f32 %v5582, %v7246
      %v7248 = vpop.f32.mrf.mxu0
      %v7249 = vadd.f32 %v5586, %v7248
      %v7250 = vpop.f32.mrf.mxu0
      %v7251 = vadd.f32 %v5582, %v7250
      %v7252 = vpop.f32.mrf.mxu0
      %v7253 = vadd.f32 %v5586, %v7252
      %7254 = vmatprep.mubr.bf16.mxu0 %v5282
      %7255 = vmatmul.mubr.bf16.gmra.mxu0 %v5281
      %v7256 = vpop.f32.mrf.mxu0
      %v7257 = vadd.f32 %v5582, %v7256
      %v7258 = vpop.f32.mrf.mxu0
      %v7259 = vadd.f32 %v5586, %v7258
      %v7260 = vpop.f32.mrf.mxu0
      %v7261 = vadd.f32 %v5582, %v7260
      %v7262 = vpop.f32.mrf.mxu0
      %v7263 = vadd.f32 %v5586, %v7262
      %7264 = vmatprep.mubr.bf16.mxu0 %v5286
      %7265 = vmatmul.mubr.bf16.gmra.mxu0 %v5285
      %v7266 = vpop.f32.mrf.mxu0
      %v7267 = vadd.f32 %v5582, %v7266
      %v7268 = vpop.f32.mrf.mxu0
      %v7269 = vadd.f32 %v5586, %v7268
      %v7270 = vpop.f32.mrf.mxu0
      %v7271 = vadd.f32 %v5582, %v7270
      %v7272 = vpop.f32.mrf.mxu0
      %v7273 = vadd.f32 %v5586, %v7272
      %7274 = vmatprep.mubr.bf16.mxu0 %v5290
      %7275 = vmatmul.mubr.bf16.gmra.mxu0 %v5289
      %v7276 = vpop.f32.mrf.mxu0
      %v7277 = vadd.f32 %v5582, %v7276
      %v7278 = vpop.f32.mrf.mxu0
      %v7279 = vadd.f32 %v5586, %v7278
      %v7280 = vpop.f32.mrf.mxu0
      %v7281 = vadd.f32 %v5582, %v7280
      %v7282 = vpop.f32.mrf.mxu0
      %v7283 = vadd.f32 %v5586, %v7282
      %7284 = vmatprep.mubr.bf16.mxu0 %v5294
      %7285 = vmatmul.mubr.bf16.gmra.mxu0 %v5293
      %v7286 = vpop.f32.mrf.mxu0
      %v7287 = vadd.f32 %v5582, %v7286
      %v7288 = vpop.f32.mrf.mxu0
      %v7289 = vadd.f32 %v5586, %v7288
      %v7290 = vpop.f32.mrf.mxu0
      %v7291 = vadd.f32 %v5582, %v7290
      %v7292 = vpop.f32.mrf.mxu0
      %v7293 = vadd.f32 %v5586, %v7292
      %7294 = vmatprep.mubr.bf16.mxu0 %v5298
      %7295 = vmatmul.mubr.bf16.gmra.mxu0 %v5297
      %v7296 = vpop.f32.mrf.mxu0
      %v7297 = vadd.f32 %v5582, %v7296
      %v7298 = vpop.f32.mrf.mxu0
      %v7299 = vadd.f32 %v5586, %v7298
      %v7300 = vpop.f32.mrf.mxu0
      %v7301 = vadd.f32 %v5582, %v7300
      %v7302 = vpop.f32.mrf.mxu0
      %v7303 = vadd.f32 %v5586, %v7302
      %7304 = vmatprep.mubr.bf16.mxu0 %v5302
      %7305 = vmatmul.mubr.bf16.gmra.mxu0 %v5301
      %v7306 = vpop.f32.mrf.mxu0
      %v7307 = vadd.f32 %v5582, %v7306
      %v7308 = vpop.f32.mrf.mxu0
      %v7309 = vadd.f32 %v5586, %v7308
      %v7310 = vpop.f32.mrf.mxu0
      %v7311 = vadd.f32 %v5582, %v7310
      %v7312 = vpop.f32.mrf.mxu0
      %v7313 = vadd.f32 %v5586, %v7312
      %7314 = vdwg.mxu0
      %7315 = vmatprep.subr.bf16.mxu0 %v6468
      %7316 = vmatpush1.bf16.msra.mxu0 %v6467
      %7317 = vmatprep.subr.bf16.mxu0 %v6461
      %7318 = vmatpush1.bf16.msra.mxu0 %v6460
      %7319 = vmatprep.subr.bf16.mxu0 %v6454
      %7320 = vmatpush1.bf16.msra.mxu0 %v6453
      %7321 = vmatprep.subr.bf16.mxu0 %v6447
      %7322 = vmatpush1.bf16.msra.mxu0 %v6446
      %7323 = vmatprep.subr.bf16.mxu0 %v6440
      %7324 = vmatpush1.bf16.msra.mxu0 %v6439
      %7325 = vmatprep.subr.bf16.mxu0 %v6433
      %7326 = vmatpush1.bf16.msra.mxu0 %v6432
      %7327 = vmatprep.subr.bf16.mxu0 %v6426
      %7328 = vmatpush1.bf16.msra.mxu0 %v6425
      %7329 = vmatprep.subr.bf16.mxu0 %v6419
      %7330 = vmatpush1.bf16.msra.mxu0 %v6418
      %7331 = vmatprep.subr.bf16.mxu0 %v6524
      %7332 = vmatpush2.bf16.msra.mxu0 %v6523
      %7333 = vmatprep.subr.bf16.mxu0 %v6517
      %7334 = vmatpush2.bf16.msra.mxu0 %v6516
      %7335 = vmatprep.subr.bf16.mxu0 %v6510
      %7336 = vmatpush2.bf16.msra.mxu0 %v6509
      %7337 = vmatprep.subr.bf16.mxu0 %v6503
      %7338 = vmatpush2.bf16.msra.mxu0 %v6502
      %7339 = vmatprep.subr.bf16.mxu0 %v6496
      %7340 = vmatpush2.bf16.msra.mxu0 %v6495
      %7341 = vmatprep.subr.bf16.mxu0 %v6489
      %7342 = vmatpush2.bf16.msra.mxu0 %v6488
      %7343 = vmatprep.subr.bf16.mxu0 %v6482
      %7344 = vmatpush2.bf16.msra.mxu0 %v6481
      %7345 = vmatprep.subr.bf16.mxu0 %v6475
      %7346 = vmatpush2.bf16.msra.mxu0 %v6474
      %7347 = vmatprep.mubr.bf16.mxu0 %v5276
      %7348 = vmatmul.mubr.bf16.gmra.mxu0 %v5275
      %v7349 = vpop.f32.mrf.mxu0
      %v7350 = vadd.f32 %v7237, %v7349
      %v7351 = vpop.f32.mrf.mxu0
      %v7352 = vadd.f32 %v7239, %v7351
      %v7353 = vpop.f32.mrf.mxu0
      %v7354 = vadd.f32 %v7241, %v7353
      %v7355 = vpop.f32.mrf.mxu0
      %v7356 = vadd.f32 %v7243, %v7355
      %7357 = vmatprep.mubr.bf16.mxu0 %v5280
      %7358 = vmatmul.mubr.bf16.gmra.mxu0 %v5279
      %v7359 = vpop.f32.mrf.mxu0
      %v7360 = vadd.f32 %v7247, %v7359
      %v7361 = vpop.f32.mrf.mxu0
      %v7362 = vadd.f32 %v7249, %v7361
      %v7363 = vpop.f32.mrf.mxu0
      %v7364 = vadd.f32 %v7251, %v7363
      %v7365 = vpop.f32.mrf.mxu0
      %v7366 = vadd.f32 %v7253, %v7365
      %7367 = vmatprep.mubr.bf16.mxu0 %v5284
      %7368 = vmatmul.mubr.bf16.gmra.mxu0 %v5283
      %v7369 = vpop.f32.mrf.mxu0
      %v7370 = vadd.f32 %v7257, %v7369
      %v7371 = vpop.f32.mrf.mxu0
      %v7372 = vadd.f32 %v7259, %v7371
      %v7373 = vpop.f32.mrf.mxu0
      %v7374 = vadd.f32 %v7261, %v7373
      %v7375 = vpop.f32.mrf.mxu0
      %v7376 = vadd.f32 %v7263, %v7375
      %7377 = vmatprep.mubr.bf16.mxu0 %v5288
      %7378 = vmatmul.mubr.bf16.gmra.mxu0 %v5287
      %v7379 = vpop.f32.mrf.mxu0
      %v7380 = vadd.f32 %v7267, %v7379
      %v7381 = vpop.f32.mrf.mxu0
      %v7382 = vadd.f32 %v7269, %v7381
      %v7383 = vpop.f32.mrf.mxu0
      %v7384 = vadd.f32 %v7271, %v7383
      %v7385 = vpop.f32.mrf.mxu0
      %v7386 = vadd.f32 %v7273, %v7385
      %7387 = vmatprep.mubr.bf16.mxu0 %v5292
      %7388 = vmatmul.mubr.bf16.gmra.mxu0 %v5291
      %v7389 = vpop.f32.mrf.mxu0
      %v7390 = vadd.f32 %v7277, %v7389
      %v7391 = vpop.f32.mrf.mxu0
      %v7392 = vadd.f32 %v7279, %v7391
      %v7393 = vpop.f32.mrf.mxu0
      %v7394 = vadd.f32 %v7281, %v7393
      %v7395 = vpop.f32.mrf.mxu0
      %v7396 = vadd.f32 %v7283, %v7395
      %7397 = vmatprep.mubr.bf16.mxu0 %v5296
      %7398 = vmatmul.mubr.bf16.gmra.mxu0 %v5295
      %v7399 = vpop.f32.mrf.mxu0
      %v7400 = vadd.f32 %v7287, %v7399
      %v7401 = vpop.f32.mrf.mxu0
      %v7402 = vadd.f32 %v7289, %v7401
      %v7403 = vpop.f32.mrf.mxu0
      %v7404 = vadd.f32 %v7291, %v7403
      %v7405 = vpop.f32.mrf.mxu0
      %v7406 = vadd.f32 %v7293, %v7405
      %7407 = vmatprep.mubr.bf16.mxu0 %v5300
      %7408 = vmatmul.mubr.bf16.gmra.mxu0 %v5299
      %v7409 = vpop.f32.mrf.mxu0
      %v7410 = vadd.f32 %v7297, %v7409
      %v7411 = vpop.f32.mrf.mxu0
      %v7412 = vadd.f32 %v7299, %v7411
      %v7413 = vpop.f32.mrf.mxu0
      %v7414 = vadd.f32 %v7301, %v7413
      %v7415 = vpop.f32.mrf.mxu0
      %v7416 = vadd.f32 %v7303, %v7415
      %7417 = vmatprep.mubr.bf16.mxu0 %v5304
      %7418 = vmatmul.mubr.bf16.gmra.mxu0 %v5303
      %v7419 = vpop.f32.mrf.mxu0
      %v7420 = vadd.f32 %v7307, %v7419
      %v7421 = vpop.f32.mrf.mxu0
      %v7422 = vadd.f32 %v7309, %v7421
      %v7423 = vpop.f32.mrf.mxu0
      %v7424 = vadd.f32 %v7311, %v7423
      %v7425 = vpop.f32.mrf.mxu0
      %v7426 = vadd.f32 %v7313, %v7425
      %7427 = vdwg.mxu0
      %7428 = vmatprep.subr.bf16.mxu0 0
      %7429 = vmatpush1.bf16.msra.mxu0 %v6357
      %7430 = vmatprep.subr.bf16.mxu0 0
      %7431 = vmatpush1.bf16.msra.mxu0 %v6350
      %7432 = vmatprep.subr.bf16.mxu0 0
      %7433 = vmatpush1.bf16.msra.mxu0 %v6343
      %7434 = vmatprep.subr.bf16.mxu0 0
      %7435 = vmatpush1.bf16.msra.mxu0 %v6336
      %7436 = vmatprep.subr.bf16.mxu0 0
      %7437 = vmatpush1.bf16.msra.mxu0 %v6329
      %7438 = vmatprep.subr.bf16.mxu0 0
      %7439 = vmatpush1.bf16.msra.mxu0 %v6322
      %7440 = vmatprep.subr.bf16.mxu0 0
      %7441 = vmatpush1.bf16.msra.mxu0 %v6315
      %7442 = vmatprep.subr.bf16.mxu0 0
      %7443 = vmatpush1.bf16.msra.mxu0 %v6308
      %7444 = vmatprep.subr.bf16.mxu0 0
      %7445 = vmatpush2.bf16.msra.mxu0 %v6413
      %7446 = vmatprep.subr.bf16.mxu0 0
      %7447 = vmatpush2.bf16.msra.mxu0 %v6406
      %7448 = vmatprep.subr.bf16.mxu0 0
      %7449 = vmatpush2.bf16.msra.mxu0 %v6399
      %7450 = vmatprep.subr.bf16.mxu0 0
      %7451 = vmatpush2.bf16.msra.mxu0 %v6392
      %7452 = vmatprep.subr.bf16.mxu0 0
      %7453 = vmatpush2.bf16.msra.mxu0 %v6385
      %7454 = vmatprep.subr.bf16.mxu0 0
      %7455 = vmatpush2.bf16.msra.mxu0 %v6378
      %7456 = vmatprep.subr.bf16.mxu0 0
      %7457 = vmatpush2.bf16.msra.mxu0 %v6371
      %7458 = vmatprep.subr.bf16.mxu0 0
      %7459 = vmatpush2.bf16.msra.mxu0 %v6364
      %7460 = vmatprep.mubr.bf16.mxu0 %v5274
      %7461 = vmatmul.mubr.bf16.gmra.mxu0 %v5273
      %v7462 = vpop.f32.mrf.mxu0
      %v7463 = vadd.f32 %v5590, %v7462
      %v7464 = vpop.f32.mrf.mxu0
      %v7465 = vpop.f32.mrf.mxu0
      %v7466 = vadd.f32 %v5590, %v7465
      %v7467 = vpop.f32.mrf.mxu0
      %7468 = vmatprep.mubr.bf16.mxu0 %v5278
      %7469 = vmatmul.mubr.bf16.gmra.mxu0 %v5277
      %v7470 = vpop.f32.mrf.mxu0
      %v7471 = vadd.f32 %v5590, %v7470
      %v7472 = vpop.f32.mrf.mxu0
      %v7473 = vpop.f32.mrf.mxu0
      %v7474 = vadd.f32 %v5590, %v7473
      %v7475 = vpop.f32.mrf.mxu0
      %7476 = vmatprep.mubr.bf16.mxu0 %v5282
      %7477 = vmatmul.mubr.bf16.gmra.mxu0 %v5281
      %v7478 = vpop.f32.mrf.mxu0
      %v7479 = vadd.f32 %v5590, %v7478
      %v7480 = vpop.f32.mrf.mxu0
      %v7481 = vpop.f32.mrf.mxu0
      %v7482 = vadd.f32 %v5590, %v7481
      %v7483 = vpop.f32.mrf.mxu0
      %7484 = vmatprep.mubr.bf16.mxu0 %v5286
      %7485 = vmatmul.mubr.bf16.gmra.mxu0 %v5285
      %v7486 = vpop.f32.mrf.mxu0
      %v7487 = vadd.f32 %v5590, %v7486
      %v7488 = vpop.f32.mrf.mxu0
      %v7489 = vpop.f32.mrf.mxu0
      %v7490 = vadd.f32 %v5590, %v7489
      %v7491 = vpop.f32.mrf.mxu0
      %7492 = vmatprep.mubr.bf16.mxu0 %v5290
      %7493 = vmatmul.mubr.bf16.gmra.mxu0 %v5289
      %v7494 = vpop.f32.mrf.mxu0
      %v7495 = vadd.f32 %v5590, %v7494
      %v7496 = vpop.f32.mrf.mxu0
      %v7497 = vpop.f32.mrf.mxu0
      %v7498 = vadd.f32 %v5590, %v7497
      %v7499 = vpop.f32.mrf.mxu0
      %7500 = vmatprep.mubr.bf16.mxu0 %v5294
      %7501 = vmatmul.mubr.bf16.gmra.mxu0 %v5293
      %v7502 = vpop.f32.mrf.mxu0
      %v7503 = vadd.f32 %v5590, %v7502
      %v7504 = vpop.f32.mrf.mxu0
      %v7505 = vpop.f32.mrf.mxu0
      %v7506 = vadd.f32 %v5590, %v7505
      %v7507 = vpop.f32.mrf.mxu0
      %7508 = vmatprep.mubr.bf16.mxu0 %v5298
      %7509 = vmatmul.mubr.bf16.gmra.mxu0 %v5297
      %v7510 = vpop.f32.mrf.mxu0
      %v7511 = vadd.f32 %v5590, %v7510
      %v7512 = vpop.f32.mrf.mxu0
      %v7513 = vpop.f32.mrf.mxu0
      %v7514 = vadd.f32 %v5590, %v7513
      %v7515 = vpop.f32.mrf.mxu0
      %7516 = vmatprep.mubr.bf16.mxu0 %v5302
      %7517 = vmatmul.mubr.bf16.gmra.mxu0 %v5301
      %v7518 = vpop.f32.mrf.mxu0
      %v7519 = vadd.f32 %v5590, %v7518
      %v7520 = vpop.f32.mrf.mxu0
      %v7521 = vpop.f32.mrf.mxu0
      %v7522 = vadd.f32 %v5590, %v7521
      %v7523 = vpop.f32.mrf.mxu0
      %7524 = vdwg.mxu0
      %7525 = vmatprep.subr.bf16.mxu0 0
      %7526 = vmatpush1.bf16.msra.mxu0 %v6469
      %7527 = vmatprep.subr.bf16.mxu0 0
      %7528 = vmatpush1.bf16.msra.mxu0 %v6462
      %7529 = vmatprep.subr.bf16.mxu0 0
      %7530 = vmatpush1.bf16.msra.mxu0 %v6455
      %7531 = vmatprep.subr.bf16.mxu0 0
      %7532 = vmatpush1.bf16.msra.mxu0 %v6448
      %7533 = vmatprep.subr.bf16.mxu0 0
      %7534 = vmatpush1.bf16.msra.mxu0 %v6441
      %7535 = vmatprep.subr.bf16.mxu0 0
      %7536 = vmatpush1.bf16.msra.mxu0 %v6434
      %7537 = vmatprep.subr.bf16.mxu0 0
      %7538 = vmatpush1.bf16.msra.mxu0 %v6427
      %7539 = vmatprep.subr.bf16.mxu0 0
      %7540 = vmatpush1.bf16.msra.mxu0 %v6420
      %7541 = vmatprep.subr.bf16.mxu0 0
      %7542 = vmatpush2.bf16.msra.mxu0 %v6525
      %7543 = vmatprep.subr.bf16.mxu0 0
      %7544 = vmatpush2.bf16.msra.mxu0 %v6518
      %7545 = vmatprep.subr.bf16.mxu0 0
      %7546 = vmatpush2.bf16.msra.mxu0 %v6511
      %7547 = vmatprep.subr.bf16.mxu0 0
      %7548 = vmatpush2.bf16.msra.mxu0 %v6504
      %7549 = vmatprep.subr.bf16.mxu0 0
      %7550 = vmatpush2.bf16.msra.mxu0 %v6497
      %7551 = vmatprep.subr.bf16.mxu0 0
      %7552 = vmatpush2.bf16.msra.mxu0 %v6490
      %7553 = vmatprep.subr.bf16.mxu0 0
      %7554 = vmatpush2.bf16.msra.mxu0 %v6483
      %7555 = vmatprep.subr.bf16.mxu0 0
      %7556 = vmatpush2.bf16.msra.mxu0 %v6476
      %7557 = vmatprep.mubr.bf16.mxu0 %v5276
      %7558 = vmatmul.mubr.bf16.gmra.mxu0 %v5275
      %v7559 = vpop.f32.mrf.mxu0
      %v7560 = vadd.f32 %v7463, %v7559
      %v7561 = vpop.f32.mrf.mxu0
      %v7562 = vpop.f32.mrf.mxu0
      %v7563 = vadd.f32 %v7466, %v7562
      %v7564 = vpop.f32.mrf.mxu0
      %7565 = vmatprep.mubr.bf16.mxu0 %v5280
      %7566 = vmatmul.mubr.bf16.gmra.mxu0 %v5279
      %v7567 = vpop.f32.mrf.mxu0
      %v7568 = vadd.f32 %v7471, %v7567
      %v7569 = vpop.f32.mrf.mxu0
      %v7570 = vpop.f32.mrf.mxu0
      %v7571 = vadd.f32 %v7474, %v7570
      %v7572 = vpop.f32.mrf.mxu0
      %7573 = vmatprep.mubr.bf16.mxu0 %v5284
      %7574 = vmatmul.mubr.bf16.gmra.mxu0 %v5283
      %v7575 = vpop.f32.mrf.mxu0
      %v7576 = vadd.f32 %v7479, %v7575
      %v7577 = vpop.f32.mrf.mxu0
      %v7578 = vpop.f32.mrf.mxu0
      %v7579 = vadd.f32 %v7482, %v7578
      %v7580 = vpop.f32.mrf.mxu0
      %7581 = vmatprep.mubr.bf16.mxu0 %v5288
      %7582 = vmatmul.mubr.bf16.gmra.mxu0 %v5287
      %v7583 = vpop.f32.mrf.mxu0
      %v7584 = vadd.f32 %v7487, %v7583
      %v7585 = vpop.f32.mrf.mxu0
      %v7586 = vpop.f32.mrf.mxu0
      %v7587 = vadd.f32 %v7490, %v7586
      %v7588 = vpop.f32.mrf.mxu0
      %7589 = vmatprep.mubr.bf16.mxu0 %v5292
      %7590 = vmatmul.mubr.bf16.gmra.mxu0 %v5291
      %v7591 = vpop.f32.mrf.mxu0
      %v7592 = vadd.f32 %v7495, %v7591
      %v7593 = vpop.f32.mrf.mxu0
      %v7594 = vpop.f32.mrf.mxu0
      %v7595 = vadd.f32 %v7498, %v7594
      %v7596 = vpop.f32.mrf.mxu0
      %7597 = vmatprep.mubr.bf16.mxu0 %v5296
      %7598 = vmatmul.mubr.bf16.gmra.mxu0 %v5295
      %v7599 = vpop.f32.mrf.mxu0
      %v7600 = vadd.f32 %v7503, %v7599
      %v7601 = vpop.f32.mrf.mxu0
      %v7602 = vpop.f32.mrf.mxu0
      %v7603 = vadd.f32 %v7506, %v7602
      %v7604 = vpop.f32.mrf.mxu0
      %7605 = vmatprep.mubr.bf16.mxu0 %v5300
      %7606 = vmatmul.mubr.bf16.gmra.mxu0 %v5299
      %v7607 = vpop.f32.mrf.mxu0
      %v7608 = vadd.f32 %v7511, %v7607
      %v7609 = vpop.f32.mrf.mxu0
      %v7610 = vpop.f32.mrf.mxu0
      %v7611 = vadd.f32 %v7514, %v7610
      %v7612 = vpop.f32.mrf.mxu0
      %7613 = vmatprep.mubr.bf16.mxu0 %v5304
      %7614 = vmatmul.mubr.bf16.gmra.mxu0 %v5303
      %v7615 = vpop.f32.mrf.mxu0
      %v7616 = vadd.f32 %v7519, %v7615
      %v7617 = vpop.f32.mrf.mxu0
      %v7618 = vpop.f32.mrf.mxu0
      %v7619 = vadd.f32 %v7522, %v7618
      %v7620 = vpop.f32.mrf.mxu0
      %7621 = vdwg.mxu0
      %v7622 = vunpack.c.l.bf16 %v638
      %v7623 = vunpack.c.h.bf16 %v638
      %v7624 = vunpack.c.l.bf16 %v639
      %v7625 = vunpack.c.h.bf16 %v639
      %v7626 = vunpack.c.l.bf16 %v640
      %v7627 = vunpack.c.h.bf16 %v640
      %v7628 = vunpack.c.l.bf16 %v641
      %v7629 = vunpack.c.l.bf16 %v642
      %v7630 = vunpack.c.h.bf16 %v642
      %v7631 = vunpack.c.l.bf16 %v643
      %v7632 = vunpack.c.h.bf16 %v643
      %v7633 = vunpack.c.l.bf16 %v644
      %v7634 = vunpack.c.h.bf16 %v644
      %v7635 = vunpack.c.l.bf16 %v645
      %v7636 = vunpack.c.l.bf16 %v646
      %v7637 = vunpack.c.h.bf16 %v646
      %v7638 = vunpack.c.l.bf16 %v647
      %v7639 = vunpack.c.h.bf16 %v647
      %v7640 = vunpack.c.l.bf16 %v648
      %v7641 = vunpack.c.h.bf16 %v648
      %v7642 = vunpack.c.l.bf16 %v649
      %v7643 = vunpack.c.l.bf16 %v650
      %v7644 = vunpack.c.h.bf16 %v650
      %v7645 = vunpack.c.l.bf16 %v651
      %v7646 = vunpack.c.h.bf16 %v651
      %v7647 = vunpack.c.l.bf16 %v652
      %v7648 = vunpack.c.h.bf16 %v652
      %v7649 = vunpack.c.l.bf16 %v653
      %v7650 = vunpack.c.l.bf16 %v654
      %v7651 = vunpack.c.h.bf16 %v654
      %v7652 = vunpack.c.l.bf16 %v655
      %v7653 = vunpack.c.h.bf16 %v655
      %v7654 = vunpack.c.l.bf16 %v656
      %v7655 = vunpack.c.h.bf16 %v656
      %v7656 = vunpack.c.l.bf16 %v657
      %v7657 = vunpack.c.l.bf16 %v658
      %v7658 = vunpack.c.h.bf16 %v658
      %v7659 = vunpack.c.l.bf16 %v659
      %v7660 = vunpack.c.h.bf16 %v659
      %v7661 = vunpack.c.l.bf16 %v660
      %v7662 = vunpack.c.h.bf16 %v660
      %v7663 = vunpack.c.l.bf16 %v661
      %v7664 = vunpack.c.l.bf16 %v662
      %v7665 = vunpack.c.h.bf16 %v662
      %v7666 = vunpack.c.l.bf16 %v663
      %v7667 = vunpack.c.h.bf16 %v663
      %v7668 = vunpack.c.l.bf16 %v664
      %v7669 = vunpack.c.h.bf16 %v664
      %v7670 = vunpack.c.l.bf16 %v665
      %v7671 = vunpack.c.l.bf16 %v666
      %v7672 = vunpack.c.h.bf16 %v666
      %v7673 = vunpack.c.l.bf16 %v667
      %v7674 = vunpack.c.h.bf16 %v667
      %v7675 = vunpack.c.l.bf16 %v668
      %v7676 = vunpack.c.h.bf16 %v668
      %v7677 = vunpack.c.l.bf16 %v669
      %v7678 = vunpack.c.l.bf16 %v670
      %v7679 = vunpack.c.h.bf16 %v670
      %v7680 = vunpack.c.l.bf16 %v671
      %v7681 = vunpack.c.h.bf16 %v671
      %v7682 = vunpack.c.l.bf16 %v672
      %v7683 = vunpack.c.h.bf16 %v672
      %v7684 = vunpack.c.l.bf16 %v673
      %v7685 = vunpack.c.l.bf16 %v674
      %v7686 = vunpack.c.h.bf16 %v674
      %v7687 = vunpack.c.l.bf16 %v675
      %v7688 = vunpack.c.h.bf16 %v675
      %v7689 = vunpack.c.l.bf16 %v676
      %v7690 = vunpack.c.h.bf16 %v676
      %v7691 = vunpack.c.l.bf16 %v677
      %v7692 = vunpack.c.l.bf16 %v678
      %v7693 = vunpack.c.h.bf16 %v678
      %v7694 = vunpack.c.l.bf16 %v679
      %v7695 = vunpack.c.h.bf16 %v679
      %v7696 = vunpack.c.l.bf16 %v680
      %v7697 = vunpack.c.h.bf16 %v680
      %v7698 = vunpack.c.l.bf16 %v681
      %v7699 = vunpack.c.l.bf16 %v682
      %v7700 = vunpack.c.h.bf16 %v682
      %v7701 = vunpack.c.l.bf16 %v683
      %v7702 = vunpack.c.h.bf16 %v683
      %v7703 = vunpack.c.l.bf16 %v684
      %v7704 = vunpack.c.h.bf16 %v684
      %v7705 = vunpack.c.l.bf16 %v685
      %v7706 = vunpack.c.l.bf16 %v686
      %v7707 = vunpack.c.h.bf16 %v686
      %v7708 = vunpack.c.l.bf16 %v687
      %v7709 = vunpack.c.h.bf16 %v687
      %v7710 = vunpack.c.l.bf16 %v688
      %v7711 = vunpack.c.h.bf16 %v688
      %v7712 = vunpack.c.l.bf16 %v689
      %v7713 = vunpack.c.l.bf16 %v690
      %v7714 = vunpack.c.h.bf16 %v690
      %v7715 = vunpack.c.l.bf16 %v691
      %v7716 = vunpack.c.h.bf16 %v691
      %v7717 = vunpack.c.l.bf16 %v692
      %v7718 = vunpack.c.h.bf16 %v692
      %v7719 = vunpack.c.l.bf16 %v693
      %v7720 = vunpack.c.l.bf16 %v694
      %v7721 = vunpack.c.h.bf16 %v694
      %v7722 = vunpack.c.l.bf16 %v695
      %v7723 = vunpack.c.h.bf16 %v695
      %v7724 = vunpack.c.l.bf16 %v696
      %v7725 = vunpack.c.h.bf16 %v696
      %v7726 = vunpack.c.l.bf16 %v697
      %v7727 = vunpack.c.l.bf16 %v698
      %v7728 = vunpack.c.h.bf16 %v698
      %v7729 = vunpack.c.l.bf16 %v699
      %v7730 = vunpack.c.h.bf16 %v699
      %v7731 = vunpack.c.l.bf16 %v700
      %v7732 = vunpack.c.h.bf16 %v700
      %v7733 = vunpack.c.l.bf16 %v701
      %v7734 = vsub.f32 %v6898, %v7622
      %v7735 = vsub.f32 %v6900, %v7623
      %v7736 = vsub.f32 %v7124, %v7624
      %v7737 = vsub.f32 %v7126, %v7625
      %v7738 = vsub.f32 %v7350, %v7626
      %v7739 = vsub.f32 %v7352, %v7627
      %v7740 = vsub.f32 %v7560, %v7628
      %v7741 = vsub.f32 %v6902, %v7629
      %v7742 = vsub.f32 %v6904, %v7630
      %v7743 = vsub.f32 %v7128, %v7631
      %v7744 = vsub.f32 %v7130, %v7632
      %v7745 = vsub.f32 %v7354, %v7633
      %v7746 = vsub.f32 %v7356, %v7634
      %v7747 = vsub.f32 %v7563, %v7635
      %v7748 = vsub.f32 %v6908, %v7636
      %v7749 = vsub.f32 %v6910, %v7637
      %v7750 = vsub.f32 %v7134, %v7638
      %v7751 = vsub.f32 %v7136, %v7639
      %v7752 = vsub.f32 %v7360, %v7640
      %v7753 = vsub.f32 %v7362, %v7641
      %v7754 = vsub.f32 %v7568, %v7642
      %v7755 = vsub.f32 %v6912, %v7643
      %v7756 = vsub.f32 %v6914, %v7644
      %v7757 = vsub.f32 %v7138, %v7645
      %v7758 = vsub.f32 %v7140, %v7646
      %v7759 = vsub.f32 %v7364, %v7647
      %v7760 = vsub.f32 %v7366, %v7648
      %v7761 = vsub.f32 %v7571, %v7649
      %v7762 = vsub.f32 %v6918, %v7650
      %v7763 = vsub.f32 %v6920, %v7651
      %v7764 = vsub.f32 %v7144, %v7652
      %v7765 = vsub.f32 %v7146, %v7653
      %v7766 = vsub.f32 %v7370, %v7654
      %v7767 = vsub.f32 %v7372, %v7655
      %v7768 = vsub.f32 %v7576, %v7656
      %v7769 = vsub.f32 %v6922, %v7657
      %v7770 = vsub.f32 %v6924, %v7658
      %v7771 = vsub.f32 %v7148, %v7659
      %v7772 = vsub.f32 %v7150, %v7660
      %v7773 = vsub.f32 %v7374, %v7661
      %v7774 = vsub.f32 %v7376, %v7662
      %v7775 = vsub.f32 %v7579, %v7663
      %v7776 = vsub.f32 %v6928, %v7664
      %v7777 = vsub.f32 %v6930, %v7665
      %v7778 = vsub.f32 %v7154, %v7666
      %v7779 = vsub.f32 %v7156, %v7667
      %v7780 = vsub.f32 %v7380, %v7668
      %v7781 = vsub.f32 %v7382, %v7669
      %v7782 = vsub.f32 %v7584, %v7670
      %v7783 = vsub.f32 %v6932, %v7671
      %v7784 = vsub.f32 %v6934, %v7672
      %v7785 = vsub.f32 %v7158, %v7673
      %v7786 = vsub.f32 %v7160, %v7674
      %v7787 = vsub.f32 %v7384, %v7675
      %v7788 = vsub.f32 %v7386, %v7676
      %v7789 = vsub.f32 %v7587, %v7677
      %v7790 = vsub.f32 %v6938, %v7678
      %v7791 = vsub.f32 %v6940, %v7679
      %v7792 = vsub.f32 %v7164, %v7680
      %v7793 = vsub.f32 %v7166, %v7681
      %v7794 = vsub.f32 %v7390, %v7682
      %v7795 = vsub.f32 %v7392, %v7683
      %v7796 = vsub.f32 %v7592, %v7684
      %v7797 = vsub.f32 %v6942, %v7685
      %v7798 = vsub.f32 %v6944, %v7686
      %v7799 = vsub.f32 %v7168, %v7687
      %v7800 = vsub.f32 %v7170, %v7688
      %v7801 = vsub.f32 %v7394, %v7689
      %v7802 = vsub.f32 %v7396, %v7690
      %v7803 = vsub.f32 %v7595, %v7691
      %v7804 = vsub.f32 %v6948, %v7692
      %v7805 = vsub.f32 %v6950, %v7693
      %v7806 = vsub.f32 %v7174, %v7694
      %v7807 = vsub.f32 %v7176, %v7695
      %v7808 = vsub.f32 %v7400, %v7696
      %v7809 = vsub.f32 %v7402, %v7697
      %v7810 = vsub.f32 %v7600, %v7698
      %v7811 = vsub.f32 %v6952, %v7699
      %v7812 = vsub.f32 %v6954, %v7700
      %v7813 = vsub.f32 %v7178, %v7701
      %v7814 = vsub.f32 %v7180, %v7702
      %v7815 = vsub.f32 %v7404, %v7703
      %v7816 = vsub.f32 %v7406, %v7704
      %v7817 = vsub.f32 %v7603, %v7705
      %v7818 = vsub.f32 %v6958, %v7706
      %v7819 = vsub.f32 %v6960, %v7707
      %v7820 = vsub.f32 %v7184, %v7708
      %v7821 = vsub.f32 %v7186, %v7709
      %v7822 = vsub.f32 %v7410, %v7710
      %v7823 = vsub.f32 %v7412, %v7711
      %v7824 = vsub.f32 %v7608, %v7712
      %v7825 = vsub.f32 %v6962, %v7713
      %v7826 = vsub.f32 %v6964, %v7714
      %v7827 = vsub.f32 %v7188, %v7715
      %v7828 = vsub.f32 %v7190, %v7716
      %v7829 = vsub.f32 %v7414, %v7717
      %v7830 = vsub.f32 %v7416, %v7718
      %v7831 = vsub.f32 %v7611, %v7719
      %v7832 = vsub.f32 %v6968, %v7720
      %v7833 = vsub.f32 %v6970, %v7721
      %v7834 = vsub.f32 %v7194, %v7722
      %v7835 = vsub.f32 %v7196, %v7723
      %v7836 = vsub.f32 %v7420, %v7724
      %v7837 = vsub.f32 %v7422, %v7725
      %v7838 = vsub.f32 %v7616, %v7726
      %v7839 = vsub.f32 %v6972, %v7727
      %v7840 = vsub.f32 %v6974, %v7728
      %v7841 = vsub.f32 %v7198, %v7729
      %v7842 = vsub.f32 %v7200, %v7730
      %v7843 = vsub.f32 %v7424, %v7731
      %v7844 = vsub.f32 %v7426, %v7732
      %v7845 = vsub.f32 %v7619, %v7733
      %v7846 = vmul.f32 %v7734, %v771
      %v7847 = vmul.f32 %v7735, %v771
      %v7848 = vmul.f32 %v7736, %v771
      %v7849 = vmul.f32 %v7737, %v771
      %v7850 = vmul.f32 %v7738, %v771
      %v7851 = vmul.f32 %v7739, %v771
      %v7852 = vmul.f32 %v7740, %v771
      %v7853 = vmul.f32 %v7741, %v772
      %v7854 = vmul.f32 %v7742, %v772
      %v7855 = vmul.f32 %v7743, %v772
      %v7856 = vmul.f32 %v7744, %v772
      %v7857 = vmul.f32 %v7745, %v772
      %v7858 = vmul.f32 %v7746, %v772
      %v7859 = vmul.f32 %v7747, %v772
      %v7860 = vmul.f32 %v7748, %v773
      %v7861 = vmul.f32 %v7749, %v773
      %v7862 = vmul.f32 %v7750, %v773
      %v7863 = vmul.f32 %v7751, %v773
      %v7864 = vmul.f32 %v7752, %v773
      %v7865 = vmul.f32 %v7753, %v773
      %v7866 = vmul.f32 %v7754, %v773
      %v7867 = vmul.f32 %v7755, %v774
      %v7868 = vmul.f32 %v7756, %v774
      %v7869 = vmul.f32 %v7757, %v774
      %v7870 = vmul.f32 %v7758, %v774
      %v7871 = vmul.f32 %v7759, %v774
      %v7872 = vmul.f32 %v7760, %v774
      %v7873 = vmul.f32 %v7761, %v774
      %v7874 = vmul.f32 %v7762, %v775
      %v7875 = vmul.f32 %v7763, %v775
      %v7876 = vmul.f32 %v7764, %v775
      %v7877 = vmul.f32 %v7765, %v775
      %v7878 = vmul.f32 %v7766, %v775
      %v7879 = vmul.f32 %v7767, %v775
      %v7880 = vmul.f32 %v7768, %v775
      %v7881 = vmul.f32 %v7769, %v776
      %v7882 = vmul.f32 %v7770, %v776
      %v7883 = vmul.f32 %v7771, %v776
      %v7884 = vmul.f32 %v7772, %v776
      %v7885 = vmul.f32 %v7773, %v776
      %v7886 = vmul.f32 %v7774, %v776
      %v7887 = vmul.f32 %v7775, %v776
      %v7888 = vmul.f32 %v7776, %v777
      %v7889 = vmul.f32 %v7777, %v777
      %v7890 = vmul.f32 %v7778, %v777
      %v7891 = vmul.f32 %v7779, %v777
      %v7892 = vmul.f32 %v7780, %v777
      %v7893 = vmul.f32 %v7781, %v777
      %v7894 = vmul.f32 %v7782, %v777
      %v7895 = vmul.f32 %v7783, %v778
      %v7896 = vmul.f32 %v7784, %v778
      %v7897 = vmul.f32 %v7785, %v778
      %v7898 = vmul.f32 %v7786, %v778
      %v7899 = vmul.f32 %v7787, %v778
      %v7900 = vmul.f32 %v7788, %v778
      %v7901 = vmul.f32 %v7789, %v778
      %v7902 = vmul.f32 %v7790, %v779
      %v7903 = vmul.f32 %v7791, %v779
      %v7904 = vmul.f32 %v7792, %v779
      %v7905 = vmul.f32 %v7793, %v779
      %v7906 = vmul.f32 %v7794, %v779
      %v7907 = vmul.f32 %v7795, %v779
      %v7908 = vmul.f32 %v7796, %v779
      %v7909 = vmul.f32 %v7797, %v780
      %v7910 = vmul.f32 %v7798, %v780
      %v7911 = vmul.f32 %v7799, %v780
      %v7912 = vmul.f32 %v7800, %v780
      %v7913 = vmul.f32 %v7801, %v780
      %v7914 = vmul.f32 %v7802, %v780
      %v7915 = vmul.f32 %v7803, %v780
      %v7916 = vmul.f32 %v7804, %v781
      %v7917 = vmul.f32 %v7805, %v781
      %v7918 = vmul.f32 %v7806, %v781
      %v7919 = vmul.f32 %v7807, %v781
      %v7920 = vmul.f32 %v7808, %v781
      %v7921 = vmul.f32 %v7809, %v781
      %v7922 = vmul.f32 %v7810, %v781
      %v7923 = vmul.f32 %v7811, %v782
      %v7924 = vmul.f32 %v7812, %v782
      %v7925 = vmul.f32 %v7813, %v782
      %v7926 = vmul.f32 %v7814, %v782
      %v7927 = vmul.f32 %v7815, %v782
      %v7928 = vmul.f32 %v7816, %v782
      %v7929 = vmul.f32 %v7817, %v782
      %v7930 = vmul.f32 %v7818, %v783
      %v7931 = vmul.f32 %v7819, %v783
      %v7932 = vmul.f32 %v7820, %v783
      %v7933 = vmul.f32 %v7821, %v783
      %v7934 = vmul.f32 %v7822, %v783
      %v7935 = vmul.f32 %v7823, %v783
      %v7936 = vmul.f32 %v7824, %v783
      %v7937 = vmul.f32 %v7825, %v784
      %v7938 = vmul.f32 %v7826, %v784
      %v7939 = vmul.f32 %v7827, %v784
      %v7940 = vmul.f32 %v7828, %v784
      %v7941 = vmul.f32 %v7829, %v784
      %v7942 = vmul.f32 %v7830, %v784
      %v7943 = vmul.f32 %v7831, %v784
      %v7944 = vmul.f32 %v7832, %v785
      %v7945 = vmul.f32 %v7833, %v785
      %v7946 = vmul.f32 %v7834, %v785
      %v7947 = vmul.f32 %v7835, %v785
      %v7948 = vmul.f32 %v7836, %v785
      %v7949 = vmul.f32 %v7837, %v785
      %v7950 = vmul.f32 %v7838, %v785
      %v7951 = vmul.f32 %v7839, %v786
      %v7952 = vmul.f32 %v7840, %v786
      %v7953 = vmul.f32 %v7841, %v786
      %v7954 = vmul.f32 %v7842, %v786
      %v7955 = vmul.f32 %v7843, %v786
      %v7956 = vmul.f32 %v7844, %v786
      %v7957 = vmul.f32 %v7845, %v786
      %v7958 = vmul.f32 %v7846, %v7846
      %v7959 = vmul.f32 %v7847, %v7847
      %v7960 = vmul.f32 %v7848, %v7848
      %v7961 = vmul.f32 %v7849, %v7849
      %v7962 = vmul.f32 %v7850, %v7850
      %v7963 = vmul.f32 %v7851, %v7851
      %v7964 = vmul.f32 %v7852, %v7852
      %v7965 = vmul.f32 %v7853, %v7853
      %v7966 = vmul.f32 %v7854, %v7854
      %v7967 = vmul.f32 %v7855, %v7855
      %v7968 = vmul.f32 %v7856, %v7856
      %v7969 = vmul.f32 %v7857, %v7857
      %v7970 = vmul.f32 %v7858, %v7858
      %v7971 = vmul.f32 %v7859, %v7859
      %v7972 = vmul.f32 %v7860, %v7860
      %v7973 = vmul.f32 %v7861, %v7861
      %v7974 = vmul.f32 %v7862, %v7862
      %v7975 = vmul.f32 %v7863, %v7863
      %v7976 = vmul.f32 %v7864, %v7864
      %v7977 = vmul.f32 %v7865, %v7865
      %v7978 = vmul.f32 %v7866, %v7866
      %v7979 = vmul.f32 %v7867, %v7867
      %v7980 = vmul.f32 %v7868, %v7868
      %v7981 = vmul.f32 %v7869, %v7869
      %v7982 = vmul.f32 %v7870, %v7870
      %v7983 = vmul.f32 %v7871, %v7871
      %v7984 = vmul.f32 %v7872, %v7872
      %v7985 = vmul.f32 %v7873, %v7873
      %v7986 = vmul.f32 %v7874, %v7874
      %v7987 = vmul.f32 %v7875, %v7875
      %v7988 = vmul.f32 %v7876, %v7876
      %v7989 = vmul.f32 %v7877, %v7877
      %v7990 = vmul.f32 %v7878, %v7878
      %v7991 = vmul.f32 %v7879, %v7879
      %v7992 = vmul.f32 %v7880, %v7880
      %v7993 = vmul.f32 %v7881, %v7881
      %v7994 = vmul.f32 %v7882, %v7882
      %v7995 = vmul.f32 %v7883, %v7883
      %v7996 = vmul.f32 %v7884, %v7884
      %v7997 = vmul.f32 %v7885, %v7885
      %v7998 = vmul.f32 %v7886, %v7886
      %v7999 = vmul.f32 %v7887, %v7887
      %v8000 = vmul.f32 %v7888, %v7888
      %v8001 = vmul.f32 %v7889, %v7889
      %v8002 = vmul.f32 %v7890, %v7890
      %v8003 = vmul.f32 %v7891, %v7891
      %v8004 = vmul.f32 %v7892, %v7892
      %v8005 = vmul.f32 %v7893, %v7893
      %v8006 = vmul.f32 %v7894, %v7894
      %v8007 = vmul.f32 %v7895, %v7895
      %v8008 = vmul.f32 %v7896, %v7896
      %v8009 = vmul.f32 %v7897, %v7897
      %v8010 = vmul.f32 %v7898, %v7898
      %v8011 = vmul.f32 %v7899, %v7899
      %v8012 = vmul.f32 %v7900, %v7900
      %v8013 = vmul.f32 %v7901, %v7901
      %v8014 = vmul.f32 %v7902, %v7902
      %v8015 = vmul.f32 %v7903, %v7903
      %v8016 = vmul.f32 %v7904, %v7904
      %v8017 = vmul.f32 %v7905, %v7905
      %v8018 = vmul.f32 %v7906, %v7906
      %v8019 = vmul.f32 %v7907, %v7907
      %v8020 = vmul.f32 %v7908, %v7908
      %v8021 = vmul.f32 %v7909, %v7909
      %v8022 = vmul.f32 %v7910, %v7910
      %v8023 = vmul.f32 %v7911, %v7911
      %v8024 = vmul.f32 %v7912, %v7912
      %v8025 = vmul.f32 %v7913, %v7913
      %v8026 = vmul.f32 %v7914, %v7914
      %v8027 = vmul.f32 %v7915, %v7915
      %v8028 = vmul.f32 %v7916, %v7916
      %v8029 = vmul.f32 %v7917, %v7917
      %v8030 = vmul.f32 %v7918, %v7918
      %v8031 = vmul.f32 %v7919, %v7919
      %v8032 = vmul.f32 %v7920, %v7920
      %v8033 = vmul.f32 %v7921, %v7921
      %v8034 = vmul.f32 %v7922, %v7922
      %v8035 = vmul.f32 %v7923, %v7923
      %v8036 = vmul.f32 %v7924, %v7924
      %v8037 = vmul.f32 %v7925, %v7925
      %v8038 = vmul.f32 %v7926, %v7926
      %v8039 = vmul.f32 %v7927, %v7927
      %v8040 = vmul.f32 %v7928, %v7928
      %v8041 = vmul.f32 %v7929, %v7929
      %v8042 = vmul.f32 %v7930, %v7930
      %v8043 = vmul.f32 %v7931, %v7931
      %v8044 = vmul.f32 %v7932, %v7932
      %v8045 = vmul.f32 %v7933, %v7933
      %v8046 = vmul.f32 %v7934, %v7934
      %v8047 = vmul.f32 %v7935, %v7935
      %v8048 = vmul.f32 %v7936, %v7936
      %v8049 = vmul.f32 %v7937, %v7937
      %v8050 = vmul.f32 %v7938, %v7938
      %v8051 = vmul.f32 %v7939, %v7939
      %v8052 = vmul.f32 %v7940, %v7940
      %v8053 = vmul.f32 %v7941, %v7941
      %v8054 = vmul.f32 %v7942, %v7942
      %v8055 = vmul.f32 %v7943, %v7943
      %v8056 = vmul.f32 %v7944, %v7944
      %v8057 = vmul.f32 %v7945, %v7945
      %v8058 = vmul.f32 %v7946, %v7946
      %v8059 = vmul.f32 %v7947, %v7947
      %v8060 = vmul.f32 %v7948, %v7948
      %v8061 = vmul.f32 %v7949, %v7949
      %v8062 = vmul.f32 %v7950, %v7950
      %v8063 = vmul.f32 %v7951, %v7951
      %v8064 = vmul.f32 %v7952, %v7952
      %v8065 = vmul.f32 %v7953, %v7953
      %v8066 = vmul.f32 %v7954, %v7954
      %v8067 = vmul.f32 %v7955, %v7955
      %v8068 = vmul.f32 %v7956, %v7956
      %v8069 = vmul.f32 %v7957, %v7957
      %v8070 = vadd.f32 %v7958, %v7959
      %v8071 = vadd.f32 %v8070, %v7960
      %v8072 = vadd.f32 %v8071, %v7961
      %v8073 = vadd.f32 %v8072, %v7962
      %v8074 = vadd.f32 %v8073, %v7963
      %v8075 = vadd.f32 %v8074, %v7964
      %v8076 = vadd.f32 %v8075, %v7965
      %v8077 = vadd.f32 %v8076, %v7966
      %v8078 = vadd.f32 %v8077, %v7967
      %v8079 = vadd.f32 %v8078, %v7968
      %v8080 = vadd.f32 %v8079, %v7969
      %v8081 = vadd.f32 %v8080, %v7970
      %v8082 = vadd.f32 %v8081, %v7971
      %v8083 = vadd.f32 %v8082, %v7972
      %v8084 = vadd.f32 %v8083, %v7973
      %v8085 = vadd.f32 %v8084, %v7974
      %v8086 = vadd.f32 %v8085, %v7975
      %v8087 = vadd.f32 %v8086, %v7976
      %v8088 = vadd.f32 %v8087, %v7977
      %v8089 = vadd.f32 %v8088, %v7978
      %v8090 = vadd.f32 %v8089, %v7979
      %v8091 = vadd.f32 %v8090, %v7980
      %v8092 = vadd.f32 %v8091, %v7981
      %v8093 = vadd.f32 %v8092, %v7982
      %v8094 = vadd.f32 %v8093, %v7983
      %v8095 = vadd.f32 %v8094, %v7984
      %v8096 = vadd.f32 %v8095, %v7985
      %v8097 = vadd.f32 %v8096, %v7986
      %v8098 = vadd.f32 %v8097, %v7987
      %v8099 = vadd.f32 %v8098, %v7988
      %v8100 = vadd.f32 %v8099, %v7989
      %v8101 = vadd.f32 %v8100, %v7990
      %v8102 = vadd.f32 %v8101, %v7991
      %v8103 = vadd.f32 %v8102, %v7992
      %v8104 = vadd.f32 %v8103, %v7993
      %v8105 = vadd.f32 %v8104, %v7994
      %v8106 = vadd.f32 %v8105, %v7995
      %v8107 = vadd.f32 %v8106, %v7996
      %v8108 = vadd.f32 %v8107, %v7997
      %v8109 = vadd.f32 %v8108, %v7998
      %v8110 = vadd.f32 %v8109, %v7999
      %v8111 = vadd.f32 %v8110, %v8000
      %v8112 = vadd.f32 %v8111, %v8001
      %v8113 = vadd.f32 %v8112, %v8002
      %v8114 = vadd.f32 %v8113, %v8003
      %v8115 = vadd.f32 %v8114, %v8004
      %v8116 = vadd.f32 %v8115, %v8005
      %v8117 = vadd.f32 %v8116, %v8006
      %v8118 = vadd.f32 %v8117, %v8007
      %v8119 = vadd.f32 %v8118, %v8008
      %v8120 = vadd.f32 %v8119, %v8009
      %v8121 = vadd.f32 %v8120, %v8010
      %v8122 = vadd.f32 %v8121, %v8011
      %v8123 = vadd.f32 %v8122, %v8012
      %v8124 = vadd.f32 %v8123, %v8013
      %v8125 = vadd.f32 %v8124, %v8014
      %v8126 = vadd.f32 %v8125, %v8015
      %v8127 = vadd.f32 %v8126, %v8016
      %v8128 = vadd.f32 %v8127, %v8017
      %v8129 = vadd.f32 %v8128, %v8018
      %v8130 = vadd.f32 %v8129, %v8019
      %v8131 = vadd.f32 %v8130, %v8020
      %v8132 = vadd.f32 %v8131, %v8021
      %v8133 = vadd.f32 %v8132, %v8022
      %v8134 = vadd.f32 %v8133, %v8023
      %v8135 = vadd.f32 %v8134, %v8024
      %v8136 = vadd.f32 %v8135, %v8025
      %v8137 = vadd.f32 %v8136, %v8026
      %v8138 = vadd.f32 %v8137, %v8027
      %v8139 = vadd.f32 %v8138, %v8028
      %v8140 = vadd.f32 %v8139, %v8029
      %v8141 = vadd.f32 %v8140, %v8030
      %v8142 = vadd.f32 %v8141, %v8031
      %v8143 = vadd.f32 %v8142, %v8032
      %v8144 = vadd.f32 %v8143, %v8033
      %v8145 = vadd.f32 %v8144, %v8034
      %v8146 = vadd.f32 %v8145, %v8035
      %v8147 = vadd.f32 %v8146, %v8036
      %v8148 = vadd.f32 %v8147, %v8037
      %v8149 = vadd.f32 %v8148, %v8038
      %v8150 = vadd.f32 %v8149, %v8039
      %v8151 = vadd.f32 %v8150, %v8040
      %v8152 = vadd.f32 %v8151, %v8041
      %v8153 = vadd.f32 %v8152, %v8042
      %v8154 = vadd.f32 %v8153, %v8043
      %v8155 = vadd.f32 %v8154, %v8044
      %v8156 = vadd.f32 %v8155, %v8045
      %v8157 = vadd.f32 %v8156, %v8046
      %v8158 = vadd.f32 %v8157, %v8047
      %v8159 = vadd.f32 %v8158, %v8048
      %v8160 = vadd.f32 %v8159, %v8049
      %v8161 = vadd.f32 %v8160, %v8050
      %v8162 = vadd.f32 %v8161, %v8051
      %v8163 = vadd.f32 %v8162, %v8052
      %v8164 = vadd.f32 %v8163, %v8053
      %v8165 = vadd.f32 %v8164, %v8054
      %v8166 = vadd.f32 %v8165, %v8055
      %v8167 = vadd.f32 %v8166, %v8056
      %v8168 = vadd.f32 %v8167, %v8057
      %v8169 = vadd.f32 %v8168, %v8058
      %v8170 = vadd.f32 %v8169, %v8059
      %v8171 = vadd.f32 %v8170, %v8060
      %v8172 = vadd.f32 %v8171, %v8061
      %v8173 = vadd.f32 %v8172, %v8062
      %v8174 = vadd.f32 %v8173, %v8063
      %v8175 = vadd.f32 %v8174, %v8064
      %v8176 = vadd.f32 %v8175, %v8065
      %v8177 = vadd.f32 %v8176, %v8066
      %v8178 = vadd.f32 %v8177, %v8067
      %v8179 = vadd.f32 %v8178, %v8068
      %v8180 = vadd.f32 %v8179, %v8069
      %8181 = vadd.xlane.f32.xlu0 %v8180
      %v8182 = vpop.xlane.xlu0 %8181
      %v8183 = vrot.slane %v8182, 4
      %v8184 = vadd.f32 %v8182, %v8183
      %v8185 = vrot.slane %v8184, 2
      %v8186 = vadd.f32 %v8184, %v8185
      %v8187 = vrot.slane %v8186, 1
      %v8188 = vadd.f32 %v8186, %v8187
      %s8189 = vtos %v8188
      %v8190 = vadd.f32 %v4259, 1.0
      %v8191 = vadd.f32 %v4260, 1.0
      %v8192 = vadd.f32 %v4261, 1.0
      %v8193 = vadd.f32 %v4262, 1.0
      %v8194 = vadd.f32 %v4263, 1.0
      %v8195 = vadd.f32 %v4264, 1.0
      %v8196 = vadd.f32 %v4265, 1.0
      %v8197 = vadd.f32 %v4266, 1.0
      %v8198 = vadd.f32 %v4267, 1.0
      %v8199 = vadd.f32 %v4268, 1.0
      %v8200 = vadd.f32 %v4269, 1.0
      %v8201 = vadd.f32 %v4270, 1.0
      %v8202 = vadd.f32 %v4271, 1.0
      %v8203 = vadd.f32 %v4272, 1.0
      %v8204 = vadd.f32 %v4273, 1.0
      %v8205 = vadd.f32 %v4274, 1.0
      %v8206 = vmul.f32 %v4259, %v4259
      %v8207 = vmul.f32 %v4260, %v4260
      %v8208 = vmul.f32 %v4261, %v4261
      %v8209 = vmul.f32 %v4262, %v4262
      %v8210 = vmul.f32 %v4263, %v4263
      %v8211 = vmul.f32 %v4264, %v4264
      %v8212 = vmul.f32 %v4265, %v4265
      %v8213 = vmul.f32 %v4266, %v4266
      %v8214 = vmul.f32 %v4267, %v4267
      %v8215 = vmul.f32 %v4268, %v4268
      %v8216 = vmul.f32 %v4269, %v4269
      %v8217 = vmul.f32 %v4270, %v4270
      %v8218 = vmul.f32 %v4271, %v4271
      %v8219 = vmul.f32 %v4272, %v4272
      %v8220 = vmul.f32 %v4273, %v4273
      %v8221 = vmul.f32 %v4274, %v4274
      %8238 = vrot.lane.b32.xlu0 %v8206, 4
      %v8239 = vpop.permute.xlu0 %8238
      %8240 = vrot.lane.b32.xlu0 %v8207, 4
      %v8241 = vpop.permute.xlu0 %8240
      %8242 = vrot.lane.b32.xlu0 %v8208, 4
      %v8243 = vpop.permute.xlu0 %8242
      %8244 = vrot.lane.b32.xlu0 %v8209, 4
      %v8245 = vpop.permute.xlu0 %8244
      %8246 = vrot.lane.b32.xlu0 %v8210, 4
      %v8247 = vpop.permute.xlu0 %8246
      %8248 = vrot.lane.b32.xlu0 %v8211, 4
      %v8249 = vpop.permute.xlu0 %8248
      %8250 = vrot.lane.b32.xlu0 %v8212, 4
      %v8251 = vpop.permute.xlu0 %8250
      %8252 = vrot.lane.b32.xlu0 %v8213, 4
      %v8253 = vpop.permute.xlu0 %8252
      %8254 = vrot.lane.b32.xlu0 %v8214, 4
      %v8255 = vpop.permute.xlu0 %8254
      %8256 = vrot.lane.b32.xlu0 %v8215, 4
      %v8257 = vpop.permute.xlu0 %8256
      %8258 = vrot.lane.b32.xlu0 %v8216, 4
      %v8259 = vpop.permute.xlu0 %8258
      %8260 = vrot.lane.b32.xlu0 %v8217, 4
      %v8261 = vpop.permute.xlu0 %8260
      %8262 = vrot.lane.b32.xlu0 %v8218, 4
      %v8263 = vpop.permute.xlu0 %8262
      %8264 = vrot.lane.b32.xlu0 %v8219, 4
      %v8265 = vpop.permute.xlu0 %8264
      %8266 = vrot.lane.b32.xlu0 %v8220, 4
      %v8267 = vpop.permute.xlu0 %8266
      %8268 = vrot.lane.b32.xlu0 %v8221, 4
      %v8269 = vpop.permute.xlu0 %8268
      %v8286 = vsub.f32 %v8190, %v8239
      %v8287 = vsub.f32 %v8191, %v8241
      %v8288 = vsub.f32 %v8192, %v8243
      %v8289 = vsub.f32 %v8193, %v8245
      %v8290 = vsub.f32 %v8194, %v8247
      %v8291 = vsub.f32 %v8195, %v8249
      %v8292 = vsub.f32 %v8196, %v8251
      %v8293 = vsub.f32 %v8197, %v8253
      %v8294 = vsub.f32 %v8198, %v8255
      %v8295 = vsub.f32 %v8199, %v8257
      %v8296 = vsub.f32 %v8200, %v8259
      %v8297 = vsub.f32 %v8201, %v8261
      %v8298 = vsub.f32 %v8202, %v8263
      %v8299 = vsub.f32 %v8203, %v8265
      %v8300 = vsub.f32 %v8204, %v8267
      %v8301 = vsub.f32 %v8205, %v8269
      %v8302 = vmul.f32 %v4259, 1.442695
      %v8303 = vpow.pop %v8302
      %v8304 = vmul.f32 %v4260, 1.442695
      %v8305 = vpow.pop %v8304
      %v8306 = vmul.f32 %v4261, 1.442695
      %v8307 = vpow.pop %v8306
      %v8308 = vmul.f32 %v4262, 1.442695
      %v8309 = vpow.pop %v8308
      %v8310 = vmul.f32 %v4263, 1.442695
      %v8311 = vpow.pop %v8310
      %v8312 = vmul.f32 %v4264, 1.442695
      %v8313 = vpow.pop %v8312
      %v8314 = vmul.f32 %v4265, 1.442695
      %v8315 = vpow.pop %v8314
      %v8316 = vmul.f32 %v4266, 1.442695
      %v8317 = vpow.pop %v8316
      %v8318 = vmul.f32 %v4267, 1.442695
      %v8319 = vpow.pop %v8318
      %v8320 = vmul.f32 %v4268, 1.442695
      %v8321 = vpow.pop %v8320
      %v8322 = vmul.f32 %v4269, 1.442695
      %v8323 = vpow.pop %v8322
      %v8324 = vmul.f32 %v4270, 1.442695
      %v8325 = vpow.pop %v8324
      %v8326 = vmul.f32 %v4271, 1.442695
      %v8327 = vpow.pop %v8326
      %v8328 = vmul.f32 %v4272, 1.442695
      %v8329 = vpow.pop %v8328
      %v8330 = vmul.f32 %v4273, 1.442695
      %v8331 = vpow.pop %v8330
      %v8332 = vmul.f32 %v4274, 1.442695
      %v8333 = vpow.pop %v8332
      %v8334 = vsub.f32 %v8286, %v8303
      %v8335 = vsub.f32 %v8287, %v8305
      %v8336 = vsub.f32 %v8288, %v8307
      %v8337 = vsub.f32 %v8289, %v8309
      %v8338 = vsub.f32 %v8290, %v8311
      %v8339 = vsub.f32 %v8291, %v8313
      %v8340 = vsub.f32 %v8292, %v8315
      %v8341 = vsub.f32 %v8293, %v8317
      %v8342 = vsub.f32 %v8294, %v8319
      %v8343 = vsub.f32 %v8295, %v8321
      %v8344 = vsub.f32 %v8296, %v8323
      %v8345 = vsub.f32 %v8297, %v8325
      %v8346 = vsub.f32 %v8298, %v8327
      %v8347 = vsub.f32 %v8299, %v8329
      %v8348 = vsub.f32 %v8300, %v8331
      %v8349 = vsub.f32 %v8301, %v8333
      %8366 = vrot.lane.b32.xlu0 %v8334, 124
      %v8367 = vpop.permute.xlu0 %8366
      %8368 = vrot.lane.b32.xlu0 %v8335, 124
      %v8369 = vpop.permute.xlu0 %8368
      %8370 = vrot.lane.b32.xlu0 %v8336, 124
      %v8371 = vpop.permute.xlu0 %8370
      %8372 = vrot.lane.b32.xlu0 %v8337, 124
      %v8373 = vpop.permute.xlu0 %8372
      %8374 = vrot.lane.b32.xlu0 %v8338, 124
      %v8375 = vpop.permute.xlu0 %8374
      %8376 = vrot.lane.b32.xlu0 %v8339, 124
      %v8377 = vpop.permute.xlu0 %8376
      %8378 = vrot.lane.b32.xlu0 %v8340, 124
      %v8379 = vpop.permute.xlu0 %8378
      %8380 = vrot.lane.b32.xlu0 %v8341, 124
      %v8381 = vpop.permute.xlu0 %8380
      %8382 = vrot.lane.b32.xlu0 %v8342, 124
      %v8383 = vpop.permute.xlu0 %8382
      %8384 = vrot.lane.b32.xlu0 %v8343, 124
      %v8385 = vpop.permute.xlu0 %8384
      %8386 = vrot.lane.b32.xlu0 %v8344, 124
      %v8387 = vpop.permute.xlu0 %8386
      %8388 = vrot.lane.b32.xlu0 %v8345, 124
      %v8389 = vpop.permute.xlu0 %8388
      %8390 = vrot.lane.b32.xlu0 %v8346, 124
      %v8391 = vpop.permute.xlu0 %8390
      %8392 = vrot.lane.b32.xlu0 %v8347, 124
      %v8393 = vpop.permute.xlu0 %8392
      %8394 = vrot.lane.b32.xlu0 %v8348, 124
      %v8395 = vpop.permute.xlu0 %8394
      %8396 = vrot.lane.b32.xlu0 %v8349, 124
      %v8397 = vpop.permute.xlu0 %8396
      %v8414 = vsel %vm4451, %v8367, 0.0
      %v8415 = vsel %vm4451, %v8369, 0.0
      %v8416 = vadd.f32 %v8414, %v8415
      %v8417 = vsel %vm4451, %v8371, 0.0
      %v8418 = vadd.f32 %v8416, %v8417
      %v8419 = vsel %vm4451, %v8373, 0.0
      %v8420 = vadd.f32 %v8418, %v8419
      %v8421 = vsel %vm4451, %v8375, 0.0
      %v8422 = vadd.f32 %v8420, %v8421
      %v8423 = vsel %vm4451, %v8377, 0.0
      %v8424 = vadd.f32 %v8422, %v8423
      %v8425 = vsel %vm4451, %v8379, 0.0
      %v8426 = vadd.f32 %v8424, %v8425
      %v8427 = vsel %vm4451, %v8381, 0.0
      %v8428 = vadd.f32 %v8426, %v8427
      %v8429 = vsel %vm4451, %v8383, 0.0
      %v8430 = vadd.f32 %v8428, %v8429
      %v8431 = vsel %vm4451, %v8385, 0.0
      %v8432 = vadd.f32 %v8430, %v8431
      %v8433 = vsel %vm4451, %v8387, 0.0
      %v8434 = vadd.f32 %v8432, %v8433
      %v8435 = vsel %vm4451, %v8389, 0.0
      %v8436 = vadd.f32 %v8434, %v8435
      %v8437 = vsel %vm4451, %v8391, 0.0
      %v8438 = vadd.f32 %v8436, %v8437
      %v8439 = vsel %vm4451, %v8393, 0.0
      %v8440 = vadd.f32 %v8438, %v8439
      %v8441 = vsel %vm4451, %v8395, 0.0
      %v8442 = vadd.f32 %v8440, %v8441
      %v8443 = vsel %vm4451, %v8397, 0.0
      %v8444 = vadd.f32 %v8442, %v8443
      %8445 = vadd.xlane.f32.xlu0 %v8444
      %v8446 = vpop.xlane.xlu0 %8445
      %v8447 = vrot.slane %v8446, 4
      %v8448 = vadd.f32 %v8446, %v8447
      %v8449 = vrot.slane %v8448, 2
      %v8450 = vadd.f32 %v8448, %v8449
      %v8451 = vrot.slane %v8450, 1
      %v8452 = vadd.f32 %v8450, %v8451
      %s8453 = vtos %v8452
      %v8454 = vstv %s8189
      %8455 = vst [vmem:[%s633] sm:$0x1] %v8454
      %v8456 = vstv %s8453
      %8457 = vst [vmem:[%s636] sm:$0x1] %v8456
      %p8458 = scmp.lt.s32.totalorder %s33, 1
      %s8459 = scalar_select %p8458, %s33, 1
      %s8460 = scalar_lea.vmem %s19, %s8459
      %p8461 = scmp.lt.s32.totalorder %s33, 1
      %s8462 = scalar_select %p8461, %s33, 1
      %s8463 = scalar_lea.vmem %s20, %s8462
      // Predicated region
      $region93: #{vae_forward.1} parent=91 // pred_check
        %p8464 = pneg %p439
      $region94: #{vae_forward.1} parent=91 // pred_check_branch
        %8466 = sbr.rel (%p8464) target = $region96
      $region95: #{vae_forward.1} parent=91 // pred_region
        _
      $region96: #{vae_forward.1} parent=91 // pred_fallthru
        _
      // Predicated region
      $region97: #{vae_forward.1} parent=91 // pred_check
        %p8467 = pneg %p465
      $region98: #{vae_forward.1} parent=91 // pred_check_branch
        %8469 = sbr.rel (%p8467) target = $region100
      $region99: #{vae_forward.1} parent=91 // pred_region
        _
      $region100: #{vae_forward.1} parent=91 // pred_fallthru
        _
    $region92: #{vae_forward.1} parent=5 // pred_fallthru
      _
    %p8470 = scmp.le.s32.totalorder 2, %s28
    // Predicated region
    $region101: #{vae_forward.1} parent=5 // pred_check
      %p8471 = pneg %p8470
    $region102: #{vae_forward.1} parent=5 // pred_check_branch
      %8473 = sbr.rel (%p8471) target = $region104
    $region103: #{vae_forward.1} parent=5 // pred_region
      %s8474 = ssub.s32 %s28, 2
      // Predicated region
      $region105: #{vae_forward.1} parent=103 // pred_check
        %p8475 = pneg %p445
      $region106: #{vae_forward.1} parent=103 // pred_check_branch
        %8477 = sbr.rel (%p8475) target = $region108
      $region107: #{vae_forward.1} parent=103 // pred_region
        %p8478 = scmp.lt.s32.totalorder %s34, 1
        %s8479 = scalar_select %p8478, %s34, 1
        %s8480 = scalar_lea.vmem %s19, %s8479
      $region108: #{vae_forward.1} parent=103 // pred_fallthru
        _
      // Predicated region
      $region109: #{vae_forward.1} parent=103 // pred_check
        %p8481 = pneg %p471
      $region110: #{vae_forward.1} parent=103 // pred_check_branch
        %8483 = sbr.rel (%p8481) target = $region112
      $region111: #{vae_forward.1} parent=103 // pred_region
        %p8484 = scmp.lt.s32.totalorder %s34, 1
        %s8485 = scalar_select %p8484, %s34, 1
        %s8486 = scalar_lea.vmem %s20, %s8485
      $region112: #{vae_forward.1} parent=103 // pred_fallthru
        _
    $region104: #{vae_forward.1} parent=5 // pred_fallthru
      _
  $region6: #{vae_forward.1} parent=0 // loop_footer
    %s32 = sadd.s32 1, %s28
  $region7: #{vae_forward.1} parent=0 // loop_footer_branch
    %27 = sbr.rel target = $region3
  $region8: #{vae_forward.1} parent=0 // loop_exit
    _

</llo_original>
